<compile_context>
chip_gen: v6e
topology: v6e:2x2x1
jax: 0.10.0
libtpu: 0.0.40
codegen_flags: <defaults>
</compile_context>

<pallas_src>
import math

import jax
import jax.numpy as jnp
from jax.experimental import pallas as pl
from jax.experimental.pallas import tpu as pltpu

# Hyper-parameters from TransformerIntentModel.__init__
EMBED_DIM = 100
NUM_HEADS = 5
HEAD_DIM = EMBED_DIM // NUM_HEADS  # 20
FF_DIM = 256
FC_DIM = 64
NUM_LAYERS = 2
LN_EPS = 1e-5

# Lane-padded layout constants (all pad lanes are kept exactly zero).
E_PAD = 128                            # embed dim 100 -> 128
HEAD_PAD = 128                         # per-head dim 20 -> 128 (lane-aligned slices)
FC_PAD = 128                           # fc hidden 64 -> 128
C_PAD = 128                            # num_classes -> 128 (lane-dense output)
QKV_PAD = 3 * NUM_HEADS * HEAD_PAD     # 1920

PARAM_ORDER = [
    "wqkv", "bqkv", "wo", "bo",
    "n1w", "n1b", "l1w", "l1b", "l2w", "l2b", "n2w", "n2b",
    "fc1w", "fc1b", "fc2w", "fc2b",
]


def _layer_norm(x, w, b):
    # Pad lanes of x are exactly zero, so sums over all E_PAD lanes equal sums
    # over the true EMBED_DIM features; divide by the TRUE feature count.
    inv_e = 1.0 / EMBED_DIM
    s = jnp.sum(x, axis=-1, keepdims=True)
    sq = jnp.sum(x * x, axis=-1, keepdims=True)
    mu = s * inv_e
    var = sq * inv_e - mu * mu
    # LN gain/bias pad lanes are zero -> output pad lanes stay exactly zero.
    return (x - mu) * jax.lax.rsqrt(var + LN_EPS) * w + b


def transformer_intent_kernel(
    x_ref,                        # [B_TILE, S, E_PAD]   (B_TILE sequences per grid step)
    wqkv_ref, bqkv_ref,           # [L, E_PAD, QKV_PAD], [L, 1, QKV_PAD]
    wo_ref, bo_ref,               # [L, H*HEAD_PAD, E_PAD], [L, 1, E_PAD]
    n1w_ref, n1b_ref,             # [L, 1, E_PAD]
    l1w_ref, l1b_ref,             # [L, E_PAD, FF], [L, 1, FF]
    l2w_ref, l2b_ref,             # [L, FF, E_PAD], [L, 1, E_PAD]
    n2w_ref, n2b_ref,             # [L, 1, E_PAD]
    fc1w_ref, fc1b_ref,           # [E_PAD, FC_PAD], [1, FC_PAD]
    fc2w_ref, fc2b_ref,           # [FC_PAD, C_PAD], [1, C_PAD]
    out_ref,                      # [B_TILE, C_PAD]
):
    bt, s, ep = x_ref.shape
    rows = bt * s
    xb = x_ref[...].reshape(rows, ep)                      # fold batch into rows

    for l in range(NUM_LAYERS):                            # L=2, static unroll
        # ---- multi-head self-attention (post-norm encoder layer) ----
        # Fused head-padded QKV projection: one [rows, E_PAD] @ [E_PAD, QKV_PAD].
        qkv = jnp.dot(xb, wqkv_ref[l],
                      preferred_element_type=jnp.float32) + bqkv_ref[l]    # [rows, QKV_PAD]

        # Per-head lane-aligned slices -> batched score matmuls.
        scores_list = []
        v_list = []
        for h in range(NUM_HEADS):
            qo = h * HEAD_PAD
            ko = (NUM_HEADS + h) * HEAD_PAD
            vo = (2 * NUM_HEADS + h) * HEAD_PAD
            q = qkv[:, qo:qo + HEAD_PAD].reshape(bt, s, HEAD_PAD)
            k = qkv[:, ko:ko + HEAD_PAD].reshape(bt, s, HEAD_PAD)
            v_list.append(qkv[:, vo:vo + HEAD_PAD].reshape(bt, s, HEAD_PAD))
            # 1/sqrt(head_dim) is folded into the Q weights/bias at prep time;
            # pad lanes of q/k are zero so the 128-wide dot equals the 20-wide dot.
            scores_list.append(
                jnp.einsum('bqd,bkd->bqk', q, k,
                           preferred_element_type=jnp.float32))            # [bt, s, s]

        # One softmax launch covering all heads (and all folded batch rows).
        scores = jnp.concatenate(scores_list, axis=0)                      # [H*bt, s, s]
        m = jnp.max(scores, axis=-1, keepdims=True)
        p = jnp.exp(scores - m)
        denom = jnp.sum(p, axis=-1, keepdims=True)
        p = p * pl.reciprocal(denom, approx=True)

        # Per-head context matmuls, reassembled into a head-padded ctx slab.
        ctx_list = []
        for h in range(NUM_HEADS):
            ph = p[h * bt:(h + 1) * bt]                                    # [bt, s, s]
            ctx_list.append(
                jnp.einsum('bqk,bkd->bqd', ph, v_list[h],
                           preferred_element_type=jnp.float32))            # [bt, s, HEAD_PAD]
        ctx = jnp.concatenate(ctx_list, axis=-1).reshape(rows, NUM_HEADS * HEAD_PAD)
        attn = jnp.dot(ctx, wo_ref[l],
                       preferred_element_type=jnp.float32) + bo_ref[l]     # [rows, E_PAD]
        xb = _layer_norm(xb + attn, n1w_ref[l], n1b_ref[l])

        # ---- feed-forward block ----
        h1 = jnp.maximum(
            jnp.dot(xb, l1w_ref[l], preferred_element_type=jnp.float32) + l1b_ref[l],
            0.0)                                                           # [rows, FF]
        ff = jnp.dot(h1, l2w_ref[l],
                     preferred_element_type=jnp.float32) + l2b_ref[l]      # [rows, E_PAD]
        xb = _layer_norm(xb + ff, n2w_ref[l], n2b_ref[l])

    # ---- mean over sequence + classification head (lane-dense padded output) ----
    pooled = jnp.sum(xb.reshape(bt, s, ep), axis=1) * (1.0 / s)            # [bt, E_PAD]
    hfc = jnp.maximum(
        jnp.dot(pooled, fc1w_ref[...], preferred_element_type=jnp.float32)
        + fc1b_ref[...], 0.0)                                              # [bt, FC_PAD]
    out_ref[...] = (jnp.dot(hfc, fc2w_ref[...],
                            preferred_element_type=jnp.float32)
                    + fc2b_ref[...])                                       # [bt, C_PAD]


def positional_encoding(max_len, seq_len):
    # Matches PositionalEncoding buffer construction; zero pad lanes to E_PAD.
    position = jnp.arange(max_len, dtype=jnp.float32)[:, None]             # [max_len, 1]
    div_term = jnp.exp(jnp.arange(0, EMBED_DIM, 2, dtype=jnp.float32)
                       * (-math.log(10000.0) / EMBED_DIM))                 # [E/2]
    angles = position * div_term                                           # [max_len, E/2]
    pe = jnp.stack([jnp.sin(angles), jnp.cos(angles)], axis=-1)            # interleave
    pe = pe.reshape(max_len, 1, EMBED_DIM)                                 # [max_len, 1, E]
    pe = jnp.pad(pe, ((0, 0), (0, 0), (0, E_PAD - EMBED_DIM)))             # [max_len, 1, E_PAD]
    return pe[:seq_len]


def init_params(key, vocab_size, num_classes):
    E, FF, FC, L = EMBED_DIM, FF_DIM, FC_DIM, NUM_LAYERS
    H, HD, HP = NUM_HEADS, HEAD_DIM, HEAD_PAD
    keys = iter(jax.random.split(key, 64))

    def nrm(shape, scale=0.05):
        return (scale * jax.random.normal(next(keys), shape)).astype(jnp.float32)

    # nn.Embedding weight (init_weights() -> uniform(-0.1, 0.1)); zero pad lanes.
    embedding = jax.random.uniform(next(keys), (vocab_size, E),
                                   minval=-0.1, maxval=0.1, dtype=jnp.float32)
    embedding = jnp.pad(embedding, ((0, 0), (0, E_PAD - E)))

    q_scale = 1.0 / math.sqrt(HD)

    wqkv, bqkv, wo, bo = [], [], [], []
    n1w, n1b, n2w, n2b = [], [], [], []
    l1w, l1b, l2w, l2b = [], [], [], []
    for _ in range(L):
        in_proj_w = nrm((3 * E, E))        # torch MultiheadAttention.in_proj_weight
        in_proj_b = nrm((3 * E,))
        out_proj_w = nrm((E, E))
        out_proj_b = nrm((E,))
        lin1_w = nrm((FF, E)); lin1_b = nrm((FF,))
        lin2_w = nrm((E, FF)); lin2_b = nrm((E,))

        # Head-padded fused QKV [E_PAD, 3*H*HP]: Q|K|V blocks, one 128-lane slot
        # per head (first HD columns real, rest zero).  1/sqrt(head_dim) folded
        # into the Q weights and bias.
        wq = jnp.zeros((E_PAD, 3 * H * HP), jnp.float32)
        bq = jnp.zeros((1, 3 * H * HP), jnp.float32)
        for part in range(3):              # 0=Q, 1=K, 2=V (torch in_proj ordering)
            wp = in_proj_w[part * E:(part + 1) * E]        # [E_out, E_in]
            bp = in_proj_b[part * E:(part + 1) * E]        # [E_out]
            if part == 0:
                wp = wp * q_scale
                bp = bp * q_scale
            for h in range(H):
                c0 = (part * H + h) * HP
                wq = wq.at[:E, c0:c0 + HD].set(wp[h * HD:(h + 1) * HD, :].T)
                bq = bq.at[0, c0:c0 + HD].set(bp[h * HD:(h + 1) * HD])
        wqkv.append(wq); bqkv.append(bq)

        # Head-padded output projection [H*HP, E_PAD]: zero pad rows and columns.
        wot = out_proj_w.T                                  # [E_in(concat heads), E_out]
        wop = jnp.zeros((H * HP, E_PAD), jnp.float32)
        for h in range(H):
            wop = wop.at[h * HP:h * HP + HD, :E].set(wot[h * HD:(h + 1) * HD, :])
        wo.append(wop)
        bo.append(jnp.zeros((1, E_PAD), jnp.float32).at[0, :E].set(out_proj_b))

        # LayerNorm gains/biases: pad lanes zero so pad lanes stay zero post-LN.
        n1w.append(jnp.zeros((1, E_PAD), jnp.float32).at[0, :E].set(1.0))
        n1b.append(jnp.zeros((1, E_PAD), jnp.float32))
        n2w.append(jnp.zeros((1, E_PAD), jnp.float32).at[0, :E].set(1.0))
        n2b.append(jnp.zeros((1, E_PAD), jnp.float32))

        l1w.append(jnp.pad(lin1_w.T, ((0, E_PAD - E), (0, 0))))   # [E_PAD, FF]
        l1b.append(lin1_b.reshape(1, FF))
        l2w.append(jnp.pad(lin2_w.T, ((0, 0), (0, E_PAD - E))))   # [FF, E_PAD]
        l2b.append(jnp.pad(lin2_b.reshape(1, E), ((0, 0), (0, E_PAD - E))))

    fc1_w = nrm((FC, E)); fc1_b = nrm((FC,))
    fc2_w = nrm((num_classes, FC)); fc2_b = nrm((num_classes,))

    fc1w = jnp.pad(fc1_w.T, ((0, E_PAD - E), (0, FC_PAD - FC)))             # [E_PAD, FC_PAD]
    fc1b = jnp.pad(fc1_b.reshape(1, FC), ((0, 0), (0, FC_PAD - FC)))
    fc2w = jnp.pad(fc2_w.T, ((0, FC_PAD - FC), (0, C_PAD - num_classes)))   # [FC_PAD, C_PAD]
    fc2b = jnp.pad(fc2_b.reshape(1, num_classes), ((0, 0), (0, C_PAD - num_classes)))

    stk = lambda xs: jnp.stack(xs, axis=0)
    return {
        "embedding": embedding,
        "wqkv": stk(wqkv), "bqkv": stk(bqkv), "wo": stk(wo), "bo": stk(bo),
        "n1w": stk(n1w), "n1b": stk(n1b),
        "l1w": stk(l1w), "l1b": stk(l1b), "l2w": stk(l2w), "l2b": stk(l2b),
        "n2w": stk(n2w), "n2b": stk(n2b),
        "fc1w": fc1w, "fc1b": fc1b,
        "fc2w": fc2w, "fc2b": fc2b,
    }


def transformer_intent_forward(src, params, max_len, num_classes, b_tile=None):
    """src: int32 [seq_len, batch] (PyTorch convention). Returns [batch, num_classes]."""
    seq_len, batch = src.shape

    # Glue: embedding gather, sqrt(E) scaling, positional encoding (dropouts are
    # inference-mode identities).  Pad lanes E..127 stay exactly zero.
    emb = jnp.take(params["embedding"], src, axis=0) * math.sqrt(EMBED_DIM)  # [S, B, E_PAD]
    x = emb + positional_encoding(max_len, seq_len)                          # [S, B, E_PAD]
    x = jnp.transpose(x, (1, 0, 2)).astype(jnp.float32)                      # [B, S, E_PAD]

    # Batch folding: B_TILE sequences per grid step.  Keep >= 2 grid steps when
    # the batch allows so both v7x TensorCores get work.
    if b_tile is None:
        b_tile = batch // 2 if (batch >= 2 and batch % 2 == 0) else 1
    if batch % b_tile != 0:
        b_tile = 1
    num_steps = batch // b_tile

    flat_params = [params[k] for k in PARAM_ORDER]

    # Activations: B_TILE full sequences per grid step (lane-dense [*,128] slabs).
    in_specs = [pl.BlockSpec((b_tile, seq_len, E_PAD), lambda i: (i, 0, 0))]
    # Weights: whole (padded) array resident in VMEM, same block every grid step.
    for p in flat_params:
        in_specs.append(pl.BlockSpec(p.shape, (lambda i, _n=p.ndim: (0,) * _n)))
    # Lane-dense padded output slab; wrapper slices off the class padding.
    out_spec = pl.BlockSpec((None, b_tile, C_PAD), lambda i: (i, 0, 0))

    # Advisory cost estimate (padded shapes) for XLA scheduling around the call.
    rows = b_tile * seq_len
    flops_step = NUM_LAYERS * (
        2 * rows * E_PAD * QKV_PAD                          # fused QKV projection
        + NUM_HEADS * b_tile * 4 * seq_len * seq_len * HEAD_PAD   # scores + context
        + 2 * rows * NUM_HEADS * HEAD_PAD * E_PAD           # output projection
        + 4 * rows * E_PAD * FF_DIM)                        # feed-forward
    flops_step += 2 * b_tile * E_PAD * FC_PAD + 2 * b_tile * FC_PAD * C_PAD
    flops = num_steps * flops_step
    transcendentals = num_steps * NUM_LAYERS * NUM_HEADS * b_tile * seq_len * seq_len
    param_bytes = sum(int(p.size) * 4 for p in flat_params)
    bytes_accessed = param_bytes + int(x.size) * 4 + batch * C_PAD * 4

    out = pl.pallas_call(
        transformer_intent_kernel,
        grid=(num_steps,),
        in_specs=in_specs,
        out_specs=out_spec,
        out_shape=jax.ShapeDtypeStruct((num_steps, b_tile, C_PAD), jnp.float32),
        compiler_params=pltpu.CompilerParams(dimension_semantics=("parallel",)),
        cost_estimate=pl.CostEstimate(flops=int(flops),
                                      transcendentals=int(transcendentals),
                                      bytes_accessed=int(bytes_accessed)),
    )(x, *flat_params)
    return out.reshape(batch, C_PAD)[:, :num_classes]


if __name__ == "__main__":
    key = jax.random.PRNGKey(0)
    k_in, k_par = jax.random.split(key)

    vocab_size = 50
    max_len = 64
    num_classes = 7
    seq_len = 8
    batch = 2

    params = init_params(k_par, vocab_size, num_classes)
    src = jax.random.randint(k_in, (seq_len, batch), 0, vocab_size, dtype=jnp.int32)

    logits = transformer_intent_forward(src, params, max_len, num_classes)
    logits = jax.block_until_ready(logits)
    assert logits.shape == (batch, num_classes)
    assert bool(jnp.all(jnp.isfinite(logits)))
    print("KERNEL_OK")
</pallas_src>

<mosaic_0001>
module attributes {stable_mosaic.version = 11 : i64} {
  func.func @transformer_intent_kernel(%arg0: i32, %arg1: memref<1x8x128xf32, #tpu.memory_space<vmem>>, %arg2: memref<2x128x1920xf32, #tpu.memory_space<vmem>>, %arg3: memref<2x1x1920xf32, #tpu.memory_space<vmem>>, %arg4: memref<2x640x128xf32, #tpu.memory_space<vmem>>, %arg5: memref<2x1x128xf32, #tpu.memory_space<vmem>>, %arg6: memref<2x1x128xf32, #tpu.memory_space<vmem>>, %arg7: memref<2x1x128xf32, #tpu.memory_space<vmem>>, %arg8: memref<2x128x256xf32, #tpu.memory_space<vmem>>, %arg9: memref<2x1x256xf32, #tpu.memory_space<vmem>>, %arg10: memref<2x256x128xf32, #tpu.memory_space<vmem>>, %arg11: memref<2x1x128xf32, #tpu.memory_space<vmem>>, %arg12: memref<2x1x128xf32, #tpu.memory_space<vmem>>, %arg13: memref<2x1x128xf32, #tpu.memory_space<vmem>>, %arg14: memref<128x128xf32, #tpu.memory_space<vmem>>, %arg15: memref<1x128xf32, #tpu.memory_space<vmem>>, %arg16: memref<128x128xf32, #tpu.memory_space<vmem>>, %arg17: memref<1x128xf32, #tpu.memory_space<vmem>>, %arg18: memref<1x1x128xf32, #tpu.memory_space<vmem>>) attributes {dimension_semantics = [#tpu.dimension_semantics<parallel>], iteration_bounds = array<i64: 2>, scalar_prefetch = 0 : i64, scratch_operands = 0 : i64, tpu.core_type = #tpu.core_type<tc>, window_params = [{transform_indices = @transform_0, window_bounds = array<i64: 1, 8, 128>}, {pipeline_mode = #tpu.pipeline_mode<synchronous>, transform_indices = @transform_1, window_bounds = array<i64: 2, 128, 1920>}, {pipeline_mode = #tpu.pipeline_mode<synchronous>, transform_indices = @transform_2, window_bounds = array<i64: 2, 1, 1920>}, {pipeline_mode = #tpu.pipeline_mode<synchronous>, transform_indices = @transform_3, window_bounds = array<i64: 2, 640, 128>}, {pipeline_mode = #tpu.pipeline_mode<synchronous>, transform_indices = @transform_4, window_bounds = array<i64: 2, 1, 128>}, {pipeline_mode = #tpu.pipeline_mode<synchronous>, transform_indices = @transform_5, window_bounds = array<i64: 2, 1, 128>}, {pipeline_mode = #tpu.pipeline_mode<synchronous>, transform_indices = @transform_6, window_bounds = array<i64: 2, 1, 128>}, {pipeline_mode = #tpu.pipeline_mode<synchronous>, transform_indices = @transform_7, window_bounds = array<i64: 2, 128, 256>}, {pipeline_mode = #tpu.pipeline_mode<synchronous>, transform_indices = @transform_8, window_bounds = array<i64: 2, 1, 256>}, {pipeline_mode = #tpu.pipeline_mode<synchronous>, transform_indices = @transform_9, window_bounds = array<i64: 2, 256, 128>}, {pipeline_mode = #tpu.pipeline_mode<synchronous>, transform_indices = @transform_10, window_bounds = array<i64: 2, 1, 128>}, {pipeline_mode = #tpu.pipeline_mode<synchronous>, transform_indices = @transform_11, window_bounds = array<i64: 2, 1, 128>}, {pipeline_mode = #tpu.pipeline_mode<synchronous>, transform_indices = @transform_12, window_bounds = array<i64: 2, 1, 128>}, {pipeline_mode = #tpu.pipeline_mode<synchronous>, transform_indices = @transform_13, window_bounds = array<i64: 128, 128>}, {pipeline_mode = #tpu.pipeline_mode<synchronous>, transform_indices = @transform_14, window_bounds = array<i64: 1, 128>}, {pipeline_mode = #tpu.pipeline_mode<synchronous>, transform_indices = @transform_15, window_bounds = array<i64: 128, 128>}, {pipeline_mode = #tpu.pipeline_mode<synchronous>, transform_indices = @transform_16, window_bounds = array<i64: 1, 128>}, {transform_indices = @transform_17, window_bounds = array<i64: 1, 1, 128>}]} {
    %c0 = arith.constant 0 : index
    %c0_0 = arith.constant 0 : index
    %c0_1 = arith.constant 0 : index
    %0 = vector.load %arg1[%c0, %c0_0, %c0_1] : memref<1x8x128xf32, #tpu.memory_space<vmem>>, vector<1x8x128xf32>
    %1 = vector.shape_cast %0 : vector<1x8x128xf32> to vector<8x128xf32>
    %c0_2 = arith.constant 0 : index
    %c0_3 = arith.constant 0 : index
    %c0_4 = arith.constant 0 : index
    %2 = vector.load %arg2[%c0_2, %c0_3, %c0_4] : memref<2x128x1920xf32, #tpu.memory_space<vmem>>, vector<1x128x1920xf32>
    %3 = vector.shape_cast %2 : vector<1x128x1920xf32> to vector<128x1920xf32>
    %cst = arith.constant dense<0.000000e+00> : vector<8x1920xf32>
    %4 = tpu.matmul %1, %3, %cst {dimension_numbers = #tpu.dot_dimension_numbers<[1], [0], [0], [1], [0, 0, 1, 1], [], []>} : vector<8x128xf32>, vector<128x1920xf32>, vector<8x1920xf32> -> vector<8x1920xf32>
    %c0_5 = arith.constant 0 : index
    %c0_6 = arith.constant 0 : index
    %c0_7 = arith.constant 0 : index
    %5 = vector.load %arg3[%c0_5, %c0_6, %c0_7] : memref<2x1x1920xf32, #tpu.memory_space<vmem>>, vector<1x1x1920xf32>
    %6 = vector.shape_cast %5 : vector<1x1x1920xf32> to vector<1x1920xf32>
    %7 = vector.broadcast %6 : vector<1x1920xf32> to vector<8x1920xf32>
    %8 = arith.addf %4, %7 : vector<8x1920xf32>
    %9 = vector.extract_strided_slice %8 {offsets = [0, 0], sizes = [8, 128], strides = [1, 1]} : vector<8x1920xf32> to vector<8x128xf32>
    %10 = vector.shape_cast %9 : vector<8x128xf32> to vector<1x8x128xf32>
    %11 = vector.extract_strided_slice %8 {offsets = [0, 640], sizes = [8, 128], strides = [1, 1]} : vector<8x1920xf32> to vector<8x128xf32>
    %12 = vector.shape_cast %11 : vector<8x128xf32> to vector<1x8x128xf32>
    %13 = vector.extract_strided_slice %8 {offsets = [0, 1280], sizes = [8, 128], strides = [1, 1]} : vector<8x1920xf32> to vector<8x128xf32>
    %14 = vector.shape_cast %13 : vector<8x128xf32> to vector<1x8x128xf32>
    "tpu.trace_start"() <{level = 10 : i32, message = "bqd,bkd->bqk"}> : () -> ()
    %cst_8 = arith.constant dense<0.000000e+00> : vector<1x8x8xf32>
    %15 = tpu.matmul %10, %12, %cst_8 {dimension_numbers = #tpu.dot_dimension_numbers<[2], [2], [1], [1], [0, 0, 0, 1, 1, 1], [0], [0]>} : vector<1x8x128xf32>, vector<1x8x128xf32>, vector<1x8x8xf32> -> vector<1x8x8xf32>
    "tpu.trace_stop"() : () -> ()
    %16 = vector.extract_strided_slice %8 {offsets = [0, 128], sizes = [8, 128], strides = [1, 1]} : vector<8x1920xf32> to vector<8x128xf32>
    %17 = vector.shape_cast %16 : vector<8x128xf32> to vector<1x8x128xf32>
    %18 = vector.extract_strided_slice %8 {offsets = [0, 768], sizes = [8, 128], strides = [1, 1]} : vector<8x1920xf32> to vector<8x128xf32>
    %19 = vector.shape_cast %18 : vector<8x128xf32> to vector<1x8x128xf32>
    %20 = vector.extract_strided_slice %8 {offsets = [0, 1408], sizes = [8, 128], strides = [1, 1]} : vector<8x1920xf32> to vector<8x128xf32>
    %21 = vector.shape_cast %20 : vector<8x128xf32> to vector<1x8x128xf32>
    "tpu.trace_start"() <{level = 10 : i32, message = "bqd,bkd->bqk"}> : () -> ()
    %cst_9 = arith.constant dense<0.000000e+00> : vector<1x8x8xf32>
    %22 = tpu.matmul %17, %19, %cst_9 {dimension_numbers = #tpu.dot_dimension_numbers<[2], [2], [1], [1], [0, 0, 0, 1, 1, 1], [0], [0]>} : vector<1x8x128xf32>, vector<1x8x128xf32>, vector<1x8x8xf32> -> vector<1x8x8xf32>
    "tpu.trace_stop"() : () -> ()
    %23 = vector.extract_strided_slice %8 {offsets = [0, 256], sizes = [8, 128], strides = [1, 1]} : vector<8x1920xf32> to vector<8x128xf32>
    %24 = vector.shape_cast %23 : vector<8x128xf32> to vector<1x8x128xf32>
    %25 = vector.extract_strided_slice %8 {offsets = [0, 896], sizes = [8, 128], strides = [1, 1]} : vector<8x1920xf32> to vector<8x128xf32>
    %26 = vector.shape_cast %25 : vector<8x128xf32> to vector<1x8x128xf32>
    %27 = vector.extract_strided_slice %8 {offsets = [0, 1536], sizes = [8, 128], strides = [1, 1]} : vector<8x1920xf32> to vector<8x128xf32>
    %28 = vector.shape_cast %27 : vector<8x128xf32> to vector<1x8x128xf32>
    "tpu.trace_start"() <{level = 10 : i32, message = "bqd,bkd->bqk"}> : () -> ()
    %cst_10 = arith.constant dense<0.000000e+00> : vector<1x8x8xf32>
    %29 = tpu.matmul %24, %26, %cst_10 {dimension_numbers = #tpu.dot_dimension_numbers<[2], [2], [1], [1], [0, 0, 0, 1, 1, 1], [0], [0]>} : vector<1x8x128xf32>, vector<1x8x128xf32>, vector<1x8x8xf32> -> vector<1x8x8xf32>
    "tpu.trace_stop"() : () -> ()
    %30 = vector.extract_strided_slice %8 {offsets = [0, 384], sizes = [8, 128], strides = [1, 1]} : vector<8x1920xf32> to vector<8x128xf32>
    %31 = vector.shape_cast %30 : vector<8x128xf32> to vector<1x8x128xf32>
    %32 = vector.extract_strided_slice %8 {offsets = [0, 1024], sizes = [8, 128], strides = [1, 1]} : vector<8x1920xf32> to vector<8x128xf32>
    %33 = vector.shape_cast %32 : vector<8x128xf32> to vector<1x8x128xf32>
    %34 = vector.extract_strided_slice %8 {offsets = [0, 1664], sizes = [8, 128], strides = [1, 1]} : vector<8x1920xf32> to vector<8x128xf32>
    %35 = vector.shape_cast %34 : vector<8x128xf32> to vector<1x8x128xf32>
    "tpu.trace_start"() <{level = 10 : i32, message = "bqd,bkd->bqk"}> : () -> ()
    %cst_11 = arith.constant dense<0.000000e+00> : vector<1x8x8xf32>
    %36 = tpu.matmul %31, %33, %cst_11 {dimension_numbers = #tpu.dot_dimension_numbers<[2], [2], [1], [1], [0, 0, 0, 1, 1, 1], [0], [0]>} : vector<1x8x128xf32>, vector<1x8x128xf32>, vector<1x8x8xf32> -> vector<1x8x8xf32>
    "tpu.trace_stop"() : () -> ()
    %37 = vector.extract_strided_slice %8 {offsets = [0, 512], sizes = [8, 128], strides = [1, 1]} : vector<8x1920xf32> to vector<8x128xf32>
    %38 = vector.shape_cast %37 : vector<8x128xf32> to vector<1x8x128xf32>
    %39 = vector.extract_strided_slice %8 {offsets = [0, 1152], sizes = [8, 128], strides = [1, 1]} : vector<8x1920xf32> to vector<8x128xf32>
    %40 = vector.shape_cast %39 : vector<8x128xf32> to vector<1x8x128xf32>
    %41 = vector.extract_strided_slice %8 {offsets = [0, 1792], sizes = [8, 128], strides = [1, 1]} : vector<8x1920xf32> to vector<8x128xf32>
    %42 = vector.shape_cast %41 : vector<8x128xf32> to vector<1x8x128xf32>
    "tpu.trace_start"() <{level = 10 : i32, message = "bqd,bkd->bqk"}> : () -> ()
    %cst_12 = arith.constant dense<0.000000e+00> : vector<1x8x8xf32>
    %43 = tpu.matmul %38, %40, %cst_12 {dimension_numbers = #tpu.dot_dimension_numbers<[2], [2], [1], [1], [0, 0, 0, 1, 1, 1], [0], [0]>} : vector<1x8x128xf32>, vector<1x8x128xf32>, vector<1x8x8xf32> -> vector<1x8x8xf32>
    "tpu.trace_stop"() : () -> ()
    %44 = tpu.concatenate %15, %22, %29, %36, %43 in 0 : vector<1x8x8xf32>, vector<1x8x8xf32>, vector<1x8x8xf32>, vector<1x8x8xf32>, vector<1x8x8xf32> -> vector<5x8x8xf32>
    %cst_13 = arith.constant dense<0xFF800000> : vector<5x8xf32>
    %45 = vector.multi_reduction <maximumf>, %44, %cst_13 [2] : vector<5x8x8xf32> to vector<5x8xf32>
    %46 = vector.shape_cast %45 : vector<5x8xf32> to vector<5x8x1xf32>
    %47 = vector.broadcast %46 : vector<5x8x1xf32> to vector<5x8x8xf32>
    %48 = arith.subf %44, %47 : vector<5x8x8xf32>
    %49 = math.exp %48 : vector<5x8x8xf32>
    %cst_14 = arith.constant dense<0.000000e+00> : vector<5x8xf32>
    %50 = vector.multi_reduction <add>, %49, %cst_14 [2] : vector<5x8x8xf32> to vector<5x8xf32>
    %51 = vector.shape_cast %50 : vector<5x8xf32> to vector<5x8x1xf32>
    %52 = tpu.reciprocal %51 {approx = true} : vector<5x8x1xf32> -> vector<5x8x1xf32>
    %53 = vector.broadcast %52 : vector<5x8x1xf32> to vector<5x8x8xf32>
    %54 = arith.mulf %49, %53 : vector<5x8x8xf32>
    %55 = vector.extract_strided_slice %54 {offsets = [0, 0, 0], sizes = [1, 8, 8], strides = [1, 1, 1]} : vector<5x8x8xf32> to vector<1x8x8xf32>
    "tpu.trace_start"() <{level = 10 : i32, message = "bqk,bkd->bqd"}> : () -> ()
    %cst_15 = arith.constant dense<0.000000e+00> : vector<1x8x128xf32>
    %56 = tpu.matmul %55, %14, %cst_15 {dimension_numbers = #tpu.dot_dimension_numbers<[2], [1], [1], [2], [0, 0, 0, 1, 1, 2], [0], [0]>} : vector<1x8x8xf32>, vector<1x8x128xf32>, vector<1x8x128xf32> -> vector<1x8x128xf32>
    "tpu.trace_stop"() : () -> ()
    %57 = vector.extract_strided_slice %54 {offsets = [1, 0, 0], sizes = [1, 8, 8], strides = [1, 1, 1]} : vector<5x8x8xf32> to vector<1x8x8xf32>
    "tpu.trace_start"() <{level = 10 : i32, message = "bqk,bkd->bqd"}> : () -> ()
    %cst_16 = arith.constant dense<0.000000e+00> : vector<1x8x128xf32>
    %58 = tpu.matmul %57, %21, %cst_16 {dimension_numbers = #tpu.dot_dimension_numbers<[2], [1], [1], [2], [0, 0, 0, 1, 1, 2], [0], [0]>} : vector<1x8x8xf32>, vector<1x8x128xf32>, vector<1x8x128xf32> -> vector<1x8x128xf32>
    "tpu.trace_stop"() : () -> ()
    %59 = vector.extract_strided_slice %54 {offsets = [2, 0, 0], sizes = [1, 8, 8], strides = [1, 1, 1]} : vector<5x8x8xf32> to vector<1x8x8xf32>
    "tpu.trace_start"() <{level = 10 : i32, message = "bqk,bkd->bqd"}> : () -> ()
    %cst_17 = arith.constant dense<0.000000e+00> : vector<1x8x128xf32>
    %60 = tpu.matmul %59, %28, %cst_17 {dimension_numbers = #tpu.dot_dimension_numbers<[2], [1], [1], [2], [0, 0, 0, 1, 1, 2], [0], [0]>} : vector<1x8x8xf32>, vector<1x8x128xf32>, vector<1x8x128xf32> -> vector<1x8x128xf32>
    "tpu.trace_stop"() : () -> ()
    %61 = vector.extract_strided_slice %54 {offsets = [3, 0, 0], sizes = [1, 8, 8], strides = [1, 1, 1]} : vector<5x8x8xf32> to vector<1x8x8xf32>
    "tpu.trace_start"() <{level = 10 : i32, message = "bqk,bkd->bqd"}> : () -> ()
    %cst_18 = arith.constant dense<0.000000e+00> : vector<1x8x128xf32>
    %62 = tpu.matmul %61, %35, %cst_18 {dimension_numbers = #tpu.dot_dimension_numbers<[2], [1], [1], [2], [0, 0, 0, 1, 1, 2], [0], [0]>} : vector<1x8x8xf32>, vector<1x8x128xf32>, vector<1x8x128xf32> -> vector<1x8x128xf32>
    "tpu.trace_stop"() : () -> ()
    %63 = vector.extract_strided_slice %54 {offsets = [4, 0, 0], sizes = [1, 8, 8], strides = [1, 1, 1]} : vector<5x8x8xf32> to vector<1x8x8xf32>
    "tpu.trace_start"() <{level = 10 : i32, message = "bqk,bkd->bqd"}> : () -> ()
    %cst_19 = arith.constant dense<0.000000e+00> : vector<1x8x128xf32>
    %64 = tpu.matmul %63, %42, %cst_19 {dimension_numbers = #tpu.dot_dimension_numbers<[2], [1], [1], [2], [0, 0, 0, 1, 1, 2], [0], [0]>} : vector<1x8x8xf32>, vector<1x8x128xf32>, vector<1x8x128xf32> -> vector<1x8x128xf32>
    "tpu.trace_stop"() : () -> ()
    %65 = tpu.concatenate %56, %58, %60, %62, %64 in 2 : vector<1x8x128xf32>, vector<1x8x128xf32>, vector<1x8x128xf32>, vector<1x8x128xf32>, vector<1x8x128xf32> -> vector<1x8x640xf32>
    %66 = vector.shape_cast %65 : vector<1x8x640xf32> to vector<8x640xf32>
    %c0_20 = arith.constant 0 : index
    %c0_21 = arith.constant 0 : index
    %c0_22 = arith.constant 0 : index
    %67 = vector.load %arg4[%c0_20, %c0_21, %c0_22] : memref<2x640x128xf32, #tpu.memory_space<vmem>>, vector<1x640x128xf32>
    %68 = vector.shape_cast %67 : vector<1x640x128xf32> to vector<640x128xf32>
    %cst_23 = arith.constant dense<0.000000e+00> : vector<8x128xf32>
    %69 = tpu.matmul %66, %68, %cst_23 {dimension_numbers = #tpu.dot_dimension_numbers<[1], [0], [0], [1], [0, 0, 1, 1], [], []>} : vector<8x640xf32>, vector<640x128xf32>, vector<8x128xf32> -> vector<8x128xf32>
    %c0_24 = arith.constant 0 : index
    %c0_25 = arith.constant 0 : index
    %c0_26 = arith.constant 0 : index
    %70 = vector.load %arg5[%c0_24, %c0_25, %c0_26] : memref<2x1x128xf32, #tpu.memory_space<vmem>>, vector<1x1x128xf32>
    %71 = vector.shape_cast %70 : vector<1x1x128xf32> to vector<1x128xf32>
    %72 = vector.broadcast %71 : vector<1x128xf32> to vector<8x128xf32>
    %73 = arith.addf %69, %72 : vector<8x128xf32>
    %74 = arith.addf %1, %73 : vector<8x128xf32>
    %c0_27 = arith.constant 0 : index
    %c0_28 = arith.constant 0 : index
    %c0_29 = arith.constant 0 : index
    %75 = vector.load %arg6[%c0_27, %c0_28, %c0_29] : memref<2x1x128xf32, #tpu.memory_space<vmem>>, vector<1x1x128xf32>
    %76 = vector.shape_cast %75 : vector<1x1x128xf32> to vector<1x128xf32>
    %c0_30 = arith.constant 0 : index
    %c0_31 = arith.constant 0 : index
    %c0_32 = arith.constant 0 : index
    %77 = vector.load %arg7[%c0_30, %c0_31, %c0_32] : memref<2x1x128xf32, #tpu.memory_space<vmem>>, vector<1x1x128xf32>
    %78 = vector.shape_cast %77 : vector<1x1x128xf32> to vector<1x128xf32>
    %cst_33 = arith.constant dense<0.000000e+00> : vector<8xf32>
    %79 = vector.multi_reduction <add>, %74, %cst_33 [1] : vector<8x128xf32> to vector<8xf32>
    %80 = vector.shape_cast %79 : vector<8xf32> to vector<8x1xf32>
    %81 = arith.mulf %74, %74 : vector<8x128xf32>
    %cst_34 = arith.constant dense<0.000000e+00> : vector<8xf32>
    %82 = vector.multi_reduction <add>, %81, %cst_34 [1] : vector<8x128xf32> to vector<8xf32>
    %83 = vector.shape_cast %82 : vector<8xf32> to vector<8x1xf32>
    %cst_35 = arith.constant 0.00999999977 : f32
    %84 = vector.broadcast %cst_35 : f32 to vector<8x1xf32>
    %85 = arith.mulf %80, %84 : vector<8x1xf32>
    %cst_36 = arith.constant 0.00999999977 : f32
    %86 = vector.broadcast %cst_36 : f32 to vector<8x1xf32>
    %87 = arith.mulf %83, %86 : vector<8x1xf32>
    %88 = arith.mulf %85, %85 : vector<8x1xf32>
    %89 = arith.subf %87, %88 : vector<8x1xf32>
    %90 = vector.broadcast %85 : vector<8x1xf32> to vector<8x128xf32>
    %91 = arith.subf %74, %90 : vector<8x128xf32>
    %cst_37 = arith.constant 9.99999974E-6 : f32
    %92 = vector.broadcast %cst_37 : f32 to vector<8x1xf32>
    %93 = arith.addf %89, %92 : vector<8x1xf32>
    %94 = math.rsqrt %93 : vector<8x1xf32>
    %95 = vector.broadcast %94 : vector<8x1xf32> to vector<8x128xf32>
    %96 = arith.mulf %91, %95 : vector<8x128xf32>
    %97 = vector.broadcast %76 : vector<1x128xf32> to vector<8x128xf32>
    %98 = arith.mulf %96, %97 : vector<8x128xf32>
    %99 = vector.broadcast %78 : vector<1x128xf32> to vector<8x128xf32>
    %100 = arith.addf %98, %99 : vector<8x128xf32>
    %c0_38 = arith.constant 0 : index
    %c0_39 = arith.constant 0 : index
    %c0_40 = arith.constant 0 : index
    %101 = vector.load %arg8[%c0_38, %c0_39, %c0_40] : memref<2x128x256xf32, #tpu.memory_space<vmem>>, vector<1x128x256xf32>
    %102 = vector.shape_cast %101 : vector<1x128x256xf32> to vector<128x256xf32>
    %cst_41 = arith.constant dense<0.000000e+00> : vector<8x256xf32>
    %103 = tpu.matmul %100, %102, %cst_41 {dimension_numbers = #tpu.dot_dimension_numbers<[1], [0], [0], [1], [0, 0, 1, 1], [], []>} : vector<8x128xf32>, vector<128x256xf32>, vector<8x256xf32> -> vector<8x256xf32>
    %c0_42 = arith.constant 0 : index
    %c0_43 = arith.constant 0 : index
    %c0_44 = arith.constant 0 : index
    %104 = vector.load %arg9[%c0_42, %c0_43, %c0_44] : memref<2x1x256xf32, #tpu.memory_space<vmem>>, vector<1x1x256xf32>
    %105 = vector.shape_cast %104 : vector<1x1x256xf32> to vector<1x256xf32>
    %106 = vector.broadcast %105 : vector<1x256xf32> to vector<8x256xf32>
    %107 = arith.addf %103, %106 : vector<8x256xf32>
    %cst_45 = arith.constant 0.000000e+00 : f32
    %108 = vector.broadcast %cst_45 : f32 to vector<8x256xf32>
    %109 = arith.maximumf %107, %108 : vector<8x256xf32>
    %c0_46 = arith.constant 0 : index
    %c0_47 = arith.constant 0 : index
    %c0_48 = arith.constant 0 : index
    %110 = vector.load %arg10[%c0_46, %c0_47, %c0_48] : memref<2x256x128xf32, #tpu.memory_space<vmem>>, vector<1x256x128xf32>
    %111 = vector.shape_cast %110 : vector<1x256x128xf32> to vector<256x128xf32>
    %cst_49 = arith.constant dense<0.000000e+00> : vector<8x128xf32>
    %112 = tpu.matmul %109, %111, %cst_49 {dimension_numbers = #tpu.dot_dimension_numbers<[1], [0], [0], [1], [0, 0, 1, 1], [], []>} : vector<8x256xf32>, vector<256x128xf32>, vector<8x128xf32> -> vector<8x128xf32>
    %c0_50 = arith.constant 0 : index
    %c0_51 = arith.constant 0 : index
    %c0_52 = arith.constant 0 : index
    %113 = vector.load %arg11[%c0_50, %c0_51, %c0_52] : memref<2x1x128xf32, #tpu.memory_space<vmem>>, vector<1x1x128xf32>
    %114 = vector.shape_cast %113 : vector<1x1x128xf32> to vector<1x128xf32>
    %115 = vector.broadcast %114 : vector<1x128xf32> to vector<8x128xf32>
    %116 = arith.addf %112, %115 : vector<8x128xf32>
    %117 = arith.addf %100, %116 : vector<8x128xf32>
    %c0_53 = arith.constant 0 : index
    %c0_54 = arith.constant 0 : index
    %c0_55 = arith.constant 0 : index
    %118 = vector.load %arg12[%c0_53, %c0_54, %c0_55] : memref<2x1x128xf32, #tpu.memory_space<vmem>>, vector<1x1x128xf32>
    %119 = vector.shape_cast %118 : vector<1x1x128xf32> to vector<1x128xf32>
    %c0_56 = arith.constant 0 : index
    %c0_57 = arith.constant 0 : index
    %c0_58 = arith.constant 0 : index
    %120 = vector.load %arg13[%c0_56, %c0_57, %c0_58] : memref<2x1x128xf32, #tpu.memory_space<vmem>>, vector<1x1x128xf32>
    %121 = vector.shape_cast %120 : vector<1x1x128xf32> to vector<1x128xf32>
    %cst_59 = arith.constant dense<0.000000e+00> : vector<8xf32>
    %122 = vector.multi_reduction <add>, %117, %cst_59 [1] : vector<8x128xf32> to vector<8xf32>
    %123 = vector.shape_cast %122 : vector<8xf32> to vector<8x1xf32>
    %124 = arith.mulf %117, %117 : vector<8x128xf32>
    %cst_60 = arith.constant dense<0.000000e+00> : vector<8xf32>
    %125 = vector.multi_reduction <add>, %124, %cst_60 [1] : vector<8x128xf32> to vector<8xf32>
    %126 = vector.shape_cast %125 : vector<8xf32> to vector<8x1xf32>
    %cst_61 = arith.constant 0.00999999977 : f32
    %127 = vector.broadcast %cst_61 : f32 to vector<8x1xf32>
    %128 = arith.mulf %123, %127 : vector<8x1xf32>
    %cst_62 = arith.constant 0.00999999977 : f32
    %129 = vector.broadcast %cst_62 : f32 to vector<8x1xf32>
    %130 = arith.mulf %126, %129 : vector<8x1xf32>
    %131 = arith.mulf %128, %128 : vector<8x1xf32>
    %132 = arith.subf %130, %131 : vector<8x1xf32>
    %133 = vector.broadcast %128 : vector<8x1xf32> to vector<8x128xf32>
    %134 = arith.subf %117, %133 : vector<8x128xf32>
    %cst_63 = arith.constant 9.99999974E-6 : f32
    %135 = vector.broadcast %cst_63 : f32 to vector<8x1xf32>
    %136 = arith.addf %132, %135 : vector<8x1xf32>
    %137 = math.rsqrt %136 : vector<8x1xf32>
    %138 = vector.broadcast %137 : vector<8x1xf32> to vector<8x128xf32>
    %139 = arith.mulf %134, %138 : vector<8x128xf32>
    %140 = vector.broadcast %119 : vector<1x128xf32> to vector<8x128xf32>
    %141 = arith.mulf %139, %140 : vector<8x128xf32>
    %142 = vector.broadcast %121 : vector<1x128xf32> to vector<8x128xf32>
    %143 = arith.addf %141, %142 : vector<8x128xf32>
    %c1 = arith.constant 1 : index
    %c0_64 = arith.constant 0 : index
    %c0_65 = arith.constant 0 : index
    %144 = vector.load %arg2[%c1, %c0_64, %c0_65] : memref<2x128x1920xf32, #tpu.memory_space<vmem>>, vector<1x128x1920xf32>
    %145 = vector.shape_cast %144 : vector<1x128x1920xf32> to vector<128x1920xf32>
    %cst_66 = arith.constant dense<0.000000e+00> : vector<8x1920xf32>
    %146 = tpu.matmul %143, %145, %cst_66 {dimension_numbers = #tpu.dot_dimension_numbers<[1], [0], [0], [1], [0, 0, 1, 1], [], []>} : vector<8x128xf32>, vector<128x1920xf32>, vector<8x1920xf32> -> vector<8x1920xf32>
    %c1_67 = arith.constant 1 : index
    %c0_68 = arith.constant 0 : index
    %c0_69 = arith.constant 0 : index
    %147 = vector.load %arg3[%c1_67, %c0_68, %c0_69] : memref<2x1x1920xf32, #tpu.memory_space<vmem>>, vector<1x1x1920xf32>
    %148 = vector.shape_cast %147 : vector<1x1x1920xf32> to vector<1x1920xf32>
    %149 = vector.broadcast %148 : vector<1x1920xf32> to vector<8x1920xf32>
    %150 = arith.addf %146, %149 : vector<8x1920xf32>
    %151 = vector.extract_strided_slice %150 {offsets = [0, 0], sizes = [8, 128], strides = [1, 1]} : vector<8x1920xf32> to vector<8x128xf32>
    %152 = vector.shape_cast %151 : vector<8x128xf32> to vector<1x8x128xf32>
    %153 = vector.extract_strided_slice %150 {offsets = [0, 640], sizes = [8, 128], strides = [1, 1]} : vector<8x1920xf32> to vector<8x128xf32>
    %154 = vector.shape_cast %153 : vector<8x128xf32> to vector<1x8x128xf32>
    %155 = vector.extract_strided_slice %150 {offsets = [0, 1280], sizes = [8, 128], strides = [1, 1]} : vector<8x1920xf32> to vector<8x128xf32>
    %156 = vector.shape_cast %155 : vector<8x128xf32> to vector<1x8x128xf32>
    "tpu.trace_start"() <{level = 10 : i32, message = "bqd,bkd->bqk"}> : () -> ()
    %cst_70 = arith.constant dense<0.000000e+00> : vector<1x8x8xf32>
    %157 = tpu.matmul %152, %154, %cst_70 {dimension_numbers = #tpu.dot_dimension_numbers<[2], [2], [1], [1], [0, 0, 0, 1, 1, 1], [0], [0]>} : vector<1x8x128xf32>, vector<1x8x128xf32>, vector<1x8x8xf32> -> vector<1x8x8xf32>
    "tpu.trace_stop"() : () -> ()
    %158 = vector.extract_strided_slice %150 {offsets = [0, 128], sizes = [8, 128], strides = [1, 1]} : vector<8x1920xf32> to vector<8x128xf32>
    %159 = vector.shape_cast %158 : vector<8x128xf32> to vector<1x8x128xf32>
    %160 = vector.extract_strided_slice %150 {offsets = [0, 768], sizes = [8, 128], strides = [1, 1]} : vector<8x1920xf32> to vector<8x128xf32>
    %161 = vector.shape_cast %160 : vector<8x128xf32> to vector<1x8x128xf32>
    %162 = vector.extract_strided_slice %150 {offsets = [0, 1408], sizes = [8, 128], strides = [1, 1]} : vector<8x1920xf32> to vector<8x128xf32>
    %163 = vector.shape_cast %162 : vector<8x128xf32> to vector<1x8x128xf32>
    "tpu.trace_start"() <{level = 10 : i32, message = "bqd,bkd->bqk"}> : () -> ()
    %cst_71 = arith.constant dense<0.000000e+00> : vector<1x8x8xf32>
    %164 = tpu.matmul %159, %161, %cst_71 {dimension_numbers = #tpu.dot_dimension_numbers<[2], [2], [1], [1], [0, 0, 0, 1, 1, 1], [0], [0]>} : vector<1x8x128xf32>, vector<1x8x128xf32>, vector<1x8x8xf32> -> vector<1x8x8xf32>
    "tpu.trace_stop"() : () -> ()
    %165 = vector.extract_strided_slice %150 {offsets = [0, 256], sizes = [8, 128], strides = [1, 1]} : vector<8x1920xf32> to vector<8x128xf32>
    %166 = vector.shape_cast %165 : vector<8x128xf32> to vector<1x8x128xf32>
    %167 = vector.extract_strided_slice %150 {offsets = [0, 896], sizes = [8, 128], strides = [1, 1]} : vector<8x1920xf32> to vector<8x128xf32>
    %168 = vector.shape_cast %167 : vector<8x128xf32> to vector<1x8x128xf32>
    %169 = vector.extract_strided_slice %150 {offsets = [0, 1536], sizes = [8, 128], strides = [1, 1]} : vector<8x1920xf32> to vector<8x128xf32>
    %170 = vector.shape_cast %169 : vector<8x128xf32> to vector<1x8x128xf32>
    "tpu.trace_start"() <{level = 10 : i32, message = "bqd,bkd->bqk"}> : () -> ()
    %cst_72 = arith.constant dense<0.000000e+00> : vector<1x8x8xf32>
    %171 = tpu.matmul %166, %168, %cst_72 {dimension_numbers = #tpu.dot_dimension_numbers<[2], [2], [1], [1], [0, 0, 0, 1, 1, 1], [0], [0]>} : vector<1x8x128xf32>, vector<1x8x128xf32>, vector<1x8x8xf32> -> vector<1x8x8xf32>
    "tpu.trace_stop"() : () -> ()
    %172 = vector.extract_strided_slice %150 {offsets = [0, 384], sizes = [8, 128], strides = [1, 1]} : vector<8x1920xf32> to vector<8x128xf32>
    %173 = vector.shape_cast %172 : vector<8x128xf32> to vector<1x8x128xf32>
    %174 = vector.extract_strided_slice %150 {offsets = [0, 1024], sizes = [8, 128], strides = [1, 1]} : vector<8x1920xf32> to vector<8x128xf32>
    %175 = vector.shape_cast %174 : vector<8x128xf32> to vector<1x8x128xf32>
    %176 = vector.extract_strided_slice %150 {offsets = [0, 1664], sizes = [8, 128], strides = [1, 1]} : vector<8x1920xf32> to vector<8x128xf32>
    %177 = vector.shape_cast %176 : vector<8x128xf32> to vector<1x8x128xf32>
    "tpu.trace_start"() <{level = 10 : i32, message = "bqd,bkd->bqk"}> : () -> ()
    %cst_73 = arith.constant dense<0.000000e+00> : vector<1x8x8xf32>
    %178 = tpu.matmul %173, %175, %cst_73 {dimension_numbers = #tpu.dot_dimension_numbers<[2], [2], [1], [1], [0, 0, 0, 1, 1, 1], [0], [0]>} : vector<1x8x128xf32>, vector<1x8x128xf32>, vector<1x8x8xf32> -> vector<1x8x8xf32>
    "tpu.trace_stop"() : () -> ()
    %179 = vector.extract_strided_slice %150 {offsets = [0, 512], sizes = [8, 128], strides = [1, 1]} : vector<8x1920xf32> to vector<8x128xf32>
    %180 = vector.shape_cast %179 : vector<8x128xf32> to vector<1x8x128xf32>
    %181 = vector.extract_strided_slice %150 {offsets = [0, 1152], sizes = [8, 128], strides = [1, 1]} : vector<8x1920xf32> to vector<8x128xf32>
    %182 = vector.shape_cast %181 : vector<8x128xf32> to vector<1x8x128xf32>
    %183 = vector.extract_strided_slice %150 {offsets = [0, 1792], sizes = [8, 128], strides = [1, 1]} : vector<8x1920xf32> to vector<8x128xf32>
    %184 = vector.shape_cast %183 : vector<8x128xf32> to vector<1x8x128xf32>
    "tpu.trace_start"() <{level = 10 : i32, message = "bqd,bkd->bqk"}> : () -> ()
    %cst_74 = arith.constant dense<0.000000e+00> : vector<1x8x8xf32>
    %185 = tpu.matmul %180, %182, %cst_74 {dimension_numbers = #tpu.dot_dimension_numbers<[2], [2], [1], [1], [0, 0, 0, 1, 1, 1], [0], [0]>} : vector<1x8x128xf32>, vector<1x8x128xf32>, vector<1x8x8xf32> -> vector<1x8x8xf32>
    "tpu.trace_stop"() : () -> ()
    %186 = tpu.concatenate %157, %164, %171, %178, %185 in 0 : vector<1x8x8xf32>, vector<1x8x8xf32>, vector<1x8x8xf32>, vector<1x8x8xf32>, vector<1x8x8xf32> -> vector<5x8x8xf32>
    %cst_75 = arith.constant dense<0xFF800000> : vector<5x8xf32>
    %187 = vector.multi_reduction <maximumf>, %186, %cst_75 [2] : vector<5x8x8xf32> to vector<5x8xf32>
    %188 = vector.shape_cast %187 : vector<5x8xf32> to vector<5x8x1xf32>
    %189 = vector.broadcast %188 : vector<5x8x1xf32> to vector<5x8x8xf32>
    %190 = arith.subf %186, %189 : vector<5x8x8xf32>
    %191 = math.exp %190 : vector<5x8x8xf32>
    %cst_76 = arith.constant dense<0.000000e+00> : vector<5x8xf32>
    %192 = vector.multi_reduction <add>, %191, %cst_76 [2] : vector<5x8x8xf32> to vector<5x8xf32>
    %193 = vector.shape_cast %192 : vector<5x8xf32> to vector<5x8x1xf32>
    %194 = tpu.reciprocal %193 {approx = true} : vector<5x8x1xf32> -> vector<5x8x1xf32>
    %195 = vector.broadcast %194 : vector<5x8x1xf32> to vector<5x8x8xf32>
    %196 = arith.mulf %191, %195 : vector<5x8x8xf32>
    %197 = vector.extract_strided_slice %196 {offsets = [0, 0, 0], sizes = [1, 8, 8], strides = [1, 1, 1]} : vector<5x8x8xf32> to vector<1x8x8xf32>
    "tpu.trace_start"() <{level = 10 : i32, message = "bqk,bkd->bqd"}> : () -> ()
    %cst_77 = arith.constant dense<0.000000e+00> : vector<1x8x128xf32>
    %198 = tpu.matmul %197, %156, %cst_77 {dimension_numbers = #tpu.dot_dimension_numbers<[2], [1], [1], [2], [0, 0, 0, 1, 1, 2], [0], [0]>} : vector<1x8x8xf32>, vector<1x8x128xf32>, vector<1x8x128xf32> -> vector<1x8x128xf32>
    "tpu.trace_stop"() : () -> ()
    %199 = vector.extract_strided_slice %196 {offsets = [1, 0, 0], sizes = [1, 8, 8], strides = [1, 1, 1]} : vector<5x8x8xf32> to vector<1x8x8xf32>
    "tpu.trace_start"() <{level = 10 : i32, message = "bqk,bkd->bqd"}> : () -> ()
    %cst_78 = arith.constant dense<0.000000e+00> : vector<1x8x128xf32>
    %200 = tpu.matmul %199, %163, %cst_78 {dimension_numbers = #tpu.dot_dimension_numbers<[2], [1], [1], [2], [0, 0, 0, 1, 1, 2], [0], [0]>} : vector<1x8x8xf32>, vector<1x8x128xf32>, vector<1x8x128xf32> -> vector<1x8x128xf32>
    "tpu.trace_stop"() : () -> ()
    %201 = vector.extract_strided_slice %196 {offsets = [2, 0, 0], sizes = [1, 8, 8], strides = [1, 1, 1]} : vector<5x8x8xf32> to vector<1x8x8xf32>
    "tpu.trace_start"() <{level = 10 : i32, message = "bqk,bkd->bqd"}> : () -> ()
    %cst_79 = arith.constant dense<0.000000e+00> : vector<1x8x128xf32>
    %202 = tpu.matmul %201, %170, %cst_79 {dimension_numbers = #tpu.dot_dimension_numbers<[2], [1], [1], [2], [0, 0, 0, 1, 1, 2], [0], [0]>} : vector<1x8x8xf32>, vector<1x8x128xf32>, vector<1x8x128xf32> -> vector<1x8x128xf32>
    "tpu.trace_stop"() : () -> ()
    %203 = vector.extract_strided_slice %196 {offsets = [3, 0, 0], sizes = [1, 8, 8], strides = [1, 1, 1]} : vector<5x8x8xf32> to vector<1x8x8xf32>
    "tpu.trace_start"() <{level = 10 : i32, message = "bqk,bkd->bqd"}> : () -> ()
    %cst_80 = arith.constant dense<0.000000e+00> : vector<1x8x128xf32>
    %204 = tpu.matmul %203, %177, %cst_80 {dimension_numbers = #tpu.dot_dimension_numbers<[2], [1], [1], [2], [0, 0, 0, 1, 1, 2], [0], [0]>} : vector<1x8x8xf32>, vector<1x8x128xf32>, vector<1x8x128xf32> -> vector<1x8x128xf32>
    "tpu.trace_stop"() : () -> ()
    %205 = vector.extract_strided_slice %196 {offsets = [4, 0, 0], sizes = [1, 8, 8], strides = [1, 1, 1]} : vector<5x8x8xf32> to vector<1x8x8xf32>
    "tpu.trace_start"() <{level = 10 : i32, message = "bqk,bkd->bqd"}> : () -> ()
    %cst_81 = arith.constant dense<0.000000e+00> : vector<1x8x128xf32>
    %206 = tpu.matmul %205, %184, %cst_81 {dimension_numbers = #tpu.dot_dimension_numbers<[2], [1], [1], [2], [0, 0, 0, 1, 1, 2], [0], [0]>} : vector<1x8x8xf32>, vector<1x8x128xf32>, vector<1x8x128xf32> -> vector<1x8x128xf32>
    "tpu.trace_stop"() : () -> ()
    %207 = tpu.concatenate %198, %200, %202, %204, %206 in 2 : vector<1x8x128xf32>, vector<1x8x128xf32>, vector<1x8x128xf32>, vector<1x8x128xf32>, vector<1x8x128xf32> -> vector<1x8x640xf32>
    %208 = vector.shape_cast %207 : vector<1x8x640xf32> to vector<8x640xf32>
    %c1_82 = arith.constant 1 : index
    %c0_83 = arith.constant 0 : index
    %c0_84 = arith.constant 0 : index
    %209 = vector.load %arg4[%c1_82, %c0_83, %c0_84] : memref<2x640x128xf32, #tpu.memory_space<vmem>>, vector<1x640x128xf32>
    %210 = vector.shape_cast %209 : vector<1x640x128xf32> to vector<640x128xf32>
    %cst_85 = arith.constant dense<0.000000e+00> : vector<8x128xf32>
    %211 = tpu.matmul %208, %210, %cst_85 {dimension_numbers = #tpu.dot_dimension_numbers<[1], [0], [0], [1], [0, 0, 1, 1], [], []>} : vector<8x640xf32>, vector<640x128xf32>, vector<8x128xf32> -> vector<8x128xf32>
    %c1_86 = arith.constant 1 : index
    %c0_87 = arith.constant 0 : index
    %c0_88 = arith.constant 0 : index
    %212 = vector.load %arg5[%c1_86, %c0_87, %c0_88] : memref<2x1x128xf32, #tpu.memory_space<vmem>>, vector<1x1x128xf32>
    %213 = vector.shape_cast %212 : vector<1x1x128xf32> to vector<1x128xf32>
    %214 = vector.broadcast %213 : vector<1x128xf32> to vector<8x128xf32>
    %215 = arith.addf %211, %214 : vector<8x128xf32>
    %216 = arith.addf %143, %215 : vector<8x128xf32>
    %c1_89 = arith.constant 1 : index
    %c0_90 = arith.constant 0 : index
    %c0_91 = arith.constant 0 : index
    %217 = vector.load %arg6[%c1_89, %c0_90, %c0_91] : memref<2x1x128xf32, #tpu.memory_space<vmem>>, vector<1x1x128xf32>
    %218 = vector.shape_cast %217 : vector<1x1x128xf32> to vector<1x128xf32>
    %c1_92 = arith.constant 1 : index
    %c0_93 = arith.constant 0 : index
    %c0_94 = arith.constant 0 : index
    %219 = vector.load %arg7[%c1_92, %c0_93, %c0_94] : memref<2x1x128xf32, #tpu.memory_space<vmem>>, vector<1x1x128xf32>
    %220 = vector.shape_cast %219 : vector<1x1x128xf32> to vector<1x128xf32>
    %cst_95 = arith.constant dense<0.000000e+00> : vector<8xf32>
    %221 = vector.multi_reduction <add>, %216, %cst_95 [1] : vector<8x128xf32> to vector<8xf32>
    %222 = vector.shape_cast %221 : vector<8xf32> to vector<8x1xf32>
    %223 = arith.mulf %216, %216 : vector<8x128xf32>
    %cst_96 = arith.constant dense<0.000000e+00> : vector<8xf32>
    %224 = vector.multi_reduction <add>, %223, %cst_96 [1] : vector<8x128xf32> to vector<8xf32>
    %225 = vector.shape_cast %224 : vector<8xf32> to vector<8x1xf32>
    %cst_97 = arith.constant 0.00999999977 : f32
    %226 = vector.broadcast %cst_97 : f32 to vector<8x1xf32>
    %227 = arith.mulf %222, %226 : vector<8x1xf32>
    %cst_98 = arith.constant 0.00999999977 : f32
    %228 = vector.broadcast %cst_98 : f32 to vector<8x1xf32>
    %229 = arith.mulf %225, %228 : vector<8x1xf32>
    %230 = arith.mulf %227, %227 : vector<8x1xf32>
    %231 = arith.subf %229, %230 : vector<8x1xf32>
    %232 = vector.broadcast %227 : vector<8x1xf32> to vector<8x128xf32>
    %233 = arith.subf %216, %232 : vector<8x128xf32>
    %cst_99 = arith.constant 9.99999974E-6 : f32
    %234 = vector.broadcast %cst_99 : f32 to vector<8x1xf32>
    %235 = arith.addf %231, %234 : vector<8x1xf32>
    %236 = math.rsqrt %235 : vector<8x1xf32>
    %237 = vector.broadcast %236 : vector<8x1xf32> to vector<8x128xf32>
    %238 = arith.mulf %233, %237 : vector<8x128xf32>
    %239 = vector.broadcast %218 : vector<1x128xf32> to vector<8x128xf32>
    %240 = arith.mulf %238, %239 : vector<8x128xf32>
    %241 = vector.broadcast %220 : vector<1x128xf32> to vector<8x128xf32>
    %242 = arith.addf %240, %241 : vector<8x128xf32>
    %c1_100 = arith.constant 1 : index
    %c0_101 = arith.constant 0 : index
    %c0_102 = arith.constant 0 : index
    %243 = vector.load %arg8[%c1_100, %c0_101, %c0_102] : memref<2x128x256xf32, #tpu.memory_space<vmem>>, vector<1x128x256xf32>
    %244 = vector.shape_cast %243 : vector<1x128x256xf32> to vector<128x256xf32>
    %cst_103 = arith.constant dense<0.000000e+00> : vector<8x256xf32>
    %245 = tpu.matmul %242, %244, %cst_103 {dimension_numbers = #tpu.dot_dimension_numbers<[1], [0], [0], [1], [0, 0, 1, 1], [], []>} : vector<8x128xf32>, vector<128x256xf32>, vector<8x256xf32> -> vector<8x256xf32>
    %c1_104 = arith.constant 1 : index
    %c0_105 = arith.constant 0 : index
    %c0_106 = arith.constant 0 : index
    %246 = vector.load %arg9[%c1_104, %c0_105, %c0_106] : memref<2x1x256xf32, #tpu.memory_space<vmem>>, vector<1x1x256xf32>
    %247 = vector.shape_cast %246 : vector<1x1x256xf32> to vector<1x256xf32>
    %248 = vector.broadcast %247 : vector<1x256xf32> to vector<8x256xf32>
    %249 = arith.addf %245, %248 : vector<8x256xf32>
    %cst_107 = arith.constant 0.000000e+00 : f32
    %250 = vector.broadcast %cst_107 : f32 to vector<8x256xf32>
    %251 = arith.maximumf %249, %250 : vector<8x256xf32>
    %c1_108 = arith.constant 1 : index
    %c0_109 = arith.constant 0 : index
    %c0_110 = arith.constant 0 : index
    %252 = vector.load %arg10[%c1_108, %c0_109, %c0_110] : memref<2x256x128xf32, #tpu.memory_space<vmem>>, vector<1x256x128xf32>
    %253 = vector.shape_cast %252 : vector<1x256x128xf32> to vector<256x128xf32>
    %cst_111 = arith.constant dense<0.000000e+00> : vector<8x128xf32>
    %254 = tpu.matmul %251, %253, %cst_111 {dimension_numbers = #tpu.dot_dimension_numbers<[1], [0], [0], [1], [0, 0, 1, 1], [], []>} : vector<8x256xf32>, vector<256x128xf32>, vector<8x128xf32> -> vector<8x128xf32>
    %c1_112 = arith.constant 1 : index
    %c0_113 = arith.constant 0 : index
    %c0_114 = arith.constant 0 : index
    %255 = vector.load %arg11[%c1_112, %c0_113, %c0_114] : memref<2x1x128xf32, #tpu.memory_space<vmem>>, vector<1x1x128xf32>
    %256 = vector.shape_cast %255 : vector<1x1x128xf32> to vector<1x128xf32>
    %257 = vector.broadcast %256 : vector<1x128xf32> to vector<8x128xf32>
    %258 = arith.addf %254, %257 : vector<8x128xf32>
    %259 = arith.addf %242, %258 : vector<8x128xf32>
    %c1_115 = arith.constant 1 : index
    %c0_116 = arith.constant 0 : index
    %c0_117 = arith.constant 0 : index
    %260 = vector.load %arg12[%c1_115, %c0_116, %c0_117] : memref<2x1x128xf32, #tpu.memory_space<vmem>>, vector<1x1x128xf32>
    %261 = vector.shape_cast %260 : vector<1x1x128xf32> to vector<1x128xf32>
    %c1_118 = arith.constant 1 : index
    %c0_119 = arith.constant 0 : index
    %c0_120 = arith.constant 0 : index
    %262 = vector.load %arg13[%c1_118, %c0_119, %c0_120] : memref<2x1x128xf32, #tpu.memory_space<vmem>>, vector<1x1x128xf32>
    %263 = vector.shape_cast %262 : vector<1x1x128xf32> to vector<1x128xf32>
    %cst_121 = arith.constant dense<0.000000e+00> : vector<8xf32>
    %264 = vector.multi_reduction <add>, %259, %cst_121 [1] : vector<8x128xf32> to vector<8xf32>
    %265 = vector.shape_cast %264 : vector<8xf32> to vector<8x1xf32>
    %266 = arith.mulf %259, %259 : vector<8x128xf32>
    %cst_122 = arith.constant dense<0.000000e+00> : vector<8xf32>
    %267 = vector.multi_reduction <add>, %266, %cst_122 [1] : vector<8x128xf32> to vector<8xf32>
    %268 = vector.shape_cast %267 : vector<8xf32> to vector<8x1xf32>
    %cst_123 = arith.constant 0.00999999977 : f32
    %269 = vector.broadcast %cst_123 : f32 to vector<8x1xf32>
    %270 = arith.mulf %265, %269 : vector<8x1xf32>
    %cst_124 = arith.constant 0.00999999977 : f32
    %271 = vector.broadcast %cst_124 : f32 to vector<8x1xf32>
    %272 = arith.mulf %268, %271 : vector<8x1xf32>
    %273 = arith.mulf %270, %270 : vector<8x1xf32>
    %274 = arith.subf %272, %273 : vector<8x1xf32>
    %275 = vector.broadcast %270 : vector<8x1xf32> to vector<8x128xf32>
    %276 = arith.subf %259, %275 : vector<8x128xf32>
    %cst_125 = arith.constant 9.99999974E-6 : f32
    %277 = vector.broadcast %cst_125 : f32 to vector<8x1xf32>
    %278 = arith.addf %274, %277 : vector<8x1xf32>
    %279 = math.rsqrt %278 : vector<8x1xf32>
    %280 = vector.broadcast %279 : vector<8x1xf32> to vector<8x128xf32>
    %281 = arith.mulf %276, %280 : vector<8x128xf32>
    %282 = vector.broadcast %261 : vector<1x128xf32> to vector<8x128xf32>
    %283 = arith.mulf %281, %282 : vector<8x128xf32>
    %284 = vector.broadcast %263 : vector<1x128xf32> to vector<8x128xf32>
    %285 = arith.addf %283, %284 : vector<8x128xf32>
    %286 = vector.shape_cast %285 : vector<8x128xf32> to vector<1x8x128xf32>
    %cst_126 = arith.constant dense<0.000000e+00> : vector<1x128xf32>
    %287 = vector.multi_reduction <add>, %286, %cst_126 [1] : vector<1x8x128xf32> to vector<1x128xf32>
    %cst_127 = arith.constant 1.250000e-01 : f32
    %288 = vector.broadcast %cst_127 : f32 to vector<1x128xf32>
    %289 = arith.mulf %287, %288 : vector<1x128xf32>
    %c0_128 = arith.constant 0 : index
    %c0_129 = arith.constant 0 : index
    %290 = vector.load %arg14[%c0_128, %c0_129] : memref<128x128xf32, #tpu.memory_space<vmem>>, vector<128x128xf32>
    %cst_130 = arith.constant dense<0.000000e+00> : vector<1x128xf32>
    %291 = tpu.matmul %289, %290, %cst_130 {dimension_numbers = #tpu.dot_dimension_numbers<[1], [0], [0], [1], [0, 0, 1, 1], [], []>} : vector<1x128xf32>, vector<128x128xf32>, vector<1x128xf32> -> vector<1x128xf32>
    %c0_131 = arith.constant 0 : index
    %c0_132 = arith.constant 0 : index
    %292 = vector.load %arg15[%c0_131, %c0_132] : memref<1x128xf32, #tpu.memory_space<vmem>>, vector<1x128xf32>
    %293 = arith.addf %291, %292 : vector<1x128xf32>
    %cst_133 = arith.constant 0.000000e+00 : f32
    %294 = vector.broadcast %cst_133 : f32 to vector<1x128xf32>
    %295 = arith.maximumf %293, %294 : vector<1x128xf32>
    %c0_134 = arith.constant 0 : index
    %c0_135 = arith.constant 0 : index
    %296 = vector.load %arg16[%c0_134, %c0_135] : memref<128x128xf32, #tpu.memory_space<vmem>>, vector<128x128xf32>
    %cst_136 = arith.constant dense<0.000000e+00> : vector<1x128xf32>
    %297 = tpu.matmul %295, %296, %cst_136 {dimension_numbers = #tpu.dot_dimension_numbers<[1], [0], [0], [1], [0, 0, 1, 1], [], []>} : vector<1x128xf32>, vector<128x128xf32>, vector<1x128xf32> -> vector<1x128xf32>
    %c0_137 = arith.constant 0 : index
    %c0_138 = arith.constant 0 : index
    %298 = vector.load %arg17[%c0_137, %c0_138] : memref<1x128xf32, #tpu.memory_space<vmem>>, vector<1x128xf32>
    %299 = arith.addf %297, %298 : vector<1x128xf32>
    %c0_139 = arith.constant 0 : index
    %c0_140 = arith.constant 0 : index
    %c0_141 = arith.constant 0 : index
    %300 = vector.load %arg18[%c0_139, %c0_140, %c0_141] : memref<1x1x128xf32, #tpu.memory_space<vmem>>, vector<1x1x128xf32>
    %301 = vector.shape_cast %300 : vector<1x1x128xf32> to vector<1x128xf32>
    %302 = vector.shape_cast %299 : vector<1x128xf32> to vector<1x1x128xf32>
    tpu.vector_store %arg18[%c0_139, %c0_140, %c0_141], %302 {strides = array<i32>} : memref<1x1x128xf32, #tpu.memory_space<vmem>>, vector<1x1x128xf32>,
    return
  }
  func.func @transform_0(%arg0: i32) -> (i32, i32, i32) {
    %c0_i32 = arith.constant 0 : i32
    %c0_i32_0 = arith.constant 0 : i32
    %c0_i32_1 = arith.constant 0 : i32
    return %arg0, %c0_i32, %c0_i32_0 : i32, i32, i32
  }
  func.func @transform_1(%arg0: i32) -> (i32, i32, i32) {
    %c0_i32 = arith.constant 0 : i32
    %c0_i32_0 = arith.constant 0 : i32
    %c0_i32_1 = arith.constant 0 : i32
    %c0_i32_2 = arith.constant 0 : i32
    return %c0_i32, %c0_i32_0, %c0_i32_1 : i32, i32, i32
  }
  func.func @transform_2(%arg0: i32) -> (i32, i32, i32) {
    %c0_i32 = arith.constant 0 : i32
    %c0_i32_0 = arith.constant 0 : i32
    %c0_i32_1 = arith.constant 0 : i32
    %c0_i32_2 = arith.constant 0 : i32
    return %c0_i32, %c0_i32_0, %c0_i32_1 : i32, i32, i32
  }
  func.func @transform_3(%arg0: i32) -> (i32, i32, i32) {
    %c0_i32 = arith.constant 0 : i32
    %c0_i32_0 = arith.constant 0 : i32
    %c0_i32_1 = arith.constant 0 : i32
    %c0_i32_2 = arith.constant 0 : i32
    return %c0_i32, %c0_i32_0, %c0_i32_1 : i32, i32, i32
  }
  func.func @transform_4(%arg0: i32) -> (i32, i32, i32) {
    %c0_i32 = arith.constant 0 : i32
    %c0_i32_0 = arith.constant 0 : i32
    %c0_i32_1 = arith.constant 0 : i32
    %c0_i32_2 = arith.constant 0 : i32
    return %c0_i32, %c0_i32_0, %c0_i32_1 : i32, i32, i32
  }
  func.func @transform_5(%arg0: i32) -> (i32, i32, i32) {
    %c0_i32 = arith.constant 0 : i32
    %c0_i32_0 = arith.constant 0 : i32
    %c0_i32_1 = arith.constant 0 : i32
    %c0_i32_2 = arith.constant 0 : i32
    return %c0_i32, %c0_i32_0, %c0_i32_1 : i32, i32, i32
  }
  func.func @transform_6(%arg0: i32) -> (i32, i32, i32) {
    %c0_i32 = arith.constant 0 : i32
    %c0_i32_0 = arith.constant 0 : i32
    %c0_i32_1 = arith.constant 0 : i32
    %c0_i32_2 = arith.constant 0 : i32
    return %c0_i32, %c0_i32_0, %c0_i32_1 : i32, i32, i32
  }
  func.func @transform_7(%arg0: i32) -> (i32, i32, i32) {
    %c0_i32 = arith.constant 0 : i32
    %c0_i32_0 = arith.constant 0 : i32
    %c0_i32_1 = arith.constant 0 : i32
    %c0_i32_2 = arith.constant 0 : i32
    return %c0_i32, %c0_i32_0, %c0_i32_1 : i32, i32, i32
  }
  func.func @transform_8(%arg0: i32) -> (i32, i32, i32) {
    %c0_i32 = arith.constant 0 : i32
    %c0_i32_0 = arith.constant 0 : i32
    %c0_i32_1 = arith.constant 0 : i32
    %c0_i32_2 = arith.constant 0 : i32
    return %c0_i32, %c0_i32_0, %c0_i32_1 : i32, i32, i32
  }
  func.func @transform_9(%arg0: i32) -> (i32, i32, i32) {
    %c0_i32 = arith.constant 0 : i32
    %c0_i32_0 = arith.constant 0 : i32
    %c0_i32_1 = arith.constant 0 : i32
    %c0_i32_2 = arith.constant 0 : i32
    return %c0_i32, %c0_i32_0, %c0_i32_1 : i32, i32, i32
  }
  func.func @transform_10(%arg0: i32) -> (i32, i32, i32) {
    %c0_i32 = arith.constant 0 : i32
    %c0_i32_0 = arith.constant 0 : i32
    %c0_i32_1 = arith.constant 0 : i32
    %c0_i32_2 = arith.constant 0 : i32
    return %c0_i32, %c0_i32_0, %c0_i32_1 : i32, i32, i32
  }
  func.func @transform_11(%arg0: i32) -> (i32, i32, i32) {
    %c0_i32 = arith.constant 0 : i32
    %c0_i32_0 = arith.constant 0 : i32
    %c0_i32_1 = arith.constant 0 : i32
    %c0_i32_2 = arith.constant 0 : i32
    return %c0_i32, %c0_i32_0, %c0_i32_1 : i32, i32, i32
  }
  func.func @transform_12(%arg0: i32) -> (i32, i32, i32) {
    %c0_i32 = arith.constant 0 : i32
    %c0_i32_0 = arith.constant 0 : i32
    %c0_i32_1 = arith.constant 0 : i32
    %c0_i32_2 = arith.constant 0 : i32
    return %c0_i32, %c0_i32_0, %c0_i32_1 : i32, i32, i32
  }
  func.func @transform_13(%arg0: i32) -> (i32, i32) {
    %c0_i32 = arith.constant 0 : i32
    %c0_i32_0 = arith.constant 0 : i32
    %c0_i32_1 = arith.constant 0 : i32
    return %c0_i32, %c0_i32_0 : i32, i32
  }
  func.func @transform_14(%arg0: i32) -> (i32, i32) {
    %c0_i32 = arith.constant 0 : i32
    %c0_i32_0 = arith.constant 0 : i32
    %c0_i32_1 = arith.constant 0 : i32
    return %c0_i32, %c0_i32_0 : i32, i32
  }
  func.func @transform_15(%arg0: i32) -> (i32, i32) {
    %c0_i32 = arith.constant 0 : i32
    %c0_i32_0 = arith.constant 0 : i32
    %c0_i32_1 = arith.constant 0 : i32
    return %c0_i32, %c0_i32_0 : i32, i32
  }
  func.func @transform_16(%arg0: i32) -> (i32, i32) {
    %c0_i32 = arith.constant 0 : i32
    %c0_i32_0 = arith.constant 0 : i32
    %c0_i32_1 = arith.constant 0 : i32
    return %c0_i32, %c0_i32_0 : i32, i32
  }
  func.func @transform_17(%arg0: i32) -> (i32, i32, i32) {
    %c0_i32 = arith.constant 0 : i32
    %c0_i32_0 = arith.constant 0 : i32
    %c0_i32_1 = arith.constant 0 : i32
    return %arg0, %c0_i32, %c0_i32_0 : i32, i32, i32
  }
}

</mosaic_0001>

<llo_original>
// kernel: tpu_custom_call.1
$region0: #{tpu_custom_call.1}
  #allocation0 [shape = 'u32[]', space=smem, size = 0x4, offset = 0x4, fixed_abs, tag = 'smem constant byte address 0x4 - core index']
  #allocation1 [shape = 'u32[144,128]{1,0:T(1,128)}', space=vmem, size = 0x12000, scoped, tag = 'internal scratch']
  %s0 = inlined_call_operand.hbm [shape: f32[2,8,128], index: 0, kind: input, shape index: {}]
  %s1 = inlined_call_operand.hbm [shape: f32[2,128,1920], index: 1, kind: input, shape index: {}]
  %s2 = inlined_call_operand.hbm [shape: f32[2,1,1920], index: 2, kind: input, shape index: {}]
  %s3 = inlined_call_operand.hbm [shape: f32[2,640,128], index: 3, kind: input, shape index: {}]
  %s4 = inlined_call_operand.hbm [shape: f32[2,1,128], index: 4, kind: input, shape index: {}]
  %s5 = inlined_call_operand.hbm [shape: f32[2,1,128], index: 5, kind: input, shape index: {}]
  %s6 = inlined_call_operand.hbm [shape: f32[2,1,128], index: 6, kind: input, shape index: {}]
  %s7 = inlined_call_operand.hbm [shape: f32[2,128,256], index: 7, kind: input, shape index: {}]
  %s8 = inlined_call_operand.hbm [shape: f32[2,1,256], index: 8, kind: input, shape index: {}]
  %s9 = inlined_call_operand.hbm [shape: f32[2,256,128], index: 9, kind: input, shape index: {}]
  %s10 = inlined_call_operand.hbm [shape: f32[2,1,128], index: 10, kind: input, shape index: {}]
  %s11 = inlined_call_operand.hbm [shape: f32[2,1,128], index: 11, kind: input, shape index: {}]
  %s12 = inlined_call_operand.hbm [shape: f32[2,1,128], index: 12, kind: input, shape index: {}]
  %s13 = inlined_call_operand.hbm [shape: f32[128,128], index: 13, kind: input, shape index: {}]
  %s14 = inlined_call_operand.hbm [shape: f32[1,128], index: 14, kind: input, shape index: {}]
  %s15 = inlined_call_operand.hbm [shape: f32[128,128], index: 15, kind: input, shape index: {}]
  %s16 = inlined_call_operand.hbm [shape: f32[1,128], index: 16, kind: input, shape index: {}]
  %s17 = inlined_call_operand.hbm [shape: f32[2,1,128], index: 17, kind: output, shape index: {}]
  %s18 = sld [smem:[#allocation0]]
  $region169: #{tpu_custom_call.1} parent=0
    _
  %s20 = ssub.s32 1, %s18
  %s21 = scalar_select 0, %s20, %s18
  $region1: #{tpu_custom_call.1} parent=0
    #allocation2 [shape = 'u8[8192]{0}', space=vmem, size = 0x2000, scoped, tag = 'input window, operand 0']
    #allocation3 [shape = 's32[2]{0}', space=sflag, size = 0x8, scoped, tag = 'scoped memory for tpu_custom_call.1']
    #allocation4 [shape = 's32[2]{0}', space=sflag, size = 0x8, scoped, tag = 'scoped memory for tpu_custom_call.1']
    #allocation5 [shape = 'u8[1966080]{0}', space=vmem, size = 0x1e0000, scoped, tag = 'input window, operand 1, single buffered']
    #allocation6 [shape = 's32[1]{0}', space=sflag, size = 0x4, scoped, tag = 'scoped memory for tpu_custom_call.1']
    #allocation7 [shape = 'u8[15360]{0}', space=vmem, size = 0x3c00, scoped, tag = 'input window, operand 2, single buffered']
    #allocation8 [shape = 'u8[655360]{0}', space=vmem, size = 0xa0000, scoped, tag = 'input window, operand 3, single buffered']
    #allocation9 [shape = 's32[1]{0}', space=sflag, size = 0x4, scoped, tag = 'scoped memory for tpu_custom_call.1']
    #allocation10 [shape = 'u8[1024]{0}', space=vmem, size = 0x400, scoped, tag = 'input window, operand 4, single buffered']
    #allocation11 [shape = 'u8[1024]{0}', space=vmem, size = 0x400, scoped, tag = 'input window, operand 5, single buffered']
    #allocation12 [shape = 's32[1]{0}', space=sflag, size = 0x4, scoped, tag = 'scoped memory for tpu_custom_call.1']
    #allocation13 [shape = 'u8[1024]{0}', space=vmem, size = 0x400, scoped, tag = 'input window, operand 6, single buffered']
    #allocation14 [shape = 'u8[262144]{0}', space=vmem, size = 0x40000, scoped, tag = 'input window, operand 7, single buffered']
    #allocation15 [shape = 's32[1]{0}', space=sflag, size = 0x4, scoped, tag = 'scoped memory for tpu_custom_call.1']
    #allocation16 [shape = 'u8[2048]{0}', space=vmem, size = 0x800, scoped, tag = 'input window, operand 8, single buffered']
    #allocation17 [shape = 'u8[262144]{0}', space=vmem, size = 0x40000, scoped, tag = 'input window, operand 9, single buffered']
    #allocation18 [shape = 's32[1]{0}', space=sflag, size = 0x4, scoped, tag = 'scoped memory for tpu_custom_call.1']
    #allocation19 [shape = 'u8[1024]{0}', space=vmem, size = 0x400, scoped, tag = 'input window, operand 10, single buffered']
    #allocation20 [shape = 'u8[1024]{0}', space=vmem, size = 0x400, scoped, tag = 'input window, operand 11, single buffered']
    #allocation21 [shape = 's32[1]{0}', space=sflag, size = 0x4, scoped, tag = 'scoped memory for tpu_custom_call.1']
    #allocation22 [shape = 'u8[1024]{0}', space=vmem, size = 0x400, scoped, tag = 'input window, operand 12, single buffered']
    #allocation23 [shape = 'u8[65536]{0}', space=vmem, size = 0x10000, scoped, tag = 'input window, operand 13, single buffered']
    #allocation24 [shape = 's32[1]{0}', space=sflag, size = 0x4, scoped, tag = 'scoped memory for tpu_custom_call.1']
    #allocation25 [shape = 'u8[512]{0}', space=vmem, size = 0x400, scoped, tag = 'input window, operand 14, single buffered']
    #allocation26 [shape = 'u8[65536]{0}', space=vmem, size = 0x10000, scoped, tag = 'input window, operand 15, single buffered']
    #allocation27 [shape = 's32[1]{0}', space=sflag, size = 0x4, scoped, tag = 'scoped memory for tpu_custom_call.1']
    #allocation28 [shape = 'u8[512]{0}', space=vmem, size = 0x400, scoped, tag = 'input window, operand 16, single buffered']
    #allocation29 [shape = 'u8[1024]{0}', space=vmem, size = 0x400, scoped, tag = 'output window, operand 0']
    %22 = vsyncpa [#allocation3], 0
    %s23 = scalar_lea.sflag [#allocation3], 1
    %24 = vsyncpa %s23, 0
    %25 = vsyncpa [#allocation6], 0
    %26 = vsyncpa [#allocation9], 0
    %27 = vsyncpa [#allocation12], 0
    %28 = vsyncpa [#allocation15], 0
    %29 = vsyncpa [#allocation18], 0
    %30 = vsyncpa [#allocation21], 0
    %31 = vsyncpa [#allocation24], 0
    %32 = vsyncpa [#allocation27], 0
    %33 = vsyncpa [#allocation4], 0
    %s34 = scalar_lea.sflag [#allocation4], 1
    %35 = vsyncpa %s34, 0
    loop: start=0, step=1, limit=4
    $region2: #{tpu_custom_call.1} parent=1 // loop_pre_header
      _
    $region3: #{tpu_custom_call.1} parent=1 // loop_header
      %s37 = sphi 0, %s41
      %p38 = scmp.ge.s32.totalorder %s37, 4
      %s47 = sphi 0, %s49
      %s50 = sphi 0, %s47
      %s51 = sphi 0, %s50
      %s67 = sphi 0, %s51
      %s71 = sphi 0, %s71
      %s73 = sphi 0, %s71
      %s74 = sphi 0, %s73
      %s88 = sphi 0, %s74
      %s92 = sphi 0, %s92
      %s94 = sphi 0, %s92
      %s95 = sphi 0, %s94
      %s109 = sphi 0, %s95
      %s113 = sphi 0, %s113
      %s115 = sphi 0, %s113
      %s116 = sphi 0, %s115
      %s130 = sphi 0, %s116
      %s134 = sphi 0, %s134
      %s136 = sphi 0, %s134
      %s137 = sphi 0, %s136
      %s151 = sphi 0, %s137
      %s155 = sphi 0, %s155
      %s157 = sphi 0, %s155
      %s158 = sphi 0, %s157
      %s172 = sphi 0, %s158
      %s176 = sphi 0, %s176
      %s178 = sphi 0, %s176
      %s179 = sphi 0, %s178
      %s193 = sphi 0, %s179
      %s197 = sphi 0, %s197
      %s199 = sphi 0, %s197
      %s200 = sphi 0, %s199
      %s214 = sphi 0, %s200
      %s218 = sphi 0, %s218
      %s220 = sphi 0, %s218
      %s221 = sphi 0, %s220
      %s235 = sphi 0, %s221
      %s239 = sphi 0, %s239
      %s241 = sphi 0, %s239
      %s242 = sphi 0, %s241
      %s256 = sphi 0, %s242
      %s260 = sphi 0, %s260
      %s262 = sphi 0, %s260
      %s263 = sphi 0, %s262
      %s277 = sphi 0, %s263
      %s281 = sphi 0, %s281
      %s283 = sphi 0, %s281
      %s284 = sphi 0, %s283
      %s298 = sphi 0, %s284
      %s302 = sphi 0, %s302
      %s304 = sphi 0, %s302
      %s305 = sphi 0, %s304
      %s319 = sphi 0, %s305
      %s323 = sphi 0, %s323
      %s325 = sphi 0, %s323
      %s326 = sphi 0, %s325
      %s340 = sphi 0, %s326
      %s344 = sphi 0, %s344
      %s346 = sphi 0, %s344
      %s347 = sphi 0, %s346
      %s361 = sphi 0, %s347
      %s365 = sphi 0, %s365
      %s367 = sphi 0, %s365
      %s368 = sphi 0, %s367
      %s382 = sphi 0, %s368
      %s386 = sphi 0, %s386
      %s388 = sphi 0, %s386
      %s389 = sphi 0, %s388
      %s403 = sphi 0, %s389
      %s409 = sphi 0, %s411
      %s412 = sphi 0, %s409
      %s413 = sphi 0, %s412
      %s429 = sphi 0, %s413
    $region4: #{tpu_custom_call.1} parent=1 // loop_header_branch
      %40 = sbr.rel (%p38) target = $region8
    $region5: #{tpu_custom_call.1} parent=1 // loop_body
      %s42 = ssub.s32 %s37, 1
      %s43 = ssub.s32 %s37, 2
      %s44 = sadd.s32 %s37, 1
      %s45 = ssub.s32 %s37, %s44
      %p46 = scmp.eq.s32.totalorder %s45, 0
      %s48 = sadd.s32 %s47, 1
      %s49 = scalar_select %p46, %s47, %s48
      %p52 = pneg %p46
      %p53 = scmp.eq.s32.totalorder %s37, 1
      %p54 = por %p52, %p53
      %p55 = scmp.ne.s32.totalorder %s47, %s50
      %p56 = scmp.eq.s32.totalorder %s37, 0
      %p57 = por %p55, %p56
      %p58 = scmp.ne.s32.totalorder %s47, %s50
      %p59 = scmp.eq.s32.totalorder %s42, 1
      %p60 = por %p58, %p59
      %p61 = scmp.ne.s32.totalorder %s50, %s51
      %p62 = scmp.eq.s32.totalorder %s42, 0
      %p63 = por %p61, %p62
      %p64 = scmp.ne.s32.totalorder %s50, %s51
      %p65 = scmp.eq.s32.totalorder %s43, 1
      %p66 = por %p64, %p65
      %p68 = scmp.ne.s32.totalorder %s51, %s67
      %p69 = scmp.eq.s32.totalorder %s43, 0
      %p70 = por %p68, %p69
      %s72 = sadd.s32 %s71, 1
      %p75 = scmp.eq.s32.totalorder %s37, 1
      %p76 = scmp.ne.s32.totalorder %s71, %s73
      %p77 = scmp.eq.s32.totalorder %s37, 0
      %p78 = por %p76, %p77
      %p79 = scmp.ne.s32.totalorder %s71, %s73
      %p80 = scmp.eq.s32.totalorder %s42, 1
      %p81 = por %p79, %p80
      %p82 = scmp.ne.s32.totalorder %s73, %s74
      %p83 = scmp.eq.s32.totalorder %s42, 0
      %p84 = por %p82, %p83
      %p85 = scmp.ne.s32.totalorder %s73, %s74
      %p86 = scmp.eq.s32.totalorder %s43, 1
      %p87 = por %p85, %p86
      %p89 = scmp.ne.s32.totalorder %s74, %s88
      %p90 = scmp.eq.s32.totalorder %s43, 0
      %p91 = por %p89, %p90
      %s93 = sadd.s32 %s92, 1
      %p96 = scmp.eq.s32.totalorder %s37, 1
      %p97 = scmp.ne.s32.totalorder %s92, %s94
      %p98 = scmp.eq.s32.totalorder %s37, 0
      %p99 = por %p97, %p98
      %p100 = scmp.ne.s32.totalorder %s92, %s94
      %p101 = scmp.eq.s32.totalorder %s42, 1
      %p102 = por %p100, %p101
      %p103 = scmp.ne.s32.totalorder %s94, %s95
      %p104 = scmp.eq.s32.totalorder %s42, 0
      %p105 = por %p103, %p104
      %p106 = scmp.ne.s32.totalorder %s94, %s95
      %p107 = scmp.eq.s32.totalorder %s43, 1
      %p108 = por %p106, %p107
      %p110 = scmp.ne.s32.totalorder %s95, %s109
      %p111 = scmp.eq.s32.totalorder %s43, 0
      %p112 = por %p110, %p111
      %s114 = sadd.s32 %s113, 1
      %p117 = scmp.eq.s32.totalorder %s37, 1
      %p118 = scmp.ne.s32.totalorder %s113, %s115
      %p119 = scmp.eq.s32.totalorder %s37, 0
      %p120 = por %p118, %p119
      %p121 = scmp.ne.s32.totalorder %s113, %s115
      %p122 = scmp.eq.s32.totalorder %s42, 1
      %p123 = por %p121, %p122
      %p124 = scmp.ne.s32.totalorder %s115, %s116
      %p125 = scmp.eq.s32.totalorder %s42, 0
      %p126 = por %p124, %p125
      %p127 = scmp.ne.s32.totalorder %s115, %s116
      %p128 = scmp.eq.s32.totalorder %s43, 1
      %p129 = por %p127, %p128
      %p131 = scmp.ne.s32.totalorder %s116, %s130
      %p132 = scmp.eq.s32.totalorder %s43, 0
      %p133 = por %p131, %p132
      %s135 = sadd.s32 %s134, 1
      %p138 = scmp.eq.s32.totalorder %s37, 1
      %p139 = scmp.ne.s32.totalorder %s134, %s136
      %p140 = scmp.eq.s32.totalorder %s37, 0
      %p141 = por %p139, %p140
      %p142 = scmp.ne.s32.totalorder %s134, %s136
      %p143 = scmp.eq.s32.totalorder %s42, 1
      %p144 = por %p142, %p143
      %p145 = scmp.ne.s32.totalorder %s136, %s137
      %p146 = scmp.eq.s32.totalorder %s42, 0
      %p147 = por %p145, %p146
      %p148 = scmp.ne.s32.totalorder %s136, %s137
      %p149 = scmp.eq.s32.totalorder %s43, 1
      %p150 = por %p148, %p149
      %p152 = scmp.ne.s32.totalorder %s137, %s151
      %p153 = scmp.eq.s32.totalorder %s43, 0
      %p154 = por %p152, %p153
      %s156 = sadd.s32 %s155, 1
      %p159 = scmp.eq.s32.totalorder %s37, 1
      %p160 = scmp.ne.s32.totalorder %s155, %s157
      %p161 = scmp.eq.s32.totalorder %s37, 0
      %p162 = por %p160, %p161
      %p163 = scmp.ne.s32.totalorder %s155, %s157
      %p164 = scmp.eq.s32.totalorder %s42, 1
      %p165 = por %p163, %p164
      %p166 = scmp.ne.s32.totalorder %s157, %s158
      %p167 = scmp.eq.s32.totalorder %s42, 0
      %p168 = por %p166, %p167
      %p169 = scmp.ne.s32.totalorder %s157, %s158
      %p170 = scmp.eq.s32.totalorder %s43, 1
      %p171 = por %p169, %p170
      %p173 = scmp.ne.s32.totalorder %s158, %s172
      %p174 = scmp.eq.s32.totalorder %s43, 0
      %p175 = por %p173, %p174
      %s177 = sadd.s32 %s176, 1
      %p180 = scmp.eq.s32.totalorder %s37, 1
      %p181 = scmp.ne.s32.totalorder %s176, %s178
      %p182 = scmp.eq.s32.totalorder %s37, 0
      %p183 = por %p181, %p182
      %p184 = scmp.ne.s32.totalorder %s176, %s178
      %p185 = scmp.eq.s32.totalorder %s42, 1
      %p186 = por %p184, %p185
      %p187 = scmp.ne.s32.totalorder %s178, %s179
      %p188 = scmp.eq.s32.totalorder %s42, 0
      %p189 = por %p187, %p188
      %p190 = scmp.ne.s32.totalorder %s178, %s179
      %p191 = scmp.eq.s32.totalorder %s43, 1
      %p192 = por %p190, %p191
      %p194 = scmp.ne.s32.totalorder %s179, %s193
      %p195 = scmp.eq.s32.totalorder %s43, 0
      %p196 = por %p194, %p195
      %s198 = sadd.s32 %s197, 1
      %p201 = scmp.eq.s32.totalorder %s37, 1
      %p202 = scmp.ne.s32.totalorder %s197, %s199
      %p203 = scmp.eq.s32.totalorder %s37, 0
      %p204 = por %p202, %p203
      %p205 = scmp.ne.s32.totalorder %s197, %s199
      %p206 = scmp.eq.s32.totalorder %s42, 1
      %p207 = por %p205, %p206
      %p208 = scmp.ne.s32.totalorder %s199, %s200
      %p209 = scmp.eq.s32.totalorder %s42, 0
      %p210 = por %p208, %p209
      %p211 = scmp.ne.s32.totalorder %s199, %s200
      %p212 = scmp.eq.s32.totalorder %s43, 1
      %p213 = por %p211, %p212
      %p215 = scmp.ne.s32.totalorder %s200, %s214
      %p216 = scmp.eq.s32.totalorder %s43, 0
      %p217 = por %p215, %p216
      %s219 = sadd.s32 %s218, 1
      %p222 = scmp.eq.s32.totalorder %s37, 1
      %p223 = scmp.ne.s32.totalorder %s218, %s220
      %p224 = scmp.eq.s32.totalorder %s37, 0
      %p225 = por %p223, %p224
      %p226 = scmp.ne.s32.totalorder %s218, %s220
      %p227 = scmp.eq.s32.totalorder %s42, 1
      %p228 = por %p226, %p227
      %p229 = scmp.ne.s32.totalorder %s220, %s221
      %p230 = scmp.eq.s32.totalorder %s42, 0
      %p231 = por %p229, %p230
      %p232 = scmp.ne.s32.totalorder %s220, %s221
      %p233 = scmp.eq.s32.totalorder %s43, 1
      %p234 = por %p232, %p233
      %p236 = scmp.ne.s32.totalorder %s221, %s235
      %p237 = scmp.eq.s32.totalorder %s43, 0
      %p238 = por %p236, %p237
      %s240 = sadd.s32 %s239, 1
      %p243 = scmp.eq.s32.totalorder %s37, 1
      %p244 = scmp.ne.s32.totalorder %s239, %s241
      %p245 = scmp.eq.s32.totalorder %s37, 0
      %p246 = por %p244, %p245
      %p247 = scmp.ne.s32.totalorder %s239, %s241
      %p248 = scmp.eq.s32.totalorder %s42, 1
      %p249 = por %p247, %p248
      %p250 = scmp.ne.s32.totalorder %s241, %s242
      %p251 = scmp.eq.s32.totalorder %s42, 0
      %p252 = por %p250, %p251
      %p253 = scmp.ne.s32.totalorder %s241, %s242
      %p254 = scmp.eq.s32.totalorder %s43, 1
      %p255 = por %p253, %p254
      %p257 = scmp.ne.s32.totalorder %s242, %s256
      %p258 = scmp.eq.s32.totalorder %s43, 0
      %p259 = por %p257, %p258
      %s261 = sadd.s32 %s260, 1
      %p264 = scmp.eq.s32.totalorder %s37, 1
      %p265 = scmp.ne.s32.totalorder %s260, %s262
      %p266 = scmp.eq.s32.totalorder %s37, 0
      %p267 = por %p265, %p266
      %p268 = scmp.ne.s32.totalorder %s260, %s262
      %p269 = scmp.eq.s32.totalorder %s42, 1
      %p270 = por %p268, %p269
      %p271 = scmp.ne.s32.totalorder %s262, %s263
      %p272 = scmp.eq.s32.totalorder %s42, 0
      %p273 = por %p271, %p272
      %p274 = scmp.ne.s32.totalorder %s262, %s263
      %p275 = scmp.eq.s32.totalorder %s43, 1
      %p276 = por %p274, %p275
      %p278 = scmp.ne.s32.totalorder %s263, %s277
      %p279 = scmp.eq.s32.totalorder %s43, 0
      %p280 = por %p278, %p279
      %s282 = sadd.s32 %s281, 1
      %p285 = scmp.eq.s32.totalorder %s37, 1
      %p286 = scmp.ne.s32.totalorder %s281, %s283
      %p287 = scmp.eq.s32.totalorder %s37, 0
      %p288 = por %p286, %p287
      %p289 = scmp.ne.s32.totalorder %s281, %s283
      %p290 = scmp.eq.s32.totalorder %s42, 1
      %p291 = por %p289, %p290
      %p292 = scmp.ne.s32.totalorder %s283, %s284
      %p293 = scmp.eq.s32.totalorder %s42, 0
      %p294 = por %p292, %p293
      %p295 = scmp.ne.s32.totalorder %s283, %s284
      %p296 = scmp.eq.s32.totalorder %s43, 1
      %p297 = por %p295, %p296
      %p299 = scmp.ne.s32.totalorder %s284, %s298
      %p300 = scmp.eq.s32.totalorder %s43, 0
      %p301 = por %p299, %p300
      %s303 = sadd.s32 %s302, 1
      %p306 = scmp.eq.s32.totalorder %s37, 1
      %p307 = scmp.ne.s32.totalorder %s302, %s304
      %p308 = scmp.eq.s32.totalorder %s37, 0
      %p309 = por %p307, %p308
      %p310 = scmp.ne.s32.totalorder %s302, %s304
      %p311 = scmp.eq.s32.totalorder %s42, 1
      %p312 = por %p310, %p311
      %p313 = scmp.ne.s32.totalorder %s304, %s305
      %p314 = scmp.eq.s32.totalorder %s42, 0
      %p315 = por %p313, %p314
      %p316 = scmp.ne.s32.totalorder %s304, %s305
      %p317 = scmp.eq.s32.totalorder %s43, 1
      %p318 = por %p316, %p317
      %p320 = scmp.ne.s32.totalorder %s305, %s319
      %p321 = scmp.eq.s32.totalorder %s43, 0
      %p322 = por %p320, %p321
      %s324 = sadd.s32 %s323, 1
      %p327 = scmp.eq.s32.totalorder %s37, 1
      %p328 = scmp.ne.s32.totalorder %s323, %s325
      %p329 = scmp.eq.s32.totalorder %s37, 0
      %p330 = por %p328, %p329
      %p331 = scmp.ne.s32.totalorder %s323, %s325
      %p332 = scmp.eq.s32.totalorder %s42, 1
      %p333 = por %p331, %p332
      %p334 = scmp.ne.s32.totalorder %s325, %s326
      %p335 = scmp.eq.s32.totalorder %s42, 0
      %p336 = por %p334, %p335
      %p337 = scmp.ne.s32.totalorder %s325, %s326
      %p338 = scmp.eq.s32.totalorder %s43, 1
      %p339 = por %p337, %p338
      %p341 = scmp.ne.s32.totalorder %s326, %s340
      %p342 = scmp.eq.s32.totalorder %s43, 0
      %p343 = por %p341, %p342
      %s345 = sadd.s32 %s344, 1
      %p348 = scmp.eq.s32.totalorder %s37, 1
      %p349 = scmp.ne.s32.totalorder %s344, %s346
      %p350 = scmp.eq.s32.totalorder %s37, 0
      %p351 = por %p349, %p350
      %p352 = scmp.ne.s32.totalorder %s344, %s346
      %p353 = scmp.eq.s32.totalorder %s42, 1
      %p354 = por %p352, %p353
      %p355 = scmp.ne.s32.totalorder %s346, %s347
      %p356 = scmp.eq.s32.totalorder %s42, 0
      %p357 = por %p355, %p356
      %p358 = scmp.ne.s32.totalorder %s346, %s347
      %p359 = scmp.eq.s32.totalorder %s43, 1
      %p360 = por %p358, %p359
      %p362 = scmp.ne.s32.totalorder %s347, %s361
      %p363 = scmp.eq.s32.totalorder %s43, 0
      %p364 = por %p362, %p363
      %s366 = sadd.s32 %s365, 1
      %p369 = scmp.eq.s32.totalorder %s37, 1
      %p370 = scmp.ne.s32.totalorder %s365, %s367
      %p371 = scmp.eq.s32.totalorder %s37, 0
      %p372 = por %p370, %p371
      %p373 = scmp.ne.s32.totalorder %s365, %s367
      %p374 = scmp.eq.s32.totalorder %s42, 1
      %p375 = por %p373, %p374
      %p376 = scmp.ne.s32.totalorder %s367, %s368
      %p377 = scmp.eq.s32.totalorder %s42, 0
      %p378 = por %p376, %p377
      %p379 = scmp.ne.s32.totalorder %s367, %s368
      %p380 = scmp.eq.s32.totalorder %s43, 1
      %p381 = por %p379, %p380
      %p383 = scmp.ne.s32.totalorder %s368, %s382
      %p384 = scmp.eq.s32.totalorder %s43, 0
      %p385 = por %p383, %p384
      %s387 = sadd.s32 %s386, 1
      %p390 = scmp.eq.s32.totalorder %s37, 1
      %p391 = scmp.ne.s32.totalorder %s386, %s388
      %p392 = scmp.eq.s32.totalorder %s37, 0
      %p393 = por %p391, %p392
      %p394 = scmp.ne.s32.totalorder %s386, %s388
      %p395 = scmp.eq.s32.totalorder %s42, 1
      %p396 = por %p394, %p395
      %p397 = scmp.ne.s32.totalorder %s388, %s389
      %p398 = scmp.eq.s32.totalorder %s42, 0
      %p399 = por %p397, %p398
      %p400 = scmp.ne.s32.totalorder %s388, %s389
      %p401 = scmp.eq.s32.totalorder %s43, 1
      %p402 = por %p400, %p401
      %p404 = scmp.ne.s32.totalorder %s389, %s403
      %p405 = scmp.eq.s32.totalorder %s43, 0
      %p406 = por %p404, %p405
      %s407 = ssub.s32 %s37, %s44
      %p408 = scmp.eq.s32.totalorder %s407, 0
      %s410 = sadd.s32 %s409, 1
      %s411 = scalar_select %p408, %s409, %s410
      %p414 = pneg %p408
      %p415 = scmp.eq.s32.totalorder %s37, 1
      %p416 = por %p414, %p415
      %p417 = scmp.ne.s32.totalorder %s409, %s412
      %p418 = scmp.eq.s32.totalorder %s37, 0
      %p419 = por %p417, %p418
      %p420 = scmp.ne.s32.totalorder %s409, %s412
      %p421 = scmp.eq.s32.totalorder %s42, 1
      %p422 = por %p420, %p421
      %p423 = scmp.ne.s32.totalorder %s412, %s413
      %p424 = scmp.eq.s32.totalorder %s42, 0
      %p425 = por %p423, %p424
      %p426 = scmp.ne.s32.totalorder %s412, %s413
      %p427 = scmp.eq.s32.totalorder %s43, 1
      %p428 = por %p426, %p427
      %p430 = scmp.ne.s32.totalorder %s413, %s429
      %p431 = scmp.eq.s32.totalorder %s43, 0
      %p432 = por %p430, %p431
      %p433 = scmp.le.s32.totalorder 1, %s37
      %p434 = scmp.lt.s32.totalorder %s37, 3
      %p435 = pnand %p433, %p434
      %p436 = pneg %p435
      // Predicated region
      $region9: #{tpu_custom_call.1} parent=5 // pred_check
        _
      $region10: #{tpu_custom_call.1} parent=5 // pred_check_branch
        %438 = sbr.rel (%p435) target = $region12
      $region11: #{tpu_custom_call.1} parent=5 // pred_region
        %s439 = ssub.s32 %s37, 1
        // Predicated region
        $region13: #{tpu_custom_call.1} parent=11 // pred_check
          %p440 = pneg %p84
        $region14: #{tpu_custom_call.1} parent=11 // pred_check_branch
          %442 = sbr.rel (%p440) target = $region16
        $region15: #{tpu_custom_call.1} parent=11 // pred_region
          %s444 = ssub.s32 61440, 61440
          %445 = vsyncadd [#allocation6], %s444
          %s446 = sshll.u32 [#allocation5], 4
          %s447 = int_to_ptr.vmem [resolvable:$true] %s446
          %452 = dma.hbm_to_vmem [thread:$0]  %s1, 61440, %s447, [#allocation6], 1920, 1920, 120
        $region16: #{tpu_custom_call.1} parent=11 // pred_fallthru
          _
        // Predicated region
        $region17: #{tpu_custom_call.1} parent=11 // pred_check
          %p453 = pneg %p105
        $region18: #{tpu_custom_call.1} parent=11 // pred_check_branch
          %455 = sbr.rel (%p453) target = $region20
        $region19: #{tpu_custom_call.1} parent=11 // pred_region
          %s457 = ssub.s32 480, 480
          %458 = vsyncadd [#allocation6], %s457
          %s459 = sshll.u32 [#allocation7], 4
          %s460 = int_to_ptr.vmem [resolvable:$true] %s459
          %465 = dma.hbm_to_vmem [thread:$0]  %s2, 480, %s460, [#allocation6], 240, 240, 15
        $region20: #{tpu_custom_call.1} parent=11 // pred_fallthru
          _
        // Predicated region
        $region21: #{tpu_custom_call.1} parent=11 // pred_check
          %p466 = pneg %p126
        $region22: #{tpu_custom_call.1} parent=11 // pred_check_branch
          %468 = sbr.rel (%p466) target = $region24
        $region23: #{tpu_custom_call.1} parent=11 // pred_region
          %s470 = ssub.s32 20480, 20480
          %471 = vsyncadd [#allocation9], %s470
          %s472 = sshll.u32 [#allocation8], 4
          %s473 = int_to_ptr.vmem [resolvable:$true] %s472
          %478 = dma.hbm_to_vmem [thread:$0]  %s3, 20480, %s473, [#allocation9], 128, 128, 8
        $region24: #{tpu_custom_call.1} parent=11 // pred_fallthru
          _
        // Predicated region
        $region25: #{tpu_custom_call.1} parent=11 // pred_check
          %p479 = pneg %p147
        $region26: #{tpu_custom_call.1} parent=11 // pred_check_branch
          %481 = sbr.rel (%p479) target = $region28
        $region27: #{tpu_custom_call.1} parent=11 // pred_region
          %s483 = ssub.s32 32, 32
          %484 = vsyncadd [#allocation9], %s483
          %s485 = sshll.u32 [#allocation10], 4
          %s486 = int_to_ptr.vmem [resolvable:$true] %s485
          %491 = dma.hbm_to_vmem [thread:$0]  %s4, 32, %s486, [#allocation9], 16, 16, 1
        $region28: #{tpu_custom_call.1} parent=11 // pred_fallthru
          _
        // Predicated region
        $region29: #{tpu_custom_call.1} parent=11 // pred_check
          %p492 = pneg %p168
        $region30: #{tpu_custom_call.1} parent=11 // pred_check_branch
          %494 = sbr.rel (%p492) target = $region32
        $region31: #{tpu_custom_call.1} parent=11 // pred_region
          %s496 = ssub.s32 32, 32
          %497 = vsyncadd [#allocation12], %s496
          %s498 = sshll.u32 [#allocation11], 4
          %s499 = int_to_ptr.vmem [resolvable:$true] %s498
          %504 = dma.hbm_to_vmem [thread:$0]  %s5, 32, %s499, [#allocation12], 16, 16, 1
        $region32: #{tpu_custom_call.1} parent=11 // pred_fallthru
          _
        // Predicated region
        $region33: #{tpu_custom_call.1} parent=11 // pred_check
          %p505 = pneg %p189
        $region34: #{tpu_custom_call.1} parent=11 // pred_check_branch
          %507 = sbr.rel (%p505) target = $region36
        $region35: #{tpu_custom_call.1} parent=11 // pred_region
          %s509 = ssub.s32 32, 32
          %510 = vsyncadd [#allocation12], %s509
          %s511 = sshll.u32 [#allocation13], 4
          %s512 = int_to_ptr.vmem [resolvable:$true] %s511
          %517 = dma.hbm_to_vmem [thread:$0]  %s6, 32, %s512, [#allocation12], 16, 16, 1
        $region36: #{tpu_custom_call.1} parent=11 // pred_fallthru
          _
        // Predicated region
        $region37: #{tpu_custom_call.1} parent=11 // pred_check
          %p518 = pneg %p210
        $region38: #{tpu_custom_call.1} parent=11 // pred_check_branch
          %520 = sbr.rel (%p518) target = $region40
        $region39: #{tpu_custom_call.1} parent=11 // pred_region
          %s522 = ssub.s32 8192, 8192
          %523 = vsyncadd [#allocation15], %s522
          %s524 = sshll.u32 [#allocation14], 4
          %s525 = int_to_ptr.vmem [resolvable:$true] %s524
          %530 = dma.hbm_to_vmem [thread:$0]  %s7, 8192, %s525, [#allocation15], 256, 256, 16
        $region40: #{tpu_custom_call.1} parent=11 // pred_fallthru
          _
        // Predicated region
        $region41: #{tpu_custom_call.1} parent=11 // pred_check
          %p531 = pneg %p231
        $region42: #{tpu_custom_call.1} parent=11 // pred_check_branch
          %533 = sbr.rel (%p531) target = $region44
        $region43: #{tpu_custom_call.1} parent=11 // pred_region
          %s535 = ssub.s32 64, 64
          %536 = vsyncadd [#allocation15], %s535
          %s537 = sshll.u32 [#allocation16], 4
          %s538 = int_to_ptr.vmem [resolvable:$true] %s537
          %543 = dma.hbm_to_vmem [thread:$0]  %s8, 64, %s538, [#allocation15], 32, 32, 2
        $region44: #{tpu_custom_call.1} parent=11 // pred_fallthru
          _
        // Predicated region
        $region45: #{tpu_custom_call.1} parent=11 // pred_check
          %p544 = pneg %p252
        $region46: #{tpu_custom_call.1} parent=11 // pred_check_branch
          %546 = sbr.rel (%p544) target = $region48
        $region47: #{tpu_custom_call.1} parent=11 // pred_region
          %s548 = ssub.s32 8192, 8192
          %549 = vsyncadd [#allocation18], %s548
          %s550 = sshll.u32 [#allocation17], 4
          %s551 = int_to_ptr.vmem [resolvable:$true] %s550
          %556 = dma.hbm_to_vmem [thread:$0]  %s9, 8192, %s551, [#allocation18], 128, 128, 8
        $region48: #{tpu_custom_call.1} parent=11 // pred_fallthru
          _
        // Predicated region
        $region49: #{tpu_custom_call.1} parent=11 // pred_check
          %p557 = pneg %p273
        $region50: #{tpu_custom_call.1} parent=11 // pred_check_branch
          %559 = sbr.rel (%p557) target = $region52
        $region51: #{tpu_custom_call.1} parent=11 // pred_region
          %s561 = ssub.s32 32, 32
          %562 = vsyncadd [#allocation18], %s561
          %s563 = sshll.u32 [#allocation19], 4
          %s564 = int_to_ptr.vmem [resolvable:$true] %s563
          %569 = dma.hbm_to_vmem [thread:$0]  %s10, 32, %s564, [#allocation18], 16, 16, 1
        $region52: #{tpu_custom_call.1} parent=11 // pred_fallthru
          _
        // Predicated region
        $region53: #{tpu_custom_call.1} parent=11 // pred_check
          %p570 = pneg %p294
        $region54: #{tpu_custom_call.1} parent=11 // pred_check_branch
          %572 = sbr.rel (%p570) target = $region56
        $region55: #{tpu_custom_call.1} parent=11 // pred_region
          %s574 = ssub.s32 32, 32
          %575 = vsyncadd [#allocation21], %s574
          %s576 = sshll.u32 [#allocation20], 4
          %s577 = int_to_ptr.vmem [resolvable:$true] %s576
          %582 = dma.hbm_to_vmem [thread:$0]  %s11, 32, %s577, [#allocation21], 16, 16, 1
        $region56: #{tpu_custom_call.1} parent=11 // pred_fallthru
          _
        // Predicated region
        $region57: #{tpu_custom_call.1} parent=11 // pred_check
          %p583 = pneg %p315
        $region58: #{tpu_custom_call.1} parent=11 // pred_check_branch
          %585 = sbr.rel (%p583) target = $region60
        $region59: #{tpu_custom_call.1} parent=11 // pred_region
          %s587 = ssub.s32 32, 32
          %588 = vsyncadd [#allocation21], %s587
          %s589 = sshll.u32 [#allocation22], 4
          %s590 = int_to_ptr.vmem [resolvable:$true] %s589
          %595 = dma.hbm_to_vmem [thread:$0]  %s12, 32, %s590, [#allocation21], 16, 16, 1
        $region60: #{tpu_custom_call.1} parent=11 // pred_fallthru
          _
        // Predicated region
        $region61: #{tpu_custom_call.1} parent=11 // pred_check
          %p596 = pneg %p336
        $region62: #{tpu_custom_call.1} parent=11 // pred_check_branch
          %598 = sbr.rel (%p596) target = $region64
        $region63: #{tpu_custom_call.1} parent=11 // pred_region
          %s600 = ssub.s32 2048, 2048
          %601 = vsyncadd [#allocation24], %s600
          %s602 = sshll.u32 [#allocation23], 4
          %s603 = int_to_ptr.vmem [resolvable:$true] %s602
          %608 = dma.hbm_to_vmem [thread:$0]  %s13, 2048, %s603, [#allocation24], 128, 128, 8
        $region64: #{tpu_custom_call.1} parent=11 // pred_fallthru
          _
        // Predicated region
        $region65: #{tpu_custom_call.1} parent=11 // pred_check
          %p609 = pneg %p357
        $region66: #{tpu_custom_call.1} parent=11 // pred_check_branch
          %611 = sbr.rel (%p609) target = $region68
        $region67: #{tpu_custom_call.1} parent=11 // pred_region
          %s613 = ssub.s32 16, 16
          %614 = vsyncadd [#allocation24], %s613
          %s616 = sshll.u32 [#allocation25], 4
          %s617 = int_to_ptr.vmem [resolvable:$true] %s616
          %619 = dma.hbm_to_vmem [thread:$0]  %s14, 16, %s617, [#allocation24]
        $region68: #{tpu_custom_call.1} parent=11 // pred_fallthru
          _
        // Predicated region
        $region69: #{tpu_custom_call.1} parent=11 // pred_check
          %p620 = pneg %p378
        $region70: #{tpu_custom_call.1} parent=11 // pred_check_branch
          %622 = sbr.rel (%p620) target = $region72
        $region71: #{tpu_custom_call.1} parent=11 // pred_region
          %s624 = ssub.s32 2048, 2048
          %625 = vsyncadd [#allocation27], %s624
          %s626 = sshll.u32 [#allocation26], 4
          %s627 = int_to_ptr.vmem [resolvable:$true] %s626
          %632 = dma.hbm_to_vmem [thread:$0]  %s15, 2048, %s627, [#allocation27], 128, 128, 8
        $region72: #{tpu_custom_call.1} parent=11 // pred_fallthru
          _
        // Predicated region
        $region73: #{tpu_custom_call.1} parent=11 // pred_check
          %p633 = pneg %p399
        $region74: #{tpu_custom_call.1} parent=11 // pred_check_branch
          %635 = sbr.rel (%p633) target = $region76
        $region75: #{tpu_custom_call.1} parent=11 // pred_region
          %s637 = ssub.s32 16, 16
          %638 = vsyncadd [#allocation27], %s637
          %s640 = sshll.u32 [#allocation28], 4
          %s641 = int_to_ptr.vmem [resolvable:$true] %s640
          %643 = dma.hbm_to_vmem [thread:$0]  %s16, 16, %s641, [#allocation27]
        $region76: #{tpu_custom_call.1} parent=11 // pred_fallthru
          _
      $region12: #{tpu_custom_call.1} parent=5 // pred_fallthru
        _
      %p644 = scmp.lt.s32.totalorder %s37, 2
      // Predicated region
      $region77: #{tpu_custom_call.1} parent=5 // pred_check
        %p645 = pneg %p644
      $region78: #{tpu_custom_call.1} parent=5 // pred_check_branch
        %647 = sbr.rel (%p645) target = $region80
      $region79: #{tpu_custom_call.1} parent=5 // pred_region
        // Predicated region
        $region81: #{tpu_custom_call.1} parent=79 // pred_check
          %p648 = pneg %p57
        $region82: #{tpu_custom_call.1} parent=79 // pred_check_branch
          %650 = sbr.rel (%p648) target = $region84
        $region83: #{tpu_custom_call.1} parent=79 // pred_region
          %s651 = sand.u32 %s47, 1
          %s652 = scalar_lea.sflag [#allocation3], %s651
          %s653 = sand.u32 %s47, 1
          %s654 = smul.addr %s653, 8
          %s655 = scalar_lea.vmem [#allocation2], %s654
          %s657 = ssub.s32 128, 128
          %658 = vsyncadd %s652, %s657
          %s659 = smul.addr %s37, 128
          %s660 = scalar_lea.hbm %s0, %s659
          %s662 = sshll.u32 %s655, 4
          %s663 = int_to_ptr.vmem [resolvable:$true] %s662
          %665 = dma.hbm_to_vmem [thread:$0]  %s660, 128, %s663, %s652
        $region84: #{tpu_custom_call.1} parent=79 // pred_fallthru
          _
      $region80: #{tpu_custom_call.1} parent=5 // pred_fallthru
        _
      %p666 = scmp.le.s32.totalorder 1, %s37
      %p667 = scmp.lt.s32.totalorder %s37, 3
      %p668 = pnand %p666, %p667
      %p669 = pneg %p668
      // Predicated region
      $region85: #{tpu_custom_call.1} parent=5 // pred_check
        _
      $region86: #{tpu_custom_call.1} parent=5 // pred_check_branch
        %671 = sbr.rel (%p668) target = $region88
      $region87: #{tpu_custom_call.1} parent=5 // pred_region
        %s672 = ssub.s32 %s37, 1
        %s673 = sand.u32 %s50, 1
        %s674 = scalar_lea.sflag [#allocation3], %s673
        %s675 = sand.u32 %s50, 1
        %s676 = smul.addr %s675, 8
        %s677 = scalar_lea.vmem [#allocation2], %s676
        // Predicated region
        $region89: #{tpu_custom_call.1} parent=87 // pred_check
          %p678 = pneg %p63
        $region90: #{tpu_custom_call.1} parent=87 // pred_check_branch
          %680 = sbr.rel (%p678) target = $region92
        $region91: #{tpu_custom_call.1} parent=87 // pred_region
          %681 = dma.done %s674, 128
        $region92: #{tpu_custom_call.1} parent=87 // pred_fallthru
          _
        // Predicated region
        $region93: #{tpu_custom_call.1} parent=87 // pred_check
          %p682 = pneg %p84
        $region94: #{tpu_custom_call.1} parent=87 // pred_check_branch
          %684 = sbr.rel (%p682) target = $region96
        $region95: #{tpu_custom_call.1} parent=87 // pred_region
          %685 = dma.done [#allocation6], 61440
        $region96: #{tpu_custom_call.1} parent=87 // pred_fallthru
          _
        // Predicated region
        $region97: #{tpu_custom_call.1} parent=87 // pred_check
          %p686 = pneg %p105
        $region98: #{tpu_custom_call.1} parent=87 // pred_check_branch
          %688 = sbr.rel (%p686) target = $region100
        $region99: #{tpu_custom_call.1} parent=87 // pred_region
          %689 = dma.done [#allocation6], 480
        $region100: #{tpu_custom_call.1} parent=87 // pred_fallthru
          _
        // Predicated region
        $region101: #{tpu_custom_call.1} parent=87 // pred_check
          %p690 = pneg %p126
        $region102: #{tpu_custom_call.1} parent=87 // pred_check_branch
          %692 = sbr.rel (%p690) target = $region104
        $region103: #{tpu_custom_call.1} parent=87 // pred_region
          %693 = dma.done [#allocation9], 20480
        $region104: #{tpu_custom_call.1} parent=87 // pred_fallthru
          _
        // Predicated region
        $region105: #{tpu_custom_call.1} parent=87 // pred_check
          %p694 = pneg %p147
        $region106: #{tpu_custom_call.1} parent=87 // pred_check_branch
          %696 = sbr.rel (%p694) target = $region108
        $region107: #{tpu_custom_call.1} parent=87 // pred_region
          %697 = dma.done [#allocation9], 32
        $region108: #{tpu_custom_call.1} parent=87 // pred_fallthru
          _
        // Predicated region
        $region109: #{tpu_custom_call.1} parent=87 // pred_check
          %p698 = pneg %p168
        $region110: #{tpu_custom_call.1} parent=87 // pred_check_branch
          %700 = sbr.rel (%p698) target = $region112
        $region111: #{tpu_custom_call.1} parent=87 // pred_region
          %701 = dma.done [#allocation12], 32
        $region112: #{tpu_custom_call.1} parent=87 // pred_fallthru
          _
        // Predicated region
        $region113: #{tpu_custom_call.1} parent=87 // pred_check
          %p702 = pneg %p189
        $region114: #{tpu_custom_call.1} parent=87 // pred_check_branch
          %704 = sbr.rel (%p702) target = $region116
        $region115: #{tpu_custom_call.1} parent=87 // pred_region
          %705 = dma.done [#allocation12], 32
        $region116: #{tpu_custom_call.1} parent=87 // pred_fallthru
          _
        // Predicated region
        $region117: #{tpu_custom_call.1} parent=87 // pred_check
          %p706 = pneg %p210
        $region118: #{tpu_custom_call.1} parent=87 // pred_check_branch
          %708 = sbr.rel (%p706) target = $region120
        $region119: #{tpu_custom_call.1} parent=87 // pred_region
          %709 = dma.done [#allocation15], 8192
        $region120: #{tpu_custom_call.1} parent=87 // pred_fallthru
          _
        // Predicated region
        $region121: #{tpu_custom_call.1} parent=87 // pred_check
          %p710 = pneg %p231
        $region122: #{tpu_custom_call.1} parent=87 // pred_check_branch
          %712 = sbr.rel (%p710) target = $region124
        $region123: #{tpu_custom_call.1} parent=87 // pred_region
          %713 = dma.done [#allocation15], 64
        $region124: #{tpu_custom_call.1} parent=87 // pred_fallthru
          _
        // Predicated region
        $region125: #{tpu_custom_call.1} parent=87 // pred_check
          %p714 = pneg %p252
        $region126: #{tpu_custom_call.1} parent=87 // pred_check_branch
          %716 = sbr.rel (%p714) target = $region128
        $region127: #{tpu_custom_call.1} parent=87 // pred_region
          %717 = dma.done [#allocation18], 8192
        $region128: #{tpu_custom_call.1} parent=87 // pred_fallthru
          _
        // Predicated region
        $region129: #{tpu_custom_call.1} parent=87 // pred_check
          %p718 = pneg %p273
        $region130: #{tpu_custom_call.1} parent=87 // pred_check_branch
          %720 = sbr.rel (%p718) target = $region132
        $region131: #{tpu_custom_call.1} parent=87 // pred_region
          %721 = dma.done [#allocation18], 32
        $region132: #{tpu_custom_call.1} parent=87 // pred_fallthru
          _
        // Predicated region
        $region133: #{tpu_custom_call.1} parent=87 // pred_check
          %p722 = pneg %p294
        $region134: #{tpu_custom_call.1} parent=87 // pred_check_branch
          %724 = sbr.rel (%p722) target = $region136
        $region135: #{tpu_custom_call.1} parent=87 // pred_region
          %725 = dma.done [#allocation21], 32
        $region136: #{tpu_custom_call.1} parent=87 // pred_fallthru
          _
        // Predicated region
        $region137: #{tpu_custom_call.1} parent=87 // pred_check
          %p726 = pneg %p315
        $region138: #{tpu_custom_call.1} parent=87 // pred_check_branch
          %728 = sbr.rel (%p726) target = $region140
        $region139: #{tpu_custom_call.1} parent=87 // pred_region
          %729 = dma.done [#allocation21], 32
        $region140: #{tpu_custom_call.1} parent=87 // pred_fallthru
          _
        // Predicated region
        $region141: #{tpu_custom_call.1} parent=87 // pred_check
          %p730 = pneg %p336
        $region142: #{tpu_custom_call.1} parent=87 // pred_check_branch
          %732 = sbr.rel (%p730) target = $region144
        $region143: #{tpu_custom_call.1} parent=87 // pred_region
          %733 = dma.done [#allocation24], 2048
        $region144: #{tpu_custom_call.1} parent=87 // pred_fallthru
          _
        // Predicated region
        $region145: #{tpu_custom_call.1} parent=87 // pred_check
          %p734 = pneg %p357
        $region146: #{tpu_custom_call.1} parent=87 // pred_check_branch
          %736 = sbr.rel (%p734) target = $region148
        $region147: #{tpu_custom_call.1} parent=87 // pred_region
          %737 = dma.done [#allocation24], 16
        $region148: #{tpu_custom_call.1} parent=87 // pred_fallthru
          _
        // Predicated region
        $region149: #{tpu_custom_call.1} parent=87 // pred_check
          %p738 = pneg %p378
        $region150: #{tpu_custom_call.1} parent=87 // pred_check_branch
          %740 = sbr.rel (%p738) target = $region152
        $region151: #{tpu_custom_call.1} parent=87 // pred_region
          %741 = dma.done [#allocation27], 2048
        $region152: #{tpu_custom_call.1} parent=87 // pred_fallthru
          _
        // Predicated region
        $region153: #{tpu_custom_call.1} parent=87 // pred_check
          %p742 = pneg %p399
        $region154: #{tpu_custom_call.1} parent=87 // pred_check_branch
          %744 = sbr.rel (%p742) target = $region156
        $region155: #{tpu_custom_call.1} parent=87 // pred_region
          %745 = dma.done [#allocation27], 16
        $region156: #{tpu_custom_call.1} parent=87 // pred_fallthru
          _
        %s746 = sand.u32 %s50, 1
        %s747 = scalar_lea.sflag [#allocation3], %s746
        %s748 = sand.u32 %s50, 1
        %s749 = smul.addr %s748, 8
        %s750 = scalar_lea.vmem [#allocation2], %s749
        %p751 = pneg %p63
        %p752 = pneg %p60
        %p753 = pneg %p84
        %p754 = pneg %p81
        %p755 = pneg %p105
        %p756 = pneg %p102
        %p757 = pneg %p126
        %p758 = pneg %p123
        %p759 = pneg %p147
        %p760 = pneg %p144
        %p761 = pneg %p168
        %p762 = pneg %p165
        %p763 = pneg %p189
        %p764 = pneg %p186
        %p765 = pneg %p210
        %p766 = pneg %p207
        %p767 = pneg %p231
        %p768 = pneg %p228
        %p769 = pneg %p252
        %p770 = pneg %p249
        %p771 = pneg %p273
        %p772 = pneg %p270
        %p773 = pneg %p294
        %p774 = pneg %p291
        %p775 = pneg %p315
        %p776 = pneg %p312
        %p777 = pneg %p336
        %p778 = pneg %p333
        %p779 = pneg %p357
        %p780 = pneg %p354
        %p781 = pneg %p378
        %p782 = pneg %p375
        %p783 = pneg %p399
        %p784 = pneg %p396
        %p785 = pneg %p425
        %p786 = pneg %p422
        %s787 = sand.u32 %s412, 1
        %s788 = scalar_lea.sflag [#allocation4], %s787
        %s789 = sand.u32 %s412, 1
        %s790 = scalar_lea.vmem [#allocation29], %s789
        %v791 = vld [vmem:[%s677] sm:$0xff]
        %v792 = vld [vmem:[#allocation5] sm:$0xff]
        %v793 = vld [vmem:[#allocation5 + $0x8] sm:$0xff]
        %v794 = vld [vmem:[#allocation5 + $0x10] sm:$0xff]
        %v795 = vld [vmem:[#allocation5 + $0x18] sm:$0xff]
        %v796 = vld [vmem:[#allocation5 + $0x20] sm:$0xff]
        %v797 = vld [vmem:[#allocation5 + $0x28] sm:$0xff]
        %v798 = vld [vmem:[#allocation5 + $0x30] sm:$0xff]
        %v799 = vld [vmem:[#allocation5 + $0x38] sm:$0xff]
        %v800 = vld [vmem:[#allocation5 + $0x40] sm:$0xff]
        %v801 = vld [vmem:[#allocation5 + $0x48] sm:$0xff]
        %v802 = vld [vmem:[#allocation5 + $0x50] sm:$0xff]
        %v803 = vld [vmem:[#allocation5 + $0x58] sm:$0xff]
        %v804 = vld [vmem:[#allocation5 + $0x60] sm:$0xff]
        %v805 = vld [vmem:[#allocation5 + $0x68] sm:$0xff]
        %v806 = vld [vmem:[#allocation5 + $0x70] sm:$0xff]
        %v807 = vld [vmem:[#allocation5 + $0x78] sm:$0xff]
        %v808 = vld [vmem:[#allocation5 + $0x80] sm:$0xff]
        %v809 = vld [vmem:[#allocation5 + $0x88] sm:$0xff]
        %v810 = vld [vmem:[#allocation5 + $0x90] sm:$0xff]
        %v811 = vld [vmem:[#allocation5 + $0x98] sm:$0xff]
        %v812 = vld [vmem:[#allocation5 + $0xa0] sm:$0xff]
        %v813 = vld [vmem:[#allocation5 + $0xa8] sm:$0xff]
        %v814 = vld [vmem:[#allocation5 + $0xb0] sm:$0xff]
        %v815 = vld [vmem:[#allocation5 + $0xb8] sm:$0xff]
        %v816 = vld [vmem:[#allocation5 + $0xc0] sm:$0xff]
        %v817 = vld [vmem:[#allocation5 + $0xc8] sm:$0xff]
        %v818 = vld [vmem:[#allocation5 + $0xd0] sm:$0xff]
        %v819 = vld [vmem:[#allocation5 + $0xd8] sm:$0xff]
        %v820 = vld [vmem:[#allocation5 + $0xe0] sm:$0xff]
        %v821 = vld [vmem:[#allocation5 + $0xe8] sm:$0xff]
        %v822 = vld [vmem:[#allocation5 + $0xf0] sm:$0xff]
        %v823 = vld [vmem:[#allocation5 + $0xf8] sm:$0xff]
        %v824 = vld [vmem:[#allocation5 + $0x100] sm:$0xff]
        %v825 = vld [vmem:[#allocation5 + $0x108] sm:$0xff]
        %v826 = vld [vmem:[#allocation5 + $0x110] sm:$0xff]
        %v827 = vld [vmem:[#allocation5 + $0x118] sm:$0xff]
        %v828 = vld [vmem:[#allocation5 + $0x120] sm:$0xff]
        %v829 = vld [vmem:[#allocation5 + $0x128] sm:$0xff]
        %v830 = vld [vmem:[#allocation5 + $0x130] sm:$0xff]
        %v831 = vld [vmem:[#allocation5 + $0x138] sm:$0xff]
        %v832 = vld [vmem:[#allocation5 + $0x140] sm:$0xff]
        %v833 = vld [vmem:[#allocation5 + $0x148] sm:$0xff]
        %v834 = vld [vmem:[#allocation5 + $0x150] sm:$0xff]
        %v835 = vld [vmem:[#allocation5 + $0x158] sm:$0xff]
        %v836 = vld [vmem:[#allocation5 + $0x160] sm:$0xff]
        %v837 = vld [vmem:[#allocation5 + $0x168] sm:$0xff]
        %v838 = vld [vmem:[#allocation5 + $0x170] sm:$0xff]
        %v839 = vld [vmem:[#allocation5 + $0x178] sm:$0xff]
        %v840 = vld [vmem:[#allocation5 + $0x180] sm:$0xff]
        %v841 = vld [vmem:[#allocation5 + $0x188] sm:$0xff]
        %v842 = vld [vmem:[#allocation5 + $0x190] sm:$0xff]
        %v843 = vld [vmem:[#allocation5 + $0x198] sm:$0xff]
        %v844 = vld [vmem:[#allocation5 + $0x1a0] sm:$0xff]
        %v845 = vld [vmem:[#allocation5 + $0x1a8] sm:$0xff]
        %v846 = vld [vmem:[#allocation5 + $0x1b0] sm:$0xff]
        %v847 = vld [vmem:[#allocation5 + $0x1b8] sm:$0xff]
        %v848 = vld [vmem:[#allocation5 + $0x1c0] sm:$0xff]
        %v849 = vld [vmem:[#allocation5 + $0x1c8] sm:$0xff]
        %v850 = vld [vmem:[#allocation5 + $0x1d0] sm:$0xff]
        %v851 = vld [vmem:[#allocation5 + $0x1d8] sm:$0xff]
        %v852 = vld [vmem:[#allocation5 + $0x1e0] sm:$0xff]
        %v853 = vld [vmem:[#allocation5 + $0x1e8] sm:$0xff]
        %v854 = vld [vmem:[#allocation5 + $0x1f0] sm:$0xff]
        %v855 = vld [vmem:[#allocation5 + $0x1f8] sm:$0xff]
        %v856 = vld [vmem:[#allocation5 + $0x200] sm:$0xff]
        %v857 = vld [vmem:[#allocation5 + $0x208] sm:$0xff]
        %v858 = vld [vmem:[#allocation5 + $0x210] sm:$0xff]
        %v859 = vld [vmem:[#allocation5 + $0x218] sm:$0xff]
        %v860 = vld [vmem:[#allocation5 + $0x220] sm:$0xff]
        %v861 = vld [vmem:[#allocation5 + $0x228] sm:$0xff]
        %v862 = vld [vmem:[#allocation5 + $0x230] sm:$0xff]
        %v863 = vld [vmem:[#allocation5 + $0x238] sm:$0xff]
        %v864 = vld [vmem:[#allocation5 + $0x240] sm:$0xff]
        %v865 = vld [vmem:[#allocation5 + $0x248] sm:$0xff]
        %v866 = vld [vmem:[#allocation5 + $0x250] sm:$0xff]
        %v867 = vld [vmem:[#allocation5 + $0x258] sm:$0xff]
        %v868 = vld [vmem:[#allocation5 + $0x260] sm:$0xff]
        %v869 = vld [vmem:[#allocation5 + $0x268] sm:$0xff]
        %v870 = vld [vmem:[#allocation5 + $0x270] sm:$0xff]
        %v871 = vld [vmem:[#allocation5 + $0x278] sm:$0xff]
        %v872 = vld [vmem:[#allocation5 + $0x280] sm:$0xff]
        %v873 = vld [vmem:[#allocation5 + $0x288] sm:$0xff]
        %v874 = vld [vmem:[#allocation5 + $0x290] sm:$0xff]
        %v875 = vld [vmem:[#allocation5 + $0x298] sm:$0xff]
        %v876 = vld [vmem:[#allocation5 + $0x2a0] sm:$0xff]
        %v877 = vld [vmem:[#allocation5 + $0x2a8] sm:$0xff]
        %v878 = vld [vmem:[#allocation5 + $0x2b0] sm:$0xff]
        %v879 = vld [vmem:[#allocation5 + $0x2b8] sm:$0xff]
        %v880 = vld [vmem:[#allocation5 + $0x2c0] sm:$0xff]
        %v881 = vld [vmem:[#allocation5 + $0x2c8] sm:$0xff]
        %v882 = vld [vmem:[#allocation5 + $0x2d0] sm:$0xff]
        %v883 = vld [vmem:[#allocation5 + $0x2d8] sm:$0xff]
        %v884 = vld [vmem:[#allocation5 + $0x2e0] sm:$0xff]
        %v885 = vld [vmem:[#allocation5 + $0x2e8] sm:$0xff]
        %v886 = vld [vmem:[#allocation5 + $0x2f0] sm:$0xff]
        %v887 = vld [vmem:[#allocation5 + $0x2f8] sm:$0xff]
        %v888 = vld [vmem:[#allocation5 + $0x300] sm:$0xff]
        %v889 = vld [vmem:[#allocation5 + $0x308] sm:$0xff]
        %v890 = vld [vmem:[#allocation5 + $0x310] sm:$0xff]
        %v891 = vld [vmem:[#allocation5 + $0x318] sm:$0xff]
        %v892 = vld [vmem:[#allocation5 + $0x320] sm:$0xff]
        %v893 = vld [vmem:[#allocation5 + $0x328] sm:$0xff]
        %v894 = vld [vmem:[#allocation5 + $0x330] sm:$0xff]
        %v895 = vld [vmem:[#allocation5 + $0x338] sm:$0xff]
        %v896 = vld [vmem:[#allocation5 + $0x340] sm:$0xff]
        %v897 = vld [vmem:[#allocation5 + $0x348] sm:$0xff]
        %v898 = vld [vmem:[#allocation5 + $0x350] sm:$0xff]
        %v899 = vld [vmem:[#allocation5 + $0x358] sm:$0xff]
        %v900 = vld [vmem:[#allocation5 + $0x360] sm:$0xff]
        %v901 = vld [vmem:[#allocation5 + $0x368] sm:$0xff]
        %v902 = vld [vmem:[#allocation5 + $0x370] sm:$0xff]
        %v903 = vld [vmem:[#allocation5 + $0x378] sm:$0xff]
        %v904 = vld [vmem:[#allocation5 + $0x380] sm:$0xff]
        %v905 = vld [vmem:[#allocation5 + $0x388] sm:$0xff]
        %v906 = vld [vmem:[#allocation5 + $0x390] sm:$0xff]
        %v907 = vld [vmem:[#allocation5 + $0x398] sm:$0xff]
        %v908 = vld [vmem:[#allocation5 + $0x3a0] sm:$0xff]
        %v909 = vld [vmem:[#allocation5 + $0x3a8] sm:$0xff]
        %v910 = vld [vmem:[#allocation5 + $0x3b0] sm:$0xff]
        %v911 = vld [vmem:[#allocation5 + $0x3b8] sm:$0xff]
        %v912 = vld [vmem:[#allocation5 + $0x3c0] sm:$0xff]
        %v913 = vld [vmem:[#allocation5 + $0x3c8] sm:$0xff]
        %v914 = vld [vmem:[#allocation5 + $0x3d0] sm:$0xff]
        %v915 = vld [vmem:[#allocation5 + $0x3d8] sm:$0xff]
        %v916 = vld [vmem:[#allocation5 + $0x3e0] sm:$0xff]
        %v917 = vld [vmem:[#allocation5 + $0x3e8] sm:$0xff]
        %v918 = vld [vmem:[#allocation5 + $0x3f0] sm:$0xff]
        %v919 = vld [vmem:[#allocation5 + $0x3f8] sm:$0xff]
        %v920 = vld [vmem:[#allocation5 + $0x400] sm:$0xff]
        %v921 = vld [vmem:[#allocation5 + $0x408] sm:$0xff]
        %v922 = vld [vmem:[#allocation5 + $0x410] sm:$0xff]
        %v923 = vld [vmem:[#allocation5 + $0x418] sm:$0xff]
        %v924 = vld [vmem:[#allocation5 + $0x420] sm:$0xff]
        %v925 = vld [vmem:[#allocation5 + $0x428] sm:$0xff]
        %v926 = vld [vmem:[#allocation5 + $0x430] sm:$0xff]
        %v927 = vld [vmem:[#allocation5 + $0x438] sm:$0xff]
        %v928 = vld [vmem:[#allocation5 + $0x440] sm:$0xff]
        %v929 = vld [vmem:[#allocation5 + $0x448] sm:$0xff]
        %v930 = vld [vmem:[#allocation5 + $0x450] sm:$0xff]
        %v931 = vld [vmem:[#allocation5 + $0x458] sm:$0xff]
        %v932 = vld [vmem:[#allocation5 + $0x460] sm:$0xff]
        %v933 = vld [vmem:[#allocation5 + $0x468] sm:$0xff]
        %v934 = vld [vmem:[#allocation5 + $0x470] sm:$0xff]
        %v935 = vld [vmem:[#allocation5 + $0x478] sm:$0xff]
        %v936 = vld [vmem:[#allocation5 + $0x480] sm:$0xff]
        %v937 = vld [vmem:[#allocation5 + $0x488] sm:$0xff]
        %v938 = vld [vmem:[#allocation5 + $0x490] sm:$0xff]
        %v939 = vld [vmem:[#allocation5 + $0x498] sm:$0xff]
        %v940 = vld [vmem:[#allocation5 + $0x4a0] sm:$0xff]
        %v941 = vld [vmem:[#allocation5 + $0x4a8] sm:$0xff]
        %v942 = vld [vmem:[#allocation5 + $0x4b0] sm:$0xff]
        %v943 = vld [vmem:[#allocation5 + $0x4b8] sm:$0xff]
        %v944 = vld [vmem:[#allocation5 + $0x4c0] sm:$0xff]
        %v945 = vld [vmem:[#allocation5 + $0x4c8] sm:$0xff]
        %v946 = vld [vmem:[#allocation5 + $0x4d0] sm:$0xff]
        %v947 = vld [vmem:[#allocation5 + $0x4d8] sm:$0xff]
        %v948 = vld [vmem:[#allocation5 + $0x4e0] sm:$0xff]
        %v949 = vld [vmem:[#allocation5 + $0x4e8] sm:$0xff]
        %v950 = vld [vmem:[#allocation5 + $0x4f0] sm:$0xff]
        %v951 = vld [vmem:[#allocation5 + $0x4f8] sm:$0xff]
        %v952 = vld [vmem:[#allocation5 + $0x500] sm:$0xff]
        %v953 = vld [vmem:[#allocation5 + $0x508] sm:$0xff]
        %v954 = vld [vmem:[#allocation5 + $0x510] sm:$0xff]
        %v955 = vld [vmem:[#allocation5 + $0x518] sm:$0xff]
        %v956 = vld [vmem:[#allocation5 + $0x520] sm:$0xff]
        %v957 = vld [vmem:[#allocation5 + $0x528] sm:$0xff]
        %v958 = vld [vmem:[#allocation5 + $0x530] sm:$0xff]
        %v959 = vld [vmem:[#allocation5 + $0x538] sm:$0xff]
        %v960 = vld [vmem:[#allocation5 + $0x540] sm:$0xff]
        %v961 = vld [vmem:[#allocation5 + $0x548] sm:$0xff]
        %v962 = vld [vmem:[#allocation5 + $0x550] sm:$0xff]
        %v963 = vld [vmem:[#allocation5 + $0x558] sm:$0xff]
        %v964 = vld [vmem:[#allocation5 + $0x560] sm:$0xff]
        %v965 = vld [vmem:[#allocation5 + $0x568] sm:$0xff]
        %v966 = vld [vmem:[#allocation5 + $0x570] sm:$0xff]
        %v967 = vld [vmem:[#allocation5 + $0x578] sm:$0xff]
        %v968 = vld [vmem:[#allocation5 + $0x580] sm:$0xff]
        %v969 = vld [vmem:[#allocation5 + $0x588] sm:$0xff]
        %v970 = vld [vmem:[#allocation5 + $0x590] sm:$0xff]
        %v971 = vld [vmem:[#allocation5 + $0x598] sm:$0xff]
        %v972 = vld [vmem:[#allocation5 + $0x5a0] sm:$0xff]
        %v973 = vld [vmem:[#allocation5 + $0x5a8] sm:$0xff]
        %v974 = vld [vmem:[#allocation5 + $0x5b0] sm:$0xff]
        %v975 = vld [vmem:[#allocation5 + $0x5b8] sm:$0xff]
        %v976 = vld [vmem:[#allocation5 + $0x5c0] sm:$0xff]
        %v977 = vld [vmem:[#allocation5 + $0x5c8] sm:$0xff]
        %v978 = vld [vmem:[#allocation5 + $0x5d0] sm:$0xff]
        %v979 = vld [vmem:[#allocation5 + $0x5d8] sm:$0xff]
        %v980 = vld [vmem:[#allocation5 + $0x5e0] sm:$0xff]
        %v981 = vld [vmem:[#allocation5 + $0x5e8] sm:$0xff]
        %v982 = vld [vmem:[#allocation5 + $0x5f0] sm:$0xff]
        %v983 = vld [vmem:[#allocation5 + $0x5f8] sm:$0xff]
        %v984 = vld [vmem:[#allocation5 + $0x600] sm:$0xff]
        %v985 = vld [vmem:[#allocation5 + $0x608] sm:$0xff]
        %v986 = vld [vmem:[#allocation5 + $0x610] sm:$0xff]
        %v987 = vld [vmem:[#allocation5 + $0x618] sm:$0xff]
        %v988 = vld [vmem:[#allocation5 + $0x620] sm:$0xff]
        %v989 = vld [vmem:[#allocation5 + $0x628] sm:$0xff]
        %v990 = vld [vmem:[#allocation5 + $0x630] sm:$0xff]
        %v991 = vld [vmem:[#allocation5 + $0x638] sm:$0xff]
        %v992 = vld [vmem:[#allocation5 + $0x640] sm:$0xff]
        %v993 = vld [vmem:[#allocation5 + $0x648] sm:$0xff]
        %v994 = vld [vmem:[#allocation5 + $0x650] sm:$0xff]
        %v995 = vld [vmem:[#allocation5 + $0x658] sm:$0xff]
        %v996 = vld [vmem:[#allocation5 + $0x660] sm:$0xff]
        %v997 = vld [vmem:[#allocation5 + $0x668] sm:$0xff]
        %v998 = vld [vmem:[#allocation5 + $0x670] sm:$0xff]
        %v999 = vld [vmem:[#allocation5 + $0x678] sm:$0xff]
        %v1000 = vld [vmem:[#allocation5 + $0x680] sm:$0xff]
        %v1001 = vld [vmem:[#allocation5 + $0x688] sm:$0xff]
        %v1002 = vld [vmem:[#allocation5 + $0x690] sm:$0xff]
        %v1003 = vld [vmem:[#allocation5 + $0x698] sm:$0xff]
        %v1004 = vld [vmem:[#allocation5 + $0x6a0] sm:$0xff]
        %v1005 = vld [vmem:[#allocation5 + $0x6a8] sm:$0xff]
        %v1006 = vld [vmem:[#allocation5 + $0x6b0] sm:$0xff]
        %v1007 = vld [vmem:[#allocation5 + $0x6b8] sm:$0xff]
        %v1008 = vld [vmem:[#allocation5 + $0x6c0] sm:$0xff]
        %v1009 = vld [vmem:[#allocation5 + $0x6c8] sm:$0xff]
        %v1010 = vld [vmem:[#allocation5 + $0x6d0] sm:$0xff]
        %v1011 = vld [vmem:[#allocation5 + $0x6d8] sm:$0xff]
        %v1012 = vld [vmem:[#allocation5 + $0x6e0] sm:$0xff]
        %v1013 = vld [vmem:[#allocation5 + $0x6e8] sm:$0xff]
        %v1014 = vld [vmem:[#allocation5 + $0x6f0] sm:$0xff]
        %v1015 = vld [vmem:[#allocation5 + $0x6f8] sm:$0xff]
        %v1016 = vld [vmem:[#allocation5 + $0x700] sm:$0xff]
        %v1017 = vld [vmem:[#allocation5 + $0x708] sm:$0xff]
        %v1018 = vld [vmem:[#allocation5 + $0x710] sm:$0xff]
        %v1019 = vld [vmem:[#allocation5 + $0x718] sm:$0xff]
        %v1020 = vld [vmem:[#allocation5 + $0x720] sm:$0xff]
        %v1021 = vld [vmem:[#allocation5 + $0x728] sm:$0xff]
        %v1022 = vld [vmem:[#allocation5 + $0x730] sm:$0xff]
        %v1023 = vld [vmem:[#allocation5 + $0x738] sm:$0xff]
        %v1024 = vld [vmem:[#allocation5 + $0x740] sm:$0xff]
        %v1025 = vld [vmem:[#allocation5 + $0x748] sm:$0xff]
        %v1026 = vld [vmem:[#allocation5 + $0x750] sm:$0xff]
        %v1027 = vld [vmem:[#allocation5 + $0x758] sm:$0xff]
        %v1028 = vld [vmem:[#allocation5 + $0x760] sm:$0xff]
        %v1029 = vld [vmem:[#allocation5 + $0x768] sm:$0xff]
        %v1030 = vld [vmem:[#allocation5 + $0x770] sm:$0xff]
        %v1031 = vld [vmem:[#allocation5 + $0x778] sm:$0xff]
        %v1032 = vld [vmem:[#allocation7] sm:$0xff]
        %v1033 = vld [vmem:[#allocation7 + $0x8] sm:$0xff]
        %v1036 = vlaneseq
        %v1037 = vshrl.u32 %v1036, 7
        %v1038 = vsub.s32 0, %v1037
        %v1039 = vrot.slane %v1032, %v1038
        %v1040 = vlaneseq
        %v1041 = vshrl.u32 %v1040, 7
        %v1042 = vsub.s32 1, %v1041
        %v1043 = vrot.slane %v1032, %v1042
        %v1044 = vlaneseq
        %v1045 = vshrl.u32 %v1044, 7
        %v1046 = vsub.s32 2, %v1045
        %v1047 = vrot.slane %v1032, %v1046
        %v1048 = vlaneseq
        %v1049 = vshrl.u32 %v1048, 7
        %v1050 = vsub.s32 3, %v1049
        %v1051 = vrot.slane %v1032, %v1050
        %v1052 = vlaneseq
        %v1053 = vshrl.u32 %v1052, 7
        %v1054 = vsub.s32 4, %v1053
        %v1055 = vrot.slane %v1032, %v1054
        %v1056 = vlaneseq
        %v1057 = vshrl.u32 %v1056, 7
        %v1058 = vsub.s32 5, %v1057
        %v1059 = vrot.slane %v1032, %v1058
        %v1060 = vlaneseq
        %v1061 = vshrl.u32 %v1060, 7
        %v1062 = vsub.s32 6, %v1061
        %v1063 = vrot.slane %v1032, %v1062
        %v1064 = vlaneseq
        %v1065 = vshrl.u32 %v1064, 7
        %v1066 = vsub.s32 7, %v1065
        %v1067 = vrot.slane %v1032, %v1066
        %v1068 = vlaneseq
        %v1069 = vshrl.u32 %v1068, 7
        %v1070 = vsub.s32 0, %v1069
        %v1071 = vrot.slane %v1033, %v1070
        %v1072 = vlaneseq
        %v1073 = vshrl.u32 %v1072, 7
        %v1074 = vsub.s32 1, %v1073
        %v1075 = vrot.slane %v1033, %v1074
        %v1076 = vlaneseq
        %v1077 = vshrl.u32 %v1076, 7
        %v1078 = vsub.s32 2, %v1077
        %v1079 = vrot.slane %v1033, %v1078
        %v1080 = vlaneseq
        %v1081 = vshrl.u32 %v1080, 7
        %v1082 = vsub.s32 3, %v1081
        %v1083 = vrot.slane %v1033, %v1082
        %v1084 = vlaneseq
        %v1085 = vshrl.u32 %v1084, 7
        %v1086 = vsub.s32 4, %v1085
        %v1087 = vrot.slane %v1033, %v1086
        %v1088 = vlaneseq
        %v1089 = vshrl.u32 %v1088, 7
        %v1090 = vsub.s32 5, %v1089
        %v1091 = vrot.slane %v1033, %v1090
        %v1092 = vlaneseq
        %v1093 = vshrl.u32 %v1092, 7
        %v1094 = vsub.s32 6, %v1093
        %v1095 = vrot.slane %v1033, %v1094
        %1111 = vmatprep.subr.mxu0 %v1018
        %1112 = vmatpush1.msra.mxu0 %v1017
        %1113 = vmatprep.subr.mxu0 %v1003
        %1114 = vmatpush1.msra.mxu0 %v1002
        %1115 = vmatprep.subr.mxu0 %v988
        %1116 = vmatpush1.msra.mxu0 %v987
        %1117 = vmatprep.subr.mxu0 %v973
        %1118 = vmatpush1.msra.mxu0 %v972
        %1119 = vmatprep.subr.mxu0 %v958
        %1120 = vmatpush1.msra.mxu0 %v957
        %1121 = vmatprep.subr.mxu0 %v943
        %1122 = vmatpush1.msra.mxu0 %v942
        %1123 = vmatprep.subr.mxu0 %v928
        %1124 = vmatpush1.msra.mxu0 %v927
        %1125 = vmatprep.subr.mxu0 %v913
        %1126 = vmatpush1.msra.mxu0 %v912
        %1127 = vmatprep.subr.mxu0 %v898
        %1128 = vmatpush1.msra.mxu0 %v897
        %1129 = vmatprep.subr.mxu0 %v883
        %1130 = vmatpush1.msra.mxu0 %v882
        %1131 = vmatprep.subr.mxu0 %v868
        %1132 = vmatpush1.msra.mxu0 %v867
        %1133 = vmatprep.subr.mxu0 %v853
        %1134 = vmatpush1.msra.mxu0 %v852
        %1135 = vmatprep.subr.mxu0 %v838
        %1136 = vmatpush1.msra.mxu0 %v837
        %1137 = vmatprep.subr.mxu0 %v823
        %1138 = vmatpush1.msra.mxu0 %v822
        %1139 = vmatprep.subr.mxu0 %v808
        %1140 = vmatpush1.msra.mxu0 %v807
        %1141 = vmatprep.subr.mxu0 %v793
        %1142 = vmatpush1.msra.mxu0 %v792
        %1143 = vmatprep.subr.mxu0 0.0
        %1144 = vmatpush2.msra.mxu0 0.0
        %1145 = vmatprep.subr.mxu0 0.0
        %1146 = vmatpush2.msra.mxu0 0.0
        %1147 = vmatprep.subr.mxu0 0.0
        %1148 = vmatpush2.msra.mxu0 0.0
        %1149 = vmatprep.subr.mxu0 0.0
        %1150 = vmatpush2.msra.mxu0 0.0
        %1151 = vmatprep.subr.mxu0 0.0
        %1152 = vmatpush2.msra.mxu0 0.0
        %1153 = vmatprep.subr.mxu0 0.0
        %1154 = vmatpush2.msra.mxu0 0.0
        %1155 = vmatprep.subr.mxu0 0.0
        %1156 = vmatpush2.msra.mxu0 0.0
        %1157 = vmatprep.subr.mxu0 0.0
        %1158 = vmatpush2.msra.mxu0 0.0
        %1159 = vmatprep.subr.mxu0 0.0
        %1160 = vmatpush2.msra.mxu0 0.0
        %1161 = vmatprep.subr.mxu0 0.0
        %1162 = vmatpush2.msra.mxu0 0.0
        %1163 = vmatprep.subr.mxu0 0.0
        %1164 = vmatpush2.msra.mxu0 0.0
        %1165 = vmatprep.subr.mxu0 0.0
        %1166 = vmatpush2.msra.mxu0 0.0
        %1167 = vmatprep.subr.mxu0 0.0
        %1168 = vmatpush2.msra.mxu0 0.0
        %1169 = vmatprep.subr.mxu0 0.0
        %1170 = vmatpush2.msra.mxu0 0.0
        %1171 = vmatprep.subr.mxu0 0.0
        %1172 = vmatpush2.msra.mxu0 0.0
        %1173 = vmatprep.subr.mxu0 0.0
        %1174 = vmatpush2.msra.mxu0 0.0
        %1175 = vmatprep.mubr.f32.mxu0 0.0
        %1176 = vmatmul.mubr.f32.gmra.mxu0 %v791
        %v1177 = vpop.f32.mrf.mxu0
        %v1178 = vadd.f32 %v1039, %v1177
        %v1179 = vpop.f32.mrf.mxu0
        %v1180 = vadd.f32 %v1043, %v1179
        %1181 = vdwg.mxu0
        %1182 = vmatprep.subr.mxu0 %v1020
        %1183 = vmatpush1.msra.mxu0 %v1019
        %1184 = vmatprep.subr.mxu0 %v1005
        %1185 = vmatpush1.msra.mxu0 %v1004
        %1186 = vmatprep.subr.mxu0 %v990
        %1187 = vmatpush1.msra.mxu0 %v989
        %1188 = vmatprep.subr.mxu0 %v975
        %1189 = vmatpush1.msra.mxu0 %v974
        %1190 = vmatprep.subr.mxu0 %v960
        %1191 = vmatpush1.msra.mxu0 %v959
        %1192 = vmatprep.subr.mxu0 %v945
        %1193 = vmatpush1.msra.mxu0 %v944
        %1194 = vmatprep.subr.mxu0 %v930
        %1195 = vmatpush1.msra.mxu0 %v929
        %1196 = vmatprep.subr.mxu0 %v915
        %1197 = vmatpush1.msra.mxu0 %v914
        %1198 = vmatprep.subr.mxu0 %v900
        %1199 = vmatpush1.msra.mxu0 %v899
        %1200 = vmatprep.subr.mxu0 %v885
        %1201 = vmatpush1.msra.mxu0 %v884
        %1202 = vmatprep.subr.mxu0 %v870
        %1203 = vmatpush1.msra.mxu0 %v869
        %1204 = vmatprep.subr.mxu0 %v855
        %1205 = vmatpush1.msra.mxu0 %v854
        %1206 = vmatprep.subr.mxu0 %v840
        %1207 = vmatpush1.msra.mxu0 %v839
        %1208 = vmatprep.subr.mxu0 %v825
        %1209 = vmatpush1.msra.mxu0 %v824
        %1210 = vmatprep.subr.mxu0 %v810
        %1211 = vmatpush1.msra.mxu0 %v809
        %1212 = vmatprep.subr.mxu0 %v795
        %1213 = vmatpush1.msra.mxu0 %v794
        %1214 = vmatprep.subr.mxu0 0.0
        %1215 = vmatpush2.msra.mxu0 0.0
        %1216 = vmatprep.subr.mxu0 0.0
        %1217 = vmatpush2.msra.mxu0 0.0
        %1218 = vmatprep.subr.mxu0 0.0
        %1219 = vmatpush2.msra.mxu0 0.0
        %1220 = vmatprep.subr.mxu0 0.0
        %1221 = vmatpush2.msra.mxu0 0.0
        %1222 = vmatprep.subr.mxu0 0.0
        %1223 = vmatpush2.msra.mxu0 0.0
        %1224 = vmatprep.subr.mxu0 0.0
        %1225 = vmatpush2.msra.mxu0 0.0
        %1226 = vmatprep.subr.mxu0 0.0
        %1227 = vmatpush2.msra.mxu0 0.0
        %1228 = vmatprep.subr.mxu0 0.0
        %1229 = vmatpush2.msra.mxu0 0.0
        %1230 = vmatprep.subr.mxu0 0.0
        %1231 = vmatpush2.msra.mxu0 0.0
        %1232 = vmatprep.subr.mxu0 0.0
        %1233 = vmatpush2.msra.mxu0 0.0
        %1234 = vmatprep.subr.mxu0 0.0
        %1235 = vmatpush2.msra.mxu0 0.0
        %1236 = vmatprep.subr.mxu0 0.0
        %1237 = vmatpush2.msra.mxu0 0.0
        %1238 = vmatprep.subr.mxu0 0.0
        %1239 = vmatpush2.msra.mxu0 0.0
        %1240 = vmatprep.subr.mxu0 0.0
        %1241 = vmatpush2.msra.mxu0 0.0
        %1242 = vmatprep.subr.mxu0 0.0
        %1243 = vmatpush2.msra.mxu0 0.0
        %1244 = vmatprep.subr.mxu0 0.0
        %1245 = vmatpush2.msra.mxu0 0.0
        %1246 = vmatprep.mubr.f32.mxu0 0.0
        %1247 = vmatmul.mubr.f32.gmra.mxu0 %v791
        %v1248 = vpop.f32.mrf.mxu0
        %v1249 = vadd.f32 %v1047, %v1248
        %v1250 = vpop.f32.mrf.mxu0
        %v1251 = vadd.f32 %v1051, %v1250
        %1252 = vdwg.mxu0
        %1253 = vmatprep.subr.mxu0 %v1022
        %1254 = vmatpush1.msra.mxu0 %v1021
        %1255 = vmatprep.subr.mxu0 %v1007
        %1256 = vmatpush1.msra.mxu0 %v1006
        %1257 = vmatprep.subr.mxu0 %v992
        %1258 = vmatpush1.msra.mxu0 %v991
        %1259 = vmatprep.subr.mxu0 %v977
        %1260 = vmatpush1.msra.mxu0 %v976
        %1261 = vmatprep.subr.mxu0 %v962
        %1262 = vmatpush1.msra.mxu0 %v961
        %1263 = vmatprep.subr.mxu0 %v947
        %1264 = vmatpush1.msra.mxu0 %v946
        %1265 = vmatprep.subr.mxu0 %v932
        %1266 = vmatpush1.msra.mxu0 %v931
        %1267 = vmatprep.subr.mxu0 %v917
        %1268 = vmatpush1.msra.mxu0 %v916
        %1269 = vmatprep.subr.mxu0 %v902
        %1270 = vmatpush1.msra.mxu0 %v901
        %1271 = vmatprep.subr.mxu0 %v887
        %1272 = vmatpush1.msra.mxu0 %v886
        %1273 = vmatprep.subr.mxu0 %v872
        %1274 = vmatpush1.msra.mxu0 %v871
        %1275 = vmatprep.subr.mxu0 %v857
        %1276 = vmatpush1.msra.mxu0 %v856
        %1277 = vmatprep.subr.mxu0 %v842
        %1278 = vmatpush1.msra.mxu0 %v841
        %1279 = vmatprep.subr.mxu0 %v827
        %1280 = vmatpush1.msra.mxu0 %v826
        %1281 = vmatprep.subr.mxu0 %v812
        %1282 = vmatpush1.msra.mxu0 %v811
        %1283 = vmatprep.subr.mxu0 %v797
        %1284 = vmatpush1.msra.mxu0 %v796
        %1285 = vmatprep.subr.mxu0 0.0
        %1286 = vmatpush2.msra.mxu0 0.0
        %1287 = vmatprep.subr.mxu0 0.0
        %1288 = vmatpush2.msra.mxu0 0.0
        %1289 = vmatprep.subr.mxu0 0.0
        %1290 = vmatpush2.msra.mxu0 0.0
        %1291 = vmatprep.subr.mxu0 0.0
        %1292 = vmatpush2.msra.mxu0 0.0
        %1293 = vmatprep.subr.mxu0 0.0
        %1294 = vmatpush2.msra.mxu0 0.0
        %1295 = vmatprep.subr.mxu0 0.0
        %1296 = vmatpush2.msra.mxu0 0.0
        %1297 = vmatprep.subr.mxu0 0.0
        %1298 = vmatpush2.msra.mxu0 0.0
        %1299 = vmatprep.subr.mxu0 0.0
        %1300 = vmatpush2.msra.mxu0 0.0
        %1301 = vmatprep.subr.mxu0 0.0
        %1302 = vmatpush2.msra.mxu0 0.0
        %1303 = vmatprep.subr.mxu0 0.0
        %1304 = vmatpush2.msra.mxu0 0.0
        %1305 = vmatprep.subr.mxu0 0.0
        %1306 = vmatpush2.msra.mxu0 0.0
        %1307 = vmatprep.subr.mxu0 0.0
        %1308 = vmatpush2.msra.mxu0 0.0
        %1309 = vmatprep.subr.mxu0 0.0
        %1310 = vmatpush2.msra.mxu0 0.0
        %1311 = vmatprep.subr.mxu0 0.0
        %1312 = vmatpush2.msra.mxu0 0.0
        %1313 = vmatprep.subr.mxu0 0.0
        %1314 = vmatpush2.msra.mxu0 0.0
        %1315 = vmatprep.subr.mxu0 0.0
        %1316 = vmatpush2.msra.mxu0 0.0
        %1317 = vmatprep.mubr.f32.mxu0 0.0
        %1318 = vmatmul.mubr.f32.gmra.mxu0 %v791
        %v1319 = vpop.f32.mrf.mxu0
        %v1320 = vadd.f32 %v1055, %v1319
        %v1321 = vpop.f32.mrf.mxu0
        %v1322 = vadd.f32 %v1059, %v1321
        %1323 = vdwg.mxu0
        %1324 = vmatprep.subr.mxu0 %v1024
        %1325 = vmatpush1.msra.mxu0 %v1023
        %1326 = vmatprep.subr.mxu0 %v1009
        %1327 = vmatpush1.msra.mxu0 %v1008
        %1328 = vmatprep.subr.mxu0 %v994
        %1329 = vmatpush1.msra.mxu0 %v993
        %1330 = vmatprep.subr.mxu0 %v979
        %1331 = vmatpush1.msra.mxu0 %v978
        %1332 = vmatprep.subr.mxu0 %v964
        %1333 = vmatpush1.msra.mxu0 %v963
        %1334 = vmatprep.subr.mxu0 %v949
        %1335 = vmatpush1.msra.mxu0 %v948
        %1336 = vmatprep.subr.mxu0 %v934
        %1337 = vmatpush1.msra.mxu0 %v933
        %1338 = vmatprep.subr.mxu0 %v919
        %1339 = vmatpush1.msra.mxu0 %v918
        %1340 = vmatprep.subr.mxu0 %v904
        %1341 = vmatpush1.msra.mxu0 %v903
        %1342 = vmatprep.subr.mxu0 %v889
        %1343 = vmatpush1.msra.mxu0 %v888
        %1344 = vmatprep.subr.mxu0 %v874
        %1345 = vmatpush1.msra.mxu0 %v873
        %1346 = vmatprep.subr.mxu0 %v859
        %1347 = vmatpush1.msra.mxu0 %v858
        %1348 = vmatprep.subr.mxu0 %v844
        %1349 = vmatpush1.msra.mxu0 %v843
        %1350 = vmatprep.subr.mxu0 %v829
        %1351 = vmatpush1.msra.mxu0 %v828
        %1352 = vmatprep.subr.mxu0 %v814
        %1353 = vmatpush1.msra.mxu0 %v813
        %1354 = vmatprep.subr.mxu0 %v799
        %1355 = vmatpush1.msra.mxu0 %v798
        %1356 = vmatprep.subr.mxu0 0.0
        %1357 = vmatpush2.msra.mxu0 0.0
        %1358 = vmatprep.subr.mxu0 0.0
        %1359 = vmatpush2.msra.mxu0 0.0
        %1360 = vmatprep.subr.mxu0 0.0
        %1361 = vmatpush2.msra.mxu0 0.0
        %1362 = vmatprep.subr.mxu0 0.0
        %1363 = vmatpush2.msra.mxu0 0.0
        %1364 = vmatprep.subr.mxu0 0.0
        %1365 = vmatpush2.msra.mxu0 0.0
        %1366 = vmatprep.subr.mxu0 0.0
        %1367 = vmatpush2.msra.mxu0 0.0
        %1368 = vmatprep.subr.mxu0 0.0
        %1369 = vmatpush2.msra.mxu0 0.0
        %1370 = vmatprep.subr.mxu0 0.0
        %1371 = vmatpush2.msra.mxu0 0.0
        %1372 = vmatprep.subr.mxu0 0.0
        %1373 = vmatpush2.msra.mxu0 0.0
        %1374 = vmatprep.subr.mxu0 0.0
        %1375 = vmatpush2.msra.mxu0 0.0
        %1376 = vmatprep.subr.mxu0 0.0
        %1377 = vmatpush2.msra.mxu0 0.0
        %1378 = vmatprep.subr.mxu0 0.0
        %1379 = vmatpush2.msra.mxu0 0.0
        %1380 = vmatprep.subr.mxu0 0.0
        %1381 = vmatpush2.msra.mxu0 0.0
        %1382 = vmatprep.subr.mxu0 0.0
        %1383 = vmatpush2.msra.mxu0 0.0
        %1384 = vmatprep.subr.mxu0 0.0
        %1385 = vmatpush2.msra.mxu0 0.0
        %1386 = vmatprep.subr.mxu0 0.0
        %1387 = vmatpush2.msra.mxu0 0.0
        %1388 = vmatprep.mubr.f32.mxu0 0.0
        %1389 = vmatmul.mubr.f32.gmra.mxu0 %v791
        %v1390 = vpop.f32.mrf.mxu0
        %v1391 = vadd.f32 %v1063, %v1390
        %v1392 = vpop.f32.mrf.mxu0
        %v1393 = vadd.f32 %v1067, %v1392
        %1394 = vdwg.mxu0
        %1395 = vmatprep.subr.mxu0 %v1026
        %1396 = vmatpush1.msra.mxu0 %v1025
        %1397 = vmatprep.subr.mxu0 %v1011
        %1398 = vmatpush1.msra.mxu0 %v1010
        %1399 = vmatprep.subr.mxu0 %v996
        %1400 = vmatpush1.msra.mxu0 %v995
        %1401 = vmatprep.subr.mxu0 %v981
        %1402 = vmatpush1.msra.mxu0 %v980
        %1403 = vmatprep.subr.mxu0 %v966
        %1404 = vmatpush1.msra.mxu0 %v965
        %1405 = vmatprep.subr.mxu0 %v951
        %1406 = vmatpush1.msra.mxu0 %v950
        %1407 = vmatprep.subr.mxu0 %v936
        %1408 = vmatpush1.msra.mxu0 %v935
        %1409 = vmatprep.subr.mxu0 %v921
        %1410 = vmatpush1.msra.mxu0 %v920
        %1411 = vmatprep.subr.mxu0 %v906
        %1412 = vmatpush1.msra.mxu0 %v905
        %1413 = vmatprep.subr.mxu0 %v891
        %1414 = vmatpush1.msra.mxu0 %v890
        %1415 = vmatprep.subr.mxu0 %v876
        %1416 = vmatpush1.msra.mxu0 %v875
        %1417 = vmatprep.subr.mxu0 %v861
        %1418 = vmatpush1.msra.mxu0 %v860
        %1419 = vmatprep.subr.mxu0 %v846
        %1420 = vmatpush1.msra.mxu0 %v845
        %1421 = vmatprep.subr.mxu0 %v831
        %1422 = vmatpush1.msra.mxu0 %v830
        %1423 = vmatprep.subr.mxu0 %v816
        %1424 = vmatpush1.msra.mxu0 %v815
        %1425 = vmatprep.subr.mxu0 %v801
        %1426 = vmatpush1.msra.mxu0 %v800
        %1427 = vmatprep.subr.mxu0 0.0
        %1428 = vmatpush2.msra.mxu0 0.0
        %1429 = vmatprep.subr.mxu0 0.0
        %1430 = vmatpush2.msra.mxu0 0.0
        %1431 = vmatprep.subr.mxu0 0.0
        %1432 = vmatpush2.msra.mxu0 0.0
        %1433 = vmatprep.subr.mxu0 0.0
        %1434 = vmatpush2.msra.mxu0 0.0
        %1435 = vmatprep.subr.mxu0 0.0
        %1436 = vmatpush2.msra.mxu0 0.0
        %1437 = vmatprep.subr.mxu0 0.0
        %1438 = vmatpush2.msra.mxu0 0.0
        %1439 = vmatprep.subr.mxu0 0.0
        %1440 = vmatpush2.msra.mxu0 0.0
        %1441 = vmatprep.subr.mxu0 0.0
        %1442 = vmatpush2.msra.mxu0 0.0
        %1443 = vmatprep.subr.mxu0 0.0
        %1444 = vmatpush2.msra.mxu0 0.0
        %1445 = vmatprep.subr.mxu0 0.0
        %1446 = vmatpush2.msra.mxu0 0.0
        %1447 = vmatprep.subr.mxu0 0.0
        %1448 = vmatpush2.msra.mxu0 0.0
        %1449 = vmatprep.subr.mxu0 0.0
        %1450 = vmatpush2.msra.mxu0 0.0
        %1451 = vmatprep.subr.mxu0 0.0
        %1452 = vmatpush2.msra.mxu0 0.0
        %1453 = vmatprep.subr.mxu0 0.0
        %1454 = vmatpush2.msra.mxu0 0.0
        %1455 = vmatprep.subr.mxu0 0.0
        %1456 = vmatpush2.msra.mxu0 0.0
        %1457 = vmatprep.subr.mxu0 0.0
        %1458 = vmatpush2.msra.mxu0 0.0
        %1459 = vmatprep.mubr.f32.mxu0 0.0
        %1460 = vmatmul.mubr.f32.gmra.mxu0 %v791
        %v1461 = vpop.f32.mrf.mxu0
        %v1462 = vadd.f32 %v1071, %v1461
        %v1463 = vpop.f32.mrf.mxu0
        %v1464 = vadd.f32 %v1075, %v1463
        %1465 = vdwg.mxu0
        %1466 = vmatprep.subr.mxu0 %v1028
        %1467 = vmatpush1.msra.mxu0 %v1027
        %1468 = vmatprep.subr.mxu0 %v1013
        %1469 = vmatpush1.msra.mxu0 %v1012
        %1470 = vmatprep.subr.mxu0 %v998
        %1471 = vmatpush1.msra.mxu0 %v997
        %1472 = vmatprep.subr.mxu0 %v983
        %1473 = vmatpush1.msra.mxu0 %v982
        %1474 = vmatprep.subr.mxu0 %v968
        %1475 = vmatpush1.msra.mxu0 %v967
        %1476 = vmatprep.subr.mxu0 %v953
        %1477 = vmatpush1.msra.mxu0 %v952
        %1478 = vmatprep.subr.mxu0 %v938
        %1479 = vmatpush1.msra.mxu0 %v937
        %1480 = vmatprep.subr.mxu0 %v923
        %1481 = vmatpush1.msra.mxu0 %v922
        %1482 = vmatprep.subr.mxu0 %v908
        %1483 = vmatpush1.msra.mxu0 %v907
        %1484 = vmatprep.subr.mxu0 %v893
        %1485 = vmatpush1.msra.mxu0 %v892
        %1486 = vmatprep.subr.mxu0 %v878
        %1487 = vmatpush1.msra.mxu0 %v877
        %1488 = vmatprep.subr.mxu0 %v863
        %1489 = vmatpush1.msra.mxu0 %v862
        %1490 = vmatprep.subr.mxu0 %v848
        %1491 = vmatpush1.msra.mxu0 %v847
        %1492 = vmatprep.subr.mxu0 %v833
        %1493 = vmatpush1.msra.mxu0 %v832
        %1494 = vmatprep.subr.mxu0 %v818
        %1495 = vmatpush1.msra.mxu0 %v817
        %1496 = vmatprep.subr.mxu0 %v803
        %1497 = vmatpush1.msra.mxu0 %v802
        %1498 = vmatprep.subr.mxu0 0.0
        %1499 = vmatpush2.msra.mxu0 0.0
        %1500 = vmatprep.subr.mxu0 0.0
        %1501 = vmatpush2.msra.mxu0 0.0
        %1502 = vmatprep.subr.mxu0 0.0
        %1503 = vmatpush2.msra.mxu0 0.0
        %1504 = vmatprep.subr.mxu0 0.0
        %1505 = vmatpush2.msra.mxu0 0.0
        %1506 = vmatprep.subr.mxu0 0.0
        %1507 = vmatpush2.msra.mxu0 0.0
        %1508 = vmatprep.subr.mxu0 0.0
        %1509 = vmatpush2.msra.mxu0 0.0
        %1510 = vmatprep.subr.mxu0 0.0
        %1511 = vmatpush2.msra.mxu0 0.0
        %1512 = vmatprep.subr.mxu0 0.0
        %1513 = vmatpush2.msra.mxu0 0.0
        %1514 = vmatprep.subr.mxu0 0.0
        %1515 = vmatpush2.msra.mxu0 0.0
        %1516 = vmatprep.subr.mxu0 0.0
        %1517 = vmatpush2.msra.mxu0 0.0
        %1518 = vmatprep.subr.mxu0 0.0
        %1519 = vmatpush2.msra.mxu0 0.0
        %1520 = vmatprep.subr.mxu0 0.0
        %1521 = vmatpush2.msra.mxu0 0.0
        %1522 = vmatprep.subr.mxu0 0.0
        %1523 = vmatpush2.msra.mxu0 0.0
        %1524 = vmatprep.subr.mxu0 0.0
        %1525 = vmatpush2.msra.mxu0 0.0
        %1526 = vmatprep.subr.mxu0 0.0
        %1527 = vmatpush2.msra.mxu0 0.0
        %1528 = vmatprep.subr.mxu0 0.0
        %1529 = vmatpush2.msra.mxu0 0.0
        %1530 = vmatprep.mubr.f32.mxu0 0.0
        %1531 = vmatmul.mubr.f32.gmra.mxu0 %v791
        %v1532 = vpop.f32.mrf.mxu0
        %v1533 = vadd.f32 %v1079, %v1532
        %v1534 = vpop.f32.mrf.mxu0
        %v1535 = vadd.f32 %v1083, %v1534
        %1536 = vdwg.mxu0
        %1537 = vmatprep.subr.mxu0 %v1030
        %1538 = vmatpush1.msra.mxu0 %v1029
        %1539 = vmatprep.subr.mxu0 %v1015
        %1540 = vmatpush1.msra.mxu0 %v1014
        %1541 = vmatprep.subr.mxu0 %v1000
        %1542 = vmatpush1.msra.mxu0 %v999
        %1543 = vmatprep.subr.mxu0 %v985
        %1544 = vmatpush1.msra.mxu0 %v984
        %1545 = vmatprep.subr.mxu0 %v970
        %1546 = vmatpush1.msra.mxu0 %v969
        %1547 = vmatprep.subr.mxu0 %v955
        %1548 = vmatpush1.msra.mxu0 %v954
        %1549 = vmatprep.subr.mxu0 %v940
        %1550 = vmatpush1.msra.mxu0 %v939
        %1551 = vmatprep.subr.mxu0 %v925
        %1552 = vmatpush1.msra.mxu0 %v924
        %1553 = vmatprep.subr.mxu0 %v910
        %1554 = vmatpush1.msra.mxu0 %v909
        %1555 = vmatprep.subr.mxu0 %v895
        %1556 = vmatpush1.msra.mxu0 %v894
        %1557 = vmatprep.subr.mxu0 %v880
        %1558 = vmatpush1.msra.mxu0 %v879
        %1559 = vmatprep.subr.mxu0 %v865
        %1560 = vmatpush1.msra.mxu0 %v864
        %1561 = vmatprep.subr.mxu0 %v850
        %1562 = vmatpush1.msra.mxu0 %v849
        %1563 = vmatprep.subr.mxu0 %v835
        %1564 = vmatpush1.msra.mxu0 %v834
        %1565 = vmatprep.subr.mxu0 %v820
        %1566 = vmatpush1.msra.mxu0 %v819
        %1567 = vmatprep.subr.mxu0 %v805
        %1568 = vmatpush1.msra.mxu0 %v804
        %1569 = vmatprep.subr.mxu0 0.0
        %1570 = vmatpush2.msra.mxu0 0.0
        %1571 = vmatprep.subr.mxu0 0.0
        %1572 = vmatpush2.msra.mxu0 0.0
        %1573 = vmatprep.subr.mxu0 0.0
        %1574 = vmatpush2.msra.mxu0 0.0
        %1575 = vmatprep.subr.mxu0 0.0
        %1576 = vmatpush2.msra.mxu0 0.0
        %1577 = vmatprep.subr.mxu0 0.0
        %1578 = vmatpush2.msra.mxu0 0.0
        %1579 = vmatprep.subr.mxu0 0.0
        %1580 = vmatpush2.msra.mxu0 0.0
        %1581 = vmatprep.subr.mxu0 0.0
        %1582 = vmatpush2.msra.mxu0 0.0
        %1583 = vmatprep.subr.mxu0 0.0
        %1584 = vmatpush2.msra.mxu0 0.0
        %1585 = vmatprep.subr.mxu0 0.0
        %1586 = vmatpush2.msra.mxu0 0.0
        %1587 = vmatprep.subr.mxu0 0.0
        %1588 = vmatpush2.msra.mxu0 0.0
        %1589 = vmatprep.subr.mxu0 0.0
        %1590 = vmatpush2.msra.mxu0 0.0
        %1591 = vmatprep.subr.mxu0 0.0
        %1592 = vmatpush2.msra.mxu0 0.0
        %1593 = vmatprep.subr.mxu0 0.0
        %1594 = vmatpush2.msra.mxu0 0.0
        %1595 = vmatprep.subr.mxu0 0.0
        %1596 = vmatpush2.msra.mxu0 0.0
        %1597 = vmatprep.subr.mxu0 0.0
        %1598 = vmatpush2.msra.mxu0 0.0
        %1599 = vmatprep.subr.mxu0 0.0
        %1600 = vmatpush2.msra.mxu0 0.0
        %1601 = vmatprep.mubr.f32.mxu0 0.0
        %1602 = vmatmul.mubr.f32.gmra.mxu0 %v791
        %v1603 = vpop.f32.mrf.mxu0
        %v1604 = vadd.f32 %v1087, %v1603
        %v1605 = vpop.f32.mrf.mxu0
        %v1606 = vadd.f32 %v1091, %v1605
        %1607 = vdwg.mxu0
        %1608 = vmatprep.subr.mxu0 0.0
        %1609 = vmatpush1.msra.mxu0 %v1031
        %1610 = vmatprep.subr.mxu0 0.0
        %1611 = vmatpush1.msra.mxu0 %v1016
        %1612 = vmatprep.subr.mxu0 0.0
        %1613 = vmatpush1.msra.mxu0 %v1001
        %1614 = vmatprep.subr.mxu0 0.0
        %1615 = vmatpush1.msra.mxu0 %v986
        %1616 = vmatprep.subr.mxu0 0.0
        %1617 = vmatpush1.msra.mxu0 %v971
        %1618 = vmatprep.subr.mxu0 0.0
        %1619 = vmatpush1.msra.mxu0 %v956
        %1620 = vmatprep.subr.mxu0 0.0
        %1621 = vmatpush1.msra.mxu0 %v941
        %1622 = vmatprep.subr.mxu0 0.0
        %1623 = vmatpush1.msra.mxu0 %v926
        %1624 = vmatprep.subr.mxu0 0.0
        %1625 = vmatpush1.msra.mxu0 %v911
        %1626 = vmatprep.subr.mxu0 0.0
        %1627 = vmatpush1.msra.mxu0 %v896
        %1628 = vmatprep.subr.mxu0 0.0
        %1629 = vmatpush1.msra.mxu0 %v881
        %1630 = vmatprep.subr.mxu0 0.0
        %1631 = vmatpush1.msra.mxu0 %v866
        %1632 = vmatprep.subr.mxu0 0.0
        %1633 = vmatpush1.msra.mxu0 %v851
        %1634 = vmatprep.subr.mxu0 0.0
        %1635 = vmatpush1.msra.mxu0 %v836
        %1636 = vmatprep.subr.mxu0 0.0
        %1637 = vmatpush1.msra.mxu0 %v821
        %1638 = vmatprep.subr.mxu0 0.0
        %1639 = vmatpush1.msra.mxu0 %v806
        %1640 = vmatprep.subr.mxu0 0.0
        %1641 = vmatpush2.msra.mxu0 0.0
        %1642 = vmatprep.subr.mxu0 0.0
        %1643 = vmatpush2.msra.mxu0 0.0
        %1644 = vmatprep.subr.mxu0 0.0
        %1645 = vmatpush2.msra.mxu0 0.0
        %1646 = vmatprep.subr.mxu0 0.0
        %1647 = vmatpush2.msra.mxu0 0.0
        %1648 = vmatprep.subr.mxu0 0.0
        %1649 = vmatpush2.msra.mxu0 0.0
        %1650 = vmatprep.subr.mxu0 0.0
        %1651 = vmatpush2.msra.mxu0 0.0
        %1652 = vmatprep.subr.mxu0 0.0
        %1653 = vmatpush2.msra.mxu0 0.0
        %1654 = vmatprep.subr.mxu0 0.0
        %1655 = vmatpush2.msra.mxu0 0.0
        %1656 = vmatprep.subr.mxu0 0.0
        %1657 = vmatpush2.msra.mxu0 0.0
        %1658 = vmatprep.subr.mxu0 0.0
        %1659 = vmatpush2.msra.mxu0 0.0
        %1660 = vmatprep.subr.mxu0 0.0
        %1661 = vmatpush2.msra.mxu0 0.0
        %1662 = vmatprep.subr.mxu0 0.0
        %1663 = vmatpush2.msra.mxu0 0.0
        %1664 = vmatprep.subr.mxu0 0.0
        %1665 = vmatpush2.msra.mxu0 0.0
        %1666 = vmatprep.subr.mxu0 0.0
        %1667 = vmatpush2.msra.mxu0 0.0
        %1668 = vmatprep.subr.mxu0 0.0
        %1669 = vmatpush2.msra.mxu0 0.0
        %1670 = vmatprep.subr.mxu0 0.0
        %1671 = vmatpush2.msra.mxu0 0.0
        %1672 = vmatprep.mubr.f32.mxu0 0.0
        %1673 = vmatmul.mubr.f32.gmra.mxu0 %v791
        %v1674 = vpop.f32.mrf.mxu0
        %v1675 = vadd.f32 %v1095, %v1674
        %v1676 = vpop.f32.mrf.mxu0
        %1677 = vdwg.mxu0
        %1678 = vmatprep.subr.mxu0 0.0
        %1679 = vmatpush1.xpose.msra.mxu0 0.0
        %1680 = vmatprep.subr.mxu0 0.0
        %1681 = vmatpush1.xpose.msra.mxu0 0.0
        %1682 = vmatprep.subr.mxu0 0.0
        %1683 = vmatpush1.xpose.msra.mxu0 0.0
        %1684 = vmatprep.subr.mxu0 0.0
        %1685 = vmatpush1.xpose.msra.mxu0 0.0
        %1686 = vmatprep.subr.mxu0 0.0
        %1687 = vmatpush1.xpose.msra.mxu0 0.0
        %1688 = vmatprep.subr.mxu0 0.0
        %1689 = vmatpush1.xpose.msra.mxu0 0.0
        %1690 = vmatprep.subr.mxu0 0.0
        %1691 = vmatpush1.xpose.msra.mxu0 0.0
        %1692 = vmatprep.subr.mxu0 0.0
        %1693 = vmatpush1.xpose.msra.mxu0 0.0
        %1694 = vmatprep.subr.mxu0 0.0
        %1695 = vmatpush1.xpose.msra.mxu0 0.0
        %1696 = vmatprep.subr.mxu0 0.0
        %1697 = vmatpush1.xpose.msra.mxu0 0.0
        %1698 = vmatprep.subr.mxu0 0.0
        %1699 = vmatpush1.xpose.msra.mxu0 0.0
        %1700 = vmatprep.subr.mxu0 0.0
        %1701 = vmatpush1.xpose.msra.mxu0 0.0
        %1702 = vmatprep.subr.mxu0 0.0
        %1703 = vmatpush1.xpose.msra.mxu0 0.0
        %1704 = vmatprep.subr.mxu0 0.0
        %1705 = vmatpush1.xpose.msra.mxu0 0.0
        %1706 = vmatprep.subr.mxu0 0.0
        %1707 = vmatpush1.xpose.msra.mxu0 0.0
        %1708 = vmatprep.subr.mxu0 0.0
        %1709 = vmatpush1.xpose.msra.mxu0 %v1322
        %1710 = vmatprep.subr.mxu0 0.0
        %1711 = vmatpush2.xpose.msra.mxu0 0.0
        %1712 = vmatprep.subr.mxu0 0.0
        %1713 = vmatpush2.xpose.msra.mxu0 0.0
        %1714 = vmatprep.subr.mxu0 0.0
        %1715 = vmatpush2.xpose.msra.mxu0 0.0
        %1716 = vmatprep.subr.mxu0 0.0
        %1717 = vmatpush2.xpose.msra.mxu0 0.0
        %1718 = vmatprep.subr.mxu0 0.0
        %1719 = vmatpush2.xpose.msra.mxu0 0.0
        %1720 = vmatprep.subr.mxu0 0.0
        %1721 = vmatpush2.xpose.msra.mxu0 0.0
        %1722 = vmatprep.subr.mxu0 0.0
        %1723 = vmatpush2.xpose.msra.mxu0 0.0
        %1724 = vmatprep.subr.mxu0 0.0
        %1725 = vmatpush2.xpose.msra.mxu0 0.0
        %1726 = vmatprep.subr.mxu0 0.0
        %1727 = vmatpush2.xpose.msra.mxu0 0.0
        %1728 = vmatprep.subr.mxu0 0.0
        %1729 = vmatpush2.xpose.msra.mxu0 0.0
        %1730 = vmatprep.subr.mxu0 0.0
        %1731 = vmatpush2.xpose.msra.mxu0 0.0
        %1732 = vmatprep.subr.mxu0 0.0
        %1733 = vmatpush2.xpose.msra.mxu0 0.0
        %1734 = vmatprep.subr.mxu0 0.0
        %1735 = vmatpush2.xpose.msra.mxu0 0.0
        %1736 = vmatprep.subr.mxu0 0.0
        %1737 = vmatpush2.xpose.msra.mxu0 0.0
        %1738 = vmatprep.subr.mxu0 0.0
        %1739 = vmatpush2.xpose.msra.mxu0 0.0
        %1740 = vmatprep.subr.mxu0 0.0
        %1741 = vmatpush2.xpose.msra.mxu0 0.0
        %1742 = vmatprep.mubr.f32.mxu0 0.0
        %1743 = vmatmul.mubr.f32.gmra.mxu0 %v1178
        %v1744 = vpop.f32.mrf.mxu0
        %v1745 = vadd.f32 0.0, %v1744
        %v1746 = vpop.f32.mrf.mxu0
        %1747 = vdwg.mxu0
        %1748 = vmatprep.subr.mxu0 0.0
        %1749 = vmatpush1.xpose.msra.mxu0 0.0
        %1750 = vmatprep.subr.mxu0 0.0
        %1751 = vmatpush1.xpose.msra.mxu0 0.0
        %1752 = vmatprep.subr.mxu0 0.0
        %1753 = vmatpush1.xpose.msra.mxu0 0.0
        %1754 = vmatprep.subr.mxu0 0.0
        %1755 = vmatpush1.xpose.msra.mxu0 0.0
        %1756 = vmatprep.subr.mxu0 0.0
        %1757 = vmatpush1.xpose.msra.mxu0 0.0
        %1758 = vmatprep.subr.mxu0 0.0
        %1759 = vmatpush1.xpose.msra.mxu0 0.0
        %1760 = vmatprep.subr.mxu0 0.0
        %1761 = vmatpush1.xpose.msra.mxu0 0.0
        %1762 = vmatprep.subr.mxu0 0.0
        %1763 = vmatpush1.xpose.msra.mxu0 0.0
        %1764 = vmatprep.subr.mxu0 0.0
        %1765 = vmatpush1.xpose.msra.mxu0 0.0
        %1766 = vmatprep.subr.mxu0 0.0
        %1767 = vmatpush1.xpose.msra.mxu0 0.0
        %1768 = vmatprep.subr.mxu0 0.0
        %1769 = vmatpush1.xpose.msra.mxu0 0.0
        %1770 = vmatprep.subr.mxu0 0.0
        %1771 = vmatpush1.xpose.msra.mxu0 0.0
        %1772 = vmatprep.subr.mxu0 0.0
        %1773 = vmatpush1.xpose.msra.mxu0 0.0
        %1774 = vmatprep.subr.mxu0 0.0
        %1775 = vmatpush1.xpose.msra.mxu0 0.0
        %1776 = vmatprep.subr.mxu0 0.0
        %1777 = vmatpush1.xpose.msra.mxu0 0.0
        %1778 = vmatprep.subr.mxu0 0.0
        %1779 = vmatpush1.xpose.msra.mxu0 %v1391
        %1780 = vmatprep.subr.mxu0 0.0
        %1781 = vmatpush2.xpose.msra.mxu0 0.0
        %1782 = vmatprep.subr.mxu0 0.0
        %1783 = vmatpush2.xpose.msra.mxu0 0.0
        %1784 = vmatprep.subr.mxu0 0.0
        %1785 = vmatpush2.xpose.msra.mxu0 0.0
        %1786 = vmatprep.subr.mxu0 0.0
        %1787 = vmatpush2.xpose.msra.mxu0 0.0
        %1788 = vmatprep.subr.mxu0 0.0
        %1789 = vmatpush2.xpose.msra.mxu0 0.0
        %1790 = vmatprep.subr.mxu0 0.0
        %1791 = vmatpush2.xpose.msra.mxu0 0.0
        %1792 = vmatprep.subr.mxu0 0.0
        %1793 = vmatpush2.xpose.msra.mxu0 0.0
        %1794 = vmatprep.subr.mxu0 0.0
        %1795 = vmatpush2.xpose.msra.mxu0 0.0
        %1796 = vmatprep.subr.mxu0 0.0
        %1797 = vmatpush2.xpose.msra.mxu0 0.0
        %1798 = vmatprep.subr.mxu0 0.0
        %1799 = vmatpush2.xpose.msra.mxu0 0.0
        %1800 = vmatprep.subr.mxu0 0.0
        %1801 = vmatpush2.xpose.msra.mxu0 0.0
        %1802 = vmatprep.subr.mxu0 0.0
        %1803 = vmatpush2.xpose.msra.mxu0 0.0
        %1804 = vmatprep.subr.mxu0 0.0
        %1805 = vmatpush2.xpose.msra.mxu0 0.0
        %1806 = vmatprep.subr.mxu0 0.0
        %1807 = vmatpush2.xpose.msra.mxu0 0.0
        %1808 = vmatprep.subr.mxu0 0.0
        %1809 = vmatpush2.xpose.msra.mxu0 0.0
        %1810 = vmatprep.subr.mxu0 0.0
        %1811 = vmatpush2.xpose.msra.mxu0 0.0
        %1812 = vmatprep.mubr.f32.mxu0 0.0
        %1813 = vmatmul.mubr.f32.gmra.mxu0 %v1180
        %v1814 = vpop.f32.mrf.mxu0
        %v1815 = vadd.f32 0.0, %v1814
        %v1816 = vpop.f32.mrf.mxu0
        %1817 = vdwg.mxu0
        %1818 = vmatprep.subr.mxu0 0.0
        %1819 = vmatpush1.xpose.msra.mxu0 0.0
        %1820 = vmatprep.subr.mxu0 0.0
        %1821 = vmatpush1.xpose.msra.mxu0 0.0
        %1822 = vmatprep.subr.mxu0 0.0
        %1823 = vmatpush1.xpose.msra.mxu0 0.0
        %1824 = vmatprep.subr.mxu0 0.0
        %1825 = vmatpush1.xpose.msra.mxu0 0.0
        %1826 = vmatprep.subr.mxu0 0.0
        %1827 = vmatpush1.xpose.msra.mxu0 0.0
        %1828 = vmatprep.subr.mxu0 0.0
        %1829 = vmatpush1.xpose.msra.mxu0 0.0
        %1830 = vmatprep.subr.mxu0 0.0
        %1831 = vmatpush1.xpose.msra.mxu0 0.0
        %1832 = vmatprep.subr.mxu0 0.0
        %1833 = vmatpush1.xpose.msra.mxu0 0.0
        %1834 = vmatprep.subr.mxu0 0.0
        %1835 = vmatpush1.xpose.msra.mxu0 0.0
        %1836 = vmatprep.subr.mxu0 0.0
        %1837 = vmatpush1.xpose.msra.mxu0 0.0
        %1838 = vmatprep.subr.mxu0 0.0
        %1839 = vmatpush1.xpose.msra.mxu0 0.0
        %1840 = vmatprep.subr.mxu0 0.0
        %1841 = vmatpush1.xpose.msra.mxu0 0.0
        %1842 = vmatprep.subr.mxu0 0.0
        %1843 = vmatpush1.xpose.msra.mxu0 0.0
        %1844 = vmatprep.subr.mxu0 0.0
        %1845 = vmatpush1.xpose.msra.mxu0 0.0
        %1846 = vmatprep.subr.mxu0 0.0
        %1847 = vmatpush1.xpose.msra.mxu0 0.0
        %1848 = vmatprep.subr.mxu0 0.0
        %1849 = vmatpush1.xpose.msra.mxu0 %v1393
        %1850 = vmatprep.subr.mxu0 0.0
        %1851 = vmatpush2.xpose.msra.mxu0 0.0
        %1852 = vmatprep.subr.mxu0 0.0
        %1853 = vmatpush2.xpose.msra.mxu0 0.0
        %1854 = vmatprep.subr.mxu0 0.0
        %1855 = vmatpush2.xpose.msra.mxu0 0.0
        %1856 = vmatprep.subr.mxu0 0.0
        %1857 = vmatpush2.xpose.msra.mxu0 0.0
        %1858 = vmatprep.subr.mxu0 0.0
        %1859 = vmatpush2.xpose.msra.mxu0 0.0
        %1860 = vmatprep.subr.mxu0 0.0
        %1861 = vmatpush2.xpose.msra.mxu0 0.0
        %1862 = vmatprep.subr.mxu0 0.0
        %1863 = vmatpush2.xpose.msra.mxu0 0.0
        %1864 = vmatprep.subr.mxu0 0.0
        %1865 = vmatpush2.xpose.msra.mxu0 0.0
        %1866 = vmatprep.subr.mxu0 0.0
        %1867 = vmatpush2.xpose.msra.mxu0 0.0
        %1868 = vmatprep.subr.mxu0 0.0
        %1869 = vmatpush2.xpose.msra.mxu0 0.0
        %1870 = vmatprep.subr.mxu0 0.0
        %1871 = vmatpush2.xpose.msra.mxu0 0.0
        %1872 = vmatprep.subr.mxu0 0.0
        %1873 = vmatpush2.xpose.msra.mxu0 0.0
        %1874 = vmatprep.subr.mxu0 0.0
        %1875 = vmatpush2.xpose.msra.mxu0 0.0
        %1876 = vmatprep.subr.mxu0 0.0
        %1877 = vmatpush2.xpose.msra.mxu0 0.0
        %1878 = vmatprep.subr.mxu0 0.0
        %1879 = vmatpush2.xpose.msra.mxu0 0.0
        %1880 = vmatprep.subr.mxu0 0.0
        %1881 = vmatpush2.xpose.msra.mxu0 0.0
        %1882 = vmatprep.mubr.f32.mxu0 0.0
        %1883 = vmatmul.mubr.f32.gmra.mxu0 %v1249
        %v1884 = vpop.f32.mrf.mxu0
        %v1885 = vadd.f32 0.0, %v1884
        %v1886 = vpop.f32.mrf.mxu0
        %1887 = vdwg.mxu0
        %1888 = vmatprep.subr.mxu0 0.0
        %1889 = vmatpush1.xpose.msra.mxu0 0.0
        %1890 = vmatprep.subr.mxu0 0.0
        %1891 = vmatpush1.xpose.msra.mxu0 0.0
        %1892 = vmatprep.subr.mxu0 0.0
        %1893 = vmatpush1.xpose.msra.mxu0 0.0
        %1894 = vmatprep.subr.mxu0 0.0
        %1895 = vmatpush1.xpose.msra.mxu0 0.0
        %1896 = vmatprep.subr.mxu0 0.0
        %1897 = vmatpush1.xpose.msra.mxu0 0.0
        %1898 = vmatprep.subr.mxu0 0.0
        %1899 = vmatpush1.xpose.msra.mxu0 0.0
        %1900 = vmatprep.subr.mxu0 0.0
        %1901 = vmatpush1.xpose.msra.mxu0 0.0
        %1902 = vmatprep.subr.mxu0 0.0
        %1903 = vmatpush1.xpose.msra.mxu0 0.0
        %1904 = vmatprep.subr.mxu0 0.0
        %1905 = vmatpush1.xpose.msra.mxu0 0.0
        %1906 = vmatprep.subr.mxu0 0.0
        %1907 = vmatpush1.xpose.msra.mxu0 0.0
        %1908 = vmatprep.subr.mxu0 0.0
        %1909 = vmatpush1.xpose.msra.mxu0 0.0
        %1910 = vmatprep.subr.mxu0 0.0
        %1911 = vmatpush1.xpose.msra.mxu0 0.0
        %1912 = vmatprep.subr.mxu0 0.0
        %1913 = vmatpush1.xpose.msra.mxu0 0.0
        %1914 = vmatprep.subr.mxu0 0.0
        %1915 = vmatpush1.xpose.msra.mxu0 0.0
        %1916 = vmatprep.subr.mxu0 0.0
        %1917 = vmatpush1.xpose.msra.mxu0 0.0
        %1918 = vmatprep.subr.mxu0 0.0
        %1919 = vmatpush1.xpose.msra.mxu0 %v1462
        %1920 = vmatprep.subr.mxu0 0.0
        %1921 = vmatpush2.xpose.msra.mxu0 0.0
        %1922 = vmatprep.subr.mxu0 0.0
        %1923 = vmatpush2.xpose.msra.mxu0 0.0
        %1924 = vmatprep.subr.mxu0 0.0
        %1925 = vmatpush2.xpose.msra.mxu0 0.0
        %1926 = vmatprep.subr.mxu0 0.0
        %1927 = vmatpush2.xpose.msra.mxu0 0.0
        %1928 = vmatprep.subr.mxu0 0.0
        %1929 = vmatpush2.xpose.msra.mxu0 0.0
        %1930 = vmatprep.subr.mxu0 0.0
        %1931 = vmatpush2.xpose.msra.mxu0 0.0
        %1932 = vmatprep.subr.mxu0 0.0
        %1933 = vmatpush2.xpose.msra.mxu0 0.0
        %1934 = vmatprep.subr.mxu0 0.0
        %1935 = vmatpush2.xpose.msra.mxu0 0.0
        %1936 = vmatprep.subr.mxu0 0.0
        %1937 = vmatpush2.xpose.msra.mxu0 0.0
        %1938 = vmatprep.subr.mxu0 0.0
        %1939 = vmatpush2.xpose.msra.mxu0 0.0
        %1940 = vmatprep.subr.mxu0 0.0
        %1941 = vmatpush2.xpose.msra.mxu0 0.0
        %1942 = vmatprep.subr.mxu0 0.0
        %1943 = vmatpush2.xpose.msra.mxu0 0.0
        %1944 = vmatprep.subr.mxu0 0.0
        %1945 = vmatpush2.xpose.msra.mxu0 0.0
        %1946 = vmatprep.subr.mxu0 0.0
        %1947 = vmatpush2.xpose.msra.mxu0 0.0
        %1948 = vmatprep.subr.mxu0 0.0
        %1949 = vmatpush2.xpose.msra.mxu0 0.0
        %1950 = vmatprep.subr.mxu0 0.0
        %1951 = vmatpush2.xpose.msra.mxu0 0.0
        %1952 = vmatprep.mubr.f32.mxu0 0.0
        %1953 = vmatmul.mubr.f32.gmra.mxu0 %v1251
        %v1954 = vpop.f32.mrf.mxu0
        %v1955 = vadd.f32 0.0, %v1954
        %v1956 = vpop.f32.mrf.mxu0
        %1957 = vdwg.mxu0
        %1958 = vmatprep.subr.mxu0 0.0
        %1959 = vmatpush1.xpose.msra.mxu0 0.0
        %1960 = vmatprep.subr.mxu0 0.0
        %1961 = vmatpush1.xpose.msra.mxu0 0.0
        %1962 = vmatprep.subr.mxu0 0.0
        %1963 = vmatpush1.xpose.msra.mxu0 0.0
        %1964 = vmatprep.subr.mxu0 0.0
        %1965 = vmatpush1.xpose.msra.mxu0 0.0
        %1966 = vmatprep.subr.mxu0 0.0
        %1967 = vmatpush1.xpose.msra.mxu0 0.0
        %1968 = vmatprep.subr.mxu0 0.0
        %1969 = vmatpush1.xpose.msra.mxu0 0.0
        %1970 = vmatprep.subr.mxu0 0.0
        %1971 = vmatpush1.xpose.msra.mxu0 0.0
        %1972 = vmatprep.subr.mxu0 0.0
        %1973 = vmatpush1.xpose.msra.mxu0 0.0
        %1974 = vmatprep.subr.mxu0 0.0
        %1975 = vmatpush1.xpose.msra.mxu0 0.0
        %1976 = vmatprep.subr.mxu0 0.0
        %1977 = vmatpush1.xpose.msra.mxu0 0.0
        %1978 = vmatprep.subr.mxu0 0.0
        %1979 = vmatpush1.xpose.msra.mxu0 0.0
        %1980 = vmatprep.subr.mxu0 0.0
        %1981 = vmatpush1.xpose.msra.mxu0 0.0
        %1982 = vmatprep.subr.mxu0 0.0
        %1983 = vmatpush1.xpose.msra.mxu0 0.0
        %1984 = vmatprep.subr.mxu0 0.0
        %1985 = vmatpush1.xpose.msra.mxu0 0.0
        %1986 = vmatprep.subr.mxu0 0.0
        %1987 = vmatpush1.xpose.msra.mxu0 0.0
        %1988 = vmatprep.subr.mxu0 0.0
        %1989 = vmatpush1.xpose.msra.mxu0 %v1464
        %1990 = vmatprep.subr.mxu0 0.0
        %1991 = vmatpush2.xpose.msra.mxu0 0.0
        %1992 = vmatprep.subr.mxu0 0.0
        %1993 = vmatpush2.xpose.msra.mxu0 0.0
        %1994 = vmatprep.subr.mxu0 0.0
        %1995 = vmatpush2.xpose.msra.mxu0 0.0
        %1996 = vmatprep.subr.mxu0 0.0
        %1997 = vmatpush2.xpose.msra.mxu0 0.0
        %1998 = vmatprep.subr.mxu0 0.0
        %1999 = vmatpush2.xpose.msra.mxu0 0.0
        %2000 = vmatprep.subr.mxu0 0.0
        %2001 = vmatpush2.xpose.msra.mxu0 0.0
        %2002 = vmatprep.subr.mxu0 0.0
        %2003 = vmatpush2.xpose.msra.mxu0 0.0
        %2004 = vmatprep.subr.mxu0 0.0
        %2005 = vmatpush2.xpose.msra.mxu0 0.0
        %2006 = vmatprep.subr.mxu0 0.0
        %2007 = vmatpush2.xpose.msra.mxu0 0.0
        %2008 = vmatprep.subr.mxu0 0.0
        %2009 = vmatpush2.xpose.msra.mxu0 0.0
        %2010 = vmatprep.subr.mxu0 0.0
        %2011 = vmatpush2.xpose.msra.mxu0 0.0
        %2012 = vmatprep.subr.mxu0 0.0
        %2013 = vmatpush2.xpose.msra.mxu0 0.0
        %2014 = vmatprep.subr.mxu0 0.0
        %2015 = vmatpush2.xpose.msra.mxu0 0.0
        %2016 = vmatprep.subr.mxu0 0.0
        %2017 = vmatpush2.xpose.msra.mxu0 0.0
        %2018 = vmatprep.subr.mxu0 0.0
        %2019 = vmatpush2.xpose.msra.mxu0 0.0
        %2020 = vmatprep.subr.mxu0 0.0
        %2021 = vmatpush2.xpose.msra.mxu0 0.0
        %2022 = vmatprep.mubr.f32.mxu0 0.0
        %2023 = vmatmul.mubr.f32.gmra.mxu0 %v1320
        %v2024 = vpop.f32.mrf.mxu0
        %v2025 = vadd.f32 0.0, %v2024
        %v2026 = vpop.f32.mrf.mxu0
        %2027 = vdwg.mxu0
        %vm2028 = vcmask 64512
        %v2029 = vsel %vm2028, %v1745, -inf
        %2030 = vmax.xlane.f32.xlu0 %v2029
        %v2031 = vpop.xlane.xlu0 %2030
        %v2032 = vsel %vm2028, %v1815, -inf
        %2033 = vmax.xlane.f32.xlu0 %v2032
        %v2034 = vpop.xlane.xlu0 %2033
        %v2035 = vsel %vm2028, %v1885, -inf
        %2036 = vmax.xlane.f32.xlu0 %v2035
        %v2037 = vpop.xlane.xlu0 %2036
        %v2038 = vsel %vm2028, %v1955, -inf
        %2039 = vmax.xlane.f32.xlu0 %v2038
        %v2040 = vpop.xlane.xlu0 %2039
        %v2041 = vsel %vm2028, %v2025, -inf
        %2042 = vmax.xlane.f32.xlu0 %v2041
        %v2043 = vpop.xlane.xlu0 %2042
        %v2044 = vsub.f32 %v1745, %v2031
        %v2045 = vsub.f32 %v1815, %v2034
        %v2046 = vsub.f32 %v1885, %v2037
        %v2047 = vsub.f32 %v1955, %v2040
        %v2048 = vsub.f32 %v2025, %v2043
        %v2049 = vmul.f32 %v2044, 1.442695
        %v2050 = vpow.pop %v2049
        %v2051 = vmul.f32 %v2045, 1.442695
        %v2052 = vpow.pop %v2051
        %v2053 = vmul.f32 %v2046, 1.442695
        %v2054 = vpow.pop %v2053
        %v2055 = vmul.f32 %v2047, 1.442695
        %v2056 = vpow.pop %v2055
        %v2057 = vmul.f32 %v2048, 1.442695
        %v2058 = vpow.pop %v2057
        %v2059 = vsel %vm2028, %v2050, 0.0
        %2060 = vadd.xlane.f32.xlu0 %v2059
        %v2061 = vpop.xlane.xlu0 %2060
        %v2062 = vsel %vm2028, %v2052, 0.0
        %2063 = vadd.xlane.f32.xlu0 %v2062
        %v2064 = vpop.xlane.xlu0 %2063
        %v2065 = vsel %vm2028, %v2054, 0.0
        %2066 = vadd.xlane.f32.xlu0 %v2065
        %v2067 = vpop.xlane.xlu0 %2066
        %v2068 = vsel %vm2028, %v2056, 0.0
        %2069 = vadd.xlane.f32.xlu0 %v2068
        %v2070 = vpop.xlane.xlu0 %2069
        %v2071 = vsel %vm2028, %v2058, 0.0
        %2072 = vadd.xlane.f32.xlu0 %v2071
        %v2073 = vpop.xlane.xlu0 %2072
        %v2074 = vrcp.pop %v2061
        %v2075 = vrcp.pop %v2064
        %v2076 = vrcp.pop %v2067
        %v2077 = vrcp.pop %v2070
        %v2078 = vrcp.pop %v2073
        %v2079 = vmul.f32 %v2050, %v2074
        %v2080 = vmul.f32 %v2052, %v2075
        %v2081 = vmul.f32 %v2054, %v2076
        %v2082 = vmul.f32 %v2056, %v2077
        %v2083 = vmul.f32 %v2058, %v2078
        %v2085 = vsel %vm2028, %v2079, 0
        %2087 = vmatprep.subr.mxu0 0.0
        %2088 = vmatpush1.msra.mxu0 0.0
        %2089 = vmatprep.subr.mxu0 0.0
        %2090 = vmatpush1.msra.mxu0 0.0
        %2091 = vmatprep.subr.mxu0 0.0
        %2092 = vmatpush1.msra.mxu0 0.0
        %2093 = vmatprep.subr.mxu0 0.0
        %2094 = vmatpush1.msra.mxu0 0.0
        %2095 = vmatprep.subr.mxu0 0.0
        %2096 = vmatpush1.msra.mxu0 0.0
        %2097 = vmatprep.subr.mxu0 0.0
        %2098 = vmatpush1.msra.mxu0 0.0
        %2099 = vmatprep.subr.mxu0 0.0
        %2100 = vmatpush1.msra.mxu0 0.0
        %2101 = vmatprep.subr.mxu0 0.0
        %2102 = vmatpush1.msra.mxu0 0.0
        %2103 = vmatprep.subr.mxu0 0.0
        %2104 = vmatpush1.msra.mxu0 0.0
        %2105 = vmatprep.subr.mxu0 0.0
        %2106 = vmatpush1.msra.mxu0 0.0
        %2107 = vmatprep.subr.mxu0 0.0
        %2108 = vmatpush1.msra.mxu0 0.0
        %2109 = vmatprep.subr.mxu0 0.0
        %2110 = vmatpush1.msra.mxu0 0.0
        %2111 = vmatprep.subr.mxu0 0.0
        %2112 = vmatpush1.msra.mxu0 0.0
        %2113 = vmatprep.subr.mxu0 0.0
        %2114 = vmatpush1.msra.mxu0 0.0
        %2115 = vmatprep.subr.mxu0 0.0
        %2116 = vmatpush1.msra.mxu0 0.0
        %2117 = vmatprep.subr.mxu0 0.0
        %2118 = vmatpush1.msra.mxu0 %v1533
        %2119 = vmatprep.subr.mxu0 0.0
        %2120 = vmatpush2.msra.mxu0 0.0
        %2121 = vmatprep.subr.mxu0 0.0
        %2122 = vmatpush2.msra.mxu0 0.0
        %2123 = vmatprep.subr.mxu0 0.0
        %2124 = vmatpush2.msra.mxu0 0.0
        %2125 = vmatprep.subr.mxu0 0.0
        %2126 = vmatpush2.msra.mxu0 0.0
        %2127 = vmatprep.subr.mxu0 0.0
        %2128 = vmatpush2.msra.mxu0 0.0
        %2129 = vmatprep.subr.mxu0 0.0
        %2130 = vmatpush2.msra.mxu0 0.0
        %2131 = vmatprep.subr.mxu0 0.0
        %2132 = vmatpush2.msra.mxu0 0.0
        %2133 = vmatprep.subr.mxu0 0.0
        %2134 = vmatpush2.msra.mxu0 0.0
        %2135 = vmatprep.subr.mxu0 0.0
        %2136 = vmatpush2.msra.mxu0 0.0
        %2137 = vmatprep.subr.mxu0 0.0
        %2138 = vmatpush2.msra.mxu0 0.0
        %2139 = vmatprep.subr.mxu0 0.0
        %2140 = vmatpush2.msra.mxu0 0.0
        %2141 = vmatprep.subr.mxu0 0.0
        %2142 = vmatpush2.msra.mxu0 0.0
        %2143 = vmatprep.subr.mxu0 0.0
        %2144 = vmatpush2.msra.mxu0 0.0
        %2145 = vmatprep.subr.mxu0 0.0
        %2146 = vmatpush2.msra.mxu0 0.0
        %2147 = vmatprep.subr.mxu0 0.0
        %2148 = vmatpush2.msra.mxu0 0.0
        %2149 = vmatprep.subr.mxu0 0.0
        %2150 = vmatpush2.msra.mxu0 0.0
        %2151 = vmatprep.mubr.f32.mxu0 0.0
        %2152 = vmatmul.mubr.f32.gmra.mxu0 %v2085
        %v2153 = vpop.f32.mrf.mxu0
        %v2154 = vadd.f32 0.0, %v2153
        %v2155 = vpop.f32.mrf.mxu0
        %2156 = vdwg.mxu0
        %v2158 = vsel %vm2028, %v2080, 0
        %2160 = vmatprep.subr.mxu0 0.0
        %2161 = vmatpush1.msra.mxu0 0.0
        %2162 = vmatprep.subr.mxu0 0.0
        %2163 = vmatpush1.msra.mxu0 0.0
        %2164 = vmatprep.subr.mxu0 0.0
        %2165 = vmatpush1.msra.mxu0 0.0
        %2166 = vmatprep.subr.mxu0 0.0
        %2167 = vmatpush1.msra.mxu0 0.0
        %2168 = vmatprep.subr.mxu0 0.0
        %2169 = vmatpush1.msra.mxu0 0.0
        %2170 = vmatprep.subr.mxu0 0.0
        %2171 = vmatpush1.msra.mxu0 0.0
        %2172 = vmatprep.subr.mxu0 0.0
        %2173 = vmatpush1.msra.mxu0 0.0
        %2174 = vmatprep.subr.mxu0 0.0
        %2175 = vmatpush1.msra.mxu0 0.0
        %2176 = vmatprep.subr.mxu0 0.0
        %2177 = vmatpush1.msra.mxu0 0.0
        %2178 = vmatprep.subr.mxu0 0.0
        %2179 = vmatpush1.msra.mxu0 0.0
        %2180 = vmatprep.subr.mxu0 0.0
        %2181 = vmatpush1.msra.mxu0 0.0
        %2182 = vmatprep.subr.mxu0 0.0
        %2183 = vmatpush1.msra.mxu0 0.0
        %2184 = vmatprep.subr.mxu0 0.0
        %2185 = vmatpush1.msra.mxu0 0.0
        %2186 = vmatprep.subr.mxu0 0.0
        %2187 = vmatpush1.msra.mxu0 0.0
        %2188 = vmatprep.subr.mxu0 0.0
        %2189 = vmatpush1.msra.mxu0 0.0
        %2190 = vmatprep.subr.mxu0 0.0
        %2191 = vmatpush1.msra.mxu0 %v1535
        %2192 = vmatprep.subr.mxu0 0.0
        %2193 = vmatpush2.msra.mxu0 0.0
        %2194 = vmatprep.subr.mxu0 0.0
        %2195 = vmatpush2.msra.mxu0 0.0
        %2196 = vmatprep.subr.mxu0 0.0
        %2197 = vmatpush2.msra.mxu0 0.0
        %2198 = vmatprep.subr.mxu0 0.0
        %2199 = vmatpush2.msra.mxu0 0.0
        %2200 = vmatprep.subr.mxu0 0.0
        %2201 = vmatpush2.msra.mxu0 0.0
        %2202 = vmatprep.subr.mxu0 0.0
        %2203 = vmatpush2.msra.mxu0 0.0
        %2204 = vmatprep.subr.mxu0 0.0
        %2205 = vmatpush2.msra.mxu0 0.0
        %2206 = vmatprep.subr.mxu0 0.0
        %2207 = vmatpush2.msra.mxu0 0.0
        %2208 = vmatprep.subr.mxu0 0.0
        %2209 = vmatpush2.msra.mxu0 0.0
        %2210 = vmatprep.subr.mxu0 0.0
        %2211 = vmatpush2.msra.mxu0 0.0
        %2212 = vmatprep.subr.mxu0 0.0
        %2213 = vmatpush2.msra.mxu0 0.0
        %2214 = vmatprep.subr.mxu0 0.0
        %2215 = vmatpush2.msra.mxu0 0.0
        %2216 = vmatprep.subr.mxu0 0.0
        %2217 = vmatpush2.msra.mxu0 0.0
        %2218 = vmatprep.subr.mxu0 0.0
        %2219 = vmatpush2.msra.mxu0 0.0
        %2220 = vmatprep.subr.mxu0 0.0
        %2221 = vmatpush2.msra.mxu0 0.0
        %2222 = vmatprep.subr.mxu0 0.0
        %2223 = vmatpush2.msra.mxu0 0.0
        %2224 = vmatprep.mubr.f32.mxu0 0.0
        %2225 = vmatmul.mubr.f32.gmra.mxu0 %v2158
        %v2226 = vpop.f32.mrf.mxu0
        %v2227 = vadd.f32 0.0, %v2226
        %v2228 = vpop.f32.mrf.mxu0
        %2229 = vdwg.mxu0
        %v2231 = vsel %vm2028, %v2081, 0
        %2233 = vmatprep.subr.mxu0 0.0
        %2234 = vmatpush1.msra.mxu0 0.0
        %2235 = vmatprep.subr.mxu0 0.0
        %2236 = vmatpush1.msra.mxu0 0.0
        %2237 = vmatprep.subr.mxu0 0.0
        %2238 = vmatpush1.msra.mxu0 0.0
        %2239 = vmatprep.subr.mxu0 0.0
        %2240 = vmatpush1.msra.mxu0 0.0
        %2241 = vmatprep.subr.mxu0 0.0
        %2242 = vmatpush1.msra.mxu0 0.0
        %2243 = vmatprep.subr.mxu0 0.0
        %2244 = vmatpush1.msra.mxu0 0.0
        %2245 = vmatprep.subr.mxu0 0.0
        %2246 = vmatpush1.msra.mxu0 0.0
        %2247 = vmatprep.subr.mxu0 0.0
        %2248 = vmatpush1.msra.mxu0 0.0
        %2249 = vmatprep.subr.mxu0 0.0
        %2250 = vmatpush1.msra.mxu0 0.0
        %2251 = vmatprep.subr.mxu0 0.0
        %2252 = vmatpush1.msra.mxu0 0.0
        %2253 = vmatprep.subr.mxu0 0.0
        %2254 = vmatpush1.msra.mxu0 0.0
        %2255 = vmatprep.subr.mxu0 0.0
        %2256 = vmatpush1.msra.mxu0 0.0
        %2257 = vmatprep.subr.mxu0 0.0
        %2258 = vmatpush1.msra.mxu0 0.0
        %2259 = vmatprep.subr.mxu0 0.0
        %2260 = vmatpush1.msra.mxu0 0.0
        %2261 = vmatprep.subr.mxu0 0.0
        %2262 = vmatpush1.msra.mxu0 0.0
        %2263 = vmatprep.subr.mxu0 0.0
        %2264 = vmatpush1.msra.mxu0 %v1604
        %2265 = vmatprep.subr.mxu0 0.0
        %2266 = vmatpush2.msra.mxu0 0.0
        %2267 = vmatprep.subr.mxu0 0.0
        %2268 = vmatpush2.msra.mxu0 0.0
        %2269 = vmatprep.subr.mxu0 0.0
        %2270 = vmatpush2.msra.mxu0 0.0
        %2271 = vmatprep.subr.mxu0 0.0
        %2272 = vmatpush2.msra.mxu0 0.0
        %2273 = vmatprep.subr.mxu0 0.0
        %2274 = vmatpush2.msra.mxu0 0.0
        %2275 = vmatprep.subr.mxu0 0.0
        %2276 = vmatpush2.msra.mxu0 0.0
        %2277 = vmatprep.subr.mxu0 0.0
        %2278 = vmatpush2.msra.mxu0 0.0
        %2279 = vmatprep.subr.mxu0 0.0
        %2280 = vmatpush2.msra.mxu0 0.0
        %2281 = vmatprep.subr.mxu0 0.0
        %2282 = vmatpush2.msra.mxu0 0.0
        %2283 = vmatprep.subr.mxu0 0.0
        %2284 = vmatpush2.msra.mxu0 0.0
        %2285 = vmatprep.subr.mxu0 0.0
        %2286 = vmatpush2.msra.mxu0 0.0
        %2287 = vmatprep.subr.mxu0 0.0
        %2288 = vmatpush2.msra.mxu0 0.0
        %2289 = vmatprep.subr.mxu0 0.0
        %2290 = vmatpush2.msra.mxu0 0.0
        %2291 = vmatprep.subr.mxu0 0.0
        %2292 = vmatpush2.msra.mxu0 0.0
        %2293 = vmatprep.subr.mxu0 0.0
        %2294 = vmatpush2.msra.mxu0 0.0
        %2295 = vmatprep.subr.mxu0 0.0
        %2296 = vmatpush2.msra.mxu0 0.0
        %2297 = vmatprep.mubr.f32.mxu0 0.0
        %2298 = vmatmul.mubr.f32.gmra.mxu0 %v2231
        %v2299 = vpop.f32.mrf.mxu0
        %v2300 = vadd.f32 0.0, %v2299
        %v2301 = vpop.f32.mrf.mxu0
        %2302 = vdwg.mxu0
        %v2304 = vsel %vm2028, %v2082, 0
        %2306 = vmatprep.subr.mxu0 0.0
        %2307 = vmatpush1.msra.mxu0 0.0
        %2308 = vmatprep.subr.mxu0 0.0
        %2309 = vmatpush1.msra.mxu0 0.0
        %2310 = vmatprep.subr.mxu0 0.0
        %2311 = vmatpush1.msra.mxu0 0.0
        %2312 = vmatprep.subr.mxu0 0.0
        %2313 = vmatpush1.msra.mxu0 0.0
        %2314 = vmatprep.subr.mxu0 0.0
        %2315 = vmatpush1.msra.mxu0 0.0
        %2316 = vmatprep.subr.mxu0 0.0
        %2317 = vmatpush1.msra.mxu0 0.0
        %2318 = vmatprep.subr.mxu0 0.0
        %2319 = vmatpush1.msra.mxu0 0.0
        %2320 = vmatprep.subr.mxu0 0.0
        %2321 = vmatpush1.msra.mxu0 0.0
        %2322 = vmatprep.subr.mxu0 0.0
        %2323 = vmatpush1.msra.mxu0 0.0
        %2324 = vmatprep.subr.mxu0 0.0
        %2325 = vmatpush1.msra.mxu0 0.0
        %2326 = vmatprep.subr.mxu0 0.0
        %2327 = vmatpush1.msra.mxu0 0.0
        %2328 = vmatprep.subr.mxu0 0.0
        %2329 = vmatpush1.msra.mxu0 0.0
        %2330 = vmatprep.subr.mxu0 0.0
        %2331 = vmatpush1.msra.mxu0 0.0
        %2332 = vmatprep.subr.mxu0 0.0
        %2333 = vmatpush1.msra.mxu0 0.0
        %2334 = vmatprep.subr.mxu0 0.0
        %2335 = vmatpush1.msra.mxu0 0.0
        %2336 = vmatprep.subr.mxu0 0.0
        %2337 = vmatpush1.msra.mxu0 %v1606
        %2338 = vmatprep.subr.mxu0 0.0
        %2339 = vmatpush2.msra.mxu0 0.0
        %2340 = vmatprep.subr.mxu0 0.0
        %2341 = vmatpush2.msra.mxu0 0.0
        %2342 = vmatprep.subr.mxu0 0.0
        %2343 = vmatpush2.msra.mxu0 0.0
        %2344 = vmatprep.subr.mxu0 0.0
        %2345 = vmatpush2.msra.mxu0 0.0
        %2346 = vmatprep.subr.mxu0 0.0
        %2347 = vmatpush2.msra.mxu0 0.0
        %2348 = vmatprep.subr.mxu0 0.0
        %2349 = vmatpush2.msra.mxu0 0.0
        %2350 = vmatprep.subr.mxu0 0.0
        %2351 = vmatpush2.msra.mxu0 0.0
        %2352 = vmatprep.subr.mxu0 0.0
        %2353 = vmatpush2.msra.mxu0 0.0
        %2354 = vmatprep.subr.mxu0 0.0
        %2355 = vmatpush2.msra.mxu0 0.0
        %2356 = vmatprep.subr.mxu0 0.0
        %2357 = vmatpush2.msra.mxu0 0.0
        %2358 = vmatprep.subr.mxu0 0.0
        %2359 = vmatpush2.msra.mxu0 0.0
        %2360 = vmatprep.subr.mxu0 0.0
        %2361 = vmatpush2.msra.mxu0 0.0
        %2362 = vmatprep.subr.mxu0 0.0
        %2363 = vmatpush2.msra.mxu0 0.0
        %2364 = vmatprep.subr.mxu0 0.0
        %2365 = vmatpush2.msra.mxu0 0.0
        %2366 = vmatprep.subr.mxu0 0.0
        %2367 = vmatpush2.msra.mxu0 0.0
        %2368 = vmatprep.subr.mxu0 0.0
        %2369 = vmatpush2.msra.mxu0 0.0
        %2370 = vmatprep.mubr.f32.mxu0 0.0
        %2371 = vmatmul.mubr.f32.gmra.mxu0 %v2304
        %v2372 = vpop.f32.mrf.mxu0
        %v2373 = vadd.f32 0.0, %v2372
        %v2374 = vpop.f32.mrf.mxu0
        %2375 = vdwg.mxu0
        %v2377 = vsel %vm2028, %v2083, 0
        %2379 = vmatprep.subr.mxu0 0.0
        %2380 = vmatpush1.msra.mxu0 0.0
        %2381 = vmatprep.subr.mxu0 0.0
        %2382 = vmatpush1.msra.mxu0 0.0
        %2383 = vmatprep.subr.mxu0 0.0
        %2384 = vmatpush1.msra.mxu0 0.0
        %2385 = vmatprep.subr.mxu0 0.0
        %2386 = vmatpush1.msra.mxu0 0.0
        %2387 = vmatprep.subr.mxu0 0.0
        %2388 = vmatpush1.msra.mxu0 0.0
        %2389 = vmatprep.subr.mxu0 0.0
        %2390 = vmatpush1.msra.mxu0 0.0
        %2391 = vmatprep.subr.mxu0 0.0
        %2392 = vmatpush1.msra.mxu0 0.0
        %2393 = vmatprep.subr.mxu0 0.0
        %2394 = vmatpush1.msra.mxu0 0.0
        %2395 = vmatprep.subr.mxu0 0.0
        %2396 = vmatpush1.msra.mxu0 0.0
        %2397 = vmatprep.subr.mxu0 0.0
        %2398 = vmatpush1.msra.mxu0 0.0
        %2399 = vmatprep.subr.mxu0 0.0
        %2400 = vmatpush1.msra.mxu0 0.0
        %2401 = vmatprep.subr.mxu0 0.0
        %2402 = vmatpush1.msra.mxu0 0.0
        %2403 = vmatprep.subr.mxu0 0.0
        %2404 = vmatpush1.msra.mxu0 0.0
        %2405 = vmatprep.subr.mxu0 0.0
        %2406 = vmatpush1.msra.mxu0 0.0
        %2407 = vmatprep.subr.mxu0 0.0
        %2408 = vmatpush1.msra.mxu0 0.0
        %2409 = vmatprep.subr.mxu0 0.0
        %2410 = vmatpush1.msra.mxu0 %v1675
        %2411 = vmatprep.subr.mxu0 0.0
        %2412 = vmatpush2.msra.mxu0 0.0
        %2413 = vmatprep.subr.mxu0 0.0
        %2414 = vmatpush2.msra.mxu0 0.0
        %2415 = vmatprep.subr.mxu0 0.0
        %2416 = vmatpush2.msra.mxu0 0.0
        %2417 = vmatprep.subr.mxu0 0.0
        %2418 = vmatpush2.msra.mxu0 0.0
        %2419 = vmatprep.subr.mxu0 0.0
        %2420 = vmatpush2.msra.mxu0 0.0
        %2421 = vmatprep.subr.mxu0 0.0
        %2422 = vmatpush2.msra.mxu0 0.0
        %2423 = vmatprep.subr.mxu0 0.0
        %2424 = vmatpush2.msra.mxu0 0.0
        %2425 = vmatprep.subr.mxu0 0.0
        %2426 = vmatpush2.msra.mxu0 0.0
        %2427 = vmatprep.subr.mxu0 0.0
        %2428 = vmatpush2.msra.mxu0 0.0
        %2429 = vmatprep.subr.mxu0 0.0
        %2430 = vmatpush2.msra.mxu0 0.0
        %2431 = vmatprep.subr.mxu0 0.0
        %2432 = vmatpush2.msra.mxu0 0.0
        %2433 = vmatprep.subr.mxu0 0.0
        %2434 = vmatpush2.msra.mxu0 0.0
        %2435 = vmatprep.subr.mxu0 0.0
        %2436 = vmatpush2.msra.mxu0 0.0
        %2437 = vmatprep.subr.mxu0 0.0
        %2438 = vmatpush2.msra.mxu0 0.0
        %2439 = vmatprep.subr.mxu0 0.0
        %2440 = vmatpush2.msra.mxu0 0.0
        %2441 = vmatprep.subr.mxu0 0.0
        %2442 = vmatpush2.msra.mxu0 0.0
        %2443 = vmatprep.mubr.f32.mxu0 0.0
        %2444 = vmatmul.mubr.f32.gmra.mxu0 %v2377
        %v2445 = vpop.f32.mrf.mxu0
        %v2446 = vadd.f32 0.0, %v2445
        %v2447 = vpop.f32.mrf.mxu0
        %2448 = vdwg.mxu0
        %v2449 = vld [vmem:[#allocation8] sm:$0xff]
        %v2450 = vld [vmem:[#allocation8 + $0x8] sm:$0xff]
        %v2451 = vld [vmem:[#allocation8 + $0x10] sm:$0xff]
        %v2452 = vld [vmem:[#allocation8 + $0x18] sm:$0xff]
        %v2453 = vld [vmem:[#allocation8 + $0x20] sm:$0xff]
        %v2454 = vld [vmem:[#allocation8 + $0x28] sm:$0xff]
        %v2455 = vld [vmem:[#allocation8 + $0x30] sm:$0xff]
        %v2456 = vld [vmem:[#allocation8 + $0x38] sm:$0xff]
        %v2457 = vld [vmem:[#allocation8 + $0x40] sm:$0xff]
        %v2458 = vld [vmem:[#allocation8 + $0x48] sm:$0xff]
        %v2459 = vld [vmem:[#allocation8 + $0x50] sm:$0xff]
        %v2460 = vld [vmem:[#allocation8 + $0x58] sm:$0xff]
        %v2461 = vld [vmem:[#allocation8 + $0x60] sm:$0xff]
        %v2462 = vld [vmem:[#allocation8 + $0x68] sm:$0xff]
        %v2463 = vld [vmem:[#allocation8 + $0x70] sm:$0xff]
        %v2464 = vld [vmem:[#allocation8 + $0x78] sm:$0xff]
        %v2465 = vld [vmem:[#allocation8 + $0x80] sm:$0xff]
        %v2466 = vld [vmem:[#allocation8 + $0x88] sm:$0xff]
        %v2467 = vld [vmem:[#allocation8 + $0x90] sm:$0xff]
        %v2468 = vld [vmem:[#allocation8 + $0x98] sm:$0xff]
        %v2469 = vld [vmem:[#allocation8 + $0xa0] sm:$0xff]
        %v2470 = vld [vmem:[#allocation8 + $0xa8] sm:$0xff]
        %v2471 = vld [vmem:[#allocation8 + $0xb0] sm:$0xff]
        %v2472 = vld [vmem:[#allocation8 + $0xb8] sm:$0xff]
        %v2473 = vld [vmem:[#allocation8 + $0xc0] sm:$0xff]
        %v2474 = vld [vmem:[#allocation8 + $0xc8] sm:$0xff]
        %v2475 = vld [vmem:[#allocation8 + $0xd0] sm:$0xff]
        %v2476 = vld [vmem:[#allocation8 + $0xd8] sm:$0xff]
        %v2477 = vld [vmem:[#allocation8 + $0xe0] sm:$0xff]
        %v2478 = vld [vmem:[#allocation8 + $0xe8] sm:$0xff]
        %v2479 = vld [vmem:[#allocation8 + $0xf0] sm:$0xff]
        %v2480 = vld [vmem:[#allocation8 + $0xf8] sm:$0xff]
        %v2481 = vld [vmem:[#allocation8 + $0x100] sm:$0xff]
        %v2482 = vld [vmem:[#allocation8 + $0x108] sm:$0xff]
        %v2483 = vld [vmem:[#allocation8 + $0x110] sm:$0xff]
        %v2484 = vld [vmem:[#allocation8 + $0x118] sm:$0xff]
        %v2485 = vld [vmem:[#allocation8 + $0x120] sm:$0xff]
        %v2486 = vld [vmem:[#allocation8 + $0x128] sm:$0xff]
        %v2487 = vld [vmem:[#allocation8 + $0x130] sm:$0xff]
        %v2488 = vld [vmem:[#allocation8 + $0x138] sm:$0xff]
        %v2489 = vld [vmem:[#allocation8 + $0x140] sm:$0xff]
        %v2490 = vld [vmem:[#allocation8 + $0x148] sm:$0xff]
        %v2491 = vld [vmem:[#allocation8 + $0x150] sm:$0xff]
        %v2492 = vld [vmem:[#allocation8 + $0x158] sm:$0xff]
        %v2493 = vld [vmem:[#allocation8 + $0x160] sm:$0xff]
        %v2494 = vld [vmem:[#allocation8 + $0x168] sm:$0xff]
        %v2495 = vld [vmem:[#allocation8 + $0x170] sm:$0xff]
        %v2496 = vld [vmem:[#allocation8 + $0x178] sm:$0xff]
        %v2497 = vld [vmem:[#allocation8 + $0x180] sm:$0xff]
        %v2498 = vld [vmem:[#allocation8 + $0x188] sm:$0xff]
        %v2499 = vld [vmem:[#allocation8 + $0x190] sm:$0xff]
        %v2500 = vld [vmem:[#allocation8 + $0x198] sm:$0xff]
        %v2501 = vld [vmem:[#allocation8 + $0x1a0] sm:$0xff]
        %v2502 = vld [vmem:[#allocation8 + $0x1a8] sm:$0xff]
        %v2503 = vld [vmem:[#allocation8 + $0x1b0] sm:$0xff]
        %v2504 = vld [vmem:[#allocation8 + $0x1b8] sm:$0xff]
        %v2505 = vld [vmem:[#allocation8 + $0x1c0] sm:$0xff]
        %v2506 = vld [vmem:[#allocation8 + $0x1c8] sm:$0xff]
        %v2507 = vld [vmem:[#allocation8 + $0x1d0] sm:$0xff]
        %v2508 = vld [vmem:[#allocation8 + $0x1d8] sm:$0xff]
        %v2509 = vld [vmem:[#allocation8 + $0x1e0] sm:$0xff]
        %v2510 = vld [vmem:[#allocation8 + $0x1e8] sm:$0xff]
        %v2511 = vld [vmem:[#allocation8 + $0x1f0] sm:$0xff]
        %v2512 = vld [vmem:[#allocation8 + $0x1f8] sm:$0xff]
        %v2513 = vld [vmem:[#allocation8 + $0x200] sm:$0xff]
        %v2514 = vld [vmem:[#allocation8 + $0x208] sm:$0xff]
        %v2515 = vld [vmem:[#allocation8 + $0x210] sm:$0xff]
        %v2516 = vld [vmem:[#allocation8 + $0x218] sm:$0xff]
        %v2517 = vld [vmem:[#allocation8 + $0x220] sm:$0xff]
        %v2518 = vld [vmem:[#allocation8 + $0x228] sm:$0xff]
        %v2519 = vld [vmem:[#allocation8 + $0x230] sm:$0xff]
        %v2520 = vld [vmem:[#allocation8 + $0x238] sm:$0xff]
        %v2521 = vld [vmem:[#allocation8 + $0x240] sm:$0xff]
        %v2522 = vld [vmem:[#allocation8 + $0x248] sm:$0xff]
        %v2523 = vld [vmem:[#allocation8 + $0x250] sm:$0xff]
        %v2524 = vld [vmem:[#allocation8 + $0x258] sm:$0xff]
        %v2525 = vld [vmem:[#allocation8 + $0x260] sm:$0xff]
        %v2526 = vld [vmem:[#allocation8 + $0x268] sm:$0xff]
        %v2527 = vld [vmem:[#allocation8 + $0x270] sm:$0xff]
        %v2528 = vld [vmem:[#allocation8 + $0x278] sm:$0xff]
        %v2529 = vld [vmem:[#allocation10] sm:$0x1]
        %v2531 = vlaneseq
        %v2532 = vshrl.u32 %v2531, 7
        %v2533 = vsub.s32 0, %v2532
        %v2534 = vrot.slane %v2529, %v2533
        %2536 = vmatprep.subr.mxu0 0.0
        %2537 = vmatpush1.msra.mxu0 %v2464
        %2538 = vmatprep.subr.mxu0 0.0
        %2539 = vmatpush1.msra.mxu0 %v2463
        %2540 = vmatprep.subr.mxu0 0.0
        %2541 = vmatpush1.msra.mxu0 %v2462
        %2542 = vmatprep.subr.mxu0 0.0
        %2543 = vmatpush1.msra.mxu0 %v2461
        %2544 = vmatprep.subr.mxu0 0.0
        %2545 = vmatpush1.msra.mxu0 %v2460
        %2546 = vmatprep.subr.mxu0 0.0
        %2547 = vmatpush1.msra.mxu0 %v2459
        %2548 = vmatprep.subr.mxu0 0.0
        %2549 = vmatpush1.msra.mxu0 %v2458
        %2550 = vmatprep.subr.mxu0 0.0
        %2551 = vmatpush1.msra.mxu0 %v2457
        %2552 = vmatprep.subr.mxu0 0.0
        %2553 = vmatpush1.msra.mxu0 %v2456
        %2554 = vmatprep.subr.mxu0 0.0
        %2555 = vmatpush1.msra.mxu0 %v2455
        %2556 = vmatprep.subr.mxu0 0.0
        %2557 = vmatpush1.msra.mxu0 %v2454
        %2558 = vmatprep.subr.mxu0 0.0
        %2559 = vmatpush1.msra.mxu0 %v2453
        %2560 = vmatprep.subr.mxu0 0.0
        %2561 = vmatpush1.msra.mxu0 %v2452
        %2562 = vmatprep.subr.mxu0 0.0
        %2563 = vmatpush1.msra.mxu0 %v2451
        %2564 = vmatprep.subr.mxu0 0.0
        %2565 = vmatpush1.msra.mxu0 %v2450
        %2566 = vmatprep.subr.mxu0 0.0
        %2567 = vmatpush1.msra.mxu0 %v2449
        %2568 = vmatprep.subr.mxu0 0.0
        %2569 = vmatpush2.msra.mxu0 %v2480
        %2570 = vmatprep.subr.mxu0 0.0
        %2571 = vmatpush2.msra.mxu0 %v2479
        %2572 = vmatprep.subr.mxu0 0.0
        %2573 = vmatpush2.msra.mxu0 %v2478
        %2574 = vmatprep.subr.mxu0 0.0
        %2575 = vmatpush2.msra.mxu0 %v2477
        %2576 = vmatprep.subr.mxu0 0.0
        %2577 = vmatpush2.msra.mxu0 %v2476
        %2578 = vmatprep.subr.mxu0 0.0
        %2579 = vmatpush2.msra.mxu0 %v2475
        %2580 = vmatprep.subr.mxu0 0.0
        %2581 = vmatpush2.msra.mxu0 %v2474
        %2582 = vmatprep.subr.mxu0 0.0
        %2583 = vmatpush2.msra.mxu0 %v2473
        %2584 = vmatprep.subr.mxu0 0.0
        %2585 = vmatpush2.msra.mxu0 %v2472
        %2586 = vmatprep.subr.mxu0 0.0
        %2587 = vmatpush2.msra.mxu0 %v2471
        %2588 = vmatprep.subr.mxu0 0.0
        %2589 = vmatpush2.msra.mxu0 %v2470
        %2590 = vmatprep.subr.mxu0 0.0
        %2591 = vmatpush2.msra.mxu0 %v2469
        %2592 = vmatprep.subr.mxu0 0.0
        %2593 = vmatpush2.msra.mxu0 %v2468
        %2594 = vmatprep.subr.mxu0 0.0
        %2595 = vmatpush2.msra.mxu0 %v2467
        %2596 = vmatprep.subr.mxu0 0.0
        %2597 = vmatpush2.msra.mxu0 %v2466
        %2598 = vmatprep.subr.mxu0 0.0
        %2599 = vmatpush2.msra.mxu0 %v2465
        %2600 = vmatprep.mubr.f32.mxu0 %v2227
        %2601 = vmatmul.mubr.f32.gmra.mxu0 %v2154
        %v2602 = vpop.f32.mrf.mxu0
        %v2603 = vadd.f32 %v2534, %v2602
        %v2604 = vpop.f32.mrf.mxu0
        %2605 = vdwg.mxu0
        %2606 = vmatprep.subr.mxu0 0.0
        %2607 = vmatpush1.msra.mxu0 %v2496
        %2608 = vmatprep.subr.mxu0 0.0
        %2609 = vmatpush1.msra.mxu0 %v2495
        %2610 = vmatprep.subr.mxu0 0.0
        %2611 = vmatpush1.msra.mxu0 %v2494
        %2612 = vmatprep.subr.mxu0 0.0
        %2613 = vmatpush1.msra.mxu0 %v2493
        %2614 = vmatprep.subr.mxu0 0.0
        %2615 = vmatpush1.msra.mxu0 %v2492
        %2616 = vmatprep.subr.mxu0 0.0
        %2617 = vmatpush1.msra.mxu0 %v2491
        %2618 = vmatprep.subr.mxu0 0.0
        %2619 = vmatpush1.msra.mxu0 %v2490
        %2620 = vmatprep.subr.mxu0 0.0
        %2621 = vmatpush1.msra.mxu0 %v2489
        %2622 = vmatprep.subr.mxu0 0.0
        %2623 = vmatpush1.msra.mxu0 %v2488
        %2624 = vmatprep.subr.mxu0 0.0
        %2625 = vmatpush1.msra.mxu0 %v2487
        %2626 = vmatprep.subr.mxu0 0.0
        %2627 = vmatpush1.msra.mxu0 %v2486
        %2628 = vmatprep.subr.mxu0 0.0
        %2629 = vmatpush1.msra.mxu0 %v2485
        %2630 = vmatprep.subr.mxu0 0.0
        %2631 = vmatpush1.msra.mxu0 %v2484
        %2632 = vmatprep.subr.mxu0 0.0
        %2633 = vmatpush1.msra.mxu0 %v2483
        %2634 = vmatprep.subr.mxu0 0.0
        %2635 = vmatpush1.msra.mxu0 %v2482
        %2636 = vmatprep.subr.mxu0 0.0
        %2637 = vmatpush1.msra.mxu0 %v2481
        %2638 = vmatprep.subr.mxu0 0.0
        %2639 = vmatpush2.msra.mxu0 %v2512
        %2640 = vmatprep.subr.mxu0 0.0
        %2641 = vmatpush2.msra.mxu0 %v2511
        %2642 = vmatprep.subr.mxu0 0.0
        %2643 = vmatpush2.msra.mxu0 %v2510
        %2644 = vmatprep.subr.mxu0 0.0
        %2645 = vmatpush2.msra.mxu0 %v2509
        %2646 = vmatprep.subr.mxu0 0.0
        %2647 = vmatpush2.msra.mxu0 %v2508
        %2648 = vmatprep.subr.mxu0 0.0
        %2649 = vmatpush2.msra.mxu0 %v2507
        %2650 = vmatprep.subr.mxu0 0.0
        %2651 = vmatpush2.msra.mxu0 %v2506
        %2652 = vmatprep.subr.mxu0 0.0
        %2653 = vmatpush2.msra.mxu0 %v2505
        %2654 = vmatprep.subr.mxu0 0.0
        %2655 = vmatpush2.msra.mxu0 %v2504
        %2656 = vmatprep.subr.mxu0 0.0
        %2657 = vmatpush2.msra.mxu0 %v2503
        %2658 = vmatprep.subr.mxu0 0.0
        %2659 = vmatpush2.msra.mxu0 %v2502
        %2660 = vmatprep.subr.mxu0 0.0
        %2661 = vmatpush2.msra.mxu0 %v2501
        %2662 = vmatprep.subr.mxu0 0.0
        %2663 = vmatpush2.msra.mxu0 %v2500
        %2664 = vmatprep.subr.mxu0 0.0
        %2665 = vmatpush2.msra.mxu0 %v2499
        %2666 = vmatprep.subr.mxu0 0.0
        %2667 = vmatpush2.msra.mxu0 %v2498
        %2668 = vmatprep.subr.mxu0 0.0
        %2669 = vmatpush2.msra.mxu0 %v2497
        %2670 = vmatprep.mubr.f32.mxu0 %v2373
        %2671 = vmatmul.mubr.f32.gmra.mxu0 %v2300
        %v2672 = vpop.f32.mrf.mxu0
        %v2673 = vadd.f32 %v2603, %v2672
        %v2674 = vpop.f32.mrf.mxu0
        %2675 = vdwg.mxu0
        %2676 = vmatprep.subr.mxu0 0.0
        %2677 = vmatpush1.msra.mxu0 %v2528
        %2678 = vmatprep.subr.mxu0 0.0
        %2679 = vmatpush1.msra.mxu0 %v2527
        %2680 = vmatprep.subr.mxu0 0.0
        %2681 = vmatpush1.msra.mxu0 %v2526
        %2682 = vmatprep.subr.mxu0 0.0
        %2683 = vmatpush1.msra.mxu0 %v2525
        %2684 = vmatprep.subr.mxu0 0.0
        %2685 = vmatpush1.msra.mxu0 %v2524
        %2686 = vmatprep.subr.mxu0 0.0
        %2687 = vmatpush1.msra.mxu0 %v2523
        %2688 = vmatprep.subr.mxu0 0.0
        %2689 = vmatpush1.msra.mxu0 %v2522
        %2690 = vmatprep.subr.mxu0 0.0
        %2691 = vmatpush1.msra.mxu0 %v2521
        %2692 = vmatprep.subr.mxu0 0.0
        %2693 = vmatpush1.msra.mxu0 %v2520
        %2694 = vmatprep.subr.mxu0 0.0
        %2695 = vmatpush1.msra.mxu0 %v2519
        %2696 = vmatprep.subr.mxu0 0.0
        %2697 = vmatpush1.msra.mxu0 %v2518
        %2698 = vmatprep.subr.mxu0 0.0
        %2699 = vmatpush1.msra.mxu0 %v2517
        %2700 = vmatprep.subr.mxu0 0.0
        %2701 = vmatpush1.msra.mxu0 %v2516
        %2702 = vmatprep.subr.mxu0 0.0
        %2703 = vmatpush1.msra.mxu0 %v2515
        %2704 = vmatprep.subr.mxu0 0.0
        %2705 = vmatpush1.msra.mxu0 %v2514
        %2706 = vmatprep.subr.mxu0 0.0
        %2707 = vmatpush1.msra.mxu0 %v2513
        %2708 = vmatprep.subr.mxu0 0.0
        %2709 = vmatpush2.msra.mxu0 0.0
        %2710 = vmatprep.subr.mxu0 0.0
        %2711 = vmatpush2.msra.mxu0 0.0
        %2712 = vmatprep.subr.mxu0 0.0
        %2713 = vmatpush2.msra.mxu0 0.0
        %2714 = vmatprep.subr.mxu0 0.0
        %2715 = vmatpush2.msra.mxu0 0.0
        %2716 = vmatprep.subr.mxu0 0.0
        %2717 = vmatpush2.msra.mxu0 0.0
        %2718 = vmatprep.subr.mxu0 0.0
        %2719 = vmatpush2.msra.mxu0 0.0
        %2720 = vmatprep.subr.mxu0 0.0
        %2721 = vmatpush2.msra.mxu0 0.0
        %2722 = vmatprep.subr.mxu0 0.0
        %2723 = vmatpush2.msra.mxu0 0.0
        %2724 = vmatprep.subr.mxu0 0.0
        %2725 = vmatpush2.msra.mxu0 0.0
        %2726 = vmatprep.subr.mxu0 0.0
        %2727 = vmatpush2.msra.mxu0 0.0
        %2728 = vmatprep.subr.mxu0 0.0
        %2729 = vmatpush2.msra.mxu0 0.0
        %2730 = vmatprep.subr.mxu0 0.0
        %2731 = vmatpush2.msra.mxu0 0.0
        %2732 = vmatprep.subr.mxu0 0.0
        %2733 = vmatpush2.msra.mxu0 0.0
        %2734 = vmatprep.subr.mxu0 0.0
        %2735 = vmatpush2.msra.mxu0 0.0
        %2736 = vmatprep.subr.mxu0 0.0
        %2737 = vmatpush2.msra.mxu0 0.0
        %2738 = vmatprep.subr.mxu0 0.0
        %2739 = vmatpush2.msra.mxu0 0.0
        %2740 = vmatprep.mubr.f32.mxu0 0.0
        %2741 = vmatmul.mubr.f32.gmra.mxu0 %v2446
        %v2742 = vpop.f32.mrf.mxu0
        %v2743 = vadd.f32 %v2673, %v2742
        %v2744 = vpop.f32.mrf.mxu0
        %2745 = vdwg.mxu0
        %v2746 = vadd.f32 %v791, %v2743
        %v2747 = vld [vmem:[#allocation11] sm:$0x1]
        %v2748 = vld [vmem:[#allocation13] sm:$0x1]
        %2749 = vadd.xlane.f32.xlu0 %v2746
        %v2750 = vpop.xlane.xlu0 %2749
        %v2751 = vmul.f32 %v2746, %v2746
        %2752 = vadd.xlane.f32.xlu0 %v2751
        %v2753 = vpop.xlane.xlu0 %2752
        %v2754 = vmul.f32 %v2750, 0.01
        %v2755 = vmul.f32 %v2753, 0.01
        %v2756 = vmul.f32 %v2754, %v2754
        %v2757 = vsub.f32 %v2755, %v2756
        %v2758 = vsub.f32 %v2746, %v2754
        %v2759 = vadd.f32 %v2757, 1e-05
        %v2760 = vrsqrt.pop %v2759
        %v2761 = vmul.f32 %v2758, %v2760
        %v2763 = vlaneseq
        %v2764 = vshrl.u32 %v2763, 7
        %v2765 = vsub.s32 0, %v2764
        %v2766 = vrot.slane %v2747, %v2765
        %v2768 = vmul.f32 %v2761, %v2766
        %v2770 = vlaneseq
        %v2771 = vshrl.u32 %v2770, 7
        %v2772 = vsub.s32 0, %v2771
        %v2773 = vrot.slane %v2748, %v2772
        %v2775 = vadd.f32 %v2768, %v2773
        %v2776 = vld [vmem:[#allocation14] sm:$0xff]
        %v2777 = vld [vmem:[#allocation14 + $0x8] sm:$0xff]
        %v2778 = vld [vmem:[#allocation14 + $0x10] sm:$0xff]
        %v2779 = vld [vmem:[#allocation14 + $0x18] sm:$0xff]
        %v2780 = vld [vmem:[#allocation14 + $0x20] sm:$0xff]
        %v2781 = vld [vmem:[#allocation14 + $0x28] sm:$0xff]
        %v2782 = vld [vmem:[#allocation14 + $0x30] sm:$0xff]
        %v2783 = vld [vmem:[#allocation14 + $0x38] sm:$0xff]
        %v2784 = vld [vmem:[#allocation14 + $0x40] sm:$0xff]
        %v2785 = vld [vmem:[#allocation14 + $0x48] sm:$0xff]
        %v2786 = vld [vmem:[#allocation14 + $0x50] sm:$0xff]
        %v2787 = vld [vmem:[#allocation14 + $0x58] sm:$0xff]
        %v2788 = vld [vmem:[#allocation14 + $0x60] sm:$0xff]
        %v2789 = vld [vmem:[#allocation14 + $0x68] sm:$0xff]
        %v2790 = vld [vmem:[#allocation14 + $0x70] sm:$0xff]
        %v2791 = vld [vmem:[#allocation14 + $0x78] sm:$0xff]
        %v2792 = vld [vmem:[#allocation14 + $0x80] sm:$0xff]
        %v2793 = vld [vmem:[#allocation14 + $0x88] sm:$0xff]
        %v2794 = vld [vmem:[#allocation14 + $0x90] sm:$0xff]
        %v2795 = vld [vmem:[#allocation14 + $0x98] sm:$0xff]
        %v2796 = vld [vmem:[#allocation14 + $0xa0] sm:$0xff]
        %v2797 = vld [vmem:[#allocation14 + $0xa8] sm:$0xff]
        %v2798 = vld [vmem:[#allocation14 + $0xb0] sm:$0xff]
        %v2799 = vld [vmem:[#allocation14 + $0xb8] sm:$0xff]
        %v2800 = vld [vmem:[#allocation14 + $0xc0] sm:$0xff]
        %v2801 = vld [vmem:[#allocation14 + $0xc8] sm:$0xff]
        %v2802 = vld [vmem:[#allocation14 + $0xd0] sm:$0xff]
        %v2803 = vld [vmem:[#allocation14 + $0xd8] sm:$0xff]
        %v2804 = vld [vmem:[#allocation14 + $0xe0] sm:$0xff]
        %v2805 = vld [vmem:[#allocation14 + $0xe8] sm:$0xff]
        %v2806 = vld [vmem:[#allocation14 + $0xf0] sm:$0xff]
        %v2807 = vld [vmem:[#allocation14 + $0xf8] sm:$0xff]
        %v2808 = vld [vmem:[#allocation16] sm:$0x3]
        %v2810 = vlaneseq
        %v2811 = vshrl.u32 %v2810, 7
        %v2812 = vsub.s32 0, %v2811
        %v2813 = vrot.slane %v2808, %v2812
        %v2814 = vlaneseq
        %v2815 = vshrl.u32 %v2814, 7
        %v2816 = vsub.s32 1, %v2815
        %v2817 = vrot.slane %v2808, %v2816
        %2820 = vmatprep.subr.mxu0 %v2807
        %2821 = vmatpush1.msra.mxu0 %v2806
        %2822 = vmatprep.subr.mxu0 %v2805
        %2823 = vmatpush1.msra.mxu0 %v2804
        %2824 = vmatprep.subr.mxu0 %v2803
        %2825 = vmatpush1.msra.mxu0 %v2802
        %2826 = vmatprep.subr.mxu0 %v2801
        %2827 = vmatpush1.msra.mxu0 %v2800
        %2828 = vmatprep.subr.mxu0 %v2799
        %2829 = vmatpush1.msra.mxu0 %v2798
        %2830 = vmatprep.subr.mxu0 %v2797
        %2831 = vmatpush1.msra.mxu0 %v2796
        %2832 = vmatprep.subr.mxu0 %v2795
        %2833 = vmatpush1.msra.mxu0 %v2794
        %2834 = vmatprep.subr.mxu0 %v2793
        %2835 = vmatpush1.msra.mxu0 %v2792
        %2836 = vmatprep.subr.mxu0 %v2791
        %2837 = vmatpush1.msra.mxu0 %v2790
        %2838 = vmatprep.subr.mxu0 %v2789
        %2839 = vmatpush1.msra.mxu0 %v2788
        %2840 = vmatprep.subr.mxu0 %v2787
        %2841 = vmatpush1.msra.mxu0 %v2786
        %2842 = vmatprep.subr.mxu0 %v2785
        %2843 = vmatpush1.msra.mxu0 %v2784
        %2844 = vmatprep.subr.mxu0 %v2783
        %2845 = vmatpush1.msra.mxu0 %v2782
        %2846 = vmatprep.subr.mxu0 %v2781
        %2847 = vmatpush1.msra.mxu0 %v2780
        %2848 = vmatprep.subr.mxu0 %v2779
        %2849 = vmatpush1.msra.mxu0 %v2778
        %2850 = vmatprep.subr.mxu0 %v2777
        %2851 = vmatpush1.msra.mxu0 %v2776
        %2852 = vmatprep.subr.mxu0 0.0
        %2853 = vmatpush2.msra.mxu0 0.0
        %2854 = vmatprep.subr.mxu0 0.0
        %2855 = vmatpush2.msra.mxu0 0.0
        %2856 = vmatprep.subr.mxu0 0.0
        %2857 = vmatpush2.msra.mxu0 0.0
        %2858 = vmatprep.subr.mxu0 0.0
        %2859 = vmatpush2.msra.mxu0 0.0
        %2860 = vmatprep.subr.mxu0 0.0
        %2861 = vmatpush2.msra.mxu0 0.0
        %2862 = vmatprep.subr.mxu0 0.0
        %2863 = vmatpush2.msra.mxu0 0.0
        %2864 = vmatprep.subr.mxu0 0.0
        %2865 = vmatpush2.msra.mxu0 0.0
        %2866 = vmatprep.subr.mxu0 0.0
        %2867 = vmatpush2.msra.mxu0 0.0
        %2868 = vmatprep.subr.mxu0 0.0
        %2869 = vmatpush2.msra.mxu0 0.0
        %2870 = vmatprep.subr.mxu0 0.0
        %2871 = vmatpush2.msra.mxu0 0.0
        %2872 = vmatprep.subr.mxu0 0.0
        %2873 = vmatpush2.msra.mxu0 0.0
        %2874 = vmatprep.subr.mxu0 0.0
        %2875 = vmatpush2.msra.mxu0 0.0
        %2876 = vmatprep.subr.mxu0 0.0
        %2877 = vmatpush2.msra.mxu0 0.0
        %2878 = vmatprep.subr.mxu0 0.0
        %2879 = vmatpush2.msra.mxu0 0.0
        %2880 = vmatprep.subr.mxu0 0.0
        %2881 = vmatpush2.msra.mxu0 0.0
        %2882 = vmatprep.subr.mxu0 0.0
        %2883 = vmatpush2.msra.mxu0 0.0
        %2884 = vmatprep.mubr.f32.mxu0 0.0
        %2885 = vmatmul.mubr.f32.gmra.mxu0 %v2775
        %v2886 = vpop.f32.mrf.mxu0
        %v2887 = vadd.f32 %v2813, %v2886
        %v2888 = vpop.f32.mrf.mxu0
        %v2889 = vadd.f32 %v2817, %v2888
        %2890 = vdwg.mxu0
        %v2891 = vmax.f32 %v2887, 0.0
        %v2892 = vmax.f32 %v2889, 0.0
        %v2893 = vld [vmem:[#allocation17] sm:$0xff]
        %v2894 = vld [vmem:[#allocation17 + $0x8] sm:$0xff]
        %v2895 = vld [vmem:[#allocation17 + $0x10] sm:$0xff]
        %v2896 = vld [vmem:[#allocation17 + $0x18] sm:$0xff]
        %v2897 = vld [vmem:[#allocation17 + $0x20] sm:$0xff]
        %v2898 = vld [vmem:[#allocation17 + $0x28] sm:$0xff]
        %v2899 = vld [vmem:[#allocation17 + $0x30] sm:$0xff]
        %v2900 = vld [vmem:[#allocation17 + $0x38] sm:$0xff]
        %v2901 = vld [vmem:[#allocation17 + $0x40] sm:$0xff]
        %v2902 = vld [vmem:[#allocation17 + $0x48] sm:$0xff]
        %v2903 = vld [vmem:[#allocation17 + $0x50] sm:$0xff]
        %v2904 = vld [vmem:[#allocation17 + $0x58] sm:$0xff]
        %v2905 = vld [vmem:[#allocation17 + $0x60] sm:$0xff]
        %v2906 = vld [vmem:[#allocation17 + $0x68] sm:$0xff]
        %v2907 = vld [vmem:[#allocation17 + $0x70] sm:$0xff]
        %v2908 = vld [vmem:[#allocation17 + $0x78] sm:$0xff]
        %v2909 = vld [vmem:[#allocation17 + $0x80] sm:$0xff]
        %v2910 = vld [vmem:[#allocation17 + $0x88] sm:$0xff]
        %v2911 = vld [vmem:[#allocation17 + $0x90] sm:$0xff]
        %v2912 = vld [vmem:[#allocation17 + $0x98] sm:$0xff]
        %v2913 = vld [vmem:[#allocation17 + $0xa0] sm:$0xff]
        %v2914 = vld [vmem:[#allocation17 + $0xa8] sm:$0xff]
        %v2915 = vld [vmem:[#allocation17 + $0xb0] sm:$0xff]
        %v2916 = vld [vmem:[#allocation17 + $0xb8] sm:$0xff]
        %v2917 = vld [vmem:[#allocation17 + $0xc0] sm:$0xff]
        %v2918 = vld [vmem:[#allocation17 + $0xc8] sm:$0xff]
        %v2919 = vld [vmem:[#allocation17 + $0xd0] sm:$0xff]
        %v2920 = vld [vmem:[#allocation17 + $0xd8] sm:$0xff]
        %v2921 = vld [vmem:[#allocation17 + $0xe0] sm:$0xff]
        %v2922 = vld [vmem:[#allocation17 + $0xe8] sm:$0xff]
        %v2923 = vld [vmem:[#allocation17 + $0xf0] sm:$0xff]
        %v2924 = vld [vmem:[#allocation17 + $0xf8] sm:$0xff]
        %v2925 = vld [vmem:[#allocation19] sm:$0x1]
        %v2927 = vlaneseq
        %v2928 = vshrl.u32 %v2927, 7
        %v2929 = vsub.s32 0, %v2928
        %v2930 = vrot.slane %v2925, %v2929
        %2932 = vmatprep.subr.mxu0 0.0
        %2933 = vmatpush1.msra.mxu0 %v2908
        %2934 = vmatprep.subr.mxu0 0.0
        %2935 = vmatpush1.msra.mxu0 %v2907
        %2936 = vmatprep.subr.mxu0 0.0
        %2937 = vmatpush1.msra.mxu0 %v2906
        %2938 = vmatprep.subr.mxu0 0.0
        %2939 = vmatpush1.msra.mxu0 %v2905
        %2940 = vmatprep.subr.mxu0 0.0
        %2941 = vmatpush1.msra.mxu0 %v2904
        %2942 = vmatprep.subr.mxu0 0.0
        %2943 = vmatpush1.msra.mxu0 %v2903
        %2944 = vmatprep.subr.mxu0 0.0
        %2945 = vmatpush1.msra.mxu0 %v2902
        %2946 = vmatprep.subr.mxu0 0.0
        %2947 = vmatpush1.msra.mxu0 %v2901
        %2948 = vmatprep.subr.mxu0 0.0
        %2949 = vmatpush1.msra.mxu0 %v2900
        %2950 = vmatprep.subr.mxu0 0.0
        %2951 = vmatpush1.msra.mxu0 %v2899
        %2952 = vmatprep.subr.mxu0 0.0
        %2953 = vmatpush1.msra.mxu0 %v2898
        %2954 = vmatprep.subr.mxu0 0.0
        %2955 = vmatpush1.msra.mxu0 %v2897
        %2956 = vmatprep.subr.mxu0 0.0
        %2957 = vmatpush1.msra.mxu0 %v2896
        %2958 = vmatprep.subr.mxu0 0.0
        %2959 = vmatpush1.msra.mxu0 %v2895
        %2960 = vmatprep.subr.mxu0 0.0
        %2961 = vmatpush1.msra.mxu0 %v2894
        %2962 = vmatprep.subr.mxu0 0.0
        %2963 = vmatpush1.msra.mxu0 %v2893
        %2964 = vmatprep.subr.mxu0 0.0
        %2965 = vmatpush2.msra.mxu0 %v2924
        %2966 = vmatprep.subr.mxu0 0.0
        %2967 = vmatpush2.msra.mxu0 %v2923
        %2968 = vmatprep.subr.mxu0 0.0
        %2969 = vmatpush2.msra.mxu0 %v2922
        %2970 = vmatprep.subr.mxu0 0.0
        %2971 = vmatpush2.msra.mxu0 %v2921
        %2972 = vmatprep.subr.mxu0 0.0
        %2973 = vmatpush2.msra.mxu0 %v2920
        %2974 = vmatprep.subr.mxu0 0.0
        %2975 = vmatpush2.msra.mxu0 %v2919
        %2976 = vmatprep.subr.mxu0 0.0
        %2977 = vmatpush2.msra.mxu0 %v2918
        %2978 = vmatprep.subr.mxu0 0.0
        %2979 = vmatpush2.msra.mxu0 %v2917
        %2980 = vmatprep.subr.mxu0 0.0
        %2981 = vmatpush2.msra.mxu0 %v2916
        %2982 = vmatprep.subr.mxu0 0.0
        %2983 = vmatpush2.msra.mxu0 %v2915
        %2984 = vmatprep.subr.mxu0 0.0
        %2985 = vmatpush2.msra.mxu0 %v2914
        %2986 = vmatprep.subr.mxu0 0.0
        %2987 = vmatpush2.msra.mxu0 %v2913
        %2988 = vmatprep.subr.mxu0 0.0
        %2989 = vmatpush2.msra.mxu0 %v2912
        %2990 = vmatprep.subr.mxu0 0.0
        %2991 = vmatpush2.msra.mxu0 %v2911
        %2992 = vmatprep.subr.mxu0 0.0
        %2993 = vmatpush2.msra.mxu0 %v2910
        %2994 = vmatprep.subr.mxu0 0.0
        %2995 = vmatpush2.msra.mxu0 %v2909
        %2996 = vmatprep.mubr.f32.mxu0 %v2892
        %2997 = vmatmul.mubr.f32.gmra.mxu0 %v2891
        %v2998 = vpop.f32.mrf.mxu0
        %v2999 = vadd.f32 %v2930, %v2998
        %v3000 = vpop.f32.mrf.mxu0
        %3001 = vdwg.mxu0
        %v3002 = vadd.f32 %v2775, %v2999
        %v3003 = vld [vmem:[#allocation20] sm:$0x1]
        %v3004 = vld [vmem:[#allocation22] sm:$0x1]
        %3005 = vadd.xlane.f32.xlu0 %v3002
        %v3006 = vpop.xlane.xlu0 %3005
        %v3007 = vmul.f32 %v3002, %v3002
        %3008 = vadd.xlane.f32.xlu0 %v3007
        %v3009 = vpop.xlane.xlu0 %3008
        %v3010 = vmul.f32 %v3006, 0.01
        %v3011 = vmul.f32 %v3009, 0.01
        %v3012 = vmul.f32 %v3010, %v3010
        %v3013 = vsub.f32 %v3011, %v3012
        %v3014 = vsub.f32 %v3002, %v3010
        %v3015 = vadd.f32 %v3013, 1e-05
        %v3016 = vrsqrt.pop %v3015
        %v3017 = vmul.f32 %v3014, %v3016
        %v3019 = vlaneseq
        %v3020 = vshrl.u32 %v3019, 7
        %v3021 = vsub.s32 0, %v3020
        %v3022 = vrot.slane %v3003, %v3021
        %v3024 = vmul.f32 %v3017, %v3022
        %v3026 = vlaneseq
        %v3027 = vshrl.u32 %v3026, 7
        %v3028 = vsub.s32 0, %v3027
        %v3029 = vrot.slane %v3004, %v3028
        %v3031 = vadd.f32 %v3024, %v3029
        %s3032 = scalar_lea.vmem [#allocation5], 1920
        %v3033 = vld [vmem:[%s3032] sm:$0xff]
        %v3034 = vld [vmem:[%s3032 + $0x8] sm:$0xff]
        %v3035 = vld [vmem:[%s3032 + $0x10] sm:$0xff]
        %v3036 = vld [vmem:[%s3032 + $0x18] sm:$0xff]
        %v3037 = vld [vmem:[%s3032 + $0x20] sm:$0xff]
        %v3038 = vld [vmem:[%s3032 + $0x28] sm:$0xff]
        %v3039 = vld [vmem:[%s3032 + $0x30] sm:$0xff]
        %v3040 = vld [vmem:[%s3032 + $0x38] sm:$0xff]
        %v3041 = vld [vmem:[%s3032 + $0x40] sm:$0xff]
        %v3042 = vld [vmem:[%s3032 + $0x48] sm:$0xff]
        %v3043 = vld [vmem:[%s3032 + $0x50] sm:$0xff]
        %v3044 = vld [vmem:[%s3032 + $0x58] sm:$0xff]
        %v3045 = vld [vmem:[%s3032 + $0x60] sm:$0xff]
        %v3046 = vld [vmem:[%s3032 + $0x68] sm:$0xff]
        %v3047 = vld [vmem:[%s3032 + $0x70] sm:$0xff]
        %v3048 = vld [vmem:[%s3032 + $0x78] sm:$0xff]
        %v3049 = vld [vmem:[%s3032 + $0x80] sm:$0xff]
        %v3050 = vld [vmem:[%s3032 + $0x88] sm:$0xff]
        %v3051 = vld [vmem:[%s3032 + $0x90] sm:$0xff]
        %v3052 = vld [vmem:[%s3032 + $0x98] sm:$0xff]
        %v3053 = vld [vmem:[%s3032 + $0xa0] sm:$0xff]
        %v3054 = vld [vmem:[%s3032 + $0xa8] sm:$0xff]
        %v3055 = vld [vmem:[%s3032 + $0xb0] sm:$0xff]
        %v3056 = vld [vmem:[%s3032 + $0xb8] sm:$0xff]
        %v3057 = vld [vmem:[%s3032 + $0xc0] sm:$0xff]
        %v3058 = vld [vmem:[%s3032 + $0xc8] sm:$0xff]
        %v3059 = vld [vmem:[%s3032 + $0xd0] sm:$0xff]
        %v3060 = vld [vmem:[%s3032 + $0xd8] sm:$0xff]
        %v3061 = vld [vmem:[%s3032 + $0xe0] sm:$0xff]
        %v3062 = vld [vmem:[%s3032 + $0xe8] sm:$0xff]
        %v3063 = vld [vmem:[%s3032 + $0xf0] sm:$0xff]
        %v3064 = vld [vmem:[%s3032 + $0xf8] sm:$0xff]
        %v3065 = vld [vmem:[%s3032 + $0x100] sm:$0xff]
        %v3066 = vld [vmem:[%s3032 + $0x108] sm:$0xff]
        %v3067 = vld [vmem:[%s3032 + $0x110] sm:$0xff]
        %v3068 = vld [vmem:[%s3032 + $0x118] sm:$0xff]
        %v3069 = vld [vmem:[%s3032 + $0x120] sm:$0xff]
        %v3070 = vld [vmem:[%s3032 + $0x128] sm:$0xff]
        %v3071 = vld [vmem:[%s3032 + $0x130] sm:$0xff]
        %v3072 = vld [vmem:[%s3032 + $0x138] sm:$0xff]
        %v3073 = vld [vmem:[%s3032 + $0x140] sm:$0xff]
        %v3074 = vld [vmem:[%s3032 + $0x148] sm:$0xff]
        %v3075 = vld [vmem:[%s3032 + $0x150] sm:$0xff]
        %v3076 = vld [vmem:[%s3032 + $0x158] sm:$0xff]
        %v3077 = vld [vmem:[%s3032 + $0x160] sm:$0xff]
        %v3078 = vld [vmem:[%s3032 + $0x168] sm:$0xff]
        %v3079 = vld [vmem:[%s3032 + $0x170] sm:$0xff]
        %v3080 = vld [vmem:[%s3032 + $0x178] sm:$0xff]
        %v3081 = vld [vmem:[%s3032 + $0x180] sm:$0xff]
        %v3082 = vld [vmem:[%s3032 + $0x188] sm:$0xff]
        %v3083 = vld [vmem:[%s3032 + $0x190] sm:$0xff]
        %v3084 = vld [vmem:[%s3032 + $0x198] sm:$0xff]
        %v3085 = vld [vmem:[%s3032 + $0x1a0] sm:$0xff]
        %v3086 = vld [vmem:[%s3032 + $0x1a8] sm:$0xff]
        %v3087 = vld [vmem:[%s3032 + $0x1b0] sm:$0xff]
        %v3088 = vld [vmem:[%s3032 + $0x1b8] sm:$0xff]
        %v3089 = vld [vmem:[%s3032 + $0x1c0] sm:$0xff]
        %v3090 = vld [vmem:[%s3032 + $0x1c8] sm:$0xff]
        %v3091 = vld [vmem:[%s3032 + $0x1d0] sm:$0xff]
        %v3092 = vld [vmem:[%s3032 + $0x1d8] sm:$0xff]
        %v3093 = vld [vmem:[%s3032 + $0x1e0] sm:$0xff]
        %v3094 = vld [vmem:[%s3032 + $0x1e8] sm:$0xff]
        %v3095 = vld [vmem:[%s3032 + $0x1f0] sm:$0xff]
        %v3096 = vld [vmem:[%s3032 + $0x1f8] sm:$0xff]
        %v3097 = vld [vmem:[%s3032 + $0x200] sm:$0xff]
        %v3098 = vld [vmem:[%s3032 + $0x208] sm:$0xff]
        %v3099 = vld [vmem:[%s3032 + $0x210] sm:$0xff]
        %v3100 = vld [vmem:[%s3032 + $0x218] sm:$0xff]
        %v3101 = vld [vmem:[%s3032 + $0x220] sm:$0xff]
        %v3102 = vld [vmem:[%s3032 + $0x228] sm:$0xff]
        %v3103 = vld [vmem:[%s3032 + $0x230] sm:$0xff]
        %v3104 = vld [vmem:[%s3032 + $0x238] sm:$0xff]
        %v3105 = vld [vmem:[%s3032 + $0x240] sm:$0xff]
        %v3106 = vld [vmem:[%s3032 + $0x248] sm:$0xff]
        %v3107 = vld [vmem:[%s3032 + $0x250] sm:$0xff]
        %v3108 = vld [vmem:[%s3032 + $0x258] sm:$0xff]
        %v3109 = vld [vmem:[%s3032 + $0x260] sm:$0xff]
        %v3110 = vld [vmem:[%s3032 + $0x268] sm:$0xff]
        %v3111 = vld [vmem:[%s3032 + $0x270] sm:$0xff]
        %v3112 = vld [vmem:[%s3032 + $0x278] sm:$0xff]
        %v3113 = vld [vmem:[%s3032 + $0x280] sm:$0xff]
        %v3114 = vld [vmem:[%s3032 + $0x288] sm:$0xff]
        %v3115 = vld [vmem:[%s3032 + $0x290] sm:$0xff]
        %v3116 = vld [vmem:[%s3032 + $0x298] sm:$0xff]
        %v3117 = vld [vmem:[%s3032 + $0x2a0] sm:$0xff]
        %v3118 = vld [vmem:[%s3032 + $0x2a8] sm:$0xff]
        %v3119 = vld [vmem:[%s3032 + $0x2b0] sm:$0xff]
        %v3120 = vld [vmem:[%s3032 + $0x2b8] sm:$0xff]
        %v3121 = vld [vmem:[%s3032 + $0x2c0] sm:$0xff]
        %v3122 = vld [vmem:[%s3032 + $0x2c8] sm:$0xff]
        %v3123 = vld [vmem:[%s3032 + $0x2d0] sm:$0xff]
        %v3124 = vld [vmem:[%s3032 + $0x2d8] sm:$0xff]
        %v3125 = vld [vmem:[%s3032 + $0x2e0] sm:$0xff]
        %v3126 = vld [vmem:[%s3032 + $0x2e8] sm:$0xff]
        %v3127 = vld [vmem:[%s3032 + $0x2f0] sm:$0xff]
        %v3128 = vld [vmem:[%s3032 + $0x2f8] sm:$0xff]
        %v3129 = vld [vmem:[%s3032 + $0x300] sm:$0xff]
        %v3130 = vld [vmem:[%s3032 + $0x308] sm:$0xff]
        %v3131 = vld [vmem:[%s3032 + $0x310] sm:$0xff]
        %v3132 = vld [vmem:[%s3032 + $0x318] sm:$0xff]
        %v3133 = vld [vmem:[%s3032 + $0x320] sm:$0xff]
        %v3134 = vld [vmem:[%s3032 + $0x328] sm:$0xff]
        %v3135 = vld [vmem:[%s3032 + $0x330] sm:$0xff]
        %v3136 = vld [vmem:[%s3032 + $0x338] sm:$0xff]
        %v3137 = vld [vmem:[%s3032 + $0x340] sm:$0xff]
        %v3138 = vld [vmem:[%s3032 + $0x348] sm:$0xff]
        %v3139 = vld [vmem:[%s3032 + $0x350] sm:$0xff]
        %v3140 = vld [vmem:[%s3032 + $0x358] sm:$0xff]
        %v3141 = vld [vmem:[%s3032 + $0x360] sm:$0xff]
        %v3142 = vld [vmem:[%s3032 + $0x368] sm:$0xff]
        %v3143 = vld [vmem:[%s3032 + $0x370] sm:$0xff]
        %v3144 = vld [vmem:[%s3032 + $0x378] sm:$0xff]
        %v3145 = vld [vmem:[%s3032 + $0x380] sm:$0xff]
        %v3146 = vld [vmem:[%s3032 + $0x388] sm:$0xff]
        %v3147 = vld [vmem:[%s3032 + $0x390] sm:$0xff]
        %v3148 = vld [vmem:[%s3032 + $0x398] sm:$0xff]
        %v3149 = vld [vmem:[%s3032 + $0x3a0] sm:$0xff]
        %v3150 = vld [vmem:[%s3032 + $0x3a8] sm:$0xff]
        %v3151 = vld [vmem:[%s3032 + $0x3b0] sm:$0xff]
        %v3152 = vld [vmem:[%s3032 + $0x3b8] sm:$0xff]
        %v3153 = vld [vmem:[%s3032 + $0x3c0] sm:$0xff]
        %v3154 = vld [vmem:[%s3032 + $0x3c8] sm:$0xff]
        %v3155 = vld [vmem:[%s3032 + $0x3d0] sm:$0xff]
        %v3156 = vld [vmem:[%s3032 + $0x3d8] sm:$0xff]
        %v3157 = vld [vmem:[%s3032 + $0x3e0] sm:$0xff]
        %v3158 = vld [vmem:[%s3032 + $0x3e8] sm:$0xff]
        %v3159 = vld [vmem:[%s3032 + $0x3f0] sm:$0xff]
        %v3160 = vld [vmem:[%s3032 + $0x3f8] sm:$0xff]
        %v3161 = vld [vmem:[%s3032 + $0x400] sm:$0xff]
        %v3162 = vld [vmem:[%s3032 + $0x408] sm:$0xff]
        %v3163 = vld [vmem:[%s3032 + $0x410] sm:$0xff]
        %v3164 = vld [vmem:[%s3032 + $0x418] sm:$0xff]
        %v3165 = vld [vmem:[%s3032 + $0x420] sm:$0xff]
        %v3166 = vld [vmem:[%s3032 + $0x428] sm:$0xff]
        %v3167 = vld [vmem:[%s3032 + $0x430] sm:$0xff]
        %v3168 = vld [vmem:[%s3032 + $0x438] sm:$0xff]
        %v3169 = vld [vmem:[%s3032 + $0x440] sm:$0xff]
        %v3170 = vld [vmem:[%s3032 + $0x448] sm:$0xff]
        %v3171 = vld [vmem:[%s3032 + $0x450] sm:$0xff]
        %v3172 = vld [vmem:[%s3032 + $0x458] sm:$0xff]
        %v3173 = vld [vmem:[%s3032 + $0x460] sm:$0xff]
        %v3174 = vld [vmem:[%s3032 + $0x468] sm:$0xff]
        %v3175 = vld [vmem:[%s3032 + $0x470] sm:$0xff]
        %v3176 = vld [vmem:[%s3032 + $0x478] sm:$0xff]
        %v3177 = vld [vmem:[%s3032 + $0x480] sm:$0xff]
        %v3178 = vld [vmem:[%s3032 + $0x488] sm:$0xff]
        %v3179 = vld [vmem:[%s3032 + $0x490] sm:$0xff]
        %v3180 = vld [vmem:[%s3032 + $0x498] sm:$0xff]
        %v3181 = vld [vmem:[%s3032 + $0x4a0] sm:$0xff]
        %v3182 = vld [vmem:[%s3032 + $0x4a8] sm:$0xff]
        %v3183 = vld [vmem:[%s3032 + $0x4b0] sm:$0xff]
        %v3184 = vld [vmem:[%s3032 + $0x4b8] sm:$0xff]
        %v3185 = vld [vmem:[%s3032 + $0x4c0] sm:$0xff]
        %v3186 = vld [vmem:[%s3032 + $0x4c8] sm:$0xff]
        %v3187 = vld [vmem:[%s3032 + $0x4d0] sm:$0xff]
        %v3188 = vld [vmem:[%s3032 + $0x4d8] sm:$0xff]
        %v3189 = vld [vmem:[%s3032 + $0x4e0] sm:$0xff]
        %v3190 = vld [vmem:[%s3032 + $0x4e8] sm:$0xff]
        %v3191 = vld [vmem:[%s3032 + $0x4f0] sm:$0xff]
        %v3192 = vld [vmem:[%s3032 + $0x4f8] sm:$0xff]
        %v3193 = vld [vmem:[%s3032 + $0x500] sm:$0xff]
        %v3194 = vld [vmem:[%s3032 + $0x508] sm:$0xff]
        %v3195 = vld [vmem:[%s3032 + $0x510] sm:$0xff]
        %v3196 = vld [vmem:[%s3032 + $0x518] sm:$0xff]
        %v3197 = vld [vmem:[%s3032 + $0x520] sm:$0xff]
        %v3198 = vld [vmem:[%s3032 + $0x528] sm:$0xff]
        %v3199 = vld [vmem:[%s3032 + $0x530] sm:$0xff]
        %v3200 = vld [vmem:[%s3032 + $0x538] sm:$0xff]
        %v3201 = vld [vmem:[%s3032 + $0x540] sm:$0xff]
        %v3202 = vld [vmem:[%s3032 + $0x548] sm:$0xff]
        %v3203 = vld [vmem:[%s3032 + $0x550] sm:$0xff]
        %v3204 = vld [vmem:[%s3032 + $0x558] sm:$0xff]
        %v3205 = vld [vmem:[%s3032 + $0x560] sm:$0xff]
        %v3206 = vld [vmem:[%s3032 + $0x568] sm:$0xff]
        %v3207 = vld [vmem:[%s3032 + $0x570] sm:$0xff]
        %v3208 = vld [vmem:[%s3032 + $0x578] sm:$0xff]
        %v3209 = vld [vmem:[%s3032 + $0x580] sm:$0xff]
        %v3210 = vld [vmem:[%s3032 + $0x588] sm:$0xff]
        %v3211 = vld [vmem:[%s3032 + $0x590] sm:$0xff]
        %v3212 = vld [vmem:[%s3032 + $0x598] sm:$0xff]
        %v3213 = vld [vmem:[%s3032 + $0x5a0] sm:$0xff]
        %v3214 = vld [vmem:[%s3032 + $0x5a8] sm:$0xff]
        %v3215 = vld [vmem:[%s3032 + $0x5b0] sm:$0xff]
        %v3216 = vld [vmem:[%s3032 + $0x5b8] sm:$0xff]
        %v3217 = vld [vmem:[%s3032 + $0x5c0] sm:$0xff]
        %v3218 = vld [vmem:[%s3032 + $0x5c8] sm:$0xff]
        %v3219 = vld [vmem:[%s3032 + $0x5d0] sm:$0xff]
        %v3220 = vld [vmem:[%s3032 + $0x5d8] sm:$0xff]
        %v3221 = vld [vmem:[%s3032 + $0x5e0] sm:$0xff]
        %v3222 = vld [vmem:[%s3032 + $0x5e8] sm:$0xff]
        %v3223 = vld [vmem:[%s3032 + $0x5f0] sm:$0xff]
        %v3224 = vld [vmem:[%s3032 + $0x5f8] sm:$0xff]
        %v3225 = vld [vmem:[%s3032 + $0x600] sm:$0xff]
        %v3226 = vld [vmem:[%s3032 + $0x608] sm:$0xff]
        %v3227 = vld [vmem:[%s3032 + $0x610] sm:$0xff]
        %v3228 = vld [vmem:[%s3032 + $0x618] sm:$0xff]
        %v3229 = vld [vmem:[%s3032 + $0x620] sm:$0xff]
        %v3230 = vld [vmem:[%s3032 + $0x628] sm:$0xff]
        %v3231 = vld [vmem:[%s3032 + $0x630] sm:$0xff]
        %v3232 = vld [vmem:[%s3032 + $0x638] sm:$0xff]
        %v3233 = vld [vmem:[%s3032 + $0x640] sm:$0xff]
        %v3234 = vld [vmem:[%s3032 + $0x648] sm:$0xff]
        %v3235 = vld [vmem:[%s3032 + $0x650] sm:$0xff]
        %v3236 = vld [vmem:[%s3032 + $0x658] sm:$0xff]
        %v3237 = vld [vmem:[%s3032 + $0x660] sm:$0xff]
        %v3238 = vld [vmem:[%s3032 + $0x668] sm:$0xff]
        %v3239 = vld [vmem:[%s3032 + $0x670] sm:$0xff]
        %v3240 = vld [vmem:[%s3032 + $0x678] sm:$0xff]
        %v3241 = vld [vmem:[%s3032 + $0x680] sm:$0xff]
        %v3242 = vld [vmem:[%s3032 + $0x688] sm:$0xff]
        %v3243 = vld [vmem:[%s3032 + $0x690] sm:$0xff]
        %v3244 = vld [vmem:[%s3032 + $0x698] sm:$0xff]
        %v3245 = vld [vmem:[%s3032 + $0x6a0] sm:$0xff]
        %v3246 = vld [vmem:[%s3032 + $0x6a8] sm:$0xff]
        %v3247 = vld [vmem:[%s3032 + $0x6b0] sm:$0xff]
        %v3248 = vld [vmem:[%s3032 + $0x6b8] sm:$0xff]
        %v3249 = vld [vmem:[%s3032 + $0x6c0] sm:$0xff]
        %v3250 = vld [vmem:[%s3032 + $0x6c8] sm:$0xff]
        %v3251 = vld [vmem:[%s3032 + $0x6d0] sm:$0xff]
        %v3252 = vld [vmem:[%s3032 + $0x6d8] sm:$0xff]
        %v3253 = vld [vmem:[%s3032 + $0x6e0] sm:$0xff]
        %v3254 = vld [vmem:[%s3032 + $0x6e8] sm:$0xff]
        %v3255 = vld [vmem:[%s3032 + $0x6f0] sm:$0xff]
        %v3256 = vld [vmem:[%s3032 + $0x6f8] sm:$0xff]
        %v3257 = vld [vmem:[%s3032 + $0x700] sm:$0xff]
        %v3258 = vld [vmem:[%s3032 + $0x708] sm:$0xff]
        %v3259 = vld [vmem:[%s3032 + $0x710] sm:$0xff]
        %v3260 = vld [vmem:[%s3032 + $0x718] sm:$0xff]
        %v3261 = vld [vmem:[%s3032 + $0x720] sm:$0xff]
        %v3262 = vld [vmem:[%s3032 + $0x728] sm:$0xff]
        %v3263 = vld [vmem:[%s3032 + $0x730] sm:$0xff]
        %v3264 = vld [vmem:[%s3032 + $0x738] sm:$0xff]
        %v3265 = vld [vmem:[%s3032 + $0x740] sm:$0xff]
        %v3266 = vld [vmem:[%s3032 + $0x748] sm:$0xff]
        %v3267 = vld [vmem:[%s3032 + $0x750] sm:$0xff]
        %v3268 = vld [vmem:[%s3032 + $0x758] sm:$0xff]
        %v3269 = vld [vmem:[%s3032 + $0x760] sm:$0xff]
        %v3270 = vld [vmem:[%s3032 + $0x768] sm:$0xff]
        %v3271 = vld [vmem:[%s3032 + $0x770] sm:$0xff]
        %v3272 = vld [vmem:[%s3032 + $0x778] sm:$0xff]
        %s3273 = scalar_lea.vmem [#allocation7], 15
        %v3274 = vld [vmem:[%s3273] sm:$0xff]
        %v3275 = vld [vmem:[%s3273 + $0x8] sm:$0xff]
        %v3278 = vlaneseq
        %v3279 = vshrl.u32 %v3278, 7
        %v3280 = vsub.s32 0, %v3279
        %v3281 = vrot.slane %v3274, %v3280
        %v3282 = vlaneseq
        %v3283 = vshrl.u32 %v3282, 7
        %v3284 = vsub.s32 1, %v3283
        %v3285 = vrot.slane %v3274, %v3284
        %v3286 = vlaneseq
        %v3287 = vshrl.u32 %v3286, 7
        %v3288 = vsub.s32 2, %v3287
        %v3289 = vrot.slane %v3274, %v3288
        %v3290 = vlaneseq
        %v3291 = vshrl.u32 %v3290, 7
        %v3292 = vsub.s32 3, %v3291
        %v3293 = vrot.slane %v3274, %v3292
        %v3294 = vlaneseq
        %v3295 = vshrl.u32 %v3294, 7
        %v3296 = vsub.s32 4, %v3295
        %v3297 = vrot.slane %v3274, %v3296
        %v3298 = vlaneseq
        %v3299 = vshrl.u32 %v3298, 7
        %v3300 = vsub.s32 5, %v3299
        %v3301 = vrot.slane %v3274, %v3300
        %v3302 = vlaneseq
        %v3303 = vshrl.u32 %v3302, 7
        %v3304 = vsub.s32 6, %v3303
        %v3305 = vrot.slane %v3274, %v3304
        %v3306 = vlaneseq
        %v3307 = vshrl.u32 %v3306, 7
        %v3308 = vsub.s32 7, %v3307
        %v3309 = vrot.slane %v3274, %v3308
        %v3310 = vlaneseq
        %v3311 = vshrl.u32 %v3310, 7
        %v3312 = vsub.s32 0, %v3311
        %v3313 = vrot.slane %v3275, %v3312
        %v3314 = vlaneseq
        %v3315 = vshrl.u32 %v3314, 7
        %v3316 = vsub.s32 1, %v3315
        %v3317 = vrot.slane %v3275, %v3316
        %v3318 = vlaneseq
        %v3319 = vshrl.u32 %v3318, 7
        %v3320 = vsub.s32 2, %v3319
        %v3321 = vrot.slane %v3275, %v3320
        %v3322 = vlaneseq
        %v3323 = vshrl.u32 %v3322, 7
        %v3324 = vsub.s32 3, %v3323
        %v3325 = vrot.slane %v3275, %v3324
        %v3326 = vlaneseq
        %v3327 = vshrl.u32 %v3326, 7
        %v3328 = vsub.s32 4, %v3327
        %v3329 = vrot.slane %v3275, %v3328
        %v3330 = vlaneseq
        %v3331 = vshrl.u32 %v3330, 7
        %v3332 = vsub.s32 5, %v3331
        %v3333 = vrot.slane %v3275, %v3332
        %v3334 = vlaneseq
        %v3335 = vshrl.u32 %v3334, 7
        %v3336 = vsub.s32 6, %v3335
        %v3337 = vrot.slane %v3275, %v3336
        %3353 = vmatprep.subr.mxu0 %v3259
        %3354 = vmatpush1.msra.mxu0 %v3258
        %3355 = vmatprep.subr.mxu0 %v3244
        %3356 = vmatpush1.msra.mxu0 %v3243
        %3357 = vmatprep.subr.mxu0 %v3229
        %3358 = vmatpush1.msra.mxu0 %v3228
        %3359 = vmatprep.subr.mxu0 %v3214
        %3360 = vmatpush1.msra.mxu0 %v3213
        %3361 = vmatprep.subr.mxu0 %v3199
        %3362 = vmatpush1.msra.mxu0 %v3198
        %3363 = vmatprep.subr.mxu0 %v3184
        %3364 = vmatpush1.msra.mxu0 %v3183
        %3365 = vmatprep.subr.mxu0 %v3169
        %3366 = vmatpush1.msra.mxu0 %v3168
        %3367 = vmatprep.subr.mxu0 %v3154
        %3368 = vmatpush1.msra.mxu0 %v3153
        %3369 = vmatprep.subr.mxu0 %v3139
        %3370 = vmatpush1.msra.mxu0 %v3138
        %3371 = vmatprep.subr.mxu0 %v3124
        %3372 = vmatpush1.msra.mxu0 %v3123
        %3373 = vmatprep.subr.mxu0 %v3109
        %3374 = vmatpush1.msra.mxu0 %v3108
        %3375 = vmatprep.subr.mxu0 %v3094
        %3376 = vmatpush1.msra.mxu0 %v3093
        %3377 = vmatprep.subr.mxu0 %v3079
        %3378 = vmatpush1.msra.mxu0 %v3078
        %3379 = vmatprep.subr.mxu0 %v3064
        %3380 = vmatpush1.msra.mxu0 %v3063
        %3381 = vmatprep.subr.mxu0 %v3049
        %3382 = vmatpush1.msra.mxu0 %v3048
        %3383 = vmatprep.subr.mxu0 %v3034
        %3384 = vmatpush1.msra.mxu0 %v3033
        %3385 = vmatprep.subr.mxu0 0.0
        %3386 = vmatpush2.msra.mxu0 0.0
        %3387 = vmatprep.subr.mxu0 0.0
        %3388 = vmatpush2.msra.mxu0 0.0
        %3389 = vmatprep.subr.mxu0 0.0
        %3390 = vmatpush2.msra.mxu0 0.0
        %3391 = vmatprep.subr.mxu0 0.0
        %3392 = vmatpush2.msra.mxu0 0.0
        %3393 = vmatprep.subr.mxu0 0.0
        %3394 = vmatpush2.msra.mxu0 0.0
        %3395 = vmatprep.subr.mxu0 0.0
        %3396 = vmatpush2.msra.mxu0 0.0
        %3397 = vmatprep.subr.mxu0 0.0
        %3398 = vmatpush2.msra.mxu0 0.0
        %3399 = vmatprep.subr.mxu0 0.0
        %3400 = vmatpush2.msra.mxu0 0.0
        %3401 = vmatprep.subr.mxu0 0.0
        %3402 = vmatpush2.msra.mxu0 0.0
        %3403 = vmatprep.subr.mxu0 0.0
        %3404 = vmatpush2.msra.mxu0 0.0
        %3405 = vmatprep.subr.mxu0 0.0
        %3406 = vmatpush2.msra.mxu0 0.0
        %3407 = vmatprep.subr.mxu0 0.0
        %3408 = vmatpush2.msra.mxu0 0.0
        %3409 = vmatprep.subr.mxu0 0.0
        %3410 = vmatpush2.msra.mxu0 0.0
        %3411 = vmatprep.subr.mxu0 0.0
        %3412 = vmatpush2.msra.mxu0 0.0
        %3413 = vmatprep.subr.mxu0 0.0
        %3414 = vmatpush2.msra.mxu0 0.0
        %3415 = vmatprep.subr.mxu0 0.0
        %3416 = vmatpush2.msra.mxu0 0.0
        %3417 = vmatprep.mubr.f32.mxu0 0.0
        %3418 = vmatmul.mubr.f32.gmra.mxu0 %v3031
        %v3419 = vpop.f32.mrf.mxu0
        %v3420 = vadd.f32 %v3281, %v3419
        %v3421 = vpop.f32.mrf.mxu0
        %v3422 = vadd.f32 %v3285, %v3421
        %3423 = vdwg.mxu0
        %3424 = vmatprep.subr.mxu0 %v3261
        %3425 = vmatpush1.msra.mxu0 %v3260
        %3426 = vmatprep.subr.mxu0 %v3246
        %3427 = vmatpush1.msra.mxu0 %v3245
        %3428 = vmatprep.subr.mxu0 %v3231
        %3429 = vmatpush1.msra.mxu0 %v3230
        %3430 = vmatprep.subr.mxu0 %v3216
        %3431 = vmatpush1.msra.mxu0 %v3215
        %3432 = vmatprep.subr.mxu0 %v3201
        %3433 = vmatpush1.msra.mxu0 %v3200
        %3434 = vmatprep.subr.mxu0 %v3186
        %3435 = vmatpush1.msra.mxu0 %v3185
        %3436 = vmatprep.subr.mxu0 %v3171
        %3437 = vmatpush1.msra.mxu0 %v3170
        %3438 = vmatprep.subr.mxu0 %v3156
        %3439 = vmatpush1.msra.mxu0 %v3155
        %3440 = vmatprep.subr.mxu0 %v3141
        %3441 = vmatpush1.msra.mxu0 %v3140
        %3442 = vmatprep.subr.mxu0 %v3126
        %3443 = vmatpush1.msra.mxu0 %v3125
        %3444 = vmatprep.subr.mxu0 %v3111
        %3445 = vmatpush1.msra.mxu0 %v3110
        %3446 = vmatprep.subr.mxu0 %v3096
        %3447 = vmatpush1.msra.mxu0 %v3095
        %3448 = vmatprep.subr.mxu0 %v3081
        %3449 = vmatpush1.msra.mxu0 %v3080
        %3450 = vmatprep.subr.mxu0 %v3066
        %3451 = vmatpush1.msra.mxu0 %v3065
        %3452 = vmatprep.subr.mxu0 %v3051
        %3453 = vmatpush1.msra.mxu0 %v3050
        %3454 = vmatprep.subr.mxu0 %v3036
        %3455 = vmatpush1.msra.mxu0 %v3035
        %3456 = vmatprep.subr.mxu0 0.0
        %3457 = vmatpush2.msra.mxu0 0.0
        %3458 = vmatprep.subr.mxu0 0.0
        %3459 = vmatpush2.msra.mxu0 0.0
        %3460 = vmatprep.subr.mxu0 0.0
        %3461 = vmatpush2.msra.mxu0 0.0
        %3462 = vmatprep.subr.mxu0 0.0
        %3463 = vmatpush2.msra.mxu0 0.0
        %3464 = vmatprep.subr.mxu0 0.0
        %3465 = vmatpush2.msra.mxu0 0.0
        %3466 = vmatprep.subr.mxu0 0.0
        %3467 = vmatpush2.msra.mxu0 0.0
        %3468 = vmatprep.subr.mxu0 0.0
        %3469 = vmatpush2.msra.mxu0 0.0
        %3470 = vmatprep.subr.mxu0 0.0
        %3471 = vmatpush2.msra.mxu0 0.0
        %3472 = vmatprep.subr.mxu0 0.0
        %3473 = vmatpush2.msra.mxu0 0.0
        %3474 = vmatprep.subr.mxu0 0.0
        %3475 = vmatpush2.msra.mxu0 0.0
        %3476 = vmatprep.subr.mxu0 0.0
        %3477 = vmatpush2.msra.mxu0 0.0
        %3478 = vmatprep.subr.mxu0 0.0
        %3479 = vmatpush2.msra.mxu0 0.0
        %3480 = vmatprep.subr.mxu0 0.0
        %3481 = vmatpush2.msra.mxu0 0.0
        %3482 = vmatprep.subr.mxu0 0.0
        %3483 = vmatpush2.msra.mxu0 0.0
        %3484 = vmatprep.subr.mxu0 0.0
        %3485 = vmatpush2.msra.mxu0 0.0
        %3486 = vmatprep.subr.mxu0 0.0
        %3487 = vmatpush2.msra.mxu0 0.0
        %3488 = vmatprep.mubr.f32.mxu0 0.0
        %3489 = vmatmul.mubr.f32.gmra.mxu0 %v3031
        %v3490 = vpop.f32.mrf.mxu0
        %v3491 = vadd.f32 %v3289, %v3490
        %v3492 = vpop.f32.mrf.mxu0
        %v3493 = vadd.f32 %v3293, %v3492
        %3494 = vdwg.mxu0
        %3495 = vmatprep.subr.mxu0 %v3263
        %3496 = vmatpush1.msra.mxu0 %v3262
        %3497 = vmatprep.subr.mxu0 %v3248
        %3498 = vmatpush1.msra.mxu0 %v3247
        %3499 = vmatprep.subr.mxu0 %v3233
        %3500 = vmatpush1.msra.mxu0 %v3232
        %3501 = vmatprep.subr.mxu0 %v3218
        %3502 = vmatpush1.msra.mxu0 %v3217
        %3503 = vmatprep.subr.mxu0 %v3203
        %3504 = vmatpush1.msra.mxu0 %v3202
        %3505 = vmatprep.subr.mxu0 %v3188
        %3506 = vmatpush1.msra.mxu0 %v3187
        %3507 = vmatprep.subr.mxu0 %v3173
        %3508 = vmatpush1.msra.mxu0 %v3172
        %3509 = vmatprep.subr.mxu0 %v3158
        %3510 = vmatpush1.msra.mxu0 %v3157
        %3511 = vmatprep.subr.mxu0 %v3143
        %3512 = vmatpush1.msra.mxu0 %v3142
        %3513 = vmatprep.subr.mxu0 %v3128
        %3514 = vmatpush1.msra.mxu0 %v3127
        %3515 = vmatprep.subr.mxu0 %v3113
        %3516 = vmatpush1.msra.mxu0 %v3112
        %3517 = vmatprep.subr.mxu0 %v3098
        %3518 = vmatpush1.msra.mxu0 %v3097
        %3519 = vmatprep.subr.mxu0 %v3083
        %3520 = vmatpush1.msra.mxu0 %v3082
        %3521 = vmatprep.subr.mxu0 %v3068
        %3522 = vmatpush1.msra.mxu0 %v3067
        %3523 = vmatprep.subr.mxu0 %v3053
        %3524 = vmatpush1.msra.mxu0 %v3052
        %3525 = vmatprep.subr.mxu0 %v3038
        %3526 = vmatpush1.msra.mxu0 %v3037
        %3527 = vmatprep.subr.mxu0 0.0
        %3528 = vmatpush2.msra.mxu0 0.0
        %3529 = vmatprep.subr.mxu0 0.0
        %3530 = vmatpush2.msra.mxu0 0.0
        %3531 = vmatprep.subr.mxu0 0.0
        %3532 = vmatpush2.msra.mxu0 0.0
        %3533 = vmatprep.subr.mxu0 0.0
        %3534 = vmatpush2.msra.mxu0 0.0
        %3535 = vmatprep.subr.mxu0 0.0
        %3536 = vmatpush2.msra.mxu0 0.0
        %3537 = vmatprep.subr.mxu0 0.0
        %3538 = vmatpush2.msra.mxu0 0.0
        %3539 = vmatprep.subr.mxu0 0.0
        %3540 = vmatpush2.msra.mxu0 0.0
        %3541 = vmatprep.subr.mxu0 0.0
        %3542 = vmatpush2.msra.mxu0 0.0
        %3543 = vmatprep.subr.mxu0 0.0
        %3544 = vmatpush2.msra.mxu0 0.0
        %3545 = vmatprep.subr.mxu0 0.0
        %3546 = vmatpush2.msra.mxu0 0.0
        %3547 = vmatprep.subr.mxu0 0.0
        %3548 = vmatpush2.msra.mxu0 0.0
        %3549 = vmatprep.subr.mxu0 0.0
        %3550 = vmatpush2.msra.mxu0 0.0
        %3551 = vmatprep.subr.mxu0 0.0
        %3552 = vmatpush2.msra.mxu0 0.0
        %3553 = vmatprep.subr.mxu0 0.0
        %3554 = vmatpush2.msra.mxu0 0.0
        %3555 = vmatprep.subr.mxu0 0.0
        %3556 = vmatpush2.msra.mxu0 0.0
        %3557 = vmatprep.subr.mxu0 0.0
        %3558 = vmatpush2.msra.mxu0 0.0
        %3559 = vmatprep.mubr.f32.mxu0 0.0
        %3560 = vmatmul.mubr.f32.gmra.mxu0 %v3031
        %v3561 = vpop.f32.mrf.mxu0
        %v3562 = vadd.f32 %v3297, %v3561
        %v3563 = vpop.f32.mrf.mxu0
        %v3564 = vadd.f32 %v3301, %v3563
        %3565 = vdwg.mxu0
        %3566 = vmatprep.subr.mxu0 %v3265
        %3567 = vmatpush1.msra.mxu0 %v3264
        %3568 = vmatprep.subr.mxu0 %v3250
        %3569 = vmatpush1.msra.mxu0 %v3249
        %3570 = vmatprep.subr.mxu0 %v3235
        %3571 = vmatpush1.msra.mxu0 %v3234
        %3572 = vmatprep.subr.mxu0 %v3220
        %3573 = vmatpush1.msra.mxu0 %v3219
        %3574 = vmatprep.subr.mxu0 %v3205
        %3575 = vmatpush1.msra.mxu0 %v3204
        %3576 = vmatprep.subr.mxu0 %v3190
        %3577 = vmatpush1.msra.mxu0 %v3189
        %3578 = vmatprep.subr.mxu0 %v3175
        %3579 = vmatpush1.msra.mxu0 %v3174
        %3580 = vmatprep.subr.mxu0 %v3160
        %3581 = vmatpush1.msra.mxu0 %v3159
        %3582 = vmatprep.subr.mxu0 %v3145
        %3583 = vmatpush1.msra.mxu0 %v3144
        %3584 = vmatprep.subr.mxu0 %v3130
        %3585 = vmatpush1.msra.mxu0 %v3129
        %3586 = vmatprep.subr.mxu0 %v3115
        %3587 = vmatpush1.msra.mxu0 %v3114
        %3588 = vmatprep.subr.mxu0 %v3100
        %3589 = vmatpush1.msra.mxu0 %v3099
        %3590 = vmatprep.subr.mxu0 %v3085
        %3591 = vmatpush1.msra.mxu0 %v3084
        %3592 = vmatprep.subr.mxu0 %v3070
        %3593 = vmatpush1.msra.mxu0 %v3069
        %3594 = vmatprep.subr.mxu0 %v3055
        %3595 = vmatpush1.msra.mxu0 %v3054
        %3596 = vmatprep.subr.mxu0 %v3040
        %3597 = vmatpush1.msra.mxu0 %v3039
        %3598 = vmatprep.subr.mxu0 0.0
        %3599 = vmatpush2.msra.mxu0 0.0
        %3600 = vmatprep.subr.mxu0 0.0
        %3601 = vmatpush2.msra.mxu0 0.0
        %3602 = vmatprep.subr.mxu0 0.0
        %3603 = vmatpush2.msra.mxu0 0.0
        %3604 = vmatprep.subr.mxu0 0.0
        %3605 = vmatpush2.msra.mxu0 0.0
        %3606 = vmatprep.subr.mxu0 0.0
        %3607 = vmatpush2.msra.mxu0 0.0
        %3608 = vmatprep.subr.mxu0 0.0
        %3609 = vmatpush2.msra.mxu0 0.0
        %3610 = vmatprep.subr.mxu0 0.0
        %3611 = vmatpush2.msra.mxu0 0.0
        %3612 = vmatprep.subr.mxu0 0.0
        %3613 = vmatpush2.msra.mxu0 0.0
        %3614 = vmatprep.subr.mxu0 0.0
        %3615 = vmatpush2.msra.mxu0 0.0
        %3616 = vmatprep.subr.mxu0 0.0
        %3617 = vmatpush2.msra.mxu0 0.0
        %3618 = vmatprep.subr.mxu0 0.0
        %3619 = vmatpush2.msra.mxu0 0.0
        %3620 = vmatprep.subr.mxu0 0.0
        %3621 = vmatpush2.msra.mxu0 0.0
        %3622 = vmatprep.subr.mxu0 0.0
        %3623 = vmatpush2.msra.mxu0 0.0
        %3624 = vmatprep.subr.mxu0 0.0
        %3625 = vmatpush2.msra.mxu0 0.0
        %3626 = vmatprep.subr.mxu0 0.0
        %3627 = vmatpush2.msra.mxu0 0.0
        %3628 = vmatprep.subr.mxu0 0.0
        %3629 = vmatpush2.msra.mxu0 0.0
        %3630 = vmatprep.mubr.f32.mxu0 0.0
        %3631 = vmatmul.mubr.f32.gmra.mxu0 %v3031
        %v3632 = vpop.f32.mrf.mxu0
        %v3633 = vadd.f32 %v3305, %v3632
        %v3634 = vpop.f32.mrf.mxu0
        %v3635 = vadd.f32 %v3309, %v3634
        %3636 = vdwg.mxu0
        %3637 = vmatprep.subr.mxu0 %v3267
        %3638 = vmatpush1.msra.mxu0 %v3266
        %3639 = vmatprep.subr.mxu0 %v3252
        %3640 = vmatpush1.msra.mxu0 %v3251
        %3641 = vmatprep.subr.mxu0 %v3237
        %3642 = vmatpush1.msra.mxu0 %v3236
        %3643 = vmatprep.subr.mxu0 %v3222
        %3644 = vmatpush1.msra.mxu0 %v3221
        %3645 = vmatprep.subr.mxu0 %v3207
        %3646 = vmatpush1.msra.mxu0 %v3206
        %3647 = vmatprep.subr.mxu0 %v3192
        %3648 = vmatpush1.msra.mxu0 %v3191
        %3649 = vmatprep.subr.mxu0 %v3177
        %3650 = vmatpush1.msra.mxu0 %v3176
        %3651 = vmatprep.subr.mxu0 %v3162
        %3652 = vmatpush1.msra.mxu0 %v3161
        %3653 = vmatprep.subr.mxu0 %v3147
        %3654 = vmatpush1.msra.mxu0 %v3146
        %3655 = vmatprep.subr.mxu0 %v3132
        %3656 = vmatpush1.msra.mxu0 %v3131
        %3657 = vmatprep.subr.mxu0 %v3117
        %3658 = vmatpush1.msra.mxu0 %v3116
        %3659 = vmatprep.subr.mxu0 %v3102
        %3660 = vmatpush1.msra.mxu0 %v3101
        %3661 = vmatprep.subr.mxu0 %v3087
        %3662 = vmatpush1.msra.mxu0 %v3086
        %3663 = vmatprep.subr.mxu0 %v3072
        %3664 = vmatpush1.msra.mxu0 %v3071
        %3665 = vmatprep.subr.mxu0 %v3057
        %3666 = vmatpush1.msra.mxu0 %v3056
        %3667 = vmatprep.subr.mxu0 %v3042
        %3668 = vmatpush1.msra.mxu0 %v3041
        %3669 = vmatprep.subr.mxu0 0.0
        %3670 = vmatpush2.msra.mxu0 0.0
        %3671 = vmatprep.subr.mxu0 0.0
        %3672 = vmatpush2.msra.mxu0 0.0
        %3673 = vmatprep.subr.mxu0 0.0
        %3674 = vmatpush2.msra.mxu0 0.0
        %3675 = vmatprep.subr.mxu0 0.0
        %3676 = vmatpush2.msra.mxu0 0.0
        %3677 = vmatprep.subr.mxu0 0.0
        %3678 = vmatpush2.msra.mxu0 0.0
        %3679 = vmatprep.subr.mxu0 0.0
        %3680 = vmatpush2.msra.mxu0 0.0
        %3681 = vmatprep.subr.mxu0 0.0
        %3682 = vmatpush2.msra.mxu0 0.0
        %3683 = vmatprep.subr.mxu0 0.0
        %3684 = vmatpush2.msra.mxu0 0.0
        %3685 = vmatprep.subr.mxu0 0.0
        %3686 = vmatpush2.msra.mxu0 0.0
        %3687 = vmatprep.subr.mxu0 0.0
        %3688 = vmatpush2.msra.mxu0 0.0
        %3689 = vmatprep.subr.mxu0 0.0
        %3690 = vmatpush2.msra.mxu0 0.0
        %3691 = vmatprep.subr.mxu0 0.0
        %3692 = vmatpush2.msra.mxu0 0.0
        %3693 = vmatprep.subr.mxu0 0.0
        %3694 = vmatpush2.msra.mxu0 0.0
        %3695 = vmatprep.subr.mxu0 0.0
        %3696 = vmatpush2.msra.mxu0 0.0
        %3697 = vmatprep.subr.mxu0 0.0
        %3698 = vmatpush2.msra.mxu0 0.0
        %3699 = vmatprep.subr.mxu0 0.0
        %3700 = vmatpush2.msra.mxu0 0.0
        %3701 = vmatprep.mubr.f32.mxu0 0.0
        %3702 = vmatmul.mubr.f32.gmra.mxu0 %v3031
        %v3703 = vpop.f32.mrf.mxu0
        %v3704 = vadd.f32 %v3313, %v3703
        %v3705 = vpop.f32.mrf.mxu0
        %v3706 = vadd.f32 %v3317, %v3705
        %3707 = vdwg.mxu0
        %3708 = vmatprep.subr.mxu0 %v3269
        %3709 = vmatpush1.msra.mxu0 %v3268
        %3710 = vmatprep.subr.mxu0 %v3254
        %3711 = vmatpush1.msra.mxu0 %v3253
        %3712 = vmatprep.subr.mxu0 %v3239
        %3713 = vmatpush1.msra.mxu0 %v3238
        %3714 = vmatprep.subr.mxu0 %v3224
        %3715 = vmatpush1.msra.mxu0 %v3223
        %3716 = vmatprep.subr.mxu0 %v3209
        %3717 = vmatpush1.msra.mxu0 %v3208
        %3718 = vmatprep.subr.mxu0 %v3194
        %3719 = vmatpush1.msra.mxu0 %v3193
        %3720 = vmatprep.subr.mxu0 %v3179
        %3721 = vmatpush1.msra.mxu0 %v3178
        %3722 = vmatprep.subr.mxu0 %v3164
        %3723 = vmatpush1.msra.mxu0 %v3163
        %3724 = vmatprep.subr.mxu0 %v3149
        %3725 = vmatpush1.msra.mxu0 %v3148
        %3726 = vmatprep.subr.mxu0 %v3134
        %3727 = vmatpush1.msra.mxu0 %v3133
        %3728 = vmatprep.subr.mxu0 %v3119
        %3729 = vmatpush1.msra.mxu0 %v3118
        %3730 = vmatprep.subr.mxu0 %v3104
        %3731 = vmatpush1.msra.mxu0 %v3103
        %3732 = vmatprep.subr.mxu0 %v3089
        %3733 = vmatpush1.msra.mxu0 %v3088
        %3734 = vmatprep.subr.mxu0 %v3074
        %3735 = vmatpush1.msra.mxu0 %v3073
        %3736 = vmatprep.subr.mxu0 %v3059
        %3737 = vmatpush1.msra.mxu0 %v3058
        %3738 = vmatprep.subr.mxu0 %v3044
        %3739 = vmatpush1.msra.mxu0 %v3043
        %3740 = vmatprep.subr.mxu0 0.0
        %3741 = vmatpush2.msra.mxu0 0.0
        %3742 = vmatprep.subr.mxu0 0.0
        %3743 = vmatpush2.msra.mxu0 0.0
        %3744 = vmatprep.subr.mxu0 0.0
        %3745 = vmatpush2.msra.mxu0 0.0
        %3746 = vmatprep.subr.mxu0 0.0
        %3747 = vmatpush2.msra.mxu0 0.0
        %3748 = vmatprep.subr.mxu0 0.0
        %3749 = vmatpush2.msra.mxu0 0.0
        %3750 = vmatprep.subr.mxu0 0.0
        %3751 = vmatpush2.msra.mxu0 0.0
        %3752 = vmatprep.subr.mxu0 0.0
        %3753 = vmatpush2.msra.mxu0 0.0
        %3754 = vmatprep.subr.mxu0 0.0
        %3755 = vmatpush2.msra.mxu0 0.0
        %3756 = vmatprep.subr.mxu0 0.0
        %3757 = vmatpush2.msra.mxu0 0.0
        %3758 = vmatprep.subr.mxu0 0.0
        %3759 = vmatpush2.msra.mxu0 0.0
        %3760 = vmatprep.subr.mxu0 0.0
        %3761 = vmatpush2.msra.mxu0 0.0
        %3762 = vmatprep.subr.mxu0 0.0
        %3763 = vmatpush2.msra.mxu0 0.0
        %3764 = vmatprep.subr.mxu0 0.0
        %3765 = vmatpush2.msra.mxu0 0.0
        %3766 = vmatprep.subr.mxu0 0.0
        %3767 = vmatpush2.msra.mxu0 0.0
        %3768 = vmatprep.subr.mxu0 0.0
        %3769 = vmatpush2.msra.mxu0 0.0
        %3770 = vmatprep.subr.mxu0 0.0
        %3771 = vmatpush2.msra.mxu0 0.0
        %3772 = vmatprep.mubr.f32.mxu0 0.0
        %3773 = vmatmul.mubr.f32.gmra.mxu0 %v3031
        %v3774 = vpop.f32.mrf.mxu0
        %v3775 = vadd.f32 %v3321, %v3774
        %v3776 = vpop.f32.mrf.mxu0
        %v3777 = vadd.f32 %v3325, %v3776
        %3778 = vdwg.mxu0
        %3779 = vmatprep.subr.mxu0 %v3271
        %3780 = vmatpush1.msra.mxu0 %v3270
        %3781 = vmatprep.subr.mxu0 %v3256
        %3782 = vmatpush1.msra.mxu0 %v3255
        %3783 = vmatprep.subr.mxu0 %v3241
        %3784 = vmatpush1.msra.mxu0 %v3240
        %3785 = vmatprep.subr.mxu0 %v3226
        %3786 = vmatpush1.msra.mxu0 %v3225
        %3787 = vmatprep.subr.mxu0 %v3211
        %3788 = vmatpush1.msra.mxu0 %v3210
        %3789 = vmatprep.subr.mxu0 %v3196
        %3790 = vmatpush1.msra.mxu0 %v3195
        %3791 = vmatprep.subr.mxu0 %v3181
        %3792 = vmatpush1.msra.mxu0 %v3180
        %3793 = vmatprep.subr.mxu0 %v3166
        %3794 = vmatpush1.msra.mxu0 %v3165
        %3795 = vmatprep.subr.mxu0 %v3151
        %3796 = vmatpush1.msra.mxu0 %v3150
        %3797 = vmatprep.subr.mxu0 %v3136
        %3798 = vmatpush1.msra.mxu0 %v3135
        %3799 = vmatprep.subr.mxu0 %v3121
        %3800 = vmatpush1.msra.mxu0 %v3120
        %3801 = vmatprep.subr.mxu0 %v3106
        %3802 = vmatpush1.msra.mxu0 %v3105
        %3803 = vmatprep.subr.mxu0 %v3091
        %3804 = vmatpush1.msra.mxu0 %v3090
        %3805 = vmatprep.subr.mxu0 %v3076
        %3806 = vmatpush1.msra.mxu0 %v3075
        %3807 = vmatprep.subr.mxu0 %v3061
        %3808 = vmatpush1.msra.mxu0 %v3060
        %3809 = vmatprep.subr.mxu0 %v3046
        %3810 = vmatpush1.msra.mxu0 %v3045
        %3811 = vmatprep.subr.mxu0 0.0
        %3812 = vmatpush2.msra.mxu0 0.0
        %3813 = vmatprep.subr.mxu0 0.0
        %3814 = vmatpush2.msra.mxu0 0.0
        %3815 = vmatprep.subr.mxu0 0.0
        %3816 = vmatpush2.msra.mxu0 0.0
        %3817 = vmatprep.subr.mxu0 0.0
        %3818 = vmatpush2.msra.mxu0 0.0
        %3819 = vmatprep.subr.mxu0 0.0
        %3820 = vmatpush2.msra.mxu0 0.0
        %3821 = vmatprep.subr.mxu0 0.0
        %3822 = vmatpush2.msra.mxu0 0.0
        %3823 = vmatprep.subr.mxu0 0.0
        %3824 = vmatpush2.msra.mxu0 0.0
        %3825 = vmatprep.subr.mxu0 0.0
        %3826 = vmatpush2.msra.mxu0 0.0
        %3827 = vmatprep.subr.mxu0 0.0
        %3828 = vmatpush2.msra.mxu0 0.0
        %3829 = vmatprep.subr.mxu0 0.0
        %3830 = vmatpush2.msra.mxu0 0.0
        %3831 = vmatprep.subr.mxu0 0.0
        %3832 = vmatpush2.msra.mxu0 0.0
        %3833 = vmatprep.subr.mxu0 0.0
        %3834 = vmatpush2.msra.mxu0 0.0
        %3835 = vmatprep.subr.mxu0 0.0
        %3836 = vmatpush2.msra.mxu0 0.0
        %3837 = vmatprep.subr.mxu0 0.0
        %3838 = vmatpush2.msra.mxu0 0.0
        %3839 = vmatprep.subr.mxu0 0.0
        %3840 = vmatpush2.msra.mxu0 0.0
        %3841 = vmatprep.subr.mxu0 0.0
        %3842 = vmatpush2.msra.mxu0 0.0
        %3843 = vmatprep.mubr.f32.mxu0 0.0
        %3844 = vmatmul.mubr.f32.gmra.mxu0 %v3031
        %v3845 = vpop.f32.mrf.mxu0
        %v3846 = vadd.f32 %v3329, %v3845
        %v3847 = vpop.f32.mrf.mxu0
        %v3848 = vadd.f32 %v3333, %v3847
        %3849 = vdwg.mxu0
        %3850 = vmatprep.subr.mxu0 0.0
        %3851 = vmatpush1.msra.mxu0 %v3272
        %3852 = vmatprep.subr.mxu0 0.0
        %3853 = vmatpush1.msra.mxu0 %v3257
        %3854 = vmatprep.subr.mxu0 0.0
        %3855 = vmatpush1.msra.mxu0 %v3242
        %3856 = vmatprep.subr.mxu0 0.0
        %3857 = vmatpush1.msra.mxu0 %v3227
        %3858 = vmatprep.subr.mxu0 0.0
        %3859 = vmatpush1.msra.mxu0 %v3212
        %3860 = vmatprep.subr.mxu0 0.0
        %3861 = vmatpush1.msra.mxu0 %v3197
        %3862 = vmatprep.subr.mxu0 0.0
        %3863 = vmatpush1.msra.mxu0 %v3182
        %3864 = vmatprep.subr.mxu0 0.0
        %3865 = vmatpush1.msra.mxu0 %v3167
        %3866 = vmatprep.subr.mxu0 0.0
        %3867 = vmatpush1.msra.mxu0 %v3152
        %3868 = vmatprep.subr.mxu0 0.0
        %3869 = vmatpush1.msra.mxu0 %v3137
        %3870 = vmatprep.subr.mxu0 0.0
        %3871 = vmatpush1.msra.mxu0 %v3122
        %3872 = vmatprep.subr.mxu0 0.0
        %3873 = vmatpush1.msra.mxu0 %v3107
        %3874 = vmatprep.subr.mxu0 0.0
        %3875 = vmatpush1.msra.mxu0 %v3092
        %3876 = vmatprep.subr.mxu0 0.0
        %3877 = vmatpush1.msra.mxu0 %v3077
        %3878 = vmatprep.subr.mxu0 0.0
        %3879 = vmatpush1.msra.mxu0 %v3062
        %3880 = vmatprep.subr.mxu0 0.0
        %3881 = vmatpush1.msra.mxu0 %v3047
        %3882 = vmatprep.subr.mxu0 0.0
        %3883 = vmatpush2.msra.mxu0 0.0
        %3884 = vmatprep.subr.mxu0 0.0
        %3885 = vmatpush2.msra.mxu0 0.0
        %3886 = vmatprep.subr.mxu0 0.0
        %3887 = vmatpush2.msra.mxu0 0.0
        %3888 = vmatprep.subr.mxu0 0.0
        %3889 = vmatpush2.msra.mxu0 0.0
        %3890 = vmatprep.subr.mxu0 0.0
        %3891 = vmatpush2.msra.mxu0 0.0
        %3892 = vmatprep.subr.mxu0 0.0
        %3893 = vmatpush2.msra.mxu0 0.0
        %3894 = vmatprep.subr.mxu0 0.0
        %3895 = vmatpush2.msra.mxu0 0.0
        %3896 = vmatprep.subr.mxu0 0.0
        %3897 = vmatpush2.msra.mxu0 0.0
        %3898 = vmatprep.subr.mxu0 0.0
        %3899 = vmatpush2.msra.mxu0 0.0
        %3900 = vmatprep.subr.mxu0 0.0
        %3901 = vmatpush2.msra.mxu0 0.0
        %3902 = vmatprep.subr.mxu0 0.0
        %3903 = vmatpush2.msra.mxu0 0.0
        %3904 = vmatprep.subr.mxu0 0.0
        %3905 = vmatpush2.msra.mxu0 0.0
        %3906 = vmatprep.subr.mxu0 0.0
        %3907 = vmatpush2.msra.mxu0 0.0
        %3908 = vmatprep.subr.mxu0 0.0
        %3909 = vmatpush2.msra.mxu0 0.0
        %3910 = vmatprep.subr.mxu0 0.0
        %3911 = vmatpush2.msra.mxu0 0.0
        %3912 = vmatprep.subr.mxu0 0.0
        %3913 = vmatpush2.msra.mxu0 0.0
        %3914 = vmatprep.mubr.f32.mxu0 0.0
        %3915 = vmatmul.mubr.f32.gmra.mxu0 %v3031
        %v3916 = vpop.f32.mrf.mxu0
        %v3917 = vadd.f32 %v3337, %v3916
        %v3918 = vpop.f32.mrf.mxu0
        %3919 = vdwg.mxu0
        %3920 = vmatprep.subr.mxu0 0.0
        %3921 = vmatpush1.xpose.msra.mxu0 0.0
        %3922 = vmatprep.subr.mxu0 0.0
        %3923 = vmatpush1.xpose.msra.mxu0 0.0
        %3924 = vmatprep.subr.mxu0 0.0
        %3925 = vmatpush1.xpose.msra.mxu0 0.0
        %3926 = vmatprep.subr.mxu0 0.0
        %3927 = vmatpush1.xpose.msra.mxu0 0.0
        %3928 = vmatprep.subr.mxu0 0.0
        %3929 = vmatpush1.xpose.msra.mxu0 0.0
        %3930 = vmatprep.subr.mxu0 0.0
        %3931 = vmatpush1.xpose.msra.mxu0 0.0
        %3932 = vmatprep.subr.mxu0 0.0
        %3933 = vmatpush1.xpose.msra.mxu0 0.0
        %3934 = vmatprep.subr.mxu0 0.0
        %3935 = vmatpush1.xpose.msra.mxu0 0.0
        %3936 = vmatprep.subr.mxu0 0.0
        %3937 = vmatpush1.xpose.msra.mxu0 0.0
        %3938 = vmatprep.subr.mxu0 0.0
        %3939 = vmatpush1.xpose.msra.mxu0 0.0
        %3940 = vmatprep.subr.mxu0 0.0
        %3941 = vmatpush1.xpose.msra.mxu0 0.0
        %3942 = vmatprep.subr.mxu0 0.0
        %3943 = vmatpush1.xpose.msra.mxu0 0.0
        %3944 = vmatprep.subr.mxu0 0.0
        %3945 = vmatpush1.xpose.msra.mxu0 0.0
        %3946 = vmatprep.subr.mxu0 0.0
        %3947 = vmatpush1.xpose.msra.mxu0 0.0
        %3948 = vmatprep.subr.mxu0 0.0
        %3949 = vmatpush1.xpose.msra.mxu0 0.0
        %3950 = vmatprep.subr.mxu0 0.0
        %3951 = vmatpush1.xpose.msra.mxu0 %v3564
        %3952 = vmatprep.subr.mxu0 0.0
        %3953 = vmatpush2.xpose.msra.mxu0 0.0
        %3954 = vmatprep.subr.mxu0 0.0
        %3955 = vmatpush2.xpose.msra.mxu0 0.0
        %3956 = vmatprep.subr.mxu0 0.0
        %3957 = vmatpush2.xpose.msra.mxu0 0.0
        %3958 = vmatprep.subr.mxu0 0.0
        %3959 = vmatpush2.xpose.msra.mxu0 0.0
        %3960 = vmatprep.subr.mxu0 0.0
        %3961 = vmatpush2.xpose.msra.mxu0 0.0
        %3962 = vmatprep.subr.mxu0 0.0
        %3963 = vmatpush2.xpose.msra.mxu0 0.0
        %3964 = vmatprep.subr.mxu0 0.0
        %3965 = vmatpush2.xpose.msra.mxu0 0.0
        %3966 = vmatprep.subr.mxu0 0.0
        %3967 = vmatpush2.xpose.msra.mxu0 0.0
        %3968 = vmatprep.subr.mxu0 0.0
        %3969 = vmatpush2.xpose.msra.mxu0 0.0
        %3970 = vmatprep.subr.mxu0 0.0
        %3971 = vmatpush2.xpose.msra.mxu0 0.0
        %3972 = vmatprep.subr.mxu0 0.0
        %3973 = vmatpush2.xpose.msra.mxu0 0.0
        %3974 = vmatprep.subr.mxu0 0.0
        %3975 = vmatpush2.xpose.msra.mxu0 0.0
        %3976 = vmatprep.subr.mxu0 0.0
        %3977 = vmatpush2.xpose.msra.mxu0 0.0
        %3978 = vmatprep.subr.mxu0 0.0
        %3979 = vmatpush2.xpose.msra.mxu0 0.0
        %3980 = vmatprep.subr.mxu0 0.0
        %3981 = vmatpush2.xpose.msra.mxu0 0.0
        %3982 = vmatprep.subr.mxu0 0.0
        %3983 = vmatpush2.xpose.msra.mxu0 0.0
        %3984 = vmatprep.mubr.f32.mxu0 0.0
        %3985 = vmatmul.mubr.f32.gmra.mxu0 %v3420
        %v3986 = vpop.f32.mrf.mxu0
        %v3987 = vadd.f32 0.0, %v3986
        %v3988 = vpop.f32.mrf.mxu0
        %3989 = vdwg.mxu0
        %3990 = vmatprep.subr.mxu0 0.0
        %3991 = vmatpush1.xpose.msra.mxu0 0.0
        %3992 = vmatprep.subr.mxu0 0.0
        %3993 = vmatpush1.xpose.msra.mxu0 0.0
        %3994 = vmatprep.subr.mxu0 0.0
        %3995 = vmatpush1.xpose.msra.mxu0 0.0
        %3996 = vmatprep.subr.mxu0 0.0
        %3997 = vmatpush1.xpose.msra.mxu0 0.0
        %3998 = vmatprep.subr.mxu0 0.0
        %3999 = vmatpush1.xpose.msra.mxu0 0.0
        %4000 = vmatprep.subr.mxu0 0.0
        %4001 = vmatpush1.xpose.msra.mxu0 0.0
        %4002 = vmatprep.subr.mxu0 0.0
        %4003 = vmatpush1.xpose.msra.mxu0 0.0
        %4004 = vmatprep.subr.mxu0 0.0
        %4005 = vmatpush1.xpose.msra.mxu0 0.0
        %4006 = vmatprep.subr.mxu0 0.0
        %4007 = vmatpush1.xpose.msra.mxu0 0.0
        %4008 = vmatprep.subr.mxu0 0.0
        %4009 = vmatpush1.xpose.msra.mxu0 0.0
        %4010 = vmatprep.subr.mxu0 0.0
        %4011 = vmatpush1.xpose.msra.mxu0 0.0
        %4012 = vmatprep.subr.mxu0 0.0
        %4013 = vmatpush1.xpose.msra.mxu0 0.0
        %4014 = vmatprep.subr.mxu0 0.0
        %4015 = vmatpush1.xpose.msra.mxu0 0.0
        %4016 = vmatprep.subr.mxu0 0.0
        %4017 = vmatpush1.xpose.msra.mxu0 0.0
        %4018 = vmatprep.subr.mxu0 0.0
        %4019 = vmatpush1.xpose.msra.mxu0 0.0
        %4020 = vmatprep.subr.mxu0 0.0
        %4021 = vmatpush1.xpose.msra.mxu0 %v3633
        %4022 = vmatprep.subr.mxu0 0.0
        %4023 = vmatpush2.xpose.msra.mxu0 0.0
        %4024 = vmatprep.subr.mxu0 0.0
        %4025 = vmatpush2.xpose.msra.mxu0 0.0
        %4026 = vmatprep.subr.mxu0 0.0
        %4027 = vmatpush2.xpose.msra.mxu0 0.0
        %4028 = vmatprep.subr.mxu0 0.0
        %4029 = vmatpush2.xpose.msra.mxu0 0.0
        %4030 = vmatprep.subr.mxu0 0.0
        %4031 = vmatpush2.xpose.msra.mxu0 0.0
        %4032 = vmatprep.subr.mxu0 0.0
        %4033 = vmatpush2.xpose.msra.mxu0 0.0
        %4034 = vmatprep.subr.mxu0 0.0
        %4035 = vmatpush2.xpose.msra.mxu0 0.0
        %4036 = vmatprep.subr.mxu0 0.0
        %4037 = vmatpush2.xpose.msra.mxu0 0.0
        %4038 = vmatprep.subr.mxu0 0.0
        %4039 = vmatpush2.xpose.msra.mxu0 0.0
        %4040 = vmatprep.subr.mxu0 0.0
        %4041 = vmatpush2.xpose.msra.mxu0 0.0
        %4042 = vmatprep.subr.mxu0 0.0
        %4043 = vmatpush2.xpose.msra.mxu0 0.0
        %4044 = vmatprep.subr.mxu0 0.0
        %4045 = vmatpush2.xpose.msra.mxu0 0.0
        %4046 = vmatprep.subr.mxu0 0.0
        %4047 = vmatpush2.xpose.msra.mxu0 0.0
        %4048 = vmatprep.subr.mxu0 0.0
        %4049 = vmatpush2.xpose.msra.mxu0 0.0
        %4050 = vmatprep.subr.mxu0 0.0
        %4051 = vmatpush2.xpose.msra.mxu0 0.0
        %4052 = vmatprep.subr.mxu0 0.0
        %4053 = vmatpush2.xpose.msra.mxu0 0.0
        %4054 = vmatprep.mubr.f32.mxu0 0.0
        %4055 = vmatmul.mubr.f32.gmra.mxu0 %v3422
        %v4056 = vpop.f32.mrf.mxu0
        %v4057 = vadd.f32 0.0, %v4056
        %v4058 = vpop.f32.mrf.mxu0
        %4059 = vdwg.mxu0
        %4060 = vmatprep.subr.mxu0 0.0
        %4061 = vmatpush1.xpose.msra.mxu0 0.0
        %4062 = vmatprep.subr.mxu0 0.0
        %4063 = vmatpush1.xpose.msra.mxu0 0.0
        %4064 = vmatprep.subr.mxu0 0.0
        %4065 = vmatpush1.xpose.msra.mxu0 0.0
        %4066 = vmatprep.subr.mxu0 0.0
        %4067 = vmatpush1.xpose.msra.mxu0 0.0
        %4068 = vmatprep.subr.mxu0 0.0
        %4069 = vmatpush1.xpose.msra.mxu0 0.0
        %4070 = vmatprep.subr.mxu0 0.0
        %4071 = vmatpush1.xpose.msra.mxu0 0.0
        %4072 = vmatprep.subr.mxu0 0.0
        %4073 = vmatpush1.xpose.msra.mxu0 0.0
        %4074 = vmatprep.subr.mxu0 0.0
        %4075 = vmatpush1.xpose.msra.mxu0 0.0
        %4076 = vmatprep.subr.mxu0 0.0
        %4077 = vmatpush1.xpose.msra.mxu0 0.0
        %4078 = vmatprep.subr.mxu0 0.0
        %4079 = vmatpush1.xpose.msra.mxu0 0.0
        %4080 = vmatprep.subr.mxu0 0.0
        %4081 = vmatpush1.xpose.msra.mxu0 0.0
        %4082 = vmatprep.subr.mxu0 0.0
        %4083 = vmatpush1.xpose.msra.mxu0 0.0
        %4084 = vmatprep.subr.mxu0 0.0
        %4085 = vmatpush1.xpose.msra.mxu0 0.0
        %4086 = vmatprep.subr.mxu0 0.0
        %4087 = vmatpush1.xpose.msra.mxu0 0.0
        %4088 = vmatprep.subr.mxu0 0.0
        %4089 = vmatpush1.xpose.msra.mxu0 0.0
        %4090 = vmatprep.subr.mxu0 0.0
        %4091 = vmatpush1.xpose.msra.mxu0 %v3635
        %4092 = vmatprep.subr.mxu0 0.0
        %4093 = vmatpush2.xpose.msra.mxu0 0.0
        %4094 = vmatprep.subr.mxu0 0.0
        %4095 = vmatpush2.xpose.msra.mxu0 0.0
        %4096 = vmatprep.subr.mxu0 0.0
        %4097 = vmatpush2.xpose.msra.mxu0 0.0
        %4098 = vmatprep.subr.mxu0 0.0
        %4099 = vmatpush2.xpose.msra.mxu0 0.0
        %4100 = vmatprep.subr.mxu0 0.0
        %4101 = vmatpush2.xpose.msra.mxu0 0.0
        %4102 = vmatprep.subr.mxu0 0.0
        %4103 = vmatpush2.xpose.msra.mxu0 0.0
        %4104 = vmatprep.subr.mxu0 0.0
        %4105 = vmatpush2.xpose.msra.mxu0 0.0
        %4106 = vmatprep.subr.mxu0 0.0
        %4107 = vmatpush2.xpose.msra.mxu0 0.0
        %4108 = vmatprep.subr.mxu0 0.0
        %4109 = vmatpush2.xpose.msra.mxu0 0.0
        %4110 = vmatprep.subr.mxu0 0.0
        %4111 = vmatpush2.xpose.msra.mxu0 0.0
        %4112 = vmatprep.subr.mxu0 0.0
        %4113 = vmatpush2.xpose.msra.mxu0 0.0
        %4114 = vmatprep.subr.mxu0 0.0
        %4115 = vmatpush2.xpose.msra.mxu0 0.0
        %4116 = vmatprep.subr.mxu0 0.0
        %4117 = vmatpush2.xpose.msra.mxu0 0.0
        %4118 = vmatprep.subr.mxu0 0.0
        %4119 = vmatpush2.xpose.msra.mxu0 0.0
        %4120 = vmatprep.subr.mxu0 0.0
        %4121 = vmatpush2.xpose.msra.mxu0 0.0
        %4122 = vmatprep.subr.mxu0 0.0
        %4123 = vmatpush2.xpose.msra.mxu0 0.0
        %4124 = vmatprep.mubr.f32.mxu0 0.0
        %4125 = vmatmul.mubr.f32.gmra.mxu0 %v3491
        %v4126 = vpop.f32.mrf.mxu0
        %v4127 = vadd.f32 0.0, %v4126
        %v4128 = vpop.f32.mrf.mxu0
        %4129 = vdwg.mxu0
        %4130 = vmatprep.subr.mxu0 0.0
        %4131 = vmatpush1.xpose.msra.mxu0 0.0
        %4132 = vmatprep.subr.mxu0 0.0
        %4133 = vmatpush1.xpose.msra.mxu0 0.0
        %4134 = vmatprep.subr.mxu0 0.0
        %4135 = vmatpush1.xpose.msra.mxu0 0.0
        %4136 = vmatprep.subr.mxu0 0.0
        %4137 = vmatpush1.xpose.msra.mxu0 0.0
        %4138 = vmatprep.subr.mxu0 0.0
        %4139 = vmatpush1.xpose.msra.mxu0 0.0
        %4140 = vmatprep.subr.mxu0 0.0
        %4141 = vmatpush1.xpose.msra.mxu0 0.0
        %4142 = vmatprep.subr.mxu0 0.0
        %4143 = vmatpush1.xpose.msra.mxu0 0.0
        %4144 = vmatprep.subr.mxu0 0.0
        %4145 = vmatpush1.xpose.msra.mxu0 0.0
        %4146 = vmatprep.subr.mxu0 0.0
        %4147 = vmatpush1.xpose.msra.mxu0 0.0
        %4148 = vmatprep.subr.mxu0 0.0
        %4149 = vmatpush1.xpose.msra.mxu0 0.0
        %4150 = vmatprep.subr.mxu0 0.0
        %4151 = vmatpush1.xpose.msra.mxu0 0.0
        %4152 = vmatprep.subr.mxu0 0.0
        %4153 = vmatpush1.xpose.msra.mxu0 0.0
        %4154 = vmatprep.subr.mxu0 0.0
        %4155 = vmatpush1.xpose.msra.mxu0 0.0
        %4156 = vmatprep.subr.mxu0 0.0
        %4157 = vmatpush1.xpose.msra.mxu0 0.0
        %4158 = vmatprep.subr.mxu0 0.0
        %4159 = vmatpush1.xpose.msra.mxu0 0.0
        %4160 = vmatprep.subr.mxu0 0.0
        %4161 = vmatpush1.xpose.msra.mxu0 %v3704
        %4162 = vmatprep.subr.mxu0 0.0
        %4163 = vmatpush2.xpose.msra.mxu0 0.0
        %4164 = vmatprep.subr.mxu0 0.0
        %4165 = vmatpush2.xpose.msra.mxu0 0.0
        %4166 = vmatprep.subr.mxu0 0.0
        %4167 = vmatpush2.xpose.msra.mxu0 0.0
        %4168 = vmatprep.subr.mxu0 0.0
        %4169 = vmatpush2.xpose.msra.mxu0 0.0
        %4170 = vmatprep.subr.mxu0 0.0
        %4171 = vmatpush2.xpose.msra.mxu0 0.0
        %4172 = vmatprep.subr.mxu0 0.0
        %4173 = vmatpush2.xpose.msra.mxu0 0.0
        %4174 = vmatprep.subr.mxu0 0.0
        %4175 = vmatpush2.xpose.msra.mxu0 0.0
        %4176 = vmatprep.subr.mxu0 0.0
        %4177 = vmatpush2.xpose.msra.mxu0 0.0
        %4178 = vmatprep.subr.mxu0 0.0
        %4179 = vmatpush2.xpose.msra.mxu0 0.0
        %4180 = vmatprep.subr.mxu0 0.0
        %4181 = vmatpush2.xpose.msra.mxu0 0.0
        %4182 = vmatprep.subr.mxu0 0.0
        %4183 = vmatpush2.xpose.msra.mxu0 0.0
        %4184 = vmatprep.subr.mxu0 0.0
        %4185 = vmatpush2.xpose.msra.mxu0 0.0
        %4186 = vmatprep.subr.mxu0 0.0
        %4187 = vmatpush2.xpose.msra.mxu0 0.0
        %4188 = vmatprep.subr.mxu0 0.0
        %4189 = vmatpush2.xpose.msra.mxu0 0.0
        %4190 = vmatprep.subr.mxu0 0.0
        %4191 = vmatpush2.xpose.msra.mxu0 0.0
        %4192 = vmatprep.subr.mxu0 0.0
        %4193 = vmatpush2.xpose.msra.mxu0 0.0
        %4194 = vmatprep.mubr.f32.mxu0 0.0
        %4195 = vmatmul.mubr.f32.gmra.mxu0 %v3493
        %v4196 = vpop.f32.mrf.mxu0
        %v4197 = vadd.f32 0.0, %v4196
        %v4198 = vpop.f32.mrf.mxu0
        %4199 = vdwg.mxu0
        %4200 = vmatprep.subr.mxu0 0.0
        %4201 = vmatpush1.xpose.msra.mxu0 0.0
        %4202 = vmatprep.subr.mxu0 0.0
        %4203 = vmatpush1.xpose.msra.mxu0 0.0
        %4204 = vmatprep.subr.mxu0 0.0
        %4205 = vmatpush1.xpose.msra.mxu0 0.0
        %4206 = vmatprep.subr.mxu0 0.0
        %4207 = vmatpush1.xpose.msra.mxu0 0.0
        %4208 = vmatprep.subr.mxu0 0.0
        %4209 = vmatpush1.xpose.msra.mxu0 0.0
        %4210 = vmatprep.subr.mxu0 0.0
        %4211 = vmatpush1.xpose.msra.mxu0 0.0
        %4212 = vmatprep.subr.mxu0 0.0
        %4213 = vmatpush1.xpose.msra.mxu0 0.0
        %4214 = vmatprep.subr.mxu0 0.0
        %4215 = vmatpush1.xpose.msra.mxu0 0.0
        %4216 = vmatprep.subr.mxu0 0.0
        %4217 = vmatpush1.xpose.msra.mxu0 0.0
        %4218 = vmatprep.subr.mxu0 0.0
        %4219 = vmatpush1.xpose.msra.mxu0 0.0
        %4220 = vmatprep.subr.mxu0 0.0
        %4221 = vmatpush1.xpose.msra.mxu0 0.0
        %4222 = vmatprep.subr.mxu0 0.0
        %4223 = vmatpush1.xpose.msra.mxu0 0.0
        %4224 = vmatprep.subr.mxu0 0.0
        %4225 = vmatpush1.xpose.msra.mxu0 0.0
        %4226 = vmatprep.subr.mxu0 0.0
        %4227 = vmatpush1.xpose.msra.mxu0 0.0
        %4228 = vmatprep.subr.mxu0 0.0
        %4229 = vmatpush1.xpose.msra.mxu0 0.0
        %4230 = vmatprep.subr.mxu0 0.0
        %4231 = vmatpush1.xpose.msra.mxu0 %v3706
        %4232 = vmatprep.subr.mxu0 0.0
        %4233 = vmatpush2.xpose.msra.mxu0 0.0
        %4234 = vmatprep.subr.mxu0 0.0
        %4235 = vmatpush2.xpose.msra.mxu0 0.0
        %4236 = vmatprep.subr.mxu0 0.0
        %4237 = vmatpush2.xpose.msra.mxu0 0.0
        %4238 = vmatprep.subr.mxu0 0.0
        %4239 = vmatpush2.xpose.msra.mxu0 0.0
        %4240 = vmatprep.subr.mxu0 0.0
        %4241 = vmatpush2.xpose.msra.mxu0 0.0
        %4242 = vmatprep.subr.mxu0 0.0
        %4243 = vmatpush2.xpose.msra.mxu0 0.0
        %4244 = vmatprep.subr.mxu0 0.0
        %4245 = vmatpush2.xpose.msra.mxu0 0.0
        %4246 = vmatprep.subr.mxu0 0.0
        %4247 = vmatpush2.xpose.msra.mxu0 0.0
        %4248 = vmatprep.subr.mxu0 0.0
        %4249 = vmatpush2.xpose.msra.mxu0 0.0
        %4250 = vmatprep.subr.mxu0 0.0
        %4251 = vmatpush2.xpose.msra.mxu0 0.0
        %4252 = vmatprep.subr.mxu0 0.0
        %4253 = vmatpush2.xpose.msra.mxu0 0.0
        %4254 = vmatprep.subr.mxu0 0.0
        %4255 = vmatpush2.xpose.msra.mxu0 0.0
        %4256 = vmatprep.subr.mxu0 0.0
        %4257 = vmatpush2.xpose.msra.mxu0 0.0
        %4258 = vmatprep.subr.mxu0 0.0
        %4259 = vmatpush2.xpose.msra.mxu0 0.0
        %4260 = vmatprep.subr.mxu0 0.0
        %4261 = vmatpush2.xpose.msra.mxu0 0.0
        %4262 = vmatprep.subr.mxu0 0.0
        %4263 = vmatpush2.xpose.msra.mxu0 0.0
        %4264 = vmatprep.mubr.f32.mxu0 0.0
        %4265 = vmatmul.mubr.f32.gmra.mxu0 %v3562
        %v4266 = vpop.f32.mrf.mxu0
        %v4267 = vadd.f32 0.0, %v4266
        %v4268 = vpop.f32.mrf.mxu0
        %4269 = vdwg.mxu0
        %v4270 = vsel %vm2028, %v3987, -inf
        %4271 = vmax.xlane.f32.xlu0 %v4270
        %v4272 = vpop.xlane.xlu0 %4271
        %v4273 = vsel %vm2028, %v4057, -inf
        %4274 = vmax.xlane.f32.xlu0 %v4273
        %v4275 = vpop.xlane.xlu0 %4274
        %v4276 = vsel %vm2028, %v4127, -inf
        %4277 = vmax.xlane.f32.xlu0 %v4276
        %v4278 = vpop.xlane.xlu0 %4277
        %v4279 = vsel %vm2028, %v4197, -inf
        %4280 = vmax.xlane.f32.xlu0 %v4279
        %v4281 = vpop.xlane.xlu0 %4280
        %v4282 = vsel %vm2028, %v4267, -inf
        %4283 = vmax.xlane.f32.xlu0 %v4282
        %v4284 = vpop.xlane.xlu0 %4283
        %v4285 = vsub.f32 %v3987, %v4272
        %v4286 = vsub.f32 %v4057, %v4275
        %v4287 = vsub.f32 %v4127, %v4278
        %v4288 = vsub.f32 %v4197, %v4281
        %v4289 = vsub.f32 %v4267, %v4284
        %v4290 = vmul.f32 %v4285, 1.442695
        %v4291 = vpow.pop %v4290
        %v4292 = vmul.f32 %v4286, 1.442695
        %v4293 = vpow.pop %v4292
        %v4294 = vmul.f32 %v4287, 1.442695
        %v4295 = vpow.pop %v4294
        %v4296 = vmul.f32 %v4288, 1.442695
        %v4297 = vpow.pop %v4296
        %v4298 = vmul.f32 %v4289, 1.442695
        %v4299 = vpow.pop %v4298
        %v4300 = vsel %vm2028, %v4291, 0.0
        %4301 = vadd.xlane.f32.xlu0 %v4300
        %v4302 = vpop.xlane.xlu0 %4301
        %v4303 = vsel %vm2028, %v4293, 0.0
        %4304 = vadd.xlane.f32.xlu0 %v4303
        %v4305 = vpop.xlane.xlu0 %4304
        %v4306 = vsel %vm2028, %v4295, 0.0
        %4307 = vadd.xlane.f32.xlu0 %v4306
        %v4308 = vpop.xlane.xlu0 %4307
        %v4309 = vsel %vm2028, %v4297, 0.0
        %4310 = vadd.xlane.f32.xlu0 %v4309
        %v4311 = vpop.xlane.xlu0 %4310
        %v4312 = vsel %vm2028, %v4299, 0.0
        %4313 = vadd.xlane.f32.xlu0 %v4312
        %v4314 = vpop.xlane.xlu0 %4313
        %v4315 = vrcp.pop %v4302
        %v4316 = vrcp.pop %v4305
        %v4317 = vrcp.pop %v4308
        %v4318 = vrcp.pop %v4311
        %v4319 = vrcp.pop %v4314
        %v4320 = vmul.f32 %v4291, %v4315
        %v4321 = vmul.f32 %v4293, %v4316
        %v4322 = vmul.f32 %v4295, %v4317
        %v4323 = vmul.f32 %v4297, %v4318
        %v4324 = vmul.f32 %v4299, %v4319
        %v4326 = vsel %vm2028, %v4320, 0
        %4328 = vmatprep.subr.mxu0 0.0
        %4329 = vmatpush1.msra.mxu0 0.0
        %4330 = vmatprep.subr.mxu0 0.0
        %4331 = vmatpush1.msra.mxu0 0.0
        %4332 = vmatprep.subr.mxu0 0.0
        %4333 = vmatpush1.msra.mxu0 0.0
        %4334 = vmatprep.subr.mxu0 0.0
        %4335 = vmatpush1.msra.mxu0 0.0
        %4336 = vmatprep.subr.mxu0 0.0
        %4337 = vmatpush1.msra.mxu0 0.0
        %4338 = vmatprep.subr.mxu0 0.0
        %4339 = vmatpush1.msra.mxu0 0.0
        %4340 = vmatprep.subr.mxu0 0.0
        %4341 = vmatpush1.msra.mxu0 0.0
        %4342 = vmatprep.subr.mxu0 0.0
        %4343 = vmatpush1.msra.mxu0 0.0
        %4344 = vmatprep.subr.mxu0 0.0
        %4345 = vmatpush1.msra.mxu0 0.0
        %4346 = vmatprep.subr.mxu0 0.0
        %4347 = vmatpush1.msra.mxu0 0.0
        %4348 = vmatprep.subr.mxu0 0.0
        %4349 = vmatpush1.msra.mxu0 0.0
        %4350 = vmatprep.subr.mxu0 0.0
        %4351 = vmatpush1.msra.mxu0 0.0
        %4352 = vmatprep.subr.mxu0 0.0
        %4353 = vmatpush1.msra.mxu0 0.0
        %4354 = vmatprep.subr.mxu0 0.0
        %4355 = vmatpush1.msra.mxu0 0.0
        %4356 = vmatprep.subr.mxu0 0.0
        %4357 = vmatpush1.msra.mxu0 0.0
        %4358 = vmatprep.subr.mxu0 0.0
        %4359 = vmatpush1.msra.mxu0 %v3775
        %4360 = vmatprep.subr.mxu0 0.0
        %4361 = vmatpush2.msra.mxu0 0.0
        %4362 = vmatprep.subr.mxu0 0.0
        %4363 = vmatpush2.msra.mxu0 0.0
        %4364 = vmatprep.subr.mxu0 0.0
        %4365 = vmatpush2.msra.mxu0 0.0
        %4366 = vmatprep.subr.mxu0 0.0
        %4367 = vmatpush2.msra.mxu0 0.0
        %4368 = vmatprep.subr.mxu0 0.0
        %4369 = vmatpush2.msra.mxu0 0.0
        %4370 = vmatprep.subr.mxu0 0.0
        %4371 = vmatpush2.msra.mxu0 0.0
        %4372 = vmatprep.subr.mxu0 0.0
        %4373 = vmatpush2.msra.mxu0 0.0
        %4374 = vmatprep.subr.mxu0 0.0
        %4375 = vmatpush2.msra.mxu0 0.0
        %4376 = vmatprep.subr.mxu0 0.0
        %4377 = vmatpush2.msra.mxu0 0.0
        %4378 = vmatprep.subr.mxu0 0.0
        %4379 = vmatpush2.msra.mxu0 0.0
        %4380 = vmatprep.subr.mxu0 0.0
        %4381 = vmatpush2.msra.mxu0 0.0
        %4382 = vmatprep.subr.mxu0 0.0
        %4383 = vmatpush2.msra.mxu0 0.0
        %4384 = vmatprep.subr.mxu0 0.0
        %4385 = vmatpush2.msra.mxu0 0.0
        %4386 = vmatprep.subr.mxu0 0.0
        %4387 = vmatpush2.msra.mxu0 0.0
        %4388 = vmatprep.subr.mxu0 0.0
        %4389 = vmatpush2.msra.mxu0 0.0
        %4390 = vmatprep.subr.mxu0 0.0
        %4391 = vmatpush2.msra.mxu0 0.0
        %4392 = vmatprep.mubr.f32.mxu0 0.0
        %4393 = vmatmul.mubr.f32.gmra.mxu0 %v4326
        %v4394 = vpop.f32.mrf.mxu0
        %v4395 = vadd.f32 0.0, %v4394
        %v4396 = vpop.f32.mrf.mxu0
        %4397 = vdwg.mxu0
        %v4399 = vsel %vm2028, %v4321, 0
        %4401 = vmatprep.subr.mxu0 0.0
        %4402 = vmatpush1.msra.mxu0 0.0
        %4403 = vmatprep.subr.mxu0 0.0
        %4404 = vmatpush1.msra.mxu0 0.0
        %4405 = vmatprep.subr.mxu0 0.0
        %4406 = vmatpush1.msra.mxu0 0.0
        %4407 = vmatprep.subr.mxu0 0.0
        %4408 = vmatpush1.msra.mxu0 0.0
        %4409 = vmatprep.subr.mxu0 0.0
        %4410 = vmatpush1.msra.mxu0 0.0
        %4411 = vmatprep.subr.mxu0 0.0
        %4412 = vmatpush1.msra.mxu0 0.0
        %4413 = vmatprep.subr.mxu0 0.0
        %4414 = vmatpush1.msra.mxu0 0.0
        %4415 = vmatprep.subr.mxu0 0.0
        %4416 = vmatpush1.msra.mxu0 0.0
        %4417 = vmatprep.subr.mxu0 0.0
        %4418 = vmatpush1.msra.mxu0 0.0
        %4419 = vmatprep.subr.mxu0 0.0
        %4420 = vmatpush1.msra.mxu0 0.0
        %4421 = vmatprep.subr.mxu0 0.0
        %4422 = vmatpush1.msra.mxu0 0.0
        %4423 = vmatprep.subr.mxu0 0.0
        %4424 = vmatpush1.msra.mxu0 0.0
        %4425 = vmatprep.subr.mxu0 0.0
        %4426 = vmatpush1.msra.mxu0 0.0
        %4427 = vmatprep.subr.mxu0 0.0
        %4428 = vmatpush1.msra.mxu0 0.0
        %4429 = vmatprep.subr.mxu0 0.0
        %4430 = vmatpush1.msra.mxu0 0.0
        %4431 = vmatprep.subr.mxu0 0.0
        %4432 = vmatpush1.msra.mxu0 %v3777
        %4433 = vmatprep.subr.mxu0 0.0
        %4434 = vmatpush2.msra.mxu0 0.0
        %4435 = vmatprep.subr.mxu0 0.0
        %4436 = vmatpush2.msra.mxu0 0.0
        %4437 = vmatprep.subr.mxu0 0.0
        %4438 = vmatpush2.msra.mxu0 0.0
        %4439 = vmatprep.subr.mxu0 0.0
        %4440 = vmatpush2.msra.mxu0 0.0
        %4441 = vmatprep.subr.mxu0 0.0
        %4442 = vmatpush2.msra.mxu0 0.0
        %4443 = vmatprep.subr.mxu0 0.0
        %4444 = vmatpush2.msra.mxu0 0.0
        %4445 = vmatprep.subr.mxu0 0.0
        %4446 = vmatpush2.msra.mxu0 0.0
        %4447 = vmatprep.subr.mxu0 0.0
        %4448 = vmatpush2.msra.mxu0 0.0
        %4449 = vmatprep.subr.mxu0 0.0
        %4450 = vmatpush2.msra.mxu0 0.0
        %4451 = vmatprep.subr.mxu0 0.0
        %4452 = vmatpush2.msra.mxu0 0.0
        %4453 = vmatprep.subr.mxu0 0.0
        %4454 = vmatpush2.msra.mxu0 0.0
        %4455 = vmatprep.subr.mxu0 0.0
        %4456 = vmatpush2.msra.mxu0 0.0
        %4457 = vmatprep.subr.mxu0 0.0
        %4458 = vmatpush2.msra.mxu0 0.0
        %4459 = vmatprep.subr.mxu0 0.0
        %4460 = vmatpush2.msra.mxu0 0.0
        %4461 = vmatprep.subr.mxu0 0.0
        %4462 = vmatpush2.msra.mxu0 0.0
        %4463 = vmatprep.subr.mxu0 0.0
        %4464 = vmatpush2.msra.mxu0 0.0
        %4465 = vmatprep.mubr.f32.mxu0 0.0
        %4466 = vmatmul.mubr.f32.gmra.mxu0 %v4399
        %v4467 = vpop.f32.mrf.mxu0
        %v4468 = vadd.f32 0.0, %v4467
        %v4469 = vpop.f32.mrf.mxu0
        %4470 = vdwg.mxu0
        %v4472 = vsel %vm2028, %v4322, 0
        %4474 = vmatprep.subr.mxu0 0.0
        %4475 = vmatpush1.msra.mxu0 0.0
        %4476 = vmatprep.subr.mxu0 0.0
        %4477 = vmatpush1.msra.mxu0 0.0
        %4478 = vmatprep.subr.mxu0 0.0
        %4479 = vmatpush1.msra.mxu0 0.0
        %4480 = vmatprep.subr.mxu0 0.0
        %4481 = vmatpush1.msra.mxu0 0.0
        %4482 = vmatprep.subr.mxu0 0.0
        %4483 = vmatpush1.msra.mxu0 0.0
        %4484 = vmatprep.subr.mxu0 0.0
        %4485 = vmatpush1.msra.mxu0 0.0
        %4486 = vmatprep.subr.mxu0 0.0
        %4487 = vmatpush1.msra.mxu0 0.0
        %4488 = vmatprep.subr.mxu0 0.0
        %4489 = vmatpush1.msra.mxu0 0.0
        %4490 = vmatprep.subr.mxu0 0.0
        %4491 = vmatpush1.msra.mxu0 0.0
        %4492 = vmatprep.subr.mxu0 0.0
        %4493 = vmatpush1.msra.mxu0 0.0
        %4494 = vmatprep.subr.mxu0 0.0
        %4495 = vmatpush1.msra.mxu0 0.0
        %4496 = vmatprep.subr.mxu0 0.0
        %4497 = vmatpush1.msra.mxu0 0.0
        %4498 = vmatprep.subr.mxu0 0.0
        %4499 = vmatpush1.msra.mxu0 0.0
        %4500 = vmatprep.subr.mxu0 0.0
        %4501 = vmatpush1.msra.mxu0 0.0
        %4502 = vmatprep.subr.mxu0 0.0
        %4503 = vmatpush1.msra.mxu0 0.0
        %4504 = vmatprep.subr.mxu0 0.0
        %4505 = vmatpush1.msra.mxu0 %v3846
        %4506 = vmatprep.subr.mxu0 0.0
        %4507 = vmatpush2.msra.mxu0 0.0
        %4508 = vmatprep.subr.mxu0 0.0
        %4509 = vmatpush2.msra.mxu0 0.0
        %4510 = vmatprep.subr.mxu0 0.0
        %4511 = vmatpush2.msra.mxu0 0.0
        %4512 = vmatprep.subr.mxu0 0.0
        %4513 = vmatpush2.msra.mxu0 0.0
        %4514 = vmatprep.subr.mxu0 0.0
        %4515 = vmatpush2.msra.mxu0 0.0
        %4516 = vmatprep.subr.mxu0 0.0
        %4517 = vmatpush2.msra.mxu0 0.0
        %4518 = vmatprep.subr.mxu0 0.0
        %4519 = vmatpush2.msra.mxu0 0.0
        %4520 = vmatprep.subr.mxu0 0.0
        %4521 = vmatpush2.msra.mxu0 0.0
        %4522 = vmatprep.subr.mxu0 0.0
        %4523 = vmatpush2.msra.mxu0 0.0
        %4524 = vmatprep.subr.mxu0 0.0
        %4525 = vmatpush2.msra.mxu0 0.0
        %4526 = vmatprep.subr.mxu0 0.0
        %4527 = vmatpush2.msra.mxu0 0.0
        %4528 = vmatprep.subr.mxu0 0.0
        %4529 = vmatpush2.msra.mxu0 0.0
        %4530 = vmatprep.subr.mxu0 0.0
        %4531 = vmatpush2.msra.mxu0 0.0
        %4532 = vmatprep.subr.mxu0 0.0
        %4533 = vmatpush2.msra.mxu0 0.0
        %4534 = vmatprep.subr.mxu0 0.0
        %4535 = vmatpush2.msra.mxu0 0.0
        %4536 = vmatprep.subr.mxu0 0.0
        %4537 = vmatpush2.msra.mxu0 0.0
        %4538 = vmatprep.mubr.f32.mxu0 0.0
        %4539 = vmatmul.mubr.f32.gmra.mxu0 %v4472
        %v4540 = vpop.f32.mrf.mxu0
        %v4541 = vadd.f32 0.0, %v4540
        %v4542 = vpop.f32.mrf.mxu0
        %4543 = vdwg.mxu0
        %v4545 = vsel %vm2028, %v4323, 0
        %4547 = vmatprep.subr.mxu0 0.0
        %4548 = vmatpush1.msra.mxu0 0.0
        %4549 = vmatprep.subr.mxu0 0.0
        %4550 = vmatpush1.msra.mxu0 0.0
        %4551 = vmatprep.subr.mxu0 0.0
        %4552 = vmatpush1.msra.mxu0 0.0
        %4553 = vmatprep.subr.mxu0 0.0
        %4554 = vmatpush1.msra.mxu0 0.0
        %4555 = vmatprep.subr.mxu0 0.0
        %4556 = vmatpush1.msra.mxu0 0.0
        %4557 = vmatprep.subr.mxu0 0.0
        %4558 = vmatpush1.msra.mxu0 0.0
        %4559 = vmatprep.subr.mxu0 0.0
        %4560 = vmatpush1.msra.mxu0 0.0
        %4561 = vmatprep.subr.mxu0 0.0
        %4562 = vmatpush1.msra.mxu0 0.0
        %4563 = vmatprep.subr.mxu0 0.0
        %4564 = vmatpush1.msra.mxu0 0.0
        %4565 = vmatprep.subr.mxu0 0.0
        %4566 = vmatpush1.msra.mxu0 0.0
        %4567 = vmatprep.subr.mxu0 0.0
        %4568 = vmatpush1.msra.mxu0 0.0
        %4569 = vmatprep.subr.mxu0 0.0
        %4570 = vmatpush1.msra.mxu0 0.0
        %4571 = vmatprep.subr.mxu0 0.0
        %4572 = vmatpush1.msra.mxu0 0.0
        %4573 = vmatprep.subr.mxu0 0.0
        %4574 = vmatpush1.msra.mxu0 0.0
        %4575 = vmatprep.subr.mxu0 0.0
        %4576 = vmatpush1.msra.mxu0 0.0
        %4577 = vmatprep.subr.mxu0 0.0
        %4578 = vmatpush1.msra.mxu0 %v3848
        %4579 = vmatprep.subr.mxu0 0.0
        %4580 = vmatpush2.msra.mxu0 0.0
        %4581 = vmatprep.subr.mxu0 0.0
        %4582 = vmatpush2.msra.mxu0 0.0
        %4583 = vmatprep.subr.mxu0 0.0
        %4584 = vmatpush2.msra.mxu0 0.0
        %4585 = vmatprep.subr.mxu0 0.0
        %4586 = vmatpush2.msra.mxu0 0.0
        %4587 = vmatprep.subr.mxu0 0.0
        %4588 = vmatpush2.msra.mxu0 0.0
        %4589 = vmatprep.subr.mxu0 0.0
        %4590 = vmatpush2.msra.mxu0 0.0
        %4591 = vmatprep.subr.mxu0 0.0
        %4592 = vmatpush2.msra.mxu0 0.0
        %4593 = vmatprep.subr.mxu0 0.0
        %4594 = vmatpush2.msra.mxu0 0.0
        %4595 = vmatprep.subr.mxu0 0.0
        %4596 = vmatpush2.msra.mxu0 0.0
        %4597 = vmatprep.subr.mxu0 0.0
        %4598 = vmatpush2.msra.mxu0 0.0
        %4599 = vmatprep.subr.mxu0 0.0
        %4600 = vmatpush2.msra.mxu0 0.0
        %4601 = vmatprep.subr.mxu0 0.0
        %4602 = vmatpush2.msra.mxu0 0.0
        %4603 = vmatprep.subr.mxu0 0.0
        %4604 = vmatpush2.msra.mxu0 0.0
        %4605 = vmatprep.subr.mxu0 0.0
        %4606 = vmatpush2.msra.mxu0 0.0
        %4607 = vmatprep.subr.mxu0 0.0
        %4608 = vmatpush2.msra.mxu0 0.0
        %4609 = vmatprep.subr.mxu0 0.0
        %4610 = vmatpush2.msra.mxu0 0.0
        %4611 = vmatprep.mubr.f32.mxu0 0.0
        %4612 = vmatmul.mubr.f32.gmra.mxu0 %v4545
        %v4613 = vpop.f32.mrf.mxu0
        %v4614 = vadd.f32 0.0, %v4613
        %v4615 = vpop.f32.mrf.mxu0
        %4616 = vdwg.mxu0
        %v4618 = vsel %vm2028, %v4324, 0
        %4620 = vmatprep.subr.mxu0 0.0
        %4621 = vmatpush1.msra.mxu0 0.0
        %4622 = vmatprep.subr.mxu0 0.0
        %4623 = vmatpush1.msra.mxu0 0.0
        %4624 = vmatprep.subr.mxu0 0.0
        %4625 = vmatpush1.msra.mxu0 0.0
        %4626 = vmatprep.subr.mxu0 0.0
        %4627 = vmatpush1.msra.mxu0 0.0
        %4628 = vmatprep.subr.mxu0 0.0
        %4629 = vmatpush1.msra.mxu0 0.0
        %4630 = vmatprep.subr.mxu0 0.0
        %4631 = vmatpush1.msra.mxu0 0.0
        %4632 = vmatprep.subr.mxu0 0.0
        %4633 = vmatpush1.msra.mxu0 0.0
        %4634 = vmatprep.subr.mxu0 0.0
        %4635 = vmatpush1.msra.mxu0 0.0
        %4636 = vmatprep.subr.mxu0 0.0
        %4637 = vmatpush1.msra.mxu0 0.0
        %4638 = vmatprep.subr.mxu0 0.0
        %4639 = vmatpush1.msra.mxu0 0.0
        %4640 = vmatprep.subr.mxu0 0.0
        %4641 = vmatpush1.msra.mxu0 0.0
        %4642 = vmatprep.subr.mxu0 0.0
        %4643 = vmatpush1.msra.mxu0 0.0
        %4644 = vmatprep.subr.mxu0 0.0
        %4645 = vmatpush1.msra.mxu0 0.0
        %4646 = vmatprep.subr.mxu0 0.0
        %4647 = vmatpush1.msra.mxu0 0.0
        %4648 = vmatprep.subr.mxu0 0.0
        %4649 = vmatpush1.msra.mxu0 0.0
        %4650 = vmatprep.subr.mxu0 0.0
        %4651 = vmatpush1.msra.mxu0 %v3917
        %4652 = vmatprep.subr.mxu0 0.0
        %4653 = vmatpush2.msra.mxu0 0.0
        %4654 = vmatprep.subr.mxu0 0.0
        %4655 = vmatpush2.msra.mxu0 0.0
        %4656 = vmatprep.subr.mxu0 0.0
        %4657 = vmatpush2.msra.mxu0 0.0
        %4658 = vmatprep.subr.mxu0 0.0
        %4659 = vmatpush2.msra.mxu0 0.0
        %4660 = vmatprep.subr.mxu0 0.0
        %4661 = vmatpush2.msra.mxu0 0.0
        %4662 = vmatprep.subr.mxu0 0.0
        %4663 = vmatpush2.msra.mxu0 0.0
        %4664 = vmatprep.subr.mxu0 0.0
        %4665 = vmatpush2.msra.mxu0 0.0
        %4666 = vmatprep.subr.mxu0 0.0
        %4667 = vmatpush2.msra.mxu0 0.0
        %4668 = vmatprep.subr.mxu0 0.0
        %4669 = vmatpush2.msra.mxu0 0.0
        %4670 = vmatprep.subr.mxu0 0.0
        %4671 = vmatpush2.msra.mxu0 0.0
        %4672 = vmatprep.subr.mxu0 0.0
        %4673 = vmatpush2.msra.mxu0 0.0
        %4674 = vmatprep.subr.mxu0 0.0
        %4675 = vmatpush2.msra.mxu0 0.0
        %4676 = vmatprep.subr.mxu0 0.0
        %4677 = vmatpush2.msra.mxu0 0.0
        %4678 = vmatprep.subr.mxu0 0.0
        %4679 = vmatpush2.msra.mxu0 0.0
        %4680 = vmatprep.subr.mxu0 0.0
        %4681 = vmatpush2.msra.mxu0 0.0
        %4682 = vmatprep.subr.mxu0 0.0
        %4683 = vmatpush2.msra.mxu0 0.0
        %4684 = vmatprep.mubr.f32.mxu0 0.0
        %4685 = vmatmul.mubr.f32.gmra.mxu0 %v4618
        %v4686 = vpop.f32.mrf.mxu0
        %v4687 = vadd.f32 0.0, %v4686
        %v4688 = vpop.f32.mrf.mxu0
        %4689 = vdwg.mxu0
        %s4690 = scalar_lea.vmem [#allocation8], 640
        %v4691 = vld [vmem:[%s4690] sm:$0xff]
        %v4692 = vld [vmem:[%s4690 + $0x8] sm:$0xff]
        %v4693 = vld [vmem:[%s4690 + $0x10] sm:$0xff]
        %v4694 = vld [vmem:[%s4690 + $0x18] sm:$0xff]
        %v4695 = vld [vmem:[%s4690 + $0x20] sm:$0xff]
        %v4696 = vld [vmem:[%s4690 + $0x28] sm:$0xff]
        %v4697 = vld [vmem:[%s4690 + $0x30] sm:$0xff]
        %v4698 = vld [vmem:[%s4690 + $0x38] sm:$0xff]
        %v4699 = vld [vmem:[%s4690 + $0x40] sm:$0xff]
        %v4700 = vld [vmem:[%s4690 + $0x48] sm:$0xff]
        %v4701 = vld [vmem:[%s4690 + $0x50] sm:$0xff]
        %v4702 = vld [vmem:[%s4690 + $0x58] sm:$0xff]
        %v4703 = vld [vmem:[%s4690 + $0x60] sm:$0xff]
        %v4704 = vld [vmem:[%s4690 + $0x68] sm:$0xff]
        %v4705 = vld [vmem:[%s4690 + $0x70] sm:$0xff]
        %v4706 = vld [vmem:[%s4690 + $0x78] sm:$0xff]
        %v4707 = vld [vmem:[%s4690 + $0x80] sm:$0xff]
        %v4708 = vld [vmem:[%s4690 + $0x88] sm:$0xff]
        %v4709 = vld [vmem:[%s4690 + $0x90] sm:$0xff]
        %v4710 = vld [vmem:[%s4690 + $0x98] sm:$0xff]
        %v4711 = vld [vmem:[%s4690 + $0xa0] sm:$0xff]
        %v4712 = vld [vmem:[%s4690 + $0xa8] sm:$0xff]
        %v4713 = vld [vmem:[%s4690 + $0xb0] sm:$0xff]
        %v4714 = vld [vmem:[%s4690 + $0xb8] sm:$0xff]
        %v4715 = vld [vmem:[%s4690 + $0xc0] sm:$0xff]
        %v4716 = vld [vmem:[%s4690 + $0xc8] sm:$0xff]
        %v4717 = vld [vmem:[%s4690 + $0xd0] sm:$0xff]
        %v4718 = vld [vmem:[%s4690 + $0xd8] sm:$0xff]
        %v4719 = vld [vmem:[%s4690 + $0xe0] sm:$0xff]
        %v4720 = vld [vmem:[%s4690 + $0xe8] sm:$0xff]
        %v4721 = vld [vmem:[%s4690 + $0xf0] sm:$0xff]
        %v4722 = vld [vmem:[%s4690 + $0xf8] sm:$0xff]
        %v4723 = vld [vmem:[%s4690 + $0x100] sm:$0xff]
        %v4724 = vld [vmem:[%s4690 + $0x108] sm:$0xff]
        %v4725 = vld [vmem:[%s4690 + $0x110] sm:$0xff]
        %v4726 = vld [vmem:[%s4690 + $0x118] sm:$0xff]
        %v4727 = vld [vmem:[%s4690 + $0x120] sm:$0xff]
        %v4728 = vld [vmem:[%s4690 + $0x128] sm:$0xff]
        %v4729 = vld [vmem:[%s4690 + $0x130] sm:$0xff]
        %v4730 = vld [vmem:[%s4690 + $0x138] sm:$0xff]
        %v4731 = vld [vmem:[%s4690 + $0x140] sm:$0xff]
        %v4732 = vld [vmem:[%s4690 + $0x148] sm:$0xff]
        %v4733 = vld [vmem:[%s4690 + $0x150] sm:$0xff]
        %v4734 = vld [vmem:[%s4690 + $0x158] sm:$0xff]
        %v4735 = vld [vmem:[%s4690 + $0x160] sm:$0xff]
        %v4736 = vld [vmem:[%s4690 + $0x168] sm:$0xff]
        %v4737 = vld [vmem:[%s4690 + $0x170] sm:$0xff]
        %v4738 = vld [vmem:[%s4690 + $0x178] sm:$0xff]
        %v4739 = vld [vmem:[%s4690 + $0x180] sm:$0xff]
        %v4740 = vld [vmem:[%s4690 + $0x188] sm:$0xff]
        %v4741 = vld [vmem:[%s4690 + $0x190] sm:$0xff]
        %v4742 = vld [vmem:[%s4690 + $0x198] sm:$0xff]
        %v4743 = vld [vmem:[%s4690 + $0x1a0] sm:$0xff]
        %v4744 = vld [vmem:[%s4690 + $0x1a8] sm:$0xff]
        %v4745 = vld [vmem:[%s4690 + $0x1b0] sm:$0xff]
        %v4746 = vld [vmem:[%s4690 + $0x1b8] sm:$0xff]
        %v4747 = vld [vmem:[%s4690 + $0x1c0] sm:$0xff]
        %v4748 = vld [vmem:[%s4690 + $0x1c8] sm:$0xff]
        %v4749 = vld [vmem:[%s4690 + $0x1d0] sm:$0xff]
        %v4750 = vld [vmem:[%s4690 + $0x1d8] sm:$0xff]
        %v4751 = vld [vmem:[%s4690 + $0x1e0] sm:$0xff]
        %v4752 = vld [vmem:[%s4690 + $0x1e8] sm:$0xff]
        %v4753 = vld [vmem:[%s4690 + $0x1f0] sm:$0xff]
        %v4754 = vld [vmem:[%s4690 + $0x1f8] sm:$0xff]
        %v4755 = vld [vmem:[%s4690 + $0x200] sm:$0xff]
        %v4756 = vld [vmem:[%s4690 + $0x208] sm:$0xff]
        %v4757 = vld [vmem:[%s4690 + $0x210] sm:$0xff]
        %v4758 = vld [vmem:[%s4690 + $0x218] sm:$0xff]
        %v4759 = vld [vmem:[%s4690 + $0x220] sm:$0xff]
        %v4760 = vld [vmem:[%s4690 + $0x228] sm:$0xff]
        %v4761 = vld [vmem:[%s4690 + $0x230] sm:$0xff]
        %v4762 = vld [vmem:[%s4690 + $0x238] sm:$0xff]
        %v4763 = vld [vmem:[%s4690 + $0x240] sm:$0xff]
        %v4764 = vld [vmem:[%s4690 + $0x248] sm:$0xff]
        %v4765 = vld [vmem:[%s4690 + $0x250] sm:$0xff]
        %v4766 = vld [vmem:[%s4690 + $0x258] sm:$0xff]
        %v4767 = vld [vmem:[%s4690 + $0x260] sm:$0xff]
        %v4768 = vld [vmem:[%s4690 + $0x268] sm:$0xff]
        %v4769 = vld [vmem:[%s4690 + $0x270] sm:$0xff]
        %v4770 = vld [vmem:[%s4690 + $0x278] sm:$0xff]
        %s4771 = scalar_lea.vmem [#allocation10], 1
        %v4772 = vld [vmem:[%s4771] sm:$0x1]
        %v4774 = vlaneseq
        %v4775 = vshrl.u32 %v4774, 7
        %v4776 = vsub.s32 0, %v4775
        %v4777 = vrot.slane %v4772, %v4776
        %4779 = vmatprep.subr.mxu0 0.0
        %4780 = vmatpush1.msra.mxu0 %v4706
        %4781 = vmatprep.subr.mxu0 0.0
        %4782 = vmatpush1.msra.mxu0 %v4705
        %4783 = vmatprep.subr.mxu0 0.0
        %4784 = vmatpush1.msra.mxu0 %v4704
        %4785 = vmatprep.subr.mxu0 0.0
        %4786 = vmatpush1.msra.mxu0 %v4703
        %4787 = vmatprep.subr.mxu0 0.0
        %4788 = vmatpush1.msra.mxu0 %v4702
        %4789 = vmatprep.subr.mxu0 0.0
        %4790 = vmatpush1.msra.mxu0 %v4701
        %4791 = vmatprep.subr.mxu0 0.0
        %4792 = vmatpush1.msra.mxu0 %v4700
        %4793 = vmatprep.subr.mxu0 0.0
        %4794 = vmatpush1.msra.mxu0 %v4699
        %4795 = vmatprep.subr.mxu0 0.0
        %4796 = vmatpush1.msra.mxu0 %v4698
        %4797 = vmatprep.subr.mxu0 0.0
        %4798 = vmatpush1.msra.mxu0 %v4697
        %4799 = vmatprep.subr.mxu0 0.0
        %4800 = vmatpush1.msra.mxu0 %v4696
        %4801 = vmatprep.subr.mxu0 0.0
        %4802 = vmatpush1.msra.mxu0 %v4695
        %4803 = vmatprep.subr.mxu0 0.0
        %4804 = vmatpush1.msra.mxu0 %v4694
        %4805 = vmatprep.subr.mxu0 0.0
        %4806 = vmatpush1.msra.mxu0 %v4693
        %4807 = vmatprep.subr.mxu0 0.0
        %4808 = vmatpush1.msra.mxu0 %v4692
        %4809 = vmatprep.subr.mxu0 0.0
        %4810 = vmatpush1.msra.mxu0 %v4691
        %4811 = vmatprep.subr.mxu0 0.0
        %4812 = vmatpush2.msra.mxu0 %v4722
        %4813 = vmatprep.subr.mxu0 0.0
        %4814 = vmatpush2.msra.mxu0 %v4721
        %4815 = vmatprep.subr.mxu0 0.0
        %4816 = vmatpush2.msra.mxu0 %v4720
        %4817 = vmatprep.subr.mxu0 0.0
        %4818 = vmatpush2.msra.mxu0 %v4719
        %4819 = vmatprep.subr.mxu0 0.0
        %4820 = vmatpush2.msra.mxu0 %v4718
        %4821 = vmatprep.subr.mxu0 0.0
        %4822 = vmatpush2.msra.mxu0 %v4717
        %4823 = vmatprep.subr.mxu0 0.0
        %4824 = vmatpush2.msra.mxu0 %v4716
        %4825 = vmatprep.subr.mxu0 0.0
        %4826 = vmatpush2.msra.mxu0 %v4715
        %4827 = vmatprep.subr.mxu0 0.0
        %4828 = vmatpush2.msra.mxu0 %v4714
        %4829 = vmatprep.subr.mxu0 0.0
        %4830 = vmatpush2.msra.mxu0 %v4713
        %4831 = vmatprep.subr.mxu0 0.0
        %4832 = vmatpush2.msra.mxu0 %v4712
        %4833 = vmatprep.subr.mxu0 0.0
        %4834 = vmatpush2.msra.mxu0 %v4711
        %4835 = vmatprep.subr.mxu0 0.0
        %4836 = vmatpush2.msra.mxu0 %v4710
        %4837 = vmatprep.subr.mxu0 0.0
        %4838 = vmatpush2.msra.mxu0 %v4709
        %4839 = vmatprep.subr.mxu0 0.0
        %4840 = vmatpush2.msra.mxu0 %v4708
        %4841 = vmatprep.subr.mxu0 0.0
        %4842 = vmatpush2.msra.mxu0 %v4707
        %4843 = vmatprep.mubr.f32.mxu0 %v4468
        %4844 = vmatmul.mubr.f32.gmra.mxu0 %v4395
        %v4845 = vpop.f32.mrf.mxu0
        %v4846 = vadd.f32 %v4777, %v4845
        %v4847 = vpop.f32.mrf.mxu0
        %4848 = vdwg.mxu0
        %4849 = vmatprep.subr.mxu0 0.0
        %4850 = vmatpush1.msra.mxu0 %v4738
        %4851 = vmatprep.subr.mxu0 0.0
        %4852 = vmatpush1.msra.mxu0 %v4737
        %4853 = vmatprep.subr.mxu0 0.0
        %4854 = vmatpush1.msra.mxu0 %v4736
        %4855 = vmatprep.subr.mxu0 0.0
        %4856 = vmatpush1.msra.mxu0 %v4735
        %4857 = vmatprep.subr.mxu0 0.0
        %4858 = vmatpush1.msra.mxu0 %v4734
        %4859 = vmatprep.subr.mxu0 0.0
        %4860 = vmatpush1.msra.mxu0 %v4733
        %4861 = vmatprep.subr.mxu0 0.0
        %4862 = vmatpush1.msra.mxu0 %v4732
        %4863 = vmatprep.subr.mxu0 0.0
        %4864 = vmatpush1.msra.mxu0 %v4731
        %4865 = vmatprep.subr.mxu0 0.0
        %4866 = vmatpush1.msra.mxu0 %v4730
        %4867 = vmatprep.subr.mxu0 0.0
        %4868 = vmatpush1.msra.mxu0 %v4729
        %4869 = vmatprep.subr.mxu0 0.0
        %4870 = vmatpush1.msra.mxu0 %v4728
        %4871 = vmatprep.subr.mxu0 0.0
        %4872 = vmatpush1.msra.mxu0 %v4727
        %4873 = vmatprep.subr.mxu0 0.0
        %4874 = vmatpush1.msra.mxu0 %v4726
        %4875 = vmatprep.subr.mxu0 0.0
        %4876 = vmatpush1.msra.mxu0 %v4725
        %4877 = vmatprep.subr.mxu0 0.0
        %4878 = vmatpush1.msra.mxu0 %v4724
        %4879 = vmatprep.subr.mxu0 0.0
        %4880 = vmatpush1.msra.mxu0 %v4723
        %4881 = vmatprep.subr.mxu0 0.0
        %4882 = vmatpush2.msra.mxu0 %v4754
        %4883 = vmatprep.subr.mxu0 0.0
        %4884 = vmatpush2.msra.mxu0 %v4753
        %4885 = vmatprep.subr.mxu0 0.0
        %4886 = vmatpush2.msra.mxu0 %v4752
        %4887 = vmatprep.subr.mxu0 0.0
        %4888 = vmatpush2.msra.mxu0 %v4751
        %4889 = vmatprep.subr.mxu0 0.0
        %4890 = vmatpush2.msra.mxu0 %v4750
        %4891 = vmatprep.subr.mxu0 0.0
        %4892 = vmatpush2.msra.mxu0 %v4749
        %4893 = vmatprep.subr.mxu0 0.0
        %4894 = vmatpush2.msra.mxu0 %v4748
        %4895 = vmatprep.subr.mxu0 0.0
        %4896 = vmatpush2.msra.mxu0 %v4747
        %4897 = vmatprep.subr.mxu0 0.0
        %4898 = vmatpush2.msra.mxu0 %v4746
        %4899 = vmatprep.subr.mxu0 0.0
        %4900 = vmatpush2.msra.mxu0 %v4745
        %4901 = vmatprep.subr.mxu0 0.0
        %4902 = vmatpush2.msra.mxu0 %v4744
        %4903 = vmatprep.subr.mxu0 0.0
        %4904 = vmatpush2.msra.mxu0 %v4743
        %4905 = vmatprep.subr.mxu0 0.0
        %4906 = vmatpush2.msra.mxu0 %v4742
        %4907 = vmatprep.subr.mxu0 0.0
        %4908 = vmatpush2.msra.mxu0 %v4741
        %4909 = vmatprep.subr.mxu0 0.0
        %4910 = vmatpush2.msra.mxu0 %v4740
        %4911 = vmatprep.subr.mxu0 0.0
        %4912 = vmatpush2.msra.mxu0 %v4739
        %4913 = vmatprep.mubr.f32.mxu0 %v4614
        %4914 = vmatmul.mubr.f32.gmra.mxu0 %v4541
        %v4915 = vpop.f32.mrf.mxu0
        %v4916 = vadd.f32 %v4846, %v4915
        %v4917 = vpop.f32.mrf.mxu0
        %4918 = vdwg.mxu0
        %4919 = vmatprep.subr.mxu0 0.0
        %4920 = vmatpush1.msra.mxu0 %v4770
        %4921 = vmatprep.subr.mxu0 0.0
        %4922 = vmatpush1.msra.mxu0 %v4769
        %4923 = vmatprep.subr.mxu0 0.0
        %4924 = vmatpush1.msra.mxu0 %v4768
        %4925 = vmatprep.subr.mxu0 0.0
        %4926 = vmatpush1.msra.mxu0 %v4767
        %4927 = vmatprep.subr.mxu0 0.0
        %4928 = vmatpush1.msra.mxu0 %v4766
        %4929 = vmatprep.subr.mxu0 0.0
        %4930 = vmatpush1.msra.mxu0 %v4765
        %4931 = vmatprep.subr.mxu0 0.0
        %4932 = vmatpush1.msra.mxu0 %v4764
        %4933 = vmatprep.subr.mxu0 0.0
        %4934 = vmatpush1.msra.mxu0 %v4763
        %4935 = vmatprep.subr.mxu0 0.0
        %4936 = vmatpush1.msra.mxu0 %v4762
        %4937 = vmatprep.subr.mxu0 0.0
        %4938 = vmatpush1.msra.mxu0 %v4761
        %4939 = vmatprep.subr.mxu0 0.0
        %4940 = vmatpush1.msra.mxu0 %v4760
        %4941 = vmatprep.subr.mxu0 0.0
        %4942 = vmatpush1.msra.mxu0 %v4759
        %4943 = vmatprep.subr.mxu0 0.0
        %4944 = vmatpush1.msra.mxu0 %v4758
        %4945 = vmatprep.subr.mxu0 0.0
        %4946 = vmatpush1.msra.mxu0 %v4757
        %4947 = vmatprep.subr.mxu0 0.0
        %4948 = vmatpush1.msra.mxu0 %v4756
        %4949 = vmatprep.subr.mxu0 0.0
        %4950 = vmatpush1.msra.mxu0 %v4755
        %4951 = vmatprep.subr.mxu0 0.0
        %4952 = vmatpush2.msra.mxu0 0.0
        %4953 = vmatprep.subr.mxu0 0.0
        %4954 = vmatpush2.msra.mxu0 0.0
        %4955 = vmatprep.subr.mxu0 0.0
        %4956 = vmatpush2.msra.mxu0 0.0
        %4957 = vmatprep.subr.mxu0 0.0
        %4958 = vmatpush2.msra.mxu0 0.0
        %4959 = vmatprep.subr.mxu0 0.0
        %4960 = vmatpush2.msra.mxu0 0.0
        %4961 = vmatprep.subr.mxu0 0.0
        %4962 = vmatpush2.msra.mxu0 0.0
        %4963 = vmatprep.subr.mxu0 0.0
        %4964 = vmatpush2.msra.mxu0 0.0
        %4965 = vmatprep.subr.mxu0 0.0
        %4966 = vmatpush2.msra.mxu0 0.0
        %4967 = vmatprep.subr.mxu0 0.0
        %4968 = vmatpush2.msra.mxu0 0.0
        %4969 = vmatprep.subr.mxu0 0.0
        %4970 = vmatpush2.msra.mxu0 0.0
        %4971 = vmatprep.subr.mxu0 0.0
        %4972 = vmatpush2.msra.mxu0 0.0
        %4973 = vmatprep.subr.mxu0 0.0
        %4974 = vmatpush2.msra.mxu0 0.0
        %4975 = vmatprep.subr.mxu0 0.0
        %4976 = vmatpush2.msra.mxu0 0.0
        %4977 = vmatprep.subr.mxu0 0.0
        %4978 = vmatpush2.msra.mxu0 0.0
        %4979 = vmatprep.subr.mxu0 0.0
        %4980 = vmatpush2.msra.mxu0 0.0
        %4981 = vmatprep.subr.mxu0 0.0
        %4982 = vmatpush2.msra.mxu0 0.0
        %4983 = vmatprep.mubr.f32.mxu0 0.0
        %4984 = vmatmul.mubr.f32.gmra.mxu0 %v4687
        %v4985 = vpop.f32.mrf.mxu0
        %v4986 = vadd.f32 %v4916, %v4985
        %v4987 = vpop.f32.mrf.mxu0
        %4988 = vdwg.mxu0
        %v4989 = vadd.f32 %v3031, %v4986
        %s4990 = scalar_lea.vmem [#allocation11], 1
        %v4991 = vld [vmem:[%s4990] sm:$0x1]
        %s4992 = scalar_lea.vmem [#allocation13], 1
        %v4993 = vld [vmem:[%s4992] sm:$0x1]
        %4994 = vadd.xlane.f32.xlu0 %v4989
        %v4995 = vpop.xlane.xlu0 %4994
        %v4996 = vmul.f32 %v4989, %v4989
        %4997 = vadd.xlane.f32.xlu0 %v4996
        %v4998 = vpop.xlane.xlu0 %4997
        %v4999 = vmul.f32 %v4995, 0.01
        %v5000 = vmul.f32 %v4998, 0.01
        %v5001 = vmul.f32 %v4999, %v4999
        %v5002 = vsub.f32 %v5000, %v5001
        %v5003 = vsub.f32 %v4989, %v4999
        %v5004 = vadd.f32 %v5002, 1e-05
        %v5005 = vrsqrt.pop %v5004
        %v5006 = vmul.f32 %v5003, %v5005
        %v5008 = vlaneseq
        %v5009 = vshrl.u32 %v5008, 7
        %v5010 = vsub.s32 0, %v5009
        %v5011 = vrot.slane %v4991, %v5010
        %v5013 = vmul.f32 %v5006, %v5011
        %v5015 = vlaneseq
        %v5016 = vshrl.u32 %v5015, 7
        %v5017 = vsub.s32 0, %v5016
        %v5018 = vrot.slane %v4993, %v5017
        %v5020 = vadd.f32 %v5013, %v5018
        %s5021 = scalar_lea.vmem [#allocation14], 256
        %v5022 = vld [vmem:[%s5021] sm:$0xff]
        %v5023 = vld [vmem:[%s5021 + $0x8] sm:$0xff]
        %v5024 = vld [vmem:[%s5021 + $0x10] sm:$0xff]
        %v5025 = vld [vmem:[%s5021 + $0x18] sm:$0xff]
        %v5026 = vld [vmem:[%s5021 + $0x20] sm:$0xff]
        %v5027 = vld [vmem:[%s5021 + $0x28] sm:$0xff]
        %v5028 = vld [vmem:[%s5021 + $0x30] sm:$0xff]
        %v5029 = vld [vmem:[%s5021 + $0x38] sm:$0xff]
        %v5030 = vld [vmem:[%s5021 + $0x40] sm:$0xff]
        %v5031 = vld [vmem:[%s5021 + $0x48] sm:$0xff]
        %v5032 = vld [vmem:[%s5021 + $0x50] sm:$0xff]
        %v5033 = vld [vmem:[%s5021 + $0x58] sm:$0xff]
        %v5034 = vld [vmem:[%s5021 + $0x60] sm:$0xff]
        %v5035 = vld [vmem:[%s5021 + $0x68] sm:$0xff]
        %v5036 = vld [vmem:[%s5021 + $0x70] sm:$0xff]
        %v5037 = vld [vmem:[%s5021 + $0x78] sm:$0xff]
        %v5038 = vld [vmem:[%s5021 + $0x80] sm:$0xff]
        %v5039 = vld [vmem:[%s5021 + $0x88] sm:$0xff]
        %v5040 = vld [vmem:[%s5021 + $0x90] sm:$0xff]
        %v5041 = vld [vmem:[%s5021 + $0x98] sm:$0xff]
        %v5042 = vld [vmem:[%s5021 + $0xa0] sm:$0xff]
        %v5043 = vld [vmem:[%s5021 + $0xa8] sm:$0xff]
        %v5044 = vld [vmem:[%s5021 + $0xb0] sm:$0xff]
        %v5045 = vld [vmem:[%s5021 + $0xb8] sm:$0xff]
        %v5046 = vld [vmem:[%s5021 + $0xc0] sm:$0xff]
        %v5047 = vld [vmem:[%s5021 + $0xc8] sm:$0xff]
        %v5048 = vld [vmem:[%s5021 + $0xd0] sm:$0xff]
        %v5049 = vld [vmem:[%s5021 + $0xd8] sm:$0xff]
        %v5050 = vld [vmem:[%s5021 + $0xe0] sm:$0xff]
        %v5051 = vld [vmem:[%s5021 + $0xe8] sm:$0xff]
        %v5052 = vld [vmem:[%s5021 + $0xf0] sm:$0xff]
        %v5053 = vld [vmem:[%s5021 + $0xf8] sm:$0xff]
        %s5054 = scalar_lea.vmem [#allocation16], 2
        %v5055 = vld [vmem:[%s5054] sm:$0x3]
        %v5057 = vlaneseq
        %v5058 = vshrl.u32 %v5057, 7
        %v5059 = vsub.s32 0, %v5058
        %v5060 = vrot.slane %v5055, %v5059
        %v5061 = vlaneseq
        %v5062 = vshrl.u32 %v5061, 7
        %v5063 = vsub.s32 1, %v5062
        %v5064 = vrot.slane %v5055, %v5063
        %5067 = vmatprep.subr.mxu0 %v5053
        %5068 = vmatpush1.msra.mxu0 %v5052
        %5069 = vmatprep.subr.mxu0 %v5051
        %5070 = vmatpush1.msra.mxu0 %v5050
        %5071 = vmatprep.subr.mxu0 %v5049
        %5072 = vmatpush1.msra.mxu0 %v5048
        %5073 = vmatprep.subr.mxu0 %v5047
        %5074 = vmatpush1.msra.mxu0 %v5046
        %5075 = vmatprep.subr.mxu0 %v5045
        %5076 = vmatpush1.msra.mxu0 %v5044
        %5077 = vmatprep.subr.mxu0 %v5043
        %5078 = vmatpush1.msra.mxu0 %v5042
        %5079 = vmatprep.subr.mxu0 %v5041
        %5080 = vmatpush1.msra.mxu0 %v5040
        %5081 = vmatprep.subr.mxu0 %v5039
        %5082 = vmatpush1.msra.mxu0 %v5038
        %5083 = vmatprep.subr.mxu0 %v5037
        %5084 = vmatpush1.msra.mxu0 %v5036
        %5085 = vmatprep.subr.mxu0 %v5035
        %5086 = vmatpush1.msra.mxu0 %v5034
        %5087 = vmatprep.subr.mxu0 %v5033
        %5088 = vmatpush1.msra.mxu0 %v5032
        %5089 = vmatprep.subr.mxu0 %v5031
        %5090 = vmatpush1.msra.mxu0 %v5030
        %5091 = vmatprep.subr.mxu0 %v5029
        %5092 = vmatpush1.msra.mxu0 %v5028
        %5093 = vmatprep.subr.mxu0 %v5027
        %5094 = vmatpush1.msra.mxu0 %v5026
        %5095 = vmatprep.subr.mxu0 %v5025
        %5096 = vmatpush1.msra.mxu0 %v5024
        %5097 = vmatprep.subr.mxu0 %v5023
        %5098 = vmatpush1.msra.mxu0 %v5022
        %5099 = vmatprep.subr.mxu0 0.0
        %5100 = vmatpush2.msra.mxu0 0.0
        %5101 = vmatprep.subr.mxu0 0.0
        %5102 = vmatpush2.msra.mxu0 0.0
        %5103 = vmatprep.subr.mxu0 0.0
        %5104 = vmatpush2.msra.mxu0 0.0
        %5105 = vmatprep.subr.mxu0 0.0
        %5106 = vmatpush2.msra.mxu0 0.0
        %5107 = vmatprep.subr.mxu0 0.0
        %5108 = vmatpush2.msra.mxu0 0.0
        %5109 = vmatprep.subr.mxu0 0.0
        %5110 = vmatpush2.msra.mxu0 0.0
        %5111 = vmatprep.subr.mxu0 0.0
        %5112 = vmatpush2.msra.mxu0 0.0
        %5113 = vmatprep.subr.mxu0 0.0
        %5114 = vmatpush2.msra.mxu0 0.0
        %5115 = vmatprep.subr.mxu0 0.0
        %5116 = vmatpush2.msra.mxu0 0.0
        %5117 = vmatprep.subr.mxu0 0.0
        %5118 = vmatpush2.msra.mxu0 0.0
        %5119 = vmatprep.subr.mxu0 0.0
        %5120 = vmatpush2.msra.mxu0 0.0
        %5121 = vmatprep.subr.mxu0 0.0
        %5122 = vmatpush2.msra.mxu0 0.0
        %5123 = vmatprep.subr.mxu0 0.0
        %5124 = vmatpush2.msra.mxu0 0.0
        %5125 = vmatprep.subr.mxu0 0.0
        %5126 = vmatpush2.msra.mxu0 0.0
        %5127 = vmatprep.subr.mxu0 0.0
        %5128 = vmatpush2.msra.mxu0 0.0
        %5129 = vmatprep.subr.mxu0 0.0
        %5130 = vmatpush2.msra.mxu0 0.0
        %5131 = vmatprep.mubr.f32.mxu0 0.0
        %5132 = vmatmul.mubr.f32.gmra.mxu0 %v5020
        %v5133 = vpop.f32.mrf.mxu0
        %v5134 = vadd.f32 %v5060, %v5133
        %v5135 = vpop.f32.mrf.mxu0
        %v5136 = vadd.f32 %v5064, %v5135
        %5137 = vdwg.mxu0
        %v5138 = vmax.f32 %v5134, 0.0
        %v5139 = vmax.f32 %v5136, 0.0
        %s5140 = scalar_lea.vmem [#allocation17], 256
        %v5141 = vld [vmem:[%s5140] sm:$0xff]
        %v5142 = vld [vmem:[%s5140 + $0x8] sm:$0xff]
        %v5143 = vld [vmem:[%s5140 + $0x10] sm:$0xff]
        %v5144 = vld [vmem:[%s5140 + $0x18] sm:$0xff]
        %v5145 = vld [vmem:[%s5140 + $0x20] sm:$0xff]
        %v5146 = vld [vmem:[%s5140 + $0x28] sm:$0xff]
        %v5147 = vld [vmem:[%s5140 + $0x30] sm:$0xff]
        %v5148 = vld [vmem:[%s5140 + $0x38] sm:$0xff]
        %v5149 = vld [vmem:[%s5140 + $0x40] sm:$0xff]
        %v5150 = vld [vmem:[%s5140 + $0x48] sm:$0xff]
        %v5151 = vld [vmem:[%s5140 + $0x50] sm:$0xff]
        %v5152 = vld [vmem:[%s5140 + $0x58] sm:$0xff]
        %v5153 = vld [vmem:[%s5140 + $0x60] sm:$0xff]
        %v5154 = vld [vmem:[%s5140 + $0x68] sm:$0xff]
        %v5155 = vld [vmem:[%s5140 + $0x70] sm:$0xff]
        %v5156 = vld [vmem:[%s5140 + $0x78] sm:$0xff]
        %v5157 = vld [vmem:[%s5140 + $0x80] sm:$0xff]
        %v5158 = vld [vmem:[%s5140 + $0x88] sm:$0xff]
        %v5159 = vld [vmem:[%s5140 + $0x90] sm:$0xff]
        %v5160 = vld [vmem:[%s5140 + $0x98] sm:$0xff]
        %v5161 = vld [vmem:[%s5140 + $0xa0] sm:$0xff]
        %v5162 = vld [vmem:[%s5140 + $0xa8] sm:$0xff]
        %v5163 = vld [vmem:[%s5140 + $0xb0] sm:$0xff]
        %v5164 = vld [vmem:[%s5140 + $0xb8] sm:$0xff]
        %v5165 = vld [vmem:[%s5140 + $0xc0] sm:$0xff]
        %v5166 = vld [vmem:[%s5140 + $0xc8] sm:$0xff]
        %v5167 = vld [vmem:[%s5140 + $0xd0] sm:$0xff]
        %v5168 = vld [vmem:[%s5140 + $0xd8] sm:$0xff]
        %v5169 = vld [vmem:[%s5140 + $0xe0] sm:$0xff]
        %v5170 = vld [vmem:[%s5140 + $0xe8] sm:$0xff]
        %v5171 = vld [vmem:[%s5140 + $0xf0] sm:$0xff]
        %v5172 = vld [vmem:[%s5140 + $0xf8] sm:$0xff]
        %s5173 = scalar_lea.vmem [#allocation19], 1
        %v5174 = vld [vmem:[%s5173] sm:$0x1]
        %v5176 = vlaneseq
        %v5177 = vshrl.u32 %v5176, 7
        %v5178 = vsub.s32 0, %v5177
        %v5179 = vrot.slane %v5174, %v5178
        %5181 = vmatprep.subr.mxu0 0.0
        %5182 = vmatpush1.msra.mxu0 %v5156
        %5183 = vmatprep.subr.mxu0 0.0
        %5184 = vmatpush1.msra.mxu0 %v5155
        %5185 = vmatprep.subr.mxu0 0.0
        %5186 = vmatpush1.msra.mxu0 %v5154
        %5187 = vmatprep.subr.mxu0 0.0
        %5188 = vmatpush1.msra.mxu0 %v5153
        %5189 = vmatprep.subr.mxu0 0.0
        %5190 = vmatpush1.msra.mxu0 %v5152
        %5191 = vmatprep.subr.mxu0 0.0
        %5192 = vmatpush1.msra.mxu0 %v5151
        %5193 = vmatprep.subr.mxu0 0.0
        %5194 = vmatpush1.msra.mxu0 %v5150
        %5195 = vmatprep.subr.mxu0 0.0
        %5196 = vmatpush1.msra.mxu0 %v5149
        %5197 = vmatprep.subr.mxu0 0.0
        %5198 = vmatpush1.msra.mxu0 %v5148
        %5199 = vmatprep.subr.mxu0 0.0
        %5200 = vmatpush1.msra.mxu0 %v5147
        %5201 = vmatprep.subr.mxu0 0.0
        %5202 = vmatpush1.msra.mxu0 %v5146
        %5203 = vmatprep.subr.mxu0 0.0
        %5204 = vmatpush1.msra.mxu0 %v5145
        %5205 = vmatprep.subr.mxu0 0.0
        %5206 = vmatpush1.msra.mxu0 %v5144
        %5207 = vmatprep.subr.mxu0 0.0
        %5208 = vmatpush1.msra.mxu0 %v5143
        %5209 = vmatprep.subr.mxu0 0.0
        %5210 = vmatpush1.msra.mxu0 %v5142
        %5211 = vmatprep.subr.mxu0 0.0
        %5212 = vmatpush1.msra.mxu0 %v5141
        %5213 = vmatprep.subr.mxu0 0.0
        %5214 = vmatpush2.msra.mxu0 %v5172
        %5215 = vmatprep.subr.mxu0 0.0
        %5216 = vmatpush2.msra.mxu0 %v5171
        %5217 = vmatprep.subr.mxu0 0.0
        %5218 = vmatpush2.msra.mxu0 %v5170
        %5219 = vmatprep.subr.mxu0 0.0
        %5220 = vmatpush2.msra.mxu0 %v5169
        %5221 = vmatprep.subr.mxu0 0.0
        %5222 = vmatpush2.msra.mxu0 %v5168
        %5223 = vmatprep.subr.mxu0 0.0
        %5224 = vmatpush2.msra.mxu0 %v5167
        %5225 = vmatprep.subr.mxu0 0.0
        %5226 = vmatpush2.msra.mxu0 %v5166
        %5227 = vmatprep.subr.mxu0 0.0
        %5228 = vmatpush2.msra.mxu0 %v5165
        %5229 = vmatprep.subr.mxu0 0.0
        %5230 = vmatpush2.msra.mxu0 %v5164
        %5231 = vmatprep.subr.mxu0 0.0
        %5232 = vmatpush2.msra.mxu0 %v5163
        %5233 = vmatprep.subr.mxu0 0.0
        %5234 = vmatpush2.msra.mxu0 %v5162
        %5235 = vmatprep.subr.mxu0 0.0
        %5236 = vmatpush2.msra.mxu0 %v5161
        %5237 = vmatprep.subr.mxu0 0.0
        %5238 = vmatpush2.msra.mxu0 %v5160
        %5239 = vmatprep.subr.mxu0 0.0
        %5240 = vmatpush2.msra.mxu0 %v5159
        %5241 = vmatprep.subr.mxu0 0.0
        %5242 = vmatpush2.msra.mxu0 %v5158
        %5243 = vmatprep.subr.mxu0 0.0
        %5244 = vmatpush2.msra.mxu0 %v5157
        %5245 = vmatprep.mubr.f32.mxu0 %v5139
        %5246 = vmatmul.mubr.f32.gmra.mxu0 %v5138
        %v5247 = vpop.f32.mrf.mxu0
        %v5248 = vadd.f32 %v5179, %v5247
        %v5249 = vpop.f32.mrf.mxu0
        %5250 = vdwg.mxu0
        %v5251 = vadd.f32 %v5020, %v5248
        %s5252 = scalar_lea.vmem [#allocation20], 1
        %v5253 = vld [vmem:[%s5252] sm:$0x1]
        %s5254 = scalar_lea.vmem [#allocation22], 1
        %v5255 = vld [vmem:[%s5254] sm:$0x1]
        %5256 = vadd.xlane.f32.xlu0 %v5251
        %v5257 = vpop.xlane.xlu0 %5256
        %v5258 = vmul.f32 %v5251, %v5251
        %5259 = vadd.xlane.f32.xlu0 %v5258
        %v5260 = vpop.xlane.xlu0 %5259
        %v5261 = vmul.f32 %v5257, 0.01
        %v5262 = vmul.f32 %v5260, 0.01
        %v5263 = vmul.f32 %v5261, %v5261
        %v5264 = vsub.f32 %v5262, %v5263
        %v5265 = vsub.f32 %v5251, %v5261
        %v5266 = vadd.f32 %v5264, 1e-05
        %v5267 = vrsqrt.pop %v5266
        %v5268 = vmul.f32 %v5265, %v5267
        %v5270 = vlaneseq
        %v5271 = vshrl.u32 %v5270, 7
        %v5272 = vsub.s32 0, %v5271
        %v5273 = vrot.slane %v5253, %v5272
        %v5275 = vmul.f32 %v5268, %v5273
        %v5277 = vlaneseq
        %v5278 = vshrl.u32 %v5277, 7
        %v5279 = vsub.s32 0, %v5278
        %v5280 = vrot.slane %v5255, %v5279
        %v5282 = vadd.f32 %v5275, %v5280
        %v5283 = vrot.slane %v5282, 4
        %v5284 = vadd.f32 %v5282, %v5283
        %v5285 = vrot.slane %v5284, 2
        %v5286 = vadd.f32 %v5284, %v5285
        %v5287 = vrot.slane %v5286, 1
        %v5288 = vadd.f32 %v5286, %v5287
        %v5289 = vmul.f32 %v5288, 0.125
        %v5290 = vld [vmem:[#allocation23] sm:$0xff]
        %v5291 = vld [vmem:[#allocation23 + $0x8] sm:$0xff]
        %v5292 = vld [vmem:[#allocation23 + $0x10] sm:$0xff]
        %v5293 = vld [vmem:[#allocation23 + $0x18] sm:$0xff]
        %v5294 = vld [vmem:[#allocation23 + $0x20] sm:$0xff]
        %v5295 = vld [vmem:[#allocation23 + $0x28] sm:$0xff]
        %v5296 = vld [vmem:[#allocation23 + $0x30] sm:$0xff]
        %v5297 = vld [vmem:[#allocation23 + $0x38] sm:$0xff]
        %v5298 = vld [vmem:[#allocation23 + $0x40] sm:$0xff]
        %v5299 = vld [vmem:[#allocation23 + $0x48] sm:$0xff]
        %v5300 = vld [vmem:[#allocation23 + $0x50] sm:$0xff]
        %v5301 = vld [vmem:[#allocation23 + $0x58] sm:$0xff]
        %v5302 = vld [vmem:[#allocation23 + $0x60] sm:$0xff]
        %v5303 = vld [vmem:[#allocation23 + $0x68] sm:$0xff]
        %v5304 = vld [vmem:[#allocation23 + $0x70] sm:$0xff]
        %v5305 = vld [vmem:[#allocation23 + $0x78] sm:$0xff]
        %v5306 = vld [vmem:[#allocation25] sm:$0x1]
        %5307 = vmatprep.subr.mxu0 0.0
        %5308 = vmatpush1.msra.mxu0 %v5305
        %5309 = vmatprep.subr.mxu0 0.0
        %5310 = vmatpush1.msra.mxu0 %v5304
        %5311 = vmatprep.subr.mxu0 0.0
        %5312 = vmatpush1.msra.mxu0 %v5303
        %5313 = vmatprep.subr.mxu0 0.0
        %5314 = vmatpush1.msra.mxu0 %v5302
        %5315 = vmatprep.subr.mxu0 0.0
        %5316 = vmatpush1.msra.mxu0 %v5301
        %5317 = vmatprep.subr.mxu0 0.0
        %5318 = vmatpush1.msra.mxu0 %v5300
        %5319 = vmatprep.subr.mxu0 0.0
        %5320 = vmatpush1.msra.mxu0 %v5299
        %5321 = vmatprep.subr.mxu0 0.0
        %5322 = vmatpush1.msra.mxu0 %v5298
        %5323 = vmatprep.subr.mxu0 0.0
        %5324 = vmatpush1.msra.mxu0 %v5297
        %5325 = vmatprep.subr.mxu0 0.0
        %5326 = vmatpush1.msra.mxu0 %v5296
        %5327 = vmatprep.subr.mxu0 0.0
        %5328 = vmatpush1.msra.mxu0 %v5295
        %5329 = vmatprep.subr.mxu0 0.0
        %5330 = vmatpush1.msra.mxu0 %v5294
        %5331 = vmatprep.subr.mxu0 0.0
        %5332 = vmatpush1.msra.mxu0 %v5293
        %5333 = vmatprep.subr.mxu0 0.0
        %5334 = vmatpush1.msra.mxu0 %v5292
        %5335 = vmatprep.subr.mxu0 0.0
        %5336 = vmatpush1.msra.mxu0 %v5291
        %5337 = vmatprep.subr.mxu0 0.0
        %5338 = vmatpush1.msra.mxu0 %v5290
        %5339 = vmatprep.subr.mxu0 0.0
        %5340 = vmatpush2.msra.mxu0 0.0
        %5341 = vmatprep.subr.mxu0 0.0
        %5342 = vmatpush2.msra.mxu0 0.0
        %5343 = vmatprep.subr.mxu0 0.0
        %5344 = vmatpush2.msra.mxu0 0.0
        %5345 = vmatprep.subr.mxu0 0.0
        %5346 = vmatpush2.msra.mxu0 0.0
        %5347 = vmatprep.subr.mxu0 0.0
        %5348 = vmatpush2.msra.mxu0 0.0
        %5349 = vmatprep.subr.mxu0 0.0
        %5350 = vmatpush2.msra.mxu0 0.0
        %5351 = vmatprep.subr.mxu0 0.0
        %5352 = vmatpush2.msra.mxu0 0.0
        %5353 = vmatprep.subr.mxu0 0.0
        %5354 = vmatpush2.msra.mxu0 0.0
        %5355 = vmatprep.subr.mxu0 0.0
        %5356 = vmatpush2.msra.mxu0 0.0
        %5357 = vmatprep.subr.mxu0 0.0
        %5358 = vmatpush2.msra.mxu0 0.0
        %5359 = vmatprep.subr.mxu0 0.0
        %5360 = vmatpush2.msra.mxu0 0.0
        %5361 = vmatprep.subr.mxu0 0.0
        %5362 = vmatpush2.msra.mxu0 0.0
        %5363 = vmatprep.subr.mxu0 0.0
        %5364 = vmatpush2.msra.mxu0 0.0
        %5365 = vmatprep.subr.mxu0 0.0
        %5366 = vmatpush2.msra.mxu0 0.0
        %5367 = vmatprep.subr.mxu0 0.0
        %5368 = vmatpush2.msra.mxu0 0.0
        %5369 = vmatprep.subr.mxu0 0.0
        %5370 = vmatpush2.msra.mxu0 0.0
        %5371 = vmatprep.mubr.f32.mxu0 0.0
        %5372 = vmatmul.mubr.f32.gmra.mxu0 %v5289
        %v5373 = vpop.f32.mrf.mxu0
        %v5374 = vadd.f32 %v5306, %v5373
        %v5375 = vpop.f32.mrf.mxu0
        %5376 = vdwg.mxu0
        %v5377 = vmax.f32 %v5374, 0.0
        %v5378 = vld [vmem:[#allocation26] sm:$0xff]
        %v5379 = vld [vmem:[#allocation26 + $0x8] sm:$0xff]
        %v5380 = vld [vmem:[#allocation26 + $0x10] sm:$0xff]
        %v5381 = vld [vmem:[#allocation26 + $0x18] sm:$0xff]
        %v5382 = vld [vmem:[#allocation26 + $0x20] sm:$0xff]
        %v5383 = vld [vmem:[#allocation26 + $0x28] sm:$0xff]
        %v5384 = vld [vmem:[#allocation26 + $0x30] sm:$0xff]
        %v5385 = vld [vmem:[#allocation26 + $0x38] sm:$0xff]
        %v5386 = vld [vmem:[#allocation26 + $0x40] sm:$0xff]
        %v5387 = vld [vmem:[#allocation26 + $0x48] sm:$0xff]
        %v5388 = vld [vmem:[#allocation26 + $0x50] sm:$0xff]
        %v5389 = vld [vmem:[#allocation26 + $0x58] sm:$0xff]
        %v5390 = vld [vmem:[#allocation26 + $0x60] sm:$0xff]
        %v5391 = vld [vmem:[#allocation26 + $0x68] sm:$0xff]
        %v5392 = vld [vmem:[#allocation26 + $0x70] sm:$0xff]
        %v5393 = vld [vmem:[#allocation26 + $0x78] sm:$0xff]
        %v5394 = vld [vmem:[#allocation28] sm:$0x1]
        %5395 = vmatprep.subr.mxu0 0.0
        %5396 = vmatpush1.msra.mxu0 %v5393
        %5397 = vmatprep.subr.mxu0 0.0
        %5398 = vmatpush1.msra.mxu0 %v5392
        %5399 = vmatprep.subr.mxu0 0.0
        %5400 = vmatpush1.msra.mxu0 %v5391
        %5401 = vmatprep.subr.mxu0 0.0
        %5402 = vmatpush1.msra.mxu0 %v5390
        %5403 = vmatprep.subr.mxu0 0.0
        %5404 = vmatpush1.msra.mxu0 %v5389
        %5405 = vmatprep.subr.mxu0 0.0
        %5406 = vmatpush1.msra.mxu0 %v5388
        %5407 = vmatprep.subr.mxu0 0.0
        %5408 = vmatpush1.msra.mxu0 %v5387
        %5409 = vmatprep.subr.mxu0 0.0
        %5410 = vmatpush1.msra.mxu0 %v5386
        %5411 = vmatprep.subr.mxu0 0.0
        %5412 = vmatpush1.msra.mxu0 %v5385
        %5413 = vmatprep.subr.mxu0 0.0
        %5414 = vmatpush1.msra.mxu0 %v5384
        %5415 = vmatprep.subr.mxu0 0.0
        %5416 = vmatpush1.msra.mxu0 %v5383
        %5417 = vmatprep.subr.mxu0 0.0
        %5418 = vmatpush1.msra.mxu0 %v5382
        %5419 = vmatprep.subr.mxu0 0.0
        %5420 = vmatpush1.msra.mxu0 %v5381
        %5421 = vmatprep.subr.mxu0 0.0
        %5422 = vmatpush1.msra.mxu0 %v5380
        %5423 = vmatprep.subr.mxu0 0.0
        %5424 = vmatpush1.msra.mxu0 %v5379
        %5425 = vmatprep.subr.mxu0 0.0
        %5426 = vmatpush1.msra.mxu0 %v5378
        %5427 = vmatprep.subr.mxu0 0.0
        %5428 = vmatpush2.msra.mxu0 0.0
        %5429 = vmatprep.subr.mxu0 0.0
        %5430 = vmatpush2.msra.mxu0 0.0
        %5431 = vmatprep.subr.mxu0 0.0
        %5432 = vmatpush2.msra.mxu0 0.0
        %5433 = vmatprep.subr.mxu0 0.0
        %5434 = vmatpush2.msra.mxu0 0.0
        %5435 = vmatprep.subr.mxu0 0.0
        %5436 = vmatpush2.msra.mxu0 0.0
        %5437 = vmatprep.subr.mxu0 0.0
        %5438 = vmatpush2.msra.mxu0 0.0
        %5439 = vmatprep.subr.mxu0 0.0
        %5440 = vmatpush2.msra.mxu0 0.0
        %5441 = vmatprep.subr.mxu0 0.0
        %5442 = vmatpush2.msra.mxu0 0.0
        %5443 = vmatprep.subr.mxu0 0.0
        %5444 = vmatpush2.msra.mxu0 0.0
        %5445 = vmatprep.subr.mxu0 0.0
        %5446 = vmatpush2.msra.mxu0 0.0
        %5447 = vmatprep.subr.mxu0 0.0
        %5448 = vmatpush2.msra.mxu0 0.0
        %5449 = vmatprep.subr.mxu0 0.0
        %5450 = vmatpush2.msra.mxu0 0.0
        %5451 = vmatprep.subr.mxu0 0.0
        %5452 = vmatpush2.msra.mxu0 0.0
        %5453 = vmatprep.subr.mxu0 0.0
        %5454 = vmatpush2.msra.mxu0 0.0
        %5455 = vmatprep.subr.mxu0 0.0
        %5456 = vmatpush2.msra.mxu0 0.0
        %5457 = vmatprep.subr.mxu0 0.0
        %5458 = vmatpush2.msra.mxu0 0.0
        %5459 = vmatprep.mubr.f32.mxu0 0.0
        %5460 = vmatmul.mubr.f32.gmra.mxu0 %v5377
        %v5461 = vpop.f32.mrf.mxu0
        %v5462 = vadd.f32 %v5394, %v5461
        %v5463 = vpop.f32.mrf.mxu0
        %5464 = vdwg.mxu0
        %5465 = vst [vmem:[%s790] sm:$0x1] %v5462
        %s5466 = sand.u32 %s412, 1
        %s5467 = scalar_lea.sflag [#allocation4], %s5466
        %s5468 = sand.u32 %s412, 1
        %s5469 = scalar_lea.vmem [#allocation29], %s5468
        // Predicated region
        $region157: #{tpu_custom_call.1} parent=87 // pred_check
          %p5470 = pneg %p422
        $region158: #{tpu_custom_call.1} parent=87 // pred_check_branch
          %5472 = sbr.rel (%p5470) target = $region160
        $region159: #{tpu_custom_call.1} parent=87 // pred_region
          %s5474 = ssub.s32 16, 16
          %5475 = vsyncadd %s5467, %s5474
          %s5476 = smul.addr %s42, 16
          %s5477 = scalar_lea.hbm %s17, %s5476
          %s5479 = sshll.u32 %s5469, 4
          %s5480 = int_to_ptr.vmem [resolvable:$true] %s5479
          %5482 = dma.vmem_to_hbm [thread:$0]  %s5480, 16, %s5477, %s5467
        $region160: #{tpu_custom_call.1} parent=87 // pred_fallthru
          _
      $region88: #{tpu_custom_call.1} parent=5 // pred_fallthru
        _
      %p5483 = scmp.le.s32.totalorder 2, %s37
      // Predicated region
      $region161: #{tpu_custom_call.1} parent=5 // pred_check
        %p5484 = pneg %p5483
      $region162: #{tpu_custom_call.1} parent=5 // pred_check_branch
        %5486 = sbr.rel (%p5484) target = $region164
      $region163: #{tpu_custom_call.1} parent=5 // pred_region
        %s5487 = ssub.s32 %s37, 2
        // Predicated region
        $region165: #{tpu_custom_call.1} parent=163 // pred_check
          %p5488 = pneg %p428
        $region166: #{tpu_custom_call.1} parent=163 // pred_check_branch
          %5490 = sbr.rel (%p5488) target = $region168
        $region167: #{tpu_custom_call.1} parent=163 // pred_region
          %s5491 = sand.u32 %s413, 1
          %s5492 = scalar_lea.sflag [#allocation4], %s5491
          %s5493 = sand.u32 %s413, 1
          %s5494 = scalar_lea.vmem [#allocation29], %s5493
          %5495 = dma.done %s5492, 16
        $region168: #{tpu_custom_call.1} parent=163 // pred_fallthru
          _
      $region164: #{tpu_custom_call.1} parent=5 // pred_fallthru
        _
    $region6: #{tpu_custom_call.1} parent=1 // loop_footer
      %s41 = sadd.s32 1, %s37
    $region7: #{tpu_custom_call.1} parent=1 // loop_footer_branch
      %36 = sbr.rel target = $region3
    $region8: #{tpu_custom_call.1} parent=1 // loop_exit
      _
    %5496 = vsyncpa [#allocation3], 1
    %s5497 = scalar_lea.sflag [#allocation3], 1
    %5498 = vsyncpa %s5497, 1
    %5499 = vsyncpa [#allocation6], 1
    %5500 = vsyncpa [#allocation9], 1
    %5501 = vsyncpa [#allocation12], 1
    %5502 = vsyncpa [#allocation15], 1
    %5503 = vsyncpa [#allocation18], 1
    %5504 = vsyncpa [#allocation21], 1
    %5505 = vsyncpa [#allocation24], 1
    %5506 = vsyncpa [#allocation27], 1
    %5507 = vsyncpa [#allocation4], 1
    %s5508 = scalar_lea.sflag [#allocation4], 1
    %5509 = vsyncpa %s5508, 1

</llo_original>
